<compile_context>
chip_gen: v7x
topology: tpu7x:2x2x1
jax: 0.10.0
libtpu: 0.0.40
codegen_flags: <defaults>
</compile_context>

<pallas_src>
import jax
import jax.numpy as jnp
import numpy as np
from jax.experimental import pallas as pl
from jax.experimental.pallas import tpu as pltpu

_BN_EPS = 1e-5
_LEAKY_SLOPE = 0.01                       # nn.LeakyReLU() default negative_slope
_GATHER_PREC = jax.lax.Precision.HIGHEST  # exact 0/1 tap selection
_CONV_PREC = jax.lax.Precision.DEFAULT    # single-pass bf16 MXU, f32 accumulate
_BLOCK_LANES = 512                        # target lanes (N) per conv-dot block


def _width_tap_matrix(w_in, w_out):
    """[3, W, Wo] 0/1 selection: tap kw of output col wo reads input col
    x = 2*wo + kw - 1; out-of-range taps (padding=1) map to all-zero columns.
    Batch-independent (batch rides on the matmul M axis)."""
    sel = np.zeros((3, w_in, w_out), np.float32)
    for kw in range(3):
        for wo in range(w_out):
            x = 2 * wo + kw - 1
            if 0 <= x < w_in:
                sel[kw, x, wo] = 1.0
    return jnp.asarray(sel)


def _row_blocks(ho, batch, wo, n_cap=_BLOCK_LANES):
    """Static (ho0, n_rows) row blocks so each conv dot has N ~ n_cap lanes."""
    r = max(1, min(ho, n_cap // max(1, batch * wo)))
    blks, s = [], 0
    while s < ho:
        blks.append((s, min(r, ho - s)))
        s += r
    return tuple(blks)


def _make_kernel(geoms, blocks, batch):
    """geoms: tuple of (Cin, H, W, Cout, Ho, Wo) per layer (static)."""
    n_layers = len(geoms)

    def kernel(*refs):
        x_ref = refs[0]                       # [B*(H0+2)*Cin0, W0] padded slab
        out_ref = refs[1 + 4 * n_layers]      # [C_L, Ho_L*B*Wo_L] lane-dense
        scratch = refs[2 + 4 * n_layers:]
        wg_ref, patch_ref = scratch[0], scratch[1]
        if n_layers > 1:
            stage_ref = scratch[2]
            act_refs = scratch[3:]
        else:
            stage_ref = None
            act_refs = ()

        src_ref = x_ref
        for l, (cin, h, w, cout, ho, wo) in enumerate(geoms):
            sel_ref = refs[1 + 4 * l]         # [3, W, Wo] width-tap gather
            w_ref = refs[2 + 4 * l]           # [Cout, 9*Cin], K = (kw, kh, ci)
            g_ref = refs[3 + 4 * l]           # [Cout, 1] BN gamma
            b_ref = refs[4 + 4 * l]           # [Cout, 1] BN beta
            last = l == n_layers - 1
            dense_ref = out_ref if last else stage_ref

            rows_src = batch * (h + 2) * cin
            k_dim = 9 * cin
            n_tot = ho * batch * wo

            # --- width-tap gather: one small MXU dot per kw over the whole
            #     height-padded source slab (sel is batch-independent [W, Wo]).
            src = src_ref[0:rows_src, 0:w]
            for kw in range(3):
                wg_ref[kw, 0:rows_src, 0:wo] = jnp.dot(
                    src, sel_ref[kw],
                    precision=_GATHER_PREC, preferred_element_type=jnp.float32)

            wmat = w_ref[...]

            # --- conv: row-blocked im2col (K = 9*Cin sublanes, N = R*B*Wo
            #     lanes) + ONE MXU dot per block; raw (pre-BN) results land in
            #     the lane-dense dense_ref slab.  Block count is 1-2 here, so
            #     the block loop stays a static Python loop.
            for ho0, r_blk in blocks[l]:
                n_blk = r_blk * batch * wo
                for kw in range(3):
                    kr0 = kw * 3 * cin
                    for r in range(r_blk):
                        for b in range(batch):
                            y0 = (b * (h + 2) + 2 * (ho0 + r)) * cin
                            c0 = (r * batch + b) * wo
                            patch_ref[kr0:kr0 + 3 * cin, c0:c0 + wo] = \
                                wg_ref[kw, y0:y0 + 3 * cin, 0:wo]
                blk = jnp.dot(wmat, patch_ref[0:k_dim, 0:n_blk],
                              precision=_CONV_PREC,
                              preferred_element_type=jnp.float32)
                off = ho0 * batch * wo
                dense_ref[0:cout, off:off + n_blk] = blk

            # --- BatchNorm (train-mode batch stats, two-pass variance) +
            #     affine + LeakyReLU, post-loop over the lane-dense slab.
            v = dense_ref[0:cout, 0:n_tot]
            inv_count = 1.0 / float(n_tot)
            mean = jnp.sum(v, axis=1, keepdims=True) * inv_count
            cent = v - mean
            var = jnp.sum(cent * cent, axis=1, keepdims=True) * inv_count
            scale = g_ref[...] * jax.lax.rsqrt(var + _BN_EPS)
            z = cent * scale + b_ref[...]
            z = jnp.where(z > 0, z, _LEAKY_SLOPE * z)

            if last:
                out_ref[...] = z              # single lane-dense final store
            else:
                nxt = act_refs[l % len(act_refs)]     # ping-pong act slab
                zero_row = jnp.zeros((cout, wo), jnp.float32)
                for b in range(batch):                # zero the 2 height-pad rows
                    base = b * (ho + 2) * cout
                    nxt[base:base + cout, 0:wo] = zero_row
                    top = base + (ho + 1) * cout
                    nxt[top:top + cout, 0:wo] = zero_row
                for r in range(ho):                   # relayout rows for layer l+1
                    for b in range(batch):
                        d0 = (b * (ho + 2) + 1 + r) * cout
                        c0 = (r * batch + b) * wo
                        nxt[d0:d0 + cout, 0:wo] = z[:, c0:c0 + wo]
                src_ref = nxt

    return kernel


def init_img2latent_params(key, hidden_width):
    """Deterministic synthetic params in PyTorch layouts:
    conv weight [Cout, Cin, 3, 3], conv bias [Cout], BN gamma/beta [Cout]."""
    params = []
    cin = 1
    for cout in hidden_width:
        key, k_w, k_b = jax.random.split(key, 3)
        bound = 1.0 / np.sqrt(cin * 9)
        w = jax.random.uniform(k_w, (cout, cin, 3, 3), jnp.float32, -bound, bound)
        b = jax.random.uniform(k_b, (cout,), jnp.float32, -bound, bound)
        params.append((w, b, jnp.ones((cout,), jnp.float32),
                       jnp.zeros((cout,), jnp.float32)))
        cin = cout
    return params


def img2latent_encoder(x_nchw, params):
    """Input [B, 1, L, C] (NCHW) -> output [B, hidden_width[-1], L', C'] (NCHW)."""
    batch, cin0, h0, w0 = (int(d) for d in x_nchw.shape)

    # Static per-layer geometry and row blocking.
    geoms, blocks = [], []
    cin, h, w = cin0, h0, w0
    for wgt, _b, _g, _be in params:
        cout = int(wgt.shape[0])
        ho, wo = (h + 1) // 2, (w + 1) // 2
        geoms.append((cin, h, w, cout, ho, wo))
        blocks.append(_row_blocks(ho, batch, wo))
        cin, h, w = cout, ho, wo
    n_layers = len(geoms)

    # Input -> height-padded (b, y, ci)-row x (x)-lane slab (rows 0/H+1 zero;
    # width padding is folded into the gather matrix).
    x_pad = jnp.pad(x_nchw.astype(jnp.float32), ((0, 0), (0, 0), (1, 1), (0, 0)))
    x_slab = jnp.transpose(x_pad, (0, 2, 1, 3)).reshape(
        batch * (h0 + 2) * cin0, w0)

    inputs = [x_slab]
    for (ci_l, _h, w_l, co_l, _ho, wo_l), (wgt, _bias, gamma, beta) in zip(
            geoms, params):
        # Conv weight [Cout, Cin, kh, kw] -> [Cout, (kw, kh, ci)] (bias cancels
        # under train-mode BN and is not passed).
        wmat = jnp.transpose(wgt, (0, 3, 2, 1)).reshape(co_l, 9 * ci_l)
        inputs += [
            _width_tap_matrix(w_l, wo_l),
            wmat.astype(jnp.float32),
            gamma.reshape(co_l, 1).astype(jnp.float32),
            beta.reshape(co_l, 1).astype(jnp.float32),
        ]

    c_last, ho_last, wo_last = geoms[-1][3], geoms[-1][4], geoms[-1][5]
    out_struct = jax.ShapeDtypeStruct((c_last, ho_last * batch * wo_last),
                                      jnp.float32)

    # Shared / reused scratch (no per-layer region-0 allocations).
    scratch_shapes = [
        (3, max(batch * (g[1] + 2) * g[0] for g in geoms),
            max(g[5] for g in geoms)),                         # width-gathered taps
        (max(9 * g[0] for g in geoms),
         max(r * batch * g[5] for g, bl in zip(geoms, blocks)
             for _, r in bl)),                                 # im2col patch
    ]
    if n_layers > 1:
        inter = geoms[:-1]
        scratch_shapes.append((max(g[3] for g in inter),
                               max(g[4] * batch * g[5] for g in inter)))  # stage
        act_shape = (max(batch * (g[4] + 2) * g[3] for g in inter),
                     max(g[5] for g in inter))
        for _ in range(min(n_layers - 1, 2)):                  # ping-pong slabs
            scratch_shapes.append(act_shape)

    # Per-generation VMEM budget with headroom (v5e/v6e 128 MiB, v7x 64 MiB).
    nbytes = 4 * (sum(int(np.prod(a.shape)) for a in inputs)
                  + int(np.prod(out_struct.shape))
                  + sum(int(np.prod(s)) for s in scratch_shapes))
    try:
        cap = int(pltpu.get_tpu_info().vmem_capacity_bytes)
    except Exception:
        cap = 64 * 1024 * 1024
    vmem_limit = int(min(max(4 * nbytes, 32 * 1024 * 1024), int(0.75 * cap)))

    vmem_spec = pl.BlockSpec(memory_space=pltpu.MemorySpace.VMEM)
    out = pl.pallas_call(
        _make_kernel(tuple(geoms), tuple(blocks), batch),
        out_shape=out_struct,
        in_specs=[vmem_spec] * len(inputs),
        out_specs=vmem_spec,
        scratch_shapes=[pltpu.VMEM(s, jnp.float32) for s in scratch_shapes],
        compiler_params=pltpu.CompilerParams(vmem_limit_bytes=vmem_limit),
    )(*inputs)

    # [C_L, (ho, b, wo)] -> [B, C_L, Ho, Wo]  (tiny final output only).
    out = out.reshape(c_last, ho_last, batch, wo_last)
    return jnp.transpose(out, (2, 0, 1, 3))


def _reference(x_nchw, params):
    """Pure-JAX reference with identical forward semantics (bias included)."""
    x = x_nchw
    for (w, b, g, be) in params:
        y = jax.lax.conv_general_dilated(
            x, w, window_strides=(2, 2), padding=((1, 1), (1, 1)),
            dimension_numbers=('NCHW', 'OIHW', 'NCHW'),
            precision=jax.lax.Precision.HIGHEST)
        y = y + b[None, :, None, None]
        mean = jnp.mean(y, axis=(0, 2, 3), keepdims=True)
        var = jnp.mean(jnp.square(y - mean), axis=(0, 2, 3), keepdims=True)
        z = (y - mean) / jnp.sqrt(var + _BN_EPS) * g[None, :, None, None] \
            + be[None, :, None, None]
        x = jnp.where(z > 0, z, _LEAKY_SLOPE * z)
    return x


if __name__ == "__main__":
    hidden_width = (4, 8)
    key = jax.random.PRNGKey(0)
    kx, kp = jax.random.split(key)

    # PyTorch input convention: [B, 1, L, C]
    x = jax.random.normal(kx, (2, 1, 16, 16), jnp.float32)
    params = init_img2latent_params(kp, hidden_width)

    out = jax.block_until_ready(jax.jit(img2latent_encoder)(x, params))
    assert out.shape == (2, hidden_width[-1], 4, 4), out.shape

    ref = _reference(x, params)
    # Tolerance sized for the intentional single-pass bf16 (DEFAULT precision)
    # MXU conv dots across two layers (review item); genuine layout / indexing
    # / statistics bugs would produce O(1) discrepancies.
    np.testing.assert_allclose(np.asarray(out), np.asarray(ref),
                               rtol=3e-2, atol=3e-2)

    print("KERNEL_OK")
</pallas_src>

<mosaic_0001>
module attributes {stable_mosaic.version = 11 : i64} {
  func.func @kernel(%arg0: memref<36x16xf32, #tpu.memory_space<vmem>>, %arg1: memref<3x16x8xf32, #tpu.memory_space<vmem>>, %arg2: memref<4x9xf32, #tpu.memory_space<vmem>>, %arg3: memref<4x1xf32, #tpu.memory_space<vmem>>, %arg4: memref<4x1xf32, #tpu.memory_space<vmem>>, %arg5: memref<3x8x4xf32, #tpu.memory_space<vmem>>, %arg6: memref<8x36xf32, #tpu.memory_space<vmem>>, %arg7: memref<8x1xf32, #tpu.memory_space<vmem>>, %arg8: memref<8x1xf32, #tpu.memory_space<vmem>>, %arg9: memref<8x32xf32, #tpu.memory_space<vmem>>, %arg10: memref<3x80x8xf32, #tpu.memory_space<vmem>>, %arg11: memref<36x128xf32, #tpu.memory_space<vmem>>, %arg12: memref<4x128xf32, #tpu.memory_space<vmem>>, %arg13: memref<80x8xf32, #tpu.memory_space<vmem>>) attributes {dimension_semantics = [], scalar_prefetch = 0 : i64, scratch_operands = 4 : i64, tpu.core_type = #tpu.core_type<tc>} {
    %c0 = arith.constant 0 : index
    %c0_0 = arith.constant 0 : index
    %0 = vector.load %arg0[%c0, %c0_0] : memref<36x16xf32, #tpu.memory_space<vmem>>, vector<36x16xf32>
    %c0_1 = arith.constant 0 : index
    %c0_2 = arith.constant 0 : index
    %c0_3 = arith.constant 0 : index
    %1 = vector.load %arg1[%c0_1, %c0_2, %c0_3] : memref<3x16x8xf32, #tpu.memory_space<vmem>>, vector<1x16x8xf32>
    %2 = vector.shape_cast %1 : vector<1x16x8xf32> to vector<16x8xf32>
    %cst = arith.constant dense<0.000000e+00> : vector<36x8xf32>
    %3 = tpu.matmul %0, %2, %cst {dimension_numbers = #tpu.dot_dimension_numbers<[1], [0], [0], [1], [0, 0, 1, 1], [], []>, precision = #tpu.contract_precision<fp32>} : vector<36x16xf32>, vector<16x8xf32>, vector<36x8xf32> -> vector<36x8xf32>
    %c0_4 = arith.constant 0 : index
    %c0_5 = arith.constant 0 : index
    %c0_6 = arith.constant 0 : index
    %4 = vector.load %arg10[%c0_4, %c0_5, %c0_6] : memref<3x80x8xf32, #tpu.memory_space<vmem>>, vector<1x36x8xf32>
    %5 = vector.shape_cast %4 : vector<1x36x8xf32> to vector<36x8xf32>
    %6 = vector.shape_cast %3 : vector<36x8xf32> to vector<1x36x8xf32>
    tpu.vector_store %arg10[%c0_4, %c0_5, %c0_6], %6 {strides = array<i32>} : memref<3x80x8xf32, #tpu.memory_space<vmem>>, vector<1x36x8xf32>,
    %c1 = arith.constant 1 : index
    %c0_7 = arith.constant 0 : index
    %c0_8 = arith.constant 0 : index
    %7 = vector.load %arg1[%c1, %c0_7, %c0_8] : memref<3x16x8xf32, #tpu.memory_space<vmem>>, vector<1x16x8xf32>
    %8 = vector.shape_cast %7 : vector<1x16x8xf32> to vector<16x8xf32>
    %cst_9 = arith.constant dense<0.000000e+00> : vector<36x8xf32>
    %9 = tpu.matmul %0, %8, %cst_9 {dimension_numbers = #tpu.dot_dimension_numbers<[1], [0], [0], [1], [0, 0, 1, 1], [], []>, precision = #tpu.contract_precision<fp32>} : vector<36x16xf32>, vector<16x8xf32>, vector<36x8xf32> -> vector<36x8xf32>
    %c1_10 = arith.constant 1 : index
    %c0_11 = arith.constant 0 : index
    %c0_12 = arith.constant 0 : index
    %10 = vector.load %arg10[%c1_10, %c0_11, %c0_12] : memref<3x80x8xf32, #tpu.memory_space<vmem>>, vector<1x36x8xf32>
    %11 = vector.shape_cast %10 : vector<1x36x8xf32> to vector<36x8xf32>
    %12 = vector.shape_cast %9 : vector<36x8xf32> to vector<1x36x8xf32>
    tpu.vector_store %arg10[%c1_10, %c0_11, %c0_12], %12 {strides = array<i32>} : memref<3x80x8xf32, #tpu.memory_space<vmem>>, vector<1x36x8xf32>,
    %c2 = arith.constant 2 : index
    %c0_13 = arith.constant 0 : index
    %c0_14 = arith.constant 0 : index
    %13 = vector.load %arg1[%c2, %c0_13, %c0_14] : memref<3x16x8xf32, #tpu.memory_space<vmem>>, vector<1x16x8xf32>
    %14 = vector.shape_cast %13 : vector<1x16x8xf32> to vector<16x8xf32>
    %cst_15 = arith.constant dense<0.000000e+00> : vector<36x8xf32>
    %15 = tpu.matmul %0, %14, %cst_15 {dimension_numbers = #tpu.dot_dimension_numbers<[1], [0], [0], [1], [0, 0, 1, 1], [], []>, precision = #tpu.contract_precision<fp32>} : vector<36x16xf32>, vector<16x8xf32>, vector<36x8xf32> -> vector<36x8xf32>
    %c2_16 = arith.constant 2 : index
    %c0_17 = arith.constant 0 : index
    %c0_18 = arith.constant 0 : index
    %16 = vector.load %arg10[%c2_16, %c0_17, %c0_18] : memref<3x80x8xf32, #tpu.memory_space<vmem>>, vector<1x36x8xf32>
    %17 = vector.shape_cast %16 : vector<1x36x8xf32> to vector<36x8xf32>
    %18 = vector.shape_cast %15 : vector<36x8xf32> to vector<1x36x8xf32>
    tpu.vector_store %arg10[%c2_16, %c0_17, %c0_18], %18 {strides = array<i32>} : memref<3x80x8xf32, #tpu.memory_space<vmem>>, vector<1x36x8xf32>,
    %c0_19 = arith.constant 0 : index
    %c0_20 = arith.constant 0 : index
    %19 = vector.load %arg2[%c0_19, %c0_20] : memref<4x9xf32, #tpu.memory_space<vmem>>, vector<4x9xf32>
    %c0_21 = arith.constant 0 : index
    %c0_22 = arith.constant 0 : index
    %c0_23 = arith.constant 0 : index
    %20 = vector.load %arg10[%c0_21, %c0_22, %c0_23] : memref<3x80x8xf32, #tpu.memory_space<vmem>>, vector<1x3x8xf32>
    %21 = vector.shape_cast %20 : vector<1x3x8xf32> to vector<3x8xf32>
    %c0_24 = arith.constant 0 : index
    %c0_25 = arith.constant 0 : index
    %22 = vector.load %arg11[%c0_24, %c0_25] : memref<36x128xf32, #tpu.memory_space<vmem>>, vector<3x8xf32>
    tpu.vector_store %arg11[%c0_24, %c0_25], %21 {strides = array<i32>} : memref<36x128xf32, #tpu.memory_space<vmem>>, vector<3x8xf32>,
    %c0_26 = arith.constant 0 : index
    %c18 = arith.constant 18 : index
    %c0_27 = arith.constant 0 : index
    %23 = vector.load %arg10[%c0_26, %c18, %c0_27] : memref<3x80x8xf32, #tpu.memory_space<vmem>>, vector<1x3x8xf32>
    %24 = vector.shape_cast %23 : vector<1x3x8xf32> to vector<3x8xf32>
    %c0_28 = arith.constant 0 : index
    %c8 = arith.constant 8 : index
    %25 = vector.load %arg11[%c0_28, %c8] : memref<36x128xf32, #tpu.memory_space<vmem>>, vector<3x8xf32>
    tpu.vector_store %arg11[%c0_28, %c8], %24 {strides = array<i32>} : memref<36x128xf32, #tpu.memory_space<vmem>>, vector<3x8xf32>,
    %c0_29 = arith.constant 0 : index
    %c2_30 = arith.constant 2 : index
    %c0_31 = arith.constant 0 : index
    %26 = vector.load %arg10[%c0_29, %c2_30, %c0_31] : memref<3x80x8xf32, #tpu.memory_space<vmem>>, vector<1x3x8xf32>
    %27 = vector.shape_cast %26 : vector<1x3x8xf32> to vector<3x8xf32>
    %c0_32 = arith.constant 0 : index
    %c16 = arith.constant 16 : index
    %28 = vector.load %arg11[%c0_32, %c16] : memref<36x128xf32, #tpu.memory_space<vmem>>, vector<3x8xf32>
    tpu.vector_store %arg11[%c0_32, %c16], %27 {strides = array<i32>} : memref<36x128xf32, #tpu.memory_space<vmem>>, vector<3x8xf32>,
    %c0_33 = arith.constant 0 : index
    %c20 = arith.constant 20 : index
    %c0_34 = arith.constant 0 : index
    %29 = vector.load %arg10[%c0_33, %c20, %c0_34] : memref<3x80x8xf32, #tpu.memory_space<vmem>>, vector<1x3x8xf32>
    %30 = vector.shape_cast %29 : vector<1x3x8xf32> to vector<3x8xf32>
    %c0_35 = arith.constant 0 : index
    %c24 = arith.constant 24 : index
    %31 = vector.load %arg11[%c0_35, %c24] : memref<36x128xf32, #tpu.memory_space<vmem>>, vector<3x8xf32>
    tpu.vector_store %arg11[%c0_35, %c24], %30 {strides = array<i32>} : memref<36x128xf32, #tpu.memory_space<vmem>>, vector<3x8xf32>,
    %c0_36 = arith.constant 0 : index
    %c4 = arith.constant 4 : index
    %c0_37 = arith.constant 0 : index
    %32 = vector.load %arg10[%c0_36, %c4, %c0_37] : memref<3x80x8xf32, #tpu.memory_space<vmem>>, vector<1x3x8xf32>
    %33 = vector.shape_cast %32 : vector<1x3x8xf32> to vector<3x8xf32>
    %c0_38 = arith.constant 0 : index
    %c32 = arith.constant 32 : index
    %34 = vector.load %arg11[%c0_38, %c32] : memref<36x128xf32, #tpu.memory_space<vmem>>, vector<3x8xf32>
    tpu.vector_store %arg11[%c0_38, %c32], %33 {strides = array<i32>} : memref<36x128xf32, #tpu.memory_space<vmem>>, vector<3x8xf32>,
    %c0_39 = arith.constant 0 : index
    %c22 = arith.constant 22 : index
    %c0_40 = arith.constant 0 : index
    %35 = vector.load %arg10[%c0_39, %c22, %c0_40] : memref<3x80x8xf32, #tpu.memory_space<vmem>>, vector<1x3x8xf32>
    %36 = vector.shape_cast %35 : vector<1x3x8xf32> to vector<3x8xf32>
    %c0_41 = arith.constant 0 : index
    %c40 = arith.constant 40 : index
    %37 = vector.load %arg11[%c0_41, %c40] : memref<36x128xf32, #tpu.memory_space<vmem>>, vector<3x8xf32>
    tpu.vector_store %arg11[%c0_41, %c40], %36 {strides = array<i32>} : memref<36x128xf32, #tpu.memory_space<vmem>>, vector<3x8xf32>,
    %c0_42 = arith.constant 0 : index
    %c6 = arith.constant 6 : index
    %c0_43 = arith.constant 0 : index
    %38 = vector.load %arg10[%c0_42, %c6, %c0_43] : memref<3x80x8xf32, #tpu.memory_space<vmem>>, vector<1x3x8xf32>
    %39 = vector.shape_cast %38 : vector<1x3x8xf32> to vector<3x8xf32>
    %c0_44 = arith.constant 0 : index
    %c48 = arith.constant 48 : index
    %40 = vector.load %arg11[%c0_44, %c48] : memref<36x128xf32, #tpu.memory_space<vmem>>, vector<3x8xf32>
    tpu.vector_store %arg11[%c0_44, %c48], %39 {strides = array<i32>} : memref<36x128xf32, #tpu.memory_space<vmem>>, vector<3x8xf32>,
    %c0_45 = arith.constant 0 : index
    %c24_46 = arith.constant 24 : index
    %c0_47 = arith.constant 0 : index
    %41 = vector.load %arg10[%c0_45, %c24_46, %c0_47] : memref<3x80x8xf32, #tpu.memory_space<vmem>>, vector<1x3x8xf32>
    %42 = vector.shape_cast %41 : vector<1x3x8xf32> to vector<3x8xf32>
    %c0_48 = arith.constant 0 : index
    %c56 = arith.constant 56 : index
    %43 = vector.load %arg11[%c0_48, %c56] : memref<36x128xf32, #tpu.memory_space<vmem>>, vector<3x8xf32>
    tpu.vector_store %arg11[%c0_48, %c56], %42 {strides = array<i32>} : memref<36x128xf32, #tpu.memory_space<vmem>>, vector<3x8xf32>,
    %c0_49 = arith.constant 0 : index
    %c8_50 = arith.constant 8 : index
    %c0_51 = arith.constant 0 : index
    %44 = vector.load %arg10[%c0_49, %c8_50, %c0_51] : memref<3x80x8xf32, #tpu.memory_space<vmem>>, vector<1x3x8xf32>
    %45 = vector.shape_cast %44 : vector<1x3x8xf32> to vector<3x8xf32>
    %c0_52 = arith.constant 0 : index
    %c64 = arith.constant 64 : index
    %46 = vector.load %arg11[%c0_52, %c64] : memref<36x128xf32, #tpu.memory_space<vmem>>, vector<3x8xf32>
    tpu.vector_store %arg11[%c0_52, %c64], %45 {strides = array<i32>} : memref<36x128xf32, #tpu.memory_space<vmem>>, vector<3x8xf32>,
    %c0_53 = arith.constant 0 : index
    %c26 = arith.constant 26 : index
    %c0_54 = arith.constant 0 : index
    %47 = vector.load %arg10[%c0_53, %c26, %c0_54] : memref<3x80x8xf32, #tpu.memory_space<vmem>>, vector<1x3x8xf32>
    %48 = vector.shape_cast %47 : vector<1x3x8xf32> to vector<3x8xf32>
    %c0_55 = arith.constant 0 : index
    %c72 = arith.constant 72 : index
    %49 = vector.load %arg11[%c0_55, %c72] : memref<36x128xf32, #tpu.memory_space<vmem>>, vector<3x8xf32>
    tpu.vector_store %arg11[%c0_55, %c72], %48 {strides = array<i32>} : memref<36x128xf32, #tpu.memory_space<vmem>>, vector<3x8xf32>,
    %c0_56 = arith.constant 0 : index
    %c10 = arith.constant 10 : index
    %c0_57 = arith.constant 0 : index
    %50 = vector.load %arg10[%c0_56, %c10, %c0_57] : memref<3x80x8xf32, #tpu.memory_space<vmem>>, vector<1x3x8xf32>
    %51 = vector.shape_cast %50 : vector<1x3x8xf32> to vector<3x8xf32>
    %c0_58 = arith.constant 0 : index
    %c80 = arith.constant 80 : index
    %52 = vector.load %arg11[%c0_58, %c80] : memref<36x128xf32, #tpu.memory_space<vmem>>, vector<3x8xf32>
    tpu.vector_store %arg11[%c0_58, %c80], %51 {strides = array<i32>} : memref<36x128xf32, #tpu.memory_space<vmem>>, vector<3x8xf32>,
    %c0_59 = arith.constant 0 : index
    %c28 = arith.constant 28 : index
    %c0_60 = arith.constant 0 : index
    %53 = vector.load %arg10[%c0_59, %c28, %c0_60] : memref<3x80x8xf32, #tpu.memory_space<vmem>>, vector<1x3x8xf32>
    %54 = vector.shape_cast %53 : vector<1x3x8xf32> to vector<3x8xf32>
    %c0_61 = arith.constant 0 : index
    %c88 = arith.constant 88 : index
    %55 = vector.load %arg11[%c0_61, %c88] : memref<36x128xf32, #tpu.memory_space<vmem>>, vector<3x8xf32>
    tpu.vector_store %arg11[%c0_61, %c88], %54 {strides = array<i32>} : memref<36x128xf32, #tpu.memory_space<vmem>>, vector<3x8xf32>,
    %c0_62 = arith.constant 0 : index
    %c12 = arith.constant 12 : index
    %c0_63 = arith.constant 0 : index
    %56 = vector.load %arg10[%c0_62, %c12, %c0_63] : memref<3x80x8xf32, #tpu.memory_space<vmem>>, vector<1x3x8xf32>
    %57 = vector.shape_cast %56 : vector<1x3x8xf32> to vector<3x8xf32>
    %c0_64 = arith.constant 0 : index
    %c96 = arith.constant 96 : index
    %58 = vector.load %arg11[%c0_64, %c96] : memref<36x128xf32, #tpu.memory_space<vmem>>, vector<3x8xf32>
    tpu.vector_store %arg11[%c0_64, %c96], %57 {strides = array<i32>} : memref<36x128xf32, #tpu.memory_space<vmem>>, vector<3x8xf32>,
    %c0_65 = arith.constant 0 : index
    %c30 = arith.constant 30 : index
    %c0_66 = arith.constant 0 : index
    %59 = vector.load %arg10[%c0_65, %c30, %c0_66] : memref<3x80x8xf32, #tpu.memory_space<vmem>>, vector<1x3x8xf32>
    %60 = vector.shape_cast %59 : vector<1x3x8xf32> to vector<3x8xf32>
    %c0_67 = arith.constant 0 : index
    %c104 = arith.constant 104 : index
    %61 = vector.load %arg11[%c0_67, %c104] : memref<36x128xf32, #tpu.memory_space<vmem>>, vector<3x8xf32>
    tpu.vector_store %arg11[%c0_67, %c104], %60 {strides = array<i32>} : memref<36x128xf32, #tpu.memory_space<vmem>>, vector<3x8xf32>,
    %c0_68 = arith.constant 0 : index
    %c14 = arith.constant 14 : index
    %c0_69 = arith.constant 0 : index
    %62 = vector.load %arg10[%c0_68, %c14, %c0_69] : memref<3x80x8xf32, #tpu.memory_space<vmem>>, vector<1x3x8xf32>
    %63 = vector.shape_cast %62 : vector<1x3x8xf32> to vector<3x8xf32>
    %c0_70 = arith.constant 0 : index
    %c112 = arith.constant 112 : index
    %64 = vector.load %arg11[%c0_70, %c112] : memref<36x128xf32, #tpu.memory_space<vmem>>, vector<3x8xf32>
    tpu.vector_store %arg11[%c0_70, %c112], %63 {strides = array<i32>} : memref<36x128xf32, #tpu.memory_space<vmem>>, vector<3x8xf32>,
    %c0_71 = arith.constant 0 : index
    %c32_72 = arith.constant 32 : index
    %c0_73 = arith.constant 0 : index
    %65 = vector.load %arg10[%c0_71, %c32_72, %c0_73] : memref<3x80x8xf32, #tpu.memory_space<vmem>>, vector<1x3x8xf32>
    %66 = vector.shape_cast %65 : vector<1x3x8xf32> to vector<3x8xf32>
    %c0_74 = arith.constant 0 : index
    %c120 = arith.constant 120 : index
    %67 = vector.load %arg11[%c0_74, %c120] : memref<36x128xf32, #tpu.memory_space<vmem>>, vector<3x8xf32>
    tpu.vector_store %arg11[%c0_74, %c120], %66 {strides = array<i32>} : memref<36x128xf32, #tpu.memory_space<vmem>>, vector<3x8xf32>,
    %c1_75 = arith.constant 1 : index
    %c0_76 = arith.constant 0 : index
    %c0_77 = arith.constant 0 : index
    %68 = vector.load %arg10[%c1_75, %c0_76, %c0_77] : memref<3x80x8xf32, #tpu.memory_space<vmem>>, vector<1x3x8xf32>
    %69 = vector.shape_cast %68 : vector<1x3x8xf32> to vector<3x8xf32>
    %c3 = arith.constant 3 : index
    %c0_78 = arith.constant 0 : index
    %70 = vector.load %arg11[%c3, %c0_78] : memref<36x128xf32, #tpu.memory_space<vmem>>, vector<3x8xf32>
    tpu.vector_store %arg11[%c3, %c0_78], %69 {strides = array<i32>} : memref<36x128xf32, #tpu.memory_space<vmem>>, vector<3x8xf32>,
    %c1_79 = arith.constant 1 : index
    %c18_80 = arith.constant 18 : index
    %c0_81 = arith.constant 0 : index
    %71 = vector.load %arg10[%c1_79, %c18_80, %c0_81] : memref<3x80x8xf32, #tpu.memory_space<vmem>>, vector<1x3x8xf32>
    %72 = vector.shape_cast %71 : vector<1x3x8xf32> to vector<3x8xf32>
    %c3_82 = arith.constant 3 : index
    %c8_83 = arith.constant 8 : index
    %73 = vector.load %arg11[%c3_82, %c8_83] : memref<36x128xf32, #tpu.memory_space<vmem>>, vector<3x8xf32>
    tpu.vector_store %arg11[%c3_82, %c8_83], %72 {strides = array<i32>} : memref<36x128xf32, #tpu.memory_space<vmem>>, vector<3x8xf32>,
    %c1_84 = arith.constant 1 : index
    %c2_85 = arith.constant 2 : index
    %c0_86 = arith.constant 0 : index
    %74 = vector.load %arg10[%c1_84, %c2_85, %c0_86] : memref<3x80x8xf32, #tpu.memory_space<vmem>>, vector<1x3x8xf32>
    %75 = vector.shape_cast %74 : vector<1x3x8xf32> to vector<3x8xf32>
    %c3_87 = arith.constant 3 : index
    %c16_88 = arith.constant 16 : index
    %76 = vector.load %arg11[%c3_87, %c16_88] : memref<36x128xf32, #tpu.memory_space<vmem>>, vector<3x8xf32>
    tpu.vector_store %arg11[%c3_87, %c16_88], %75 {strides = array<i32>} : memref<36x128xf32, #tpu.memory_space<vmem>>, vector<3x8xf32>,
    %c1_89 = arith.constant 1 : index
    %c20_90 = arith.constant 20 : index
    %c0_91 = arith.constant 0 : index
    %77 = vector.load %arg10[%c1_89, %c20_90, %c0_91] : memref<3x80x8xf32, #tpu.memory_space<vmem>>, vector<1x3x8xf32>
    %78 = vector.shape_cast %77 : vector<1x3x8xf32> to vector<3x8xf32>
    %c3_92 = arith.constant 3 : index
    %c24_93 = arith.constant 24 : index
    %79 = vector.load %arg11[%c3_92, %c24_93] : memref<36x128xf32, #tpu.memory_space<vmem>>, vector<3x8xf32>
    tpu.vector_store %arg11[%c3_92, %c24_93], %78 {strides = array<i32>} : memref<36x128xf32, #tpu.memory_space<vmem>>, vector<3x8xf32>,
    %c1_94 = arith.constant 1 : index
    %c4_95 = arith.constant 4 : index
    %c0_96 = arith.constant 0 : index
    %80 = vector.load %arg10[%c1_94, %c4_95, %c0_96] : memref<3x80x8xf32, #tpu.memory_space<vmem>>, vector<1x3x8xf32>
    %81 = vector.shape_cast %80 : vector<1x3x8xf32> to vector<3x8xf32>
    %c3_97 = arith.constant 3 : index
    %c32_98 = arith.constant 32 : index
    %82 = vector.load %arg11[%c3_97, %c32_98] : memref<36x128xf32, #tpu.memory_space<vmem>>, vector<3x8xf32>
    tpu.vector_store %arg11[%c3_97, %c32_98], %81 {strides = array<i32>} : memref<36x128xf32, #tpu.memory_space<vmem>>, vector<3x8xf32>,
    %c1_99 = arith.constant 1 : index
    %c22_100 = arith.constant 22 : index
    %c0_101 = arith.constant 0 : index
    %83 = vector.load %arg10[%c1_99, %c22_100, %c0_101] : memref<3x80x8xf32, #tpu.memory_space<vmem>>, vector<1x3x8xf32>
    %84 = vector.shape_cast %83 : vector<1x3x8xf32> to vector<3x8xf32>
    %c3_102 = arith.constant 3 : index
    %c40_103 = arith.constant 40 : index
    %85 = vector.load %arg11[%c3_102, %c40_103] : memref<36x128xf32, #tpu.memory_space<vmem>>, vector<3x8xf32>
    tpu.vector_store %arg11[%c3_102, %c40_103], %84 {strides = array<i32>} : memref<36x128xf32, #tpu.memory_space<vmem>>, vector<3x8xf32>,
    %c1_104 = arith.constant 1 : index
    %c6_105 = arith.constant 6 : index
    %c0_106 = arith.constant 0 : index
    %86 = vector.load %arg10[%c1_104, %c6_105, %c0_106] : memref<3x80x8xf32, #tpu.memory_space<vmem>>, vector<1x3x8xf32>
    %87 = vector.shape_cast %86 : vector<1x3x8xf32> to vector<3x8xf32>
    %c3_107 = arith.constant 3 : index
    %c48_108 = arith.constant 48 : index
    %88 = vector.load %arg11[%c3_107, %c48_108] : memref<36x128xf32, #tpu.memory_space<vmem>>, vector<3x8xf32>
    tpu.vector_store %arg11[%c3_107, %c48_108], %87 {strides = array<i32>} : memref<36x128xf32, #tpu.memory_space<vmem>>, vector<3x8xf32>,
    %c1_109 = arith.constant 1 : index
    %c24_110 = arith.constant 24 : index
    %c0_111 = arith.constant 0 : index
    %89 = vector.load %arg10[%c1_109, %c24_110, %c0_111] : memref<3x80x8xf32, #tpu.memory_space<vmem>>, vector<1x3x8xf32>
    %90 = vector.shape_cast %89 : vector<1x3x8xf32> to vector<3x8xf32>
    %c3_112 = arith.constant 3 : index
    %c56_113 = arith.constant 56 : index
    %91 = vector.load %arg11[%c3_112, %c56_113] : memref<36x128xf32, #tpu.memory_space<vmem>>, vector<3x8xf32>
    tpu.vector_store %arg11[%c3_112, %c56_113], %90 {strides = array<i32>} : memref<36x128xf32, #tpu.memory_space<vmem>>, vector<3x8xf32>,
    %c1_114 = arith.constant 1 : index
    %c8_115 = arith.constant 8 : index
    %c0_116 = arith.constant 0 : index
    %92 = vector.load %arg10[%c1_114, %c8_115, %c0_116] : memref<3x80x8xf32, #tpu.memory_space<vmem>>, vector<1x3x8xf32>
    %93 = vector.shape_cast %92 : vector<1x3x8xf32> to vector<3x8xf32>
    %c3_117 = arith.constant 3 : index
    %c64_118 = arith.constant 64 : index
    %94 = vector.load %arg11[%c3_117, %c64_118] : memref<36x128xf32, #tpu.memory_space<vmem>>, vector<3x8xf32>
    tpu.vector_store %arg11[%c3_117, %c64_118], %93 {strides = array<i32>} : memref<36x128xf32, #tpu.memory_space<vmem>>, vector<3x8xf32>,
    %c1_119 = arith.constant 1 : index
    %c26_120 = arith.constant 26 : index
    %c0_121 = arith.constant 0 : index
    %95 = vector.load %arg10[%c1_119, %c26_120, %c0_121] : memref<3x80x8xf32, #tpu.memory_space<vmem>>, vector<1x3x8xf32>
    %96 = vector.shape_cast %95 : vector<1x3x8xf32> to vector<3x8xf32>
    %c3_122 = arith.constant 3 : index
    %c72_123 = arith.constant 72 : index
    %97 = vector.load %arg11[%c3_122, %c72_123] : memref<36x128xf32, #tpu.memory_space<vmem>>, vector<3x8xf32>
    tpu.vector_store %arg11[%c3_122, %c72_123], %96 {strides = array<i32>} : memref<36x128xf32, #tpu.memory_space<vmem>>, vector<3x8xf32>,
    %c1_124 = arith.constant 1 : index
    %c10_125 = arith.constant 10 : index
    %c0_126 = arith.constant 0 : index
    %98 = vector.load %arg10[%c1_124, %c10_125, %c0_126] : memref<3x80x8xf32, #tpu.memory_space<vmem>>, vector<1x3x8xf32>
    %99 = vector.shape_cast %98 : vector<1x3x8xf32> to vector<3x8xf32>
    %c3_127 = arith.constant 3 : index
    %c80_128 = arith.constant 80 : index
    %100 = vector.load %arg11[%c3_127, %c80_128] : memref<36x128xf32, #tpu.memory_space<vmem>>, vector<3x8xf32>
    tpu.vector_store %arg11[%c3_127, %c80_128], %99 {strides = array<i32>} : memref<36x128xf32, #tpu.memory_space<vmem>>, vector<3x8xf32>,
    %c1_129 = arith.constant 1 : index
    %c28_130 = arith.constant 28 : index
    %c0_131 = arith.constant 0 : index
    %101 = vector.load %arg10[%c1_129, %c28_130, %c0_131] : memref<3x80x8xf32, #tpu.memory_space<vmem>>, vector<1x3x8xf32>
    %102 = vector.shape_cast %101 : vector<1x3x8xf32> to vector<3x8xf32>
    %c3_132 = arith.constant 3 : index
    %c88_133 = arith.constant 88 : index
    %103 = vector.load %arg11[%c3_132, %c88_133] : memref<36x128xf32, #tpu.memory_space<vmem>>, vector<3x8xf32>
    tpu.vector_store %arg11[%c3_132, %c88_133], %102 {strides = array<i32>} : memref<36x128xf32, #tpu.memory_space<vmem>>, vector<3x8xf32>,
    %c1_134 = arith.constant 1 : index
    %c12_135 = arith.constant 12 : index
    %c0_136 = arith.constant 0 : index
    %104 = vector.load %arg10[%c1_134, %c12_135, %c0_136] : memref<3x80x8xf32, #tpu.memory_space<vmem>>, vector<1x3x8xf32>
    %105 = vector.shape_cast %104 : vector<1x3x8xf32> to vector<3x8xf32>
    %c3_137 = arith.constant 3 : index
    %c96_138 = arith.constant 96 : index
    %106 = vector.load %arg11[%c3_137, %c96_138] : memref<36x128xf32, #tpu.memory_space<vmem>>, vector<3x8xf32>
    tpu.vector_store %arg11[%c3_137, %c96_138], %105 {strides = array<i32>} : memref<36x128xf32, #tpu.memory_space<vmem>>, vector<3x8xf32>,
    %c1_139 = arith.constant 1 : index
    %c30_140 = arith.constant 30 : index
    %c0_141 = arith.constant 0 : index
    %107 = vector.load %arg10[%c1_139, %c30_140, %c0_141] : memref<3x80x8xf32, #tpu.memory_space<vmem>>, vector<1x3x8xf32>
    %108 = vector.shape_cast %107 : vector<1x3x8xf32> to vector<3x8xf32>
    %c3_142 = arith.constant 3 : index
    %c104_143 = arith.constant 104 : index
    %109 = vector.load %arg11[%c3_142, %c104_143] : memref<36x128xf32, #tpu.memory_space<vmem>>, vector<3x8xf32>
    tpu.vector_store %arg11[%c3_142, %c104_143], %108 {strides = array<i32>} : memref<36x128xf32, #tpu.memory_space<vmem>>, vector<3x8xf32>,
    %c1_144 = arith.constant 1 : index
    %c14_145 = arith.constant 14 : index
    %c0_146 = arith.constant 0 : index
    %110 = vector.load %arg10[%c1_144, %c14_145, %c0_146] : memref<3x80x8xf32, #tpu.memory_space<vmem>>, vector<1x3x8xf32>
    %111 = vector.shape_cast %110 : vector<1x3x8xf32> to vector<3x8xf32>
    %c3_147 = arith.constant 3 : index
    %c112_148 = arith.constant 112 : index
    %112 = vector.load %arg11[%c3_147, %c112_148] : memref<36x128xf32, #tpu.memory_space<vmem>>, vector<3x8xf32>
    tpu.vector_store %arg11[%c3_147, %c112_148], %111 {strides = array<i32>} : memref<36x128xf32, #tpu.memory_space<vmem>>, vector<3x8xf32>,
    %c1_149 = arith.constant 1 : index
    %c32_150 = arith.constant 32 : index
    %c0_151 = arith.constant 0 : index
    %113 = vector.load %arg10[%c1_149, %c32_150, %c0_151] : memref<3x80x8xf32, #tpu.memory_space<vmem>>, vector<1x3x8xf32>
    %114 = vector.shape_cast %113 : vector<1x3x8xf32> to vector<3x8xf32>
    %c3_152 = arith.constant 3 : index
    %c120_153 = arith.constant 120 : index
    %115 = vector.load %arg11[%c3_152, %c120_153] : memref<36x128xf32, #tpu.memory_space<vmem>>, vector<3x8xf32>
    tpu.vector_store %arg11[%c3_152, %c120_153], %114 {strides = array<i32>} : memref<36x128xf32, #tpu.memory_space<vmem>>, vector<3x8xf32>,
    %c2_154 = arith.constant 2 : index
    %c0_155 = arith.constant 0 : index
    %c0_156 = arith.constant 0 : index
    %116 = vector.load %arg10[%c2_154, %c0_155, %c0_156] : memref<3x80x8xf32, #tpu.memory_space<vmem>>, vector<1x3x8xf32>
    %117 = vector.shape_cast %116 : vector<1x3x8xf32> to vector<3x8xf32>
    %c6_157 = arith.constant 6 : index
    %c0_158 = arith.constant 0 : index
    %118 = vector.load %arg11[%c6_157, %c0_158] : memref<36x128xf32, #tpu.memory_space<vmem>>, vector<3x8xf32>
    tpu.vector_store %arg11[%c6_157, %c0_158], %117 {strides = array<i32>} : memref<36x128xf32, #tpu.memory_space<vmem>>, vector<3x8xf32>,
    %c2_159 = arith.constant 2 : index
    %c18_160 = arith.constant 18 : index
    %c0_161 = arith.constant 0 : index
    %119 = vector.load %arg10[%c2_159, %c18_160, %c0_161] : memref<3x80x8xf32, #tpu.memory_space<vmem>>, vector<1x3x8xf32>
    %120 = vector.shape_cast %119 : vector<1x3x8xf32> to vector<3x8xf32>
    %c6_162 = arith.constant 6 : index
    %c8_163 = arith.constant 8 : index
    %121 = vector.load %arg11[%c6_162, %c8_163] : memref<36x128xf32, #tpu.memory_space<vmem>>, vector<3x8xf32>
    tpu.vector_store %arg11[%c6_162, %c8_163], %120 {strides = array<i32>} : memref<36x128xf32, #tpu.memory_space<vmem>>, vector<3x8xf32>,
    %c2_164 = arith.constant 2 : index
    %c2_165 = arith.constant 2 : index
    %c0_166 = arith.constant 0 : index
    %122 = vector.load %arg10[%c2_164, %c2_165, %c0_166] : memref<3x80x8xf32, #tpu.memory_space<vmem>>, vector<1x3x8xf32>
    %123 = vector.shape_cast %122 : vector<1x3x8xf32> to vector<3x8xf32>
    %c6_167 = arith.constant 6 : index
    %c16_168 = arith.constant 16 : index
    %124 = vector.load %arg11[%c6_167, %c16_168] : memref<36x128xf32, #tpu.memory_space<vmem>>, vector<3x8xf32>
    tpu.vector_store %arg11[%c6_167, %c16_168], %123 {strides = array<i32>} : memref<36x128xf32, #tpu.memory_space<vmem>>, vector<3x8xf32>,
    %c2_169 = arith.constant 2 : index
    %c20_170 = arith.constant 20 : index
    %c0_171 = arith.constant 0 : index
    %125 = vector.load %arg10[%c2_169, %c20_170, %c0_171] : memref<3x80x8xf32, #tpu.memory_space<vmem>>, vector<1x3x8xf32>
    %126 = vector.shape_cast %125 : vector<1x3x8xf32> to vector<3x8xf32>
    %c6_172 = arith.constant 6 : index
    %c24_173 = arith.constant 24 : index
    %127 = vector.load %arg11[%c6_172, %c24_173] : memref<36x128xf32, #tpu.memory_space<vmem>>, vector<3x8xf32>
    tpu.vector_store %arg11[%c6_172, %c24_173], %126 {strides = array<i32>} : memref<36x128xf32, #tpu.memory_space<vmem>>, vector<3x8xf32>,
    %c2_174 = arith.constant 2 : index
    %c4_175 = arith.constant 4 : index
    %c0_176 = arith.constant 0 : index
    %128 = vector.load %arg10[%c2_174, %c4_175, %c0_176] : memref<3x80x8xf32, #tpu.memory_space<vmem>>, vector<1x3x8xf32>
    %129 = vector.shape_cast %128 : vector<1x3x8xf32> to vector<3x8xf32>
    %c6_177 = arith.constant 6 : index
    %c32_178 = arith.constant 32 : index
    %130 = vector.load %arg11[%c6_177, %c32_178] : memref<36x128xf32, #tpu.memory_space<vmem>>, vector<3x8xf32>
    tpu.vector_store %arg11[%c6_177, %c32_178], %129 {strides = array<i32>} : memref<36x128xf32, #tpu.memory_space<vmem>>, vector<3x8xf32>,
    %c2_179 = arith.constant 2 : index
    %c22_180 = arith.constant 22 : index
    %c0_181 = arith.constant 0 : index
    %131 = vector.load %arg10[%c2_179, %c22_180, %c0_181] : memref<3x80x8xf32, #tpu.memory_space<vmem>>, vector<1x3x8xf32>
    %132 = vector.shape_cast %131 : vector<1x3x8xf32> to vector<3x8xf32>
    %c6_182 = arith.constant 6 : index
    %c40_183 = arith.constant 40 : index
    %133 = vector.load %arg11[%c6_182, %c40_183] : memref<36x128xf32, #tpu.memory_space<vmem>>, vector<3x8xf32>
    tpu.vector_store %arg11[%c6_182, %c40_183], %132 {strides = array<i32>} : memref<36x128xf32, #tpu.memory_space<vmem>>, vector<3x8xf32>,
    %c2_184 = arith.constant 2 : index
    %c6_185 = arith.constant 6 : index
    %c0_186 = arith.constant 0 : index
    %134 = vector.load %arg10[%c2_184, %c6_185, %c0_186] : memref<3x80x8xf32, #tpu.memory_space<vmem>>, vector<1x3x8xf32>
    %135 = vector.shape_cast %134 : vector<1x3x8xf32> to vector<3x8xf32>
    %c6_187 = arith.constant 6 : index
    %c48_188 = arith.constant 48 : index
    %136 = vector.load %arg11[%c6_187, %c48_188] : memref<36x128xf32, #tpu.memory_space<vmem>>, vector<3x8xf32>
    tpu.vector_store %arg11[%c6_187, %c48_188], %135 {strides = array<i32>} : memref<36x128xf32, #tpu.memory_space<vmem>>, vector<3x8xf32>,
    %c2_189 = arith.constant 2 : index
    %c24_190 = arith.constant 24 : index
    %c0_191 = arith.constant 0 : index
    %137 = vector.load %arg10[%c2_189, %c24_190, %c0_191] : memref<3x80x8xf32, #tpu.memory_space<vmem>>, vector<1x3x8xf32>
    %138 = vector.shape_cast %137 : vector<1x3x8xf32> to vector<3x8xf32>
    %c6_192 = arith.constant 6 : index
    %c56_193 = arith.constant 56 : index
    %139 = vector.load %arg11[%c6_192, %c56_193] : memref<36x128xf32, #tpu.memory_space<vmem>>, vector<3x8xf32>
    tpu.vector_store %arg11[%c6_192, %c56_193], %138 {strides = array<i32>} : memref<36x128xf32, #tpu.memory_space<vmem>>, vector<3x8xf32>,
    %c2_194 = arith.constant 2 : index
    %c8_195 = arith.constant 8 : index
    %c0_196 = arith.constant 0 : index
    %140 = vector.load %arg10[%c2_194, %c8_195, %c0_196] : memref<3x80x8xf32, #tpu.memory_space<vmem>>, vector<1x3x8xf32>
    %141 = vector.shape_cast %140 : vector<1x3x8xf32> to vector<3x8xf32>
    %c6_197 = arith.constant 6 : index
    %c64_198 = arith.constant 64 : index
    %142 = vector.load %arg11[%c6_197, %c64_198] : memref<36x128xf32, #tpu.memory_space<vmem>>, vector<3x8xf32>
    tpu.vector_store %arg11[%c6_197, %c64_198], %141 {strides = array<i32>} : memref<36x128xf32, #tpu.memory_space<vmem>>, vector<3x8xf32>,
    %c2_199 = arith.constant 2 : index
    %c26_200 = arith.constant 26 : index
    %c0_201 = arith.constant 0 : index
    %143 = vector.load %arg10[%c2_199, %c26_200, %c0_201] : memref<3x80x8xf32, #tpu.memory_space<vmem>>, vector<1x3x8xf32>
    %144 = vector.shape_cast %143 : vector<1x3x8xf32> to vector<3x8xf32>
    %c6_202 = arith.constant 6 : index
    %c72_203 = arith.constant 72 : index
    %145 = vector.load %arg11[%c6_202, %c72_203] : memref<36x128xf32, #tpu.memory_space<vmem>>, vector<3x8xf32>
    tpu.vector_store %arg11[%c6_202, %c72_203], %144 {strides = array<i32>} : memref<36x128xf32, #tpu.memory_space<vmem>>, vector<3x8xf32>,
    %c2_204 = arith.constant 2 : index
    %c10_205 = arith.constant 10 : index
    %c0_206 = arith.constant 0 : index
    %146 = vector.load %arg10[%c2_204, %c10_205, %c0_206] : memref<3x80x8xf32, #tpu.memory_space<vmem>>, vector<1x3x8xf32>
    %147 = vector.shape_cast %146 : vector<1x3x8xf32> to vector<3x8xf32>
    %c6_207 = arith.constant 6 : index
    %c80_208 = arith.constant 80 : index
    %148 = vector.load %arg11[%c6_207, %c80_208] : memref<36x128xf32, #tpu.memory_space<vmem>>, vector<3x8xf32>
    tpu.vector_store %arg11[%c6_207, %c80_208], %147 {strides = array<i32>} : memref<36x128xf32, #tpu.memory_space<vmem>>, vector<3x8xf32>,
    %c2_209 = arith.constant 2 : index
    %c28_210 = arith.constant 28 : index
    %c0_211 = arith.constant 0 : index
    %149 = vector.load %arg10[%c2_209, %c28_210, %c0_211] : memref<3x80x8xf32, #tpu.memory_space<vmem>>, vector<1x3x8xf32>
    %150 = vector.shape_cast %149 : vector<1x3x8xf32> to vector<3x8xf32>
    %c6_212 = arith.constant 6 : index
    %c88_213 = arith.constant 88 : index
    %151 = vector.load %arg11[%c6_212, %c88_213] : memref<36x128xf32, #tpu.memory_space<vmem>>, vector<3x8xf32>
    tpu.vector_store %arg11[%c6_212, %c88_213], %150 {strides = array<i32>} : memref<36x128xf32, #tpu.memory_space<vmem>>, vector<3x8xf32>,
    %c2_214 = arith.constant 2 : index
    %c12_215 = arith.constant 12 : index
    %c0_216 = arith.constant 0 : index
    %152 = vector.load %arg10[%c2_214, %c12_215, %c0_216] : memref<3x80x8xf32, #tpu.memory_space<vmem>>, vector<1x3x8xf32>
    %153 = vector.shape_cast %152 : vector<1x3x8xf32> to vector<3x8xf32>
    %c6_217 = arith.constant 6 : index
    %c96_218 = arith.constant 96 : index
    %154 = vector.load %arg11[%c6_217, %c96_218] : memref<36x128xf32, #tpu.memory_space<vmem>>, vector<3x8xf32>
    tpu.vector_store %arg11[%c6_217, %c96_218], %153 {strides = array<i32>} : memref<36x128xf32, #tpu.memory_space<vmem>>, vector<3x8xf32>,
    %c2_219 = arith.constant 2 : index
    %c30_220 = arith.constant 30 : index
    %c0_221 = arith.constant 0 : index
    %155 = vector.load %arg10[%c2_219, %c30_220, %c0_221] : memref<3x80x8xf32, #tpu.memory_space<vmem>>, vector<1x3x8xf32>
    %156 = vector.shape_cast %155 : vector<1x3x8xf32> to vector<3x8xf32>
    %c6_222 = arith.constant 6 : index
    %c104_223 = arith.constant 104 : index
    %157 = vector.load %arg11[%c6_222, %c104_223] : memref<36x128xf32, #tpu.memory_space<vmem>>, vector<3x8xf32>
    tpu.vector_store %arg11[%c6_222, %c104_223], %156 {strides = array<i32>} : memref<36x128xf32, #tpu.memory_space<vmem>>, vector<3x8xf32>,
    %c2_224 = arith.constant 2 : index
    %c14_225 = arith.constant 14 : index
    %c0_226 = arith.constant 0 : index
    %158 = vector.load %arg10[%c2_224, %c14_225, %c0_226] : memref<3x80x8xf32, #tpu.memory_space<vmem>>, vector<1x3x8xf32>
    %159 = vector.shape_cast %158 : vector<1x3x8xf32> to vector<3x8xf32>
    %c6_227 = arith.constant 6 : index
    %c112_228 = arith.constant 112 : index
    %160 = vector.load %arg11[%c6_227, %c112_228] : memref<36x128xf32, #tpu.memory_space<vmem>>, vector<3x8xf32>
    tpu.vector_store %arg11[%c6_227, %c112_228], %159 {strides = array<i32>} : memref<36x128xf32, #tpu.memory_space<vmem>>, vector<3x8xf32>,
    %c2_229 = arith.constant 2 : index
    %c32_230 = arith.constant 32 : index
    %c0_231 = arith.constant 0 : index
    %161 = vector.load %arg10[%c2_229, %c32_230, %c0_231] : memref<3x80x8xf32, #tpu.memory_space<vmem>>, vector<1x3x8xf32>
    %162 = vector.shape_cast %161 : vector<1x3x8xf32> to vector<3x8xf32>
    %c6_232 = arith.constant 6 : index
    %c120_233 = arith.constant 120 : index
    %163 = vector.load %arg11[%c6_232, %c120_233] : memref<36x128xf32, #tpu.memory_space<vmem>>, vector<3x8xf32>
    tpu.vector_store %arg11[%c6_232, %c120_233], %162 {strides = array<i32>} : memref<36x128xf32, #tpu.memory_space<vmem>>, vector<3x8xf32>,
    %c0_234 = arith.constant 0 : index
    %c0_235 = arith.constant 0 : index
    %164 = vector.load %arg11[%c0_234, %c0_235] : memref<36x128xf32, #tpu.memory_space<vmem>>, vector<9x128xf32>
    %cst_236 = arith.constant dense<0.000000e+00> : vector<4x128xf32>
    %165 = tpu.matmul %19, %164, %cst_236 {dimension_numbers = #tpu.dot_dimension_numbers<[1], [0], [0], [1], [0, 0, 1, 1], [], []>} : vector<4x9xf32>, vector<9x128xf32>, vector<4x128xf32> -> vector<4x128xf32>
    %c0_237 = arith.constant 0 : index
    %c0_238 = arith.constant 0 : index
    %166 = vector.load %arg12[%c0_237, %c0_238] : memref<4x128xf32, #tpu.memory_space<vmem>>, vector<4x128xf32>
    tpu.vector_store %arg12[%c0_237, %c0_238], %165 {strides = array<i32>} : memref<4x128xf32, #tpu.memory_space<vmem>>, vector<4x128xf32>,
    %c0_239 = arith.constant 0 : index
    %c0_240 = arith.constant 0 : index
    %167 = vector.load %arg12[%c0_239, %c0_240] : memref<4x128xf32, #tpu.memory_space<vmem>>, vector<4x128xf32>
    %cst_241 = arith.constant dense<0.000000e+00> : vector<4xf32>
    %168 = vector.multi_reduction <add>, %167, %cst_241 [1] : vector<4x128xf32> to vector<4xf32>
    %169 = vector.shape_cast %168 : vector<4xf32> to vector<4x1xf32>
    %cst_242 = arith.constant 7.812500e-03 : f32
    %170 = vector.broadcast %cst_242 : f32 to vector<4x1xf32>
    %171 = arith.mulf %169, %170 : vector<4x1xf32>
    %172 = vector.broadcast %171 : vector<4x1xf32> to vector<4x128xf32>
    %173 = arith.subf %167, %172 : vector<4x128xf32>
    %174 = arith.mulf %173, %173 : vector<4x128xf32>
    %cst_243 = arith.constant dense<0.000000e+00> : vector<4xf32>
    %175 = vector.multi_reduction <add>, %174, %cst_243 [1] : vector<4x128xf32> to vector<4xf32>
    %176 = vector.shape_cast %175 : vector<4xf32> to vector<4x1xf32>
    %cst_244 = arith.constant 7.812500e-03 : f32
    %177 = vector.broadcast %cst_244 : f32 to vector<4x1xf32>
    %178 = arith.mulf %176, %177 : vector<4x1xf32>
    %c0_245 = arith.constant 0 : index
    %c0_246 = arith.constant 0 : index
    %179 = vector.load %arg3[%c0_245, %c0_246] : memref<4x1xf32, #tpu.memory_space<vmem>>, vector<4x1xf32>
    %cst_247 = arith.constant 9.99999974E-6 : f32
    %180 = vector.broadcast %cst_247 : f32 to vector<4x1xf32>
    %181 = arith.addf %178, %180 : vector<4x1xf32>
    %182 = math.rsqrt %181 : vector<4x1xf32>
    %183 = arith.mulf %179, %182 : vector<4x1xf32>
    %184 = vector.broadcast %183 : vector<4x1xf32> to vector<4x128xf32>
    %185 = arith.mulf %173, %184 : vector<4x128xf32>
    %c0_248 = arith.constant 0 : index
    %c0_249 = arith.constant 0 : index
    %186 = vector.load %arg4[%c0_248, %c0_249] : memref<4x1xf32, #tpu.memory_space<vmem>>, vector<4x1xf32>
    %187 = vector.broadcast %186 : vector<4x1xf32> to vector<4x128xf32>
    %188 = arith.addf %185, %187 : vector<4x128xf32>
    %cst_250 = arith.constant 0.000000e+00 : f32
    %189 = vector.broadcast %cst_250 : f32 to vector<4x128xf32>
    %190 = arith.cmpf ogt, %188, %189 : vector<4x128xf32>
    %cst_251 = arith.constant 0.00999999977 : f32
    %191 = vector.broadcast %cst_251 : f32 to vector<4x128xf32>
    %192 = arith.mulf %191, %188 : vector<4x128xf32>
    %193 = arith.select %190, %188, %192 : vector<4x128xi1>, vector<4x128xf32>
    %cst_252 = arith.constant 0.000000e+00 : f32
    %194 = vector.broadcast %cst_252 : f32 to vector<4x8xf32>
    %c0_253 = arith.constant 0 : index
    %c0_254 = arith.constant 0 : index
    %195 = vector.load %arg13[%c0_253, %c0_254] : memref<80x8xf32, #tpu.memory_space<vmem>>, vector<4x8xf32>
    tpu.vector_store %arg13[%c0_253, %c0_254], %194 {strides = array<i32>} : memref<80x8xf32, #tpu.memory_space<vmem>>, vector<4x8xf32>,
    %c36 = arith.constant 36 : index
    %c0_255 = arith.constant 0 : index
    %196 = vector.load %arg13[%c36, %c0_255] : memref<80x8xf32, #tpu.memory_space<vmem>>, vector<4x8xf32>
    tpu.vector_store %arg13[%c36, %c0_255], %194 {strides = array<i32>} : memref<80x8xf32, #tpu.memory_space<vmem>>, vector<4x8xf32>,
    %c40_256 = arith.constant 40 : index
    %c0_257 = arith.constant 0 : index
    %197 = vector.load %arg13[%c40_256, %c0_257] : memref<80x8xf32, #tpu.memory_space<vmem>>, vector<4x8xf32>
    tpu.vector_store %arg13[%c40_256, %c0_257], %194 {strides = array<i32>} : memref<80x8xf32, #tpu.memory_space<vmem>>, vector<4x8xf32>,
    %c76 = arith.constant 76 : index
    %c0_258 = arith.constant 0 : index
    %198 = vector.load %arg13[%c76, %c0_258] : memref<80x8xf32, #tpu.memory_space<vmem>>, vector<4x8xf32>
    tpu.vector_store %arg13[%c76, %c0_258], %194 {strides = array<i32>} : memref<80x8xf32, #tpu.memory_space<vmem>>, vector<4x8xf32>,
    %199 = vector.extract_strided_slice %193 {offsets = [0, 0], sizes = [4, 8], strides = [1, 1]} : vector<4x128xf32> to vector<4x8xf32>
    %c4_259 = arith.constant 4 : index
    %c0_260 = arith.constant 0 : index
    %200 = vector.load %arg13[%c4_259, %c0_260] : memref<80x8xf32, #tpu.memory_space<vmem>>, vector<4x8xf32>
    tpu.vector_store %arg13[%c4_259, %c0_260], %199 {strides = array<i32>} : memref<80x8xf32, #tpu.memory_space<vmem>>, vector<4x8xf32>,
    %201 = vector.extract_strided_slice %193 {offsets = [0, 8], sizes = [4, 8], strides = [1, 1]} : vector<4x128xf32> to vector<4x8xf32>
    %c44 = arith.constant 44 : index
    %c0_261 = arith.constant 0 : index
    %202 = vector.load %arg13[%c44, %c0_261] : memref<80x8xf32, #tpu.memory_space<vmem>>, vector<4x8xf32>
    tpu.vector_store %arg13[%c44, %c0_261], %201 {strides = array<i32>} : memref<80x8xf32, #tpu.memory_space<vmem>>, vector<4x8xf32>,
    %203 = vector.extract_strided_slice %193 {offsets = [0, 16], sizes = [4, 8], strides = [1, 1]} : vector<4x128xf32> to vector<4x8xf32>
    %c8_262 = arith.constant 8 : index
    %c0_263 = arith.constant 0 : index
    %204 = vector.load %arg13[%c8_262, %c0_263] : memref<80x8xf32, #tpu.memory_space<vmem>>, vector<4x8xf32>
    tpu.vector_store %arg13[%c8_262, %c0_263], %203 {strides = array<i32>} : memref<80x8xf32, #tpu.memory_space<vmem>>, vector<4x8xf32>,
    %205 = vector.extract_strided_slice %193 {offsets = [0, 24], sizes = [4, 8], strides = [1, 1]} : vector<4x128xf32> to vector<4x8xf32>
    %c48_264 = arith.constant 48 : index
    %c0_265 = arith.constant 0 : index
    %206 = vector.load %arg13[%c48_264, %c0_265] : memref<80x8xf32, #tpu.memory_space<vmem>>, vector<4x8xf32>
    tpu.vector_store %arg13[%c48_264, %c0_265], %205 {strides = array<i32>} : memref<80x8xf32, #tpu.memory_space<vmem>>, vector<4x8xf32>,
    %207 = vector.extract_strided_slice %193 {offsets = [0, 32], sizes = [4, 8], strides = [1, 1]} : vector<4x128xf32> to vector<4x8xf32>
    %c12_266 = arith.constant 12 : index
    %c0_267 = arith.constant 0 : index
    %208 = vector.load %arg13[%c12_266, %c0_267] : memref<80x8xf32, #tpu.memory_space<vmem>>, vector<4x8xf32>
    tpu.vector_store %arg13[%c12_266, %c0_267], %207 {strides = array<i32>} : memref<80x8xf32, #tpu.memory_space<vmem>>, vector<4x8xf32>,
    %209 = vector.extract_strided_slice %193 {offsets = [0, 40], sizes = [4, 8], strides = [1, 1]} : vector<4x128xf32> to vector<4x8xf32>
    %c52 = arith.constant 52 : index
    %c0_268 = arith.constant 0 : index
    %210 = vector.load %arg13[%c52, %c0_268] : memref<80x8xf32, #tpu.memory_space<vmem>>, vector<4x8xf32>
    tpu.vector_store %arg13[%c52, %c0_268], %209 {strides = array<i32>} : memref<80x8xf32, #tpu.memory_space<vmem>>, vector<4x8xf32>,
    %211 = vector.extract_strided_slice %193 {offsets = [0, 48], sizes = [4, 8], strides = [1, 1]} : vector<4x128xf32> to vector<4x8xf32>
    %c16_269 = arith.constant 16 : index
    %c0_270 = arith.constant 0 : index
    %212 = vector.load %arg13[%c16_269, %c0_270] : memref<80x8xf32, #tpu.memory_space<vmem>>, vector<4x8xf32>
    tpu.vector_store %arg13[%c16_269, %c0_270], %211 {strides = array<i32>} : memref<80x8xf32, #tpu.memory_space<vmem>>, vector<4x8xf32>,
    %213 = vector.extract_strided_slice %193 {offsets = [0, 56], sizes = [4, 8], strides = [1, 1]} : vector<4x128xf32> to vector<4x8xf32>
    %c56_271 = arith.constant 56 : index
    %c0_272 = arith.constant 0 : index
    %214 = vector.load %arg13[%c56_271, %c0_272] : memref<80x8xf32, #tpu.memory_space<vmem>>, vector<4x8xf32>
    tpu.vector_store %arg13[%c56_271, %c0_272], %213 {strides = array<i32>} : memref<80x8xf32, #tpu.memory_space<vmem>>, vector<4x8xf32>,
    %215 = vector.extract_strided_slice %193 {offsets = [0, 64], sizes = [4, 8], strides = [1, 1]} : vector<4x128xf32> to vector<4x8xf32>
    %c20_273 = arith.constant 20 : index
    %c0_274 = arith.constant 0 : index
    %216 = vector.load %arg13[%c20_273, %c0_274] : memref<80x8xf32, #tpu.memory_space<vmem>>, vector<4x8xf32>
    tpu.vector_store %arg13[%c20_273, %c0_274], %215 {strides = array<i32>} : memref<80x8xf32, #tpu.memory_space<vmem>>, vector<4x8xf32>,
    %217 = vector.extract_strided_slice %193 {offsets = [0, 72], sizes = [4, 8], strides = [1, 1]} : vector<4x128xf32> to vector<4x8xf32>
    %c60 = arith.constant 60 : index
    %c0_275 = arith.constant 0 : index
    %218 = vector.load %arg13[%c60, %c0_275] : memref<80x8xf32, #tpu.memory_space<vmem>>, vector<4x8xf32>
    tpu.vector_store %arg13[%c60, %c0_275], %217 {strides = array<i32>} : memref<80x8xf32, #tpu.memory_space<vmem>>, vector<4x8xf32>,
    %219 = vector.extract_strided_slice %193 {offsets = [0, 80], sizes = [4, 8], strides = [1, 1]} : vector<4x128xf32> to vector<4x8xf32>
    %c24_276 = arith.constant 24 : index
    %c0_277 = arith.constant 0 : index
    %220 = vector.load %arg13[%c24_276, %c0_277] : memref<80x8xf32, #tpu.memory_space<vmem>>, vector<4x8xf32>
    tpu.vector_store %arg13[%c24_276, %c0_277], %219 {strides = array<i32>} : memref<80x8xf32, #tpu.memory_space<vmem>>, vector<4x8xf32>,
    %221 = vector.extract_strided_slice %193 {offsets = [0, 88], sizes = [4, 8], strides = [1, 1]} : vector<4x128xf32> to vector<4x8xf32>
    %c64_278 = arith.constant 64 : index
    %c0_279 = arith.constant 0 : index
    %222 = vector.load %arg13[%c64_278, %c0_279] : memref<80x8xf32, #tpu.memory_space<vmem>>, vector<4x8xf32>
    tpu.vector_store %arg13[%c64_278, %c0_279], %221 {strides = array<i32>} : memref<80x8xf32, #tpu.memory_space<vmem>>, vector<4x8xf32>,
    %223 = vector.extract_strided_slice %193 {offsets = [0, 96], sizes = [4, 8], strides = [1, 1]} : vector<4x128xf32> to vector<4x8xf32>
    %c28_280 = arith.constant 28 : index
    %c0_281 = arith.constant 0 : index
    %224 = vector.load %arg13[%c28_280, %c0_281] : memref<80x8xf32, #tpu.memory_space<vmem>>, vector<4x8xf32>
    tpu.vector_store %arg13[%c28_280, %c0_281], %223 {strides = array<i32>} : memref<80x8xf32, #tpu.memory_space<vmem>>, vector<4x8xf32>,
    %225 = vector.extract_strided_slice %193 {offsets = [0, 104], sizes = [4, 8], strides = [1, 1]} : vector<4x128xf32> to vector<4x8xf32>
    %c68 = arith.constant 68 : index
    %c0_282 = arith.constant 0 : index
    %226 = vector.load %arg13[%c68, %c0_282] : memref<80x8xf32, #tpu.memory_space<vmem>>, vector<4x8xf32>
    tpu.vector_store %arg13[%c68, %c0_282], %225 {strides = array<i32>} : memref<80x8xf32, #tpu.memory_space<vmem>>, vector<4x8xf32>,
    %227 = vector.extract_strided_slice %193 {offsets = [0, 112], sizes = [4, 8], strides = [1, 1]} : vector<4x128xf32> to vector<4x8xf32>
    %c32_283 = arith.constant 32 : index
    %c0_284 = arith.constant 0 : index
    %228 = vector.load %arg13[%c32_283, %c0_284] : memref<80x8xf32, #tpu.memory_space<vmem>>, vector<4x8xf32>
    tpu.vector_store %arg13[%c32_283, %c0_284], %227 {strides = array<i32>} : memref<80x8xf32, #tpu.memory_space<vmem>>, vector<4x8xf32>,
    %229 = vector.extract_strided_slice %193 {offsets = [0, 120], sizes = [4, 8], strides = [1, 1]} : vector<4x128xf32> to vector<4x8xf32>
    %c72_285 = arith.constant 72 : index
    %c0_286 = arith.constant 0 : index
    %230 = vector.load %arg13[%c72_285, %c0_286] : memref<80x8xf32, #tpu.memory_space<vmem>>, vector<4x8xf32>
    tpu.vector_store %arg13[%c72_285, %c0_286], %229 {strides = array<i32>} : memref<80x8xf32, #tpu.memory_space<vmem>>, vector<4x8xf32>,
    %c0_287 = arith.constant 0 : index
    %c0_288 = arith.constant 0 : index
    %231 = vector.load %arg13[%c0_287, %c0_288] : memref<80x8xf32, #tpu.memory_space<vmem>>, vector<80x8xf32>
    %c0_289 = arith.constant 0 : index
    %c0_290 = arith.constant 0 : index
    %c0_291 = arith.constant 0 : index
    %232 = vector.load %arg5[%c0_289, %c0_290, %c0_291] : memref<3x8x4xf32, #tpu.memory_space<vmem>>, vector<1x8x4xf32>
    %233 = vector.shape_cast %232 : vector<1x8x4xf32> to vector<8x4xf32>
    %cst_292 = arith.constant dense<0.000000e+00> : vector<80x4xf32>
    %234 = tpu.matmul %231, %233, %cst_292 {dimension_numbers = #tpu.dot_dimension_numbers<[1], [0], [0], [1], [0, 0, 1, 1], [], []>, precision = #tpu.contract_precision<fp32>} : vector<80x8xf32>, vector<8x4xf32>, vector<80x4xf32> -> vector<80x4xf32>
    %c0_293 = arith.constant 0 : index
    %c0_294 = arith.constant 0 : index
    %c0_295 = arith.constant 0 : index
    %235 = vector.load %arg10[%c0_293, %c0_294, %c0_295] : memref<3x80x8xf32, #tpu.memory_space<vmem>>, vector<1x80x4xf32>
    %236 = vector.shape_cast %235 : vector<1x80x4xf32> to vector<80x4xf32>
    %237 = vector.shape_cast %234 : vector<80x4xf32> to vector<1x80x4xf32>
    tpu.vector_store %arg10[%c0_293, %c0_294, %c0_295], %237 {strides = array<i32>} : memref<3x80x8xf32, #tpu.memory_space<vmem>>, vector<1x80x4xf32>,
    %c1_296 = arith.constant 1 : index
    %c0_297 = arith.constant 0 : index
    %c0_298 = arith.constant 0 : index
    %238 = vector.load %arg5[%c1_296, %c0_297, %c0_298] : memref<3x8x4xf32, #tpu.memory_space<vmem>>, vector<1x8x4xf32>
    %239 = vector.shape_cast %238 : vector<1x8x4xf32> to vector<8x4xf32>
    %cst_299 = arith.constant dense<0.000000e+00> : vector<80x4xf32>
    %240 = tpu.matmul %231, %239, %cst_299 {dimension_numbers = #tpu.dot_dimension_numbers<[1], [0], [0], [1], [0, 0, 1, 1], [], []>, precision = #tpu.contract_precision<fp32>} : vector<80x8xf32>, vector<8x4xf32>, vector<80x4xf32> -> vector<80x4xf32>
    %c1_300 = arith.constant 1 : index
    %c0_301 = arith.constant 0 : index
    %c0_302 = arith.constant 0 : index
    %241 = vector.load %arg10[%c1_300, %c0_301, %c0_302] : memref<3x80x8xf32, #tpu.memory_space<vmem>>, vector<1x80x4xf32>
    %242 = vector.shape_cast %241 : vector<1x80x4xf32> to vector<80x4xf32>
    %243 = vector.shape_cast %240 : vector<80x4xf32> to vector<1x80x4xf32>
    tpu.vector_store %arg10[%c1_300, %c0_301, %c0_302], %243 {strides = array<i32>} : memref<3x80x8xf32, #tpu.memory_space<vmem>>, vector<1x80x4xf32>,
    %c2_303 = arith.constant 2 : index
    %c0_304 = arith.constant 0 : index
    %c0_305 = arith.constant 0 : index
    %244 = vector.load %arg5[%c2_303, %c0_304, %c0_305] : memref<3x8x4xf32, #tpu.memory_space<vmem>>, vector<1x8x4xf32>
    %245 = vector.shape_cast %244 : vector<1x8x4xf32> to vector<8x4xf32>
    %cst_306 = arith.constant dense<0.000000e+00> : vector<80x4xf32>
    %246 = tpu.matmul %231, %245, %cst_306 {dimension_numbers = #tpu.dot_dimension_numbers<[1], [0], [0], [1], [0, 0, 1, 1], [], []>, precision = #tpu.contract_precision<fp32>} : vector<80x8xf32>, vector<8x4xf32>, vector<80x4xf32> -> vector<80x4xf32>
    %c2_307 = arith.constant 2 : index
    %c0_308 = arith.constant 0 : index
    %c0_309 = arith.constant 0 : index
    %247 = vector.load %arg10[%c2_307, %c0_308, %c0_309] : memref<3x80x8xf32, #tpu.memory_space<vmem>>, vector<1x80x4xf32>
    %248 = vector.shape_cast %247 : vector<1x80x4xf32> to vector<80x4xf32>
    %249 = vector.shape_cast %246 : vector<80x4xf32> to vector<1x80x4xf32>
    tpu.vector_store %arg10[%c2_307, %c0_308, %c0_309], %249 {strides = array<i32>} : memref<3x80x8xf32, #tpu.memory_space<vmem>>, vector<1x80x4xf32>,
    %c0_310 = arith.constant 0 : index
    %c0_311 = arith.constant 0 : index
    %250 = vector.load %arg6[%c0_310, %c0_311] : memref<8x36xf32, #tpu.memory_space<vmem>>, vector<8x36xf32>
    %c0_312 = arith.constant 0 : index
    %c0_313 = arith.constant 0 : index
    %c0_314 = arith.constant 0 : index
    %251 = vector.load %arg10[%c0_312, %c0_313, %c0_314] : memref<3x80x8xf32, #tpu.memory_space<vmem>>, vector<1x12x4xf32>
    %252 = vector.shape_cast %251 : vector<1x12x4xf32> to vector<12x4xf32>
    %c0_315 = arith.constant 0 : index
    %c0_316 = arith.constant 0 : index
    %253 = vector.load %arg11[%c0_315, %c0_316] : memref<36x128xf32, #tpu.memory_space<vmem>>, vector<12x4xf32>
    tpu.vector_store %arg11[%c0_315, %c0_316], %252 {strides = array<i32>} : memref<36x128xf32, #tpu.memory_space<vmem>>, vector<12x4xf32>,
    %c0_317 = arith.constant 0 : index
    %c40_318 = arith.constant 40 : index
    %c0_319 = arith.constant 0 : index
    %254 = vector.load %arg10[%c0_317, %c40_318, %c0_319] : memref<3x80x8xf32, #tpu.memory_space<vmem>>, vector<1x12x4xf32>
    %255 = vector.shape_cast %254 : vector<1x12x4xf32> to vector<12x4xf32>
    %c0_320 = arith.constant 0 : index
    %c4_321 = arith.constant 4 : index
    %256 = vector.load %arg11[%c0_320, %c4_321] : memref<36x128xf32, #tpu.memory_space<vmem>>, vector<12x4xf32>
    tpu.vector_store %arg11[%c0_320, %c4_321], %255 {strides = array<i32>} : memref<36x128xf32, #tpu.memory_space<vmem>>, vector<12x4xf32>,
    %c0_322 = arith.constant 0 : index
    %c8_323 = arith.constant 8 : index
    %c0_324 = arith.constant 0 : index
    %257 = vector.load %arg10[%c0_322, %c8_323, %c0_324] : memref<3x80x8xf32, #tpu.memory_space<vmem>>, vector<1x12x4xf32>
    %258 = vector.shape_cast %257 : vector<1x12x4xf32> to vector<12x4xf32>
    %c0_325 = arith.constant 0 : index
    %c8_326 = arith.constant 8 : index
    %259 = vector.load %arg11[%c0_325, %c8_326] : memref<36x128xf32, #tpu.memory_space<vmem>>, vector<12x4xf32>
    tpu.vector_store %arg11[%c0_325, %c8_326], %258 {strides = array<i32>} : memref<36x128xf32, #tpu.memory_space<vmem>>, vector<12x4xf32>,
    %c0_327 = arith.constant 0 : index
    %c48_328 = arith.constant 48 : index
    %c0_329 = arith.constant 0 : index
    %260 = vector.load %arg10[%c0_327, %c48_328, %c0_329] : memref<3x80x8xf32, #tpu.memory_space<vmem>>, vector<1x12x4xf32>
    %261 = vector.shape_cast %260 : vector<1x12x4xf32> to vector<12x4xf32>
    %c0_330 = arith.constant 0 : index
    %c12_331 = arith.constant 12 : index
    %262 = vector.load %arg11[%c0_330, %c12_331] : memref<36x128xf32, #tpu.memory_space<vmem>>, vector<12x4xf32>
    tpu.vector_store %arg11[%c0_330, %c12_331], %261 {strides = array<i32>} : memref<36x128xf32, #tpu.memory_space<vmem>>, vector<12x4xf32>,
    %c0_332 = arith.constant 0 : index
    %c16_333 = arith.constant 16 : index
    %c0_334 = arith.constant 0 : index
    %263 = vector.load %arg10[%c0_332, %c16_333, %c0_334] : memref<3x80x8xf32, #tpu.memory_space<vmem>>, vector<1x12x4xf32>
    %264 = vector.shape_cast %263 : vector<1x12x4xf32> to vector<12x4xf32>
    %c0_335 = arith.constant 0 : index
    %c16_336 = arith.constant 16 : index
    %265 = vector.load %arg11[%c0_335, %c16_336] : memref<36x128xf32, #tpu.memory_space<vmem>>, vector<12x4xf32>
    tpu.vector_store %arg11[%c0_335, %c16_336], %264 {strides = array<i32>} : memref<36x128xf32, #tpu.memory_space<vmem>>, vector<12x4xf32>,
    %c0_337 = arith.constant 0 : index
    %c56_338 = arith.constant 56 : index
    %c0_339 = arith.constant 0 : index
    %266 = vector.load %arg10[%c0_337, %c56_338, %c0_339] : memref<3x80x8xf32, #tpu.memory_space<vmem>>, vector<1x12x4xf32>
    %267 = vector.shape_cast %266 : vector<1x12x4xf32> to vector<12x4xf32>
    %c0_340 = arith.constant 0 : index
    %c20_341 = arith.constant 20 : index
    %268 = vector.load %arg11[%c0_340, %c20_341] : memref<36x128xf32, #tpu.memory_space<vmem>>, vector<12x4xf32>
    tpu.vector_store %arg11[%c0_340, %c20_341], %267 {strides = array<i32>} : memref<36x128xf32, #tpu.memory_space<vmem>>, vector<12x4xf32>,
    %c0_342 = arith.constant 0 : index
    %c24_343 = arith.constant 24 : index
    %c0_344 = arith.constant 0 : index
    %269 = vector.load %arg10[%c0_342, %c24_343, %c0_344] : memref<3x80x8xf32, #tpu.memory_space<vmem>>, vector<1x12x4xf32>
    %270 = vector.shape_cast %269 : vector<1x12x4xf32> to vector<12x4xf32>
    %c0_345 = arith.constant 0 : index
    %c24_346 = arith.constant 24 : index
    %271 = vector.load %arg11[%c0_345, %c24_346] : memref<36x128xf32, #tpu.memory_space<vmem>>, vector<12x4xf32>
    tpu.vector_store %arg11[%c0_345, %c24_346], %270 {strides = array<i32>} : memref<36x128xf32, #tpu.memory_space<vmem>>, vector<12x4xf32>,
    %c0_347 = arith.constant 0 : index
    %c64_348 = arith.constant 64 : index
    %c0_349 = arith.constant 0 : index
    %272 = vector.load %arg10[%c0_347, %c64_348, %c0_349] : memref<3x80x8xf32, #tpu.memory_space<vmem>>, vector<1x12x4xf32>
    %273 = vector.shape_cast %272 : vector<1x12x4xf32> to vector<12x4xf32>
    %c0_350 = arith.constant 0 : index
    %c28_351 = arith.constant 28 : index
    %274 = vector.load %arg11[%c0_350, %c28_351] : memref<36x128xf32, #tpu.memory_space<vmem>>, vector<12x4xf32>
    tpu.vector_store %arg11[%c0_350, %c28_351], %273 {strides = array<i32>} : memref<36x128xf32, #tpu.memory_space<vmem>>, vector<12x4xf32>,
    %c1_352 = arith.constant 1 : index
    %c0_353 = arith.constant 0 : index
    %c0_354 = arith.constant 0 : index
    %275 = vector.load %arg10[%c1_352, %c0_353, %c0_354] : memref<3x80x8xf32, #tpu.memory_space<vmem>>, vector<1x12x4xf32>
    %276 = vector.shape_cast %275 : vector<1x12x4xf32> to vector<12x4xf32>
    %c12_355 = arith.constant 12 : index
    %c0_356 = arith.constant 0 : index
    %277 = vector.load %arg11[%c12_355, %c0_356] : memref<36x128xf32, #tpu.memory_space<vmem>>, vector<12x4xf32>
    tpu.vector_store %arg11[%c12_355, %c0_356], %276 {strides = array<i32>} : memref<36x128xf32, #tpu.memory_space<vmem>>, vector<12x4xf32>,
    %c1_357 = arith.constant 1 : index
    %c40_358 = arith.constant 40 : index
    %c0_359 = arith.constant 0 : index
    %278 = vector.load %arg10[%c1_357, %c40_358, %c0_359] : memref<3x80x8xf32, #tpu.memory_space<vmem>>, vector<1x12x4xf32>
    %279 = vector.shape_cast %278 : vector<1x12x4xf32> to vector<12x4xf32>
    %c12_360 = arith.constant 12 : index
    %c4_361 = arith.constant 4 : index
    %280 = vector.load %arg11[%c12_360, %c4_361] : memref<36x128xf32, #tpu.memory_space<vmem>>, vector<12x4xf32>
    tpu.vector_store %arg11[%c12_360, %c4_361], %279 {strides = array<i32>} : memref<36x128xf32, #tpu.memory_space<vmem>>, vector<12x4xf32>,
    %c1_362 = arith.constant 1 : index
    %c8_363 = arith.constant 8 : index
    %c0_364 = arith.constant 0 : index
    %281 = vector.load %arg10[%c1_362, %c8_363, %c0_364] : memref<3x80x8xf32, #tpu.memory_space<vmem>>, vector<1x12x4xf32>
    %282 = vector.shape_cast %281 : vector<1x12x4xf32> to vector<12x4xf32>
    %c12_365 = arith.constant 12 : index
    %c8_366 = arith.constant 8 : index
    %283 = vector.load %arg11[%c12_365, %c8_366] : memref<36x128xf32, #tpu.memory_space<vmem>>, vector<12x4xf32>
    tpu.vector_store %arg11[%c12_365, %c8_366], %282 {strides = array<i32>} : memref<36x128xf32, #tpu.memory_space<vmem>>, vector<12x4xf32>,
    %c1_367 = arith.constant 1 : index
    %c48_368 = arith.constant 48 : index
    %c0_369 = arith.constant 0 : index
    %284 = vector.load %arg10[%c1_367, %c48_368, %c0_369] : memref<3x80x8xf32, #tpu.memory_space<vmem>>, vector<1x12x4xf32>
    %285 = vector.shape_cast %284 : vector<1x12x4xf32> to vector<12x4xf32>
    %c12_370 = arith.constant 12 : index
    %c12_371 = arith.constant 12 : index
    %286 = vector.load %arg11[%c12_370, %c12_371] : memref<36x128xf32, #tpu.memory_space<vmem>>, vector<12x4xf32>
    tpu.vector_store %arg11[%c12_370, %c12_371], %285 {strides = array<i32>} : memref<36x128xf32, #tpu.memory_space<vmem>>, vector<12x4xf32>,
    %c1_372 = arith.constant 1 : index
    %c16_373 = arith.constant 16 : index
    %c0_374 = arith.constant 0 : index
    %287 = vector.load %arg10[%c1_372, %c16_373, %c0_374] : memref<3x80x8xf32, #tpu.memory_space<vmem>>, vector<1x12x4xf32>
    %288 = vector.shape_cast %287 : vector<1x12x4xf32> to vector<12x4xf32>
    %c12_375 = arith.constant 12 : index
    %c16_376 = arith.constant 16 : index
    %289 = vector.load %arg11[%c12_375, %c16_376] : memref<36x128xf32, #tpu.memory_space<vmem>>, vector<12x4xf32>
    tpu.vector_store %arg11[%c12_375, %c16_376], %288 {strides = array<i32>} : memref<36x128xf32, #tpu.memory_space<vmem>>, vector<12x4xf32>,
    %c1_377 = arith.constant 1 : index
    %c56_378 = arith.constant 56 : index
    %c0_379 = arith.constant 0 : index
    %290 = vector.load %arg10[%c1_377, %c56_378, %c0_379] : memref<3x80x8xf32, #tpu.memory_space<vmem>>, vector<1x12x4xf32>
    %291 = vector.shape_cast %290 : vector<1x12x4xf32> to vector<12x4xf32>
    %c12_380 = arith.constant 12 : index
    %c20_381 = arith.constant 20 : index
    %292 = vector.load %arg11[%c12_380, %c20_381] : memref<36x128xf32, #tpu.memory_space<vmem>>, vector<12x4xf32>
    tpu.vector_store %arg11[%c12_380, %c20_381], %291 {strides = array<i32>} : memref<36x128xf32, #tpu.memory_space<vmem>>, vector<12x4xf32>,
    %c1_382 = arith.constant 1 : index
    %c24_383 = arith.constant 24 : index
    %c0_384 = arith.constant 0 : index
    %293 = vector.load %arg10[%c1_382, %c24_383, %c0_384] : memref<3x80x8xf32, #tpu.memory_space<vmem>>, vector<1x12x4xf32>
    %294 = vector.shape_cast %293 : vector<1x12x4xf32> to vector<12x4xf32>
    %c12_385 = arith.constant 12 : index
    %c24_386 = arith.constant 24 : index
    %295 = vector.load %arg11[%c12_385, %c24_386] : memref<36x128xf32, #tpu.memory_space<vmem>>, vector<12x4xf32>
    tpu.vector_store %arg11[%c12_385, %c24_386], %294 {strides = array<i32>} : memref<36x128xf32, #tpu.memory_space<vmem>>, vector<12x4xf32>,
    %c1_387 = arith.constant 1 : index
    %c64_388 = arith.constant 64 : index
    %c0_389 = arith.constant 0 : index
    %296 = vector.load %arg10[%c1_387, %c64_388, %c0_389] : memref<3x80x8xf32, #tpu.memory_space<vmem>>, vector<1x12x4xf32>
    %297 = vector.shape_cast %296 : vector<1x12x4xf32> to vector<12x4xf32>
    %c12_390 = arith.constant 12 : index
    %c28_391 = arith.constant 28 : index
    %298 = vector.load %arg11[%c12_390, %c28_391] : memref<36x128xf32, #tpu.memory_space<vmem>>, vector<12x4xf32>
    tpu.vector_store %arg11[%c12_390, %c28_391], %297 {strides = array<i32>} : memref<36x128xf32, #tpu.memory_space<vmem>>, vector<12x4xf32>,
    %c2_392 = arith.constant 2 : index
    %c0_393 = arith.constant 0 : index
    %c0_394 = arith.constant 0 : index
    %299 = vector.load %arg10[%c2_392, %c0_393, %c0_394] : memref<3x80x8xf32, #tpu.memory_space<vmem>>, vector<1x12x4xf32>
    %300 = vector.shape_cast %299 : vector<1x12x4xf32> to vector<12x4xf32>
    %c24_395 = arith.constant 24 : index
    %c0_396 = arith.constant 0 : index
    %301 = vector.load %arg11[%c24_395, %c0_396] : memref<36x128xf32, #tpu.memory_space<vmem>>, vector<12x4xf32>
    tpu.vector_store %arg11[%c24_395, %c0_396], %300 {strides = array<i32>} : memref<36x128xf32, #tpu.memory_space<vmem>>, vector<12x4xf32>,
    %c2_397 = arith.constant 2 : index
    %c40_398 = arith.constant 40 : index
    %c0_399 = arith.constant 0 : index
    %302 = vector.load %arg10[%c2_397, %c40_398, %c0_399] : memref<3x80x8xf32, #tpu.memory_space<vmem>>, vector<1x12x4xf32>
    %303 = vector.shape_cast %302 : vector<1x12x4xf32> to vector<12x4xf32>
    %c24_400 = arith.constant 24 : index
    %c4_401 = arith.constant 4 : index
    %304 = vector.load %arg11[%c24_400, %c4_401] : memref<36x128xf32, #tpu.memory_space<vmem>>, vector<12x4xf32>
    tpu.vector_store %arg11[%c24_400, %c4_401], %303 {strides = array<i32>} : memref<36x128xf32, #tpu.memory_space<vmem>>, vector<12x4xf32>,
    %c2_402 = arith.constant 2 : index
    %c8_403 = arith.constant 8 : index
    %c0_404 = arith.constant 0 : index
    %305 = vector.load %arg10[%c2_402, %c8_403, %c0_404] : memref<3x80x8xf32, #tpu.memory_space<vmem>>, vector<1x12x4xf32>
    %306 = vector.shape_cast %305 : vector<1x12x4xf32> to vector<12x4xf32>
    %c24_405 = arith.constant 24 : index
    %c8_406 = arith.constant 8 : index
    %307 = vector.load %arg11[%c24_405, %c8_406] : memref<36x128xf32, #tpu.memory_space<vmem>>, vector<12x4xf32>
    tpu.vector_store %arg11[%c24_405, %c8_406], %306 {strides = array<i32>} : memref<36x128xf32, #tpu.memory_space<vmem>>, vector<12x4xf32>,
    %c2_407 = arith.constant 2 : index
    %c48_408 = arith.constant 48 : index
    %c0_409 = arith.constant 0 : index
    %308 = vector.load %arg10[%c2_407, %c48_408, %c0_409] : memref<3x80x8xf32, #tpu.memory_space<vmem>>, vector<1x12x4xf32>
    %309 = vector.shape_cast %308 : vector<1x12x4xf32> to vector<12x4xf32>
    %c24_410 = arith.constant 24 : index
    %c12_411 = arith.constant 12 : index
    %310 = vector.load %arg11[%c24_410, %c12_411] : memref<36x128xf32, #tpu.memory_space<vmem>>, vector<12x4xf32>
    tpu.vector_store %arg11[%c24_410, %c12_411], %309 {strides = array<i32>} : memref<36x128xf32, #tpu.memory_space<vmem>>, vector<12x4xf32>,
    %c2_412 = arith.constant 2 : index
    %c16_413 = arith.constant 16 : index
    %c0_414 = arith.constant 0 : index
    %311 = vector.load %arg10[%c2_412, %c16_413, %c0_414] : memref<3x80x8xf32, #tpu.memory_space<vmem>>, vector<1x12x4xf32>
    %312 = vector.shape_cast %311 : vector<1x12x4xf32> to vector<12x4xf32>
    %c24_415 = arith.constant 24 : index
    %c16_416 = arith.constant 16 : index
    %313 = vector.load %arg11[%c24_415, %c16_416] : memref<36x128xf32, #tpu.memory_space<vmem>>, vector<12x4xf32>
    tpu.vector_store %arg11[%c24_415, %c16_416], %312 {strides = array<i32>} : memref<36x128xf32, #tpu.memory_space<vmem>>, vector<12x4xf32>,
    %c2_417 = arith.constant 2 : index
    %c56_418 = arith.constant 56 : index
    %c0_419 = arith.constant 0 : index
    %314 = vector.load %arg10[%c2_417, %c56_418, %c0_419] : memref<3x80x8xf32, #tpu.memory_space<vmem>>, vector<1x12x4xf32>
    %315 = vector.shape_cast %314 : vector<1x12x4xf32> to vector<12x4xf32>
    %c24_420 = arith.constant 24 : index
    %c20_421 = arith.constant 20 : index
    %316 = vector.load %arg11[%c24_420, %c20_421] : memref<36x128xf32, #tpu.memory_space<vmem>>, vector<12x4xf32>
    tpu.vector_store %arg11[%c24_420, %c20_421], %315 {strides = array<i32>} : memref<36x128xf32, #tpu.memory_space<vmem>>, vector<12x4xf32>,
    %c2_422 = arith.constant 2 : index
    %c24_423 = arith.constant 24 : index
    %c0_424 = arith.constant 0 : index
    %317 = vector.load %arg10[%c2_422, %c24_423, %c0_424] : memref<3x80x8xf32, #tpu.memory_space<vmem>>, vector<1x12x4xf32>
    %318 = vector.shape_cast %317 : vector<1x12x4xf32> to vector<12x4xf32>
    %c24_425 = arith.constant 24 : index
    %c24_426 = arith.constant 24 : index
    %319 = vector.load %arg11[%c24_425, %c24_426] : memref<36x128xf32, #tpu.memory_space<vmem>>, vector<12x4xf32>
    tpu.vector_store %arg11[%c24_425, %c24_426], %318 {strides = array<i32>} : memref<36x128xf32, #tpu.memory_space<vmem>>, vector<12x4xf32>,
    %c2_427 = arith.constant 2 : index
    %c64_428 = arith.constant 64 : index
    %c0_429 = arith.constant 0 : index
    %320 = vector.load %arg10[%c2_427, %c64_428, %c0_429] : memref<3x80x8xf32, #tpu.memory_space<vmem>>, vector<1x12x4xf32>
    %321 = vector.shape_cast %320 : vector<1x12x4xf32> to vector<12x4xf32>
    %c24_430 = arith.constant 24 : index
    %c28_431 = arith.constant 28 : index
    %322 = vector.load %arg11[%c24_430, %c28_431] : memref<36x128xf32, #tpu.memory_space<vmem>>, vector<12x4xf32>
    tpu.vector_store %arg11[%c24_430, %c28_431], %321 {strides = array<i32>} : memref<36x128xf32, #tpu.memory_space<vmem>>, vector<12x4xf32>,
    %c0_432 = arith.constant 0 : index
    %c0_433 = arith.constant 0 : index
    %323 = vector.load %arg11[%c0_432, %c0_433] : memref<36x128xf32, #tpu.memory_space<vmem>>, vector<36x32xf32>
    %cst_434 = arith.constant dense<0.000000e+00> : vector<8x32xf32>
    %324 = tpu.matmul %250, %323, %cst_434 {dimension_numbers = #tpu.dot_dimension_numbers<[1], [0], [0], [1], [0, 0, 1, 1], [], []>} : vector<8x36xf32>, vector<36x32xf32>, vector<8x32xf32> -> vector<8x32xf32>
    %c0_435 = arith.constant 0 : index
    %c0_436 = arith.constant 0 : index
    %325 = vector.load %arg9[%c0_435, %c0_436] : memref<8x32xf32, #tpu.memory_space<vmem>>, vector<8x32xf32>
    tpu.vector_store %arg9[%c0_435, %c0_436], %324 {strides = array<i32>} : memref<8x32xf32, #tpu.memory_space<vmem>>, vector<8x32xf32>,
    %c0_437 = arith.constant 0 : index
    %c0_438 = arith.constant 0 : index
    %326 = vector.load %arg9[%c0_437, %c0_438] : memref<8x32xf32, #tpu.memory_space<vmem>>, vector<8x32xf32>
    %cst_439 = arith.constant dense<0.000000e+00> : vector<8xf32>
    %327 = vector.multi_reduction <add>, %326, %cst_439 [1] : vector<8x32xf32> to vector<8xf32>
    %328 = vector.shape_cast %327 : vector<8xf32> to vector<8x1xf32>
    %cst_440 = arith.constant 3.125000e-02 : f32
    %329 = vector.broadcast %cst_440 : f32 to vector<8x1xf32>
    %330 = arith.mulf %328, %329 : vector<8x1xf32>
    %331 = vector.broadcast %330 : vector<8x1xf32> to vector<8x32xf32>
    %332 = arith.subf %326, %331 : vector<8x32xf32>
    %333 = arith.mulf %332, %332 : vector<8x32xf32>
    %cst_441 = arith.constant dense<0.000000e+00> : vector<8xf32>
    %334 = vector.multi_reduction <add>, %333, %cst_441 [1] : vector<8x32xf32> to vector<8xf32>
    %335 = vector.shape_cast %334 : vector<8xf32> to vector<8x1xf32>
    %cst_442 = arith.constant 3.125000e-02 : f32
    %336 = vector.broadcast %cst_442 : f32 to vector<8x1xf32>
    %337 = arith.mulf %335, %336 : vector<8x1xf32>
    %c0_443 = arith.constant 0 : index
    %c0_444 = arith.constant 0 : index
    %338 = vector.load %arg7[%c0_443, %c0_444] : memref<8x1xf32, #tpu.memory_space<vmem>>, vector<8x1xf32>
    %cst_445 = arith.constant 9.99999974E-6 : f32
    %339 = vector.broadcast %cst_445 : f32 to vector<8x1xf32>
    %340 = arith.addf %337, %339 : vector<8x1xf32>
    %341 = math.rsqrt %340 : vector<8x1xf32>
    %342 = arith.mulf %338, %341 : vector<8x1xf32>
    %343 = vector.broadcast %342 : vector<8x1xf32> to vector<8x32xf32>
    %344 = arith.mulf %332, %343 : vector<8x32xf32>
    %c0_446 = arith.constant 0 : index
    %c0_447 = arith.constant 0 : index
    %345 = vector.load %arg8[%c0_446, %c0_447] : memref<8x1xf32, #tpu.memory_space<vmem>>, vector<8x1xf32>
    %346 = vector.broadcast %345 : vector<8x1xf32> to vector<8x32xf32>
    %347 = arith.addf %344, %346 : vector<8x32xf32>
    %cst_448 = arith.constant 0.000000e+00 : f32
    %348 = vector.broadcast %cst_448 : f32 to vector<8x32xf32>
    %349 = arith.cmpf ogt, %347, %348 : vector<8x32xf32>
    %cst_449 = arith.constant 0.00999999977 : f32
    %350 = vector.broadcast %cst_449 : f32 to vector<8x32xf32>
    %351 = arith.mulf %350, %347 : vector<8x32xf32>
    %352 = arith.select %349, %347, %351 : vector<8x32xi1>, vector<8x32xf32>
    %c0_450 = arith.constant 0 : index
    %c0_451 = arith.constant 0 : index
    %353 = vector.load %arg9[%c0_450, %c0_451] : memref<8x32xf32, #tpu.memory_space<vmem>>, vector<8x32xf32>
    tpu.vector_store %arg9[%c0_450, %c0_451], %352 {strides = array<i32>} : memref<8x32xf32, #tpu.memory_space<vmem>>, vector<8x32xf32>,
    return
  }
}

</mosaic_0001>

<llo_original>
// kernel: img2latent_encoder.1
$region0: #{img2latent_encoder.1}
  #allocation0 [shape = 'u32[]', space=smem, size = 0x4, offset = 0x4, fixed_abs, tag = 'smem constant byte address 0x4 - core index']
  #allocation1 [shape = 'u32[144,128]{1,0:T(1,128)}', space=vmem, size = 0x12000, scoped, tag = 'internal scratch']
  #allocation2 [shape = 'f32[3,80,8]{2,1,0:T(8,128)}', space=vmem, size = 0x1e000, scoped, tag = 'scratch operand']
  #allocation3 [shape = 'f32[36,128]{1,0:T(8,128)}', space=vmem, size = 0x5000, scoped, tag = 'scratch operand']
  #allocation4 [shape = 'f32[4,128]{1,0:T(4,128)}', space=vmem, size = 0x800, scoped, tag = 'scratch operand']
  #allocation5 [shape = 'f32[80,8]{1,0:T(8,128)}', space=vmem, size = 0xa000, scoped, tag = 'scratch operand']
  %s0 = inlined_call_operand.vmem [shape: f32[36,16], index: 0, kind: input, shape index: {}]
  %s1 = inlined_call_operand.vmem [shape: f32[3,16,8], index: 1, kind: input, shape index: {}]
  %s2 = inlined_call_operand.vmem [shape: f32[4,9], index: 2, kind: input, shape index: {}]
  %s3 = inlined_call_operand.vmem [shape: f32[4,1], index: 3, kind: input, shape index: {}]
  %s4 = inlined_call_operand.vmem [shape: f32[4,1], index: 4, kind: input, shape index: {}]
  %s5 = inlined_call_operand.vmem [shape: f32[3,8,4], index: 5, kind: input, shape index: {}]
  %s6 = inlined_call_operand.vmem [shape: f32[8,36], index: 6, kind: input, shape index: {}]
  %s7 = inlined_call_operand.vmem [shape: f32[8,1], index: 7, kind: input, shape index: {}]
  %s8 = inlined_call_operand.vmem [shape: f32[8,1], index: 8, kind: input, shape index: {}]
  %s9 = inlined_call_operand.vmem [shape: f32[8,32], index: 9, kind: output, shape index: {}]
  %s10 = sld [smem:[#allocation0]]
  $region46: #{img2latent_encoder.1} parent=0
    _
  %s12 = ssub.s32 1, %s10
  %s13 = scalar_select 0, %s12, %s10
  // Predicated region
  $region2: #{img2latent_encoder.1} parent=0 // pred_check
    _
  $region3: #{img2latent_encoder.1} parent=0 // pred_check_branch
    %15 = sbr.rel (0) target = $region5
  $region4: #{img2latent_encoder.1} parent=0 // pred_region
    _
  $region5: #{img2latent_encoder.1} parent=0 // pred_fallthru
    _
  // Predicated region
  $region6: #{img2latent_encoder.1} parent=0 // pred_check
    _
  $region7: #{img2latent_encoder.1} parent=0 // pred_check_branch
    %17 = sbr.rel (0) target = $region9
  $region8: #{img2latent_encoder.1} parent=0 // pred_region
    _
  $region9: #{img2latent_encoder.1} parent=0 // pred_fallthru
    _
  // Predicated region
  $region10: #{img2latent_encoder.1} parent=0 // pred_check
    _
  $region11: #{img2latent_encoder.1} parent=0 // pred_check_branch
    %19 = sbr.rel (0) target = $region13
  $region12: #{img2latent_encoder.1} parent=0 // pred_region
    _
  $region13: #{img2latent_encoder.1} parent=0 // pred_fallthru
    _
  // Predicated region
  $region14: #{img2latent_encoder.1} parent=0 // pred_check
    _
  $region15: #{img2latent_encoder.1} parent=0 // pred_check_branch
    %21 = sbr.rel (0) target = $region17
  $region16: #{img2latent_encoder.1} parent=0 // pred_region
    _
  $region17: #{img2latent_encoder.1} parent=0 // pred_fallthru
    _
  // Predicated region
  $region18: #{img2latent_encoder.1} parent=0 // pred_check
    _
  $region19: #{img2latent_encoder.1} parent=0 // pred_check_branch
    %23 = sbr.rel (0) target = $region21
  $region20: #{img2latent_encoder.1} parent=0 // pred_region
    _
  $region21: #{img2latent_encoder.1} parent=0 // pred_fallthru
    _
  // Predicated region
  $region22: #{img2latent_encoder.1} parent=0 // pred_check
    _
  $region23: #{img2latent_encoder.1} parent=0 // pred_check_branch
    %25 = sbr.rel (0) target = $region25
  $region24: #{img2latent_encoder.1} parent=0 // pred_region
    _
  $region25: #{img2latent_encoder.1} parent=0 // pred_fallthru
    _
  // Predicated region
  $region26: #{img2latent_encoder.1} parent=0 // pred_check
    _
  $region27: #{img2latent_encoder.1} parent=0 // pred_check_branch
    %27 = sbr.rel (0) target = $region29
  $region28: #{img2latent_encoder.1} parent=0 // pred_region
    _
  $region29: #{img2latent_encoder.1} parent=0 // pred_fallthru
    _
  // Predicated region
  $region30: #{img2latent_encoder.1} parent=0 // pred_check
    _
  $region31: #{img2latent_encoder.1} parent=0 // pred_check_branch
    %29 = sbr.rel (0) target = $region33
  $region32: #{img2latent_encoder.1} parent=0 // pred_region
    _
  $region33: #{img2latent_encoder.1} parent=0 // pred_fallthru
    _
  // Predicated region
  $region34: #{img2latent_encoder.1} parent=0 // pred_check
    _
  $region35: #{img2latent_encoder.1} parent=0 // pred_check_branch
    %31 = sbr.rel (0) target = $region37
  $region36: #{img2latent_encoder.1} parent=0 // pred_region
    _
  $region37: #{img2latent_encoder.1} parent=0 // pred_fallthru
    _
  %v32 = vld [vmem:[%s0] sm:$0xff]
  %v33 = vld [vmem:[%s0 + $0x8] sm:$0xff]
  %v34 = vld [vmem:[%s0 + $0x10] sm:$0xff]
  %v35 = vld [vmem:[%s0 + $0x18] sm:$0xff]
  %v36 = vld [vmem:[%s0 + $0x20] sm:$0xf]
  %v37 = vld [vmem:[%s1] sm:$0xff]
  %v38 = vld [vmem:[%s1 + $0x8] sm:$0xff]
  %vm39 = vcmask 130048
  %v41 = vsel %vm39, %v32, 0
  %v44 = vsel %vm39, %v33, 0
  %v47 = vsel %vm39, %v34, 0
  %v50 = vsel %vm39, %v35, 0
  %v53 = vsel %vm39, %v36, 0
  %55 = vmatprep.subr.mxu0 0.0
  %v56 = vand.u32 %v37, 4294901760
  %57 = vmatpush1.msra.mxu0 %v56
  %58 = vmatprep.subr.mxu0 0.0
  %v59 = vand.u32 %v38, 4294901760
  %60 = vmatpush1.msra.mxu0 %v59
  %61 = vmatprep.subr.mxu0 0.0
  %62 = vmatpush1.msra.mxu0 0.0
  %63 = vmatprep.subr.mxu0 0.0
  %64 = vmatpush1.msra.mxu0 0.0
  %65 = vmatprep.subr.mxu0 0.0
  %66 = vmatpush1.msra.mxu0 0.0
  %67 = vmatprep.subr.mxu0 0.0
  %68 = vmatpush1.msra.mxu0 0.0
  %69 = vmatprep.subr.mxu0 0.0
  %70 = vmatpush1.msra.mxu0 0.0
  %71 = vmatprep.subr.mxu0 0.0
  %72 = vmatpush1.msra.mxu0 0.0
  %73 = vmatprep.subr.mxu0 0.0
  %74 = vmatpush1.msra.mxu0 0.0
  %75 = vmatprep.subr.mxu0 0.0
  %76 = vmatpush1.msra.mxu0 0.0
  %77 = vmatprep.subr.mxu0 0.0
  %78 = vmatpush1.msra.mxu0 0.0
  %79 = vmatprep.subr.mxu0 0.0
  %80 = vmatpush1.msra.mxu0 0.0
  %81 = vmatprep.subr.mxu0 0.0
  %82 = vmatpush1.msra.mxu0 0.0
  %83 = vmatprep.subr.mxu0 0.0
  %84 = vmatpush1.msra.mxu0 0.0
  %85 = vmatprep.subr.mxu0 0.0
  %86 = vmatpush1.msra.mxu0 0.0
  %87 = vmatprep.subr.mxu0 0.0
  %88 = vmatpush1.msra.mxu0 0.0
  %89 = vmatprep.subr.mxu0 0.0
  %90 = vmatpush1.msra.mxu0 0.0
  %91 = vmatprep.subr.mxu0 0.0
  %92 = vmatpush1.msra.mxu0 0.0
  %93 = vmatprep.subr.mxu0 0.0
  %94 = vmatpush1.msra.mxu0 0.0
  %95 = vmatprep.subr.mxu0 0.0
  %96 = vmatpush1.msra.mxu0 0.0
  %97 = vmatprep.subr.mxu0 0.0
  %98 = vmatpush1.msra.mxu0 0.0
  %99 = vmatprep.subr.mxu0 0.0
  %100 = vmatpush1.msra.mxu0 0.0
  %101 = vmatprep.subr.mxu0 0.0
  %102 = vmatpush1.msra.mxu0 0.0
  %103 = vmatprep.subr.mxu0 0.0
  %104 = vmatpush1.msra.mxu0 0.0
  %105 = vmatprep.subr.mxu0 0.0
  %106 = vmatpush1.msra.mxu0 0.0
  %107 = vmatprep.subr.mxu0 0.0
  %108 = vmatpush1.msra.mxu0 0.0
  %109 = vmatprep.subr.mxu0 0.0
  %110 = vmatpush1.msra.mxu0 0.0
  %111 = vmatprep.subr.mxu0 0.0
  %112 = vmatpush1.msra.mxu0 0.0
  %113 = vmatprep.subr.mxu0 0.0
  %114 = vmatpush1.msra.mxu0 0.0
  %115 = vmatprep.subr.mxu0 0.0
  %116 = vmatpush1.msra.mxu0 0.0
  %117 = vmatprep.subr.mxu0 0.0
  %118 = vmatpush1.msra.mxu0 0.0
  %119 = vmatprep.subr.mxu0 0.0
  %120 = vmatpush1.msra.mxu0 0.0
  %121 = vmatprep.mubr.f32.mxu0 0.0
  %v122 = vand.u32 %v41, 4294901760
  %v123 = vsub.f32 %v41, %v122
  %v124 = vand.u32 %v123, 4294901760
  %v125 = vsub.f32 %v123, %v124
  %v126 = vand.u32 %v125, 4294901760
  %127 = vmatmul.mubr.f32.gmra.mrb[0].mxu0 %v126
  %v128 = vpop.f32.mrb[0].mxu0
  %v129 = vadd.f32 0.0, %v128
  %v130 = vpop.f32.mrb[0].mxu0
  %131 = vmatprep.mubr.f32.mxu0 0.0
  %v132 = vand.u32 %v44, 4294901760
  %v133 = vsub.f32 %v44, %v132
  %v134 = vand.u32 %v133, 4294901760
  %v135 = vsub.f32 %v133, %v134
  %v136 = vand.u32 %v135, 4294901760
  %137 = vmatmul.mubr.f32.gmra.mrb[0].mxu0 %v136
  %v138 = vpop.f32.mrb[0].mxu0
  %v139 = vadd.f32 0.0, %v138
  %v140 = vpop.f32.mrb[0].mxu0
  %141 = vmatprep.mubr.f32.mxu0 0.0
  %v142 = vand.u32 %v47, 4294901760
  %v143 = vsub.f32 %v47, %v142
  %v144 = vand.u32 %v143, 4294901760
  %v145 = vsub.f32 %v143, %v144
  %v146 = vand.u32 %v145, 4294901760
  %147 = vmatmul.mubr.f32.gmra.mrb[0].mxu0 %v146
  %v148 = vpop.f32.mrb[0].mxu0
  %v149 = vadd.f32 0.0, %v148
  %v150 = vpop.f32.mrb[0].mxu0
  %151 = vmatprep.mubr.f32.mxu0 0.0
  %v152 = vand.u32 %v50, 4294901760
  %v153 = vsub.f32 %v50, %v152
  %v154 = vand.u32 %v153, 4294901760
  %v155 = vsub.f32 %v153, %v154
  %v156 = vand.u32 %v155, 4294901760
  %157 = vmatmul.mubr.f32.gmra.mrb[0].mxu0 %v156
  %v158 = vpop.f32.mrb[0].mxu0
  %v159 = vadd.f32 0.0, %v158
  %v160 = vpop.f32.mrb[0].mxu0
  %161 = vmatprep.mubr.f32.mxu0 0.0
  %v162 = vand.u32 %v53, 4294901760
  %v163 = vsub.f32 %v53, %v162
  %v164 = vand.u32 %v163, 4294901760
  %v165 = vsub.f32 %v163, %v164
  %v166 = vand.u32 %v165, 4294901760
  %167 = vmatmul.mubr.f32.gmra.mrb[0].mxu0 %v166
  %v168 = vpop.f32.mrb[0].mxu0
  %v169 = vadd.f32 0.0, %v168
  %v170 = vpop.f32.mrb[0].mxu0
  %171 = vdwg.mxu0
  %172 = vmatprep.subr.mxu0 0.0
  %v173 = vand.u32 %v37, 4294901760
  %v174 = vsub.f32 %v37, %v173
  %v175 = vand.u32 %v174, 4294901760
  %v176 = vsub.f32 %v174, %v175
  %v177 = vand.u32 %v176, 4294901760
  %178 = vmatpush1.msra.mxu0 %v177
  %179 = vmatprep.subr.mxu0 0.0
  %v180 = vand.u32 %v38, 4294901760
  %v181 = vsub.f32 %v38, %v180
  %v182 = vand.u32 %v181, 4294901760
  %v183 = vsub.f32 %v181, %v182
  %v184 = vand.u32 %v183, 4294901760
  %185 = vmatpush1.msra.mxu0 %v184
  %186 = vmatprep.subr.mxu0 0.0
  %187 = vmatpush1.msra.mxu0 0.0
  %188 = vmatprep.subr.mxu0 0.0
  %189 = vmatpush1.msra.mxu0 0.0
  %190 = vmatprep.subr.mxu0 0.0
  %191 = vmatpush1.msra.mxu0 0.0
  %192 = vmatprep.subr.mxu0 0.0
  %193 = vmatpush1.msra.mxu0 0.0
  %194 = vmatprep.subr.mxu0 0.0
  %195 = vmatpush1.msra.mxu0 0.0
  %196 = vmatprep.subr.mxu0 0.0
  %197 = vmatpush1.msra.mxu0 0.0
  %198 = vmatprep.subr.mxu0 0.0
  %199 = vmatpush1.msra.mxu0 0.0
  %200 = vmatprep.subr.mxu0 0.0
  %201 = vmatpush1.msra.mxu0 0.0
  %202 = vmatprep.subr.mxu0 0.0
  %203 = vmatpush1.msra.mxu0 0.0
  %204 = vmatprep.subr.mxu0 0.0
  %205 = vmatpush1.msra.mxu0 0.0
  %206 = vmatprep.subr.mxu0 0.0
  %207 = vmatpush1.msra.mxu0 0.0
  %208 = vmatprep.subr.mxu0 0.0
  %209 = vmatpush1.msra.mxu0 0.0
  %210 = vmatprep.subr.mxu0 0.0
  %211 = vmatpush1.msra.mxu0 0.0
  %212 = vmatprep.subr.mxu0 0.0
  %213 = vmatpush1.msra.mxu0 0.0
  %214 = vmatprep.subr.mxu0 0.0
  %215 = vmatpush1.msra.mxu0 0.0
  %216 = vmatprep.subr.mxu0 0.0
  %217 = vmatpush1.msra.mxu0 0.0
  %218 = vmatprep.subr.mxu0 0.0
  %219 = vmatpush1.msra.mxu0 0.0
  %220 = vmatprep.subr.mxu0 0.0
  %221 = vmatpush1.msra.mxu0 0.0
  %222 = vmatprep.subr.mxu0 0.0
  %223 = vmatpush1.msra.mxu0 0.0
  %224 = vmatprep.subr.mxu0 0.0
  %225 = vmatpush1.msra.mxu0 0.0
  %226 = vmatprep.subr.mxu0 0.0
  %227 = vmatpush1.msra.mxu0 0.0
  %228 = vmatprep.subr.mxu0 0.0
  %229 = vmatpush1.msra.mxu0 0.0
  %230 = vmatprep.subr.mxu0 0.0
  %231 = vmatpush1.msra.mxu0 0.0
  %232 = vmatprep.subr.mxu0 0.0
  %233 = vmatpush1.msra.mxu0 0.0
  %234 = vmatprep.subr.mxu0 0.0
  %235 = vmatpush1.msra.mxu0 0.0
  %236 = vmatprep.subr.mxu0 0.0
  %237 = vmatpush1.msra.mxu0 0.0
  %238 = vmatprep.subr.mxu0 0.0
  %239 = vmatpush1.msra.mxu0 0.0
  %240 = vmatprep.subr.mxu0 0.0
  %241 = vmatpush1.msra.mxu0 0.0
  %242 = vmatprep.subr.mxu0 0.0
  %243 = vmatpush1.msra.mxu0 0.0
  %244 = vmatprep.subr.mxu0 0.0
  %245 = vmatpush1.msra.mxu0 0.0
  %246 = vmatprep.mubr.f32.mxu0 0.0
  %v247 = vand.u32 %v41, 4294901760
  %248 = vmatmul.mubr.f32.gmra.mrb[0].mxu0 %v247
  %v249 = vpop.f32.mrb[0].mxu0
  %v250 = vadd.f32 %v129, %v249
  %v251 = vpop.f32.mrb[0].mxu0
  %252 = vmatprep.mubr.f32.mxu0 0.0
  %v253 = vand.u32 %v44, 4294901760
  %254 = vmatmul.mubr.f32.gmra.mrb[0].mxu0 %v253
  %v255 = vpop.f32.mrb[0].mxu0
  %v256 = vadd.f32 %v139, %v255
  %v257 = vpop.f32.mrb[0].mxu0
  %258 = vmatprep.mubr.f32.mxu0 0.0
  %v259 = vand.u32 %v47, 4294901760
  %260 = vmatmul.mubr.f32.gmra.mrb[0].mxu0 %v259
  %v261 = vpop.f32.mrb[0].mxu0
  %v262 = vadd.f32 %v149, %v261
  %v263 = vpop.f32.mrb[0].mxu0
  %264 = vmatprep.mubr.f32.mxu0 0.0
  %v265 = vand.u32 %v50, 4294901760
  %266 = vmatmul.mubr.f32.gmra.mrb[0].mxu0 %v265
  %v267 = vpop.f32.mrb[0].mxu0
  %v268 = vadd.f32 %v159, %v267
  %v269 = vpop.f32.mrb[0].mxu0
  %270 = vmatprep.mubr.f32.mxu0 0.0
  %v271 = vand.u32 %v53, 4294901760
  %272 = vmatmul.mubr.f32.gmra.mrb[0].mxu0 %v271
  %v273 = vpop.f32.mrb[0].mxu0
  %v274 = vadd.f32 %v169, %v273
  %v275 = vpop.f32.mrb[0].mxu0
  %276 = vdwg.mxu0
  %277 = vmatprep.subr.mxu0 0.0
  %v278 = vand.u32 %v37, 4294901760
  %v279 = vsub.f32 %v37, %v278
  %280 = vmatpush1.msra.mxu0 %v279
  %281 = vmatprep.subr.mxu0 0.0
  %v282 = vand.u32 %v38, 4294901760
  %v283 = vsub.f32 %v38, %v282
  %284 = vmatpush1.msra.mxu0 %v283
  %285 = vmatprep.subr.mxu0 0.0
  %286 = vmatpush1.msra.mxu0 0.0
  %287 = vmatprep.subr.mxu0 0.0
  %288 = vmatpush1.msra.mxu0 0.0
  %289 = vmatprep.subr.mxu0 0.0
  %290 = vmatpush1.msra.mxu0 0.0
  %291 = vmatprep.subr.mxu0 0.0
  %292 = vmatpush1.msra.mxu0 0.0
  %293 = vmatprep.subr.mxu0 0.0
  %294 = vmatpush1.msra.mxu0 0.0
  %295 = vmatprep.subr.mxu0 0.0
  %296 = vmatpush1.msra.mxu0 0.0
  %297 = vmatprep.subr.mxu0 0.0
  %298 = vmatpush1.msra.mxu0 0.0
  %299 = vmatprep.subr.mxu0 0.0
  %300 = vmatpush1.msra.mxu0 0.0
  %301 = vmatprep.subr.mxu0 0.0
  %302 = vmatpush1.msra.mxu0 0.0
  %303 = vmatprep.subr.mxu0 0.0
  %304 = vmatpush1.msra.mxu0 0.0
  %305 = vmatprep.subr.mxu0 0.0
  %306 = vmatpush1.msra.mxu0 0.0
  %307 = vmatprep.subr.mxu0 0.0
  %308 = vmatpush1.msra.mxu0 0.0
  %309 = vmatprep.subr.mxu0 0.0
  %310 = vmatpush1.msra.mxu0 0.0
  %311 = vmatprep.subr.mxu0 0.0
  %312 = vmatpush1.msra.mxu0 0.0
  %313 = vmatprep.subr.mxu0 0.0
  %314 = vmatpush1.msra.mxu0 0.0
  %315 = vmatprep.subr.mxu0 0.0
  %316 = vmatpush1.msra.mxu0 0.0
  %317 = vmatprep.subr.mxu0 0.0
  %318 = vmatpush1.msra.mxu0 0.0
  %319 = vmatprep.subr.mxu0 0.0
  %320 = vmatpush1.msra.mxu0 0.0
  %321 = vmatprep.subr.mxu0 0.0
  %322 = vmatpush1.msra.mxu0 0.0
  %323 = vmatprep.subr.mxu0 0.0
  %324 = vmatpush1.msra.mxu0 0.0
  %325 = vmatprep.subr.mxu0 0.0
  %326 = vmatpush1.msra.mxu0 0.0
  %327 = vmatprep.subr.mxu0 0.0
  %328 = vmatpush1.msra.mxu0 0.0
  %329 = vmatprep.subr.mxu0 0.0
  %330 = vmatpush1.msra.mxu0 0.0
  %331 = vmatprep.subr.mxu0 0.0
  %332 = vmatpush1.msra.mxu0 0.0
  %333 = vmatprep.subr.mxu0 0.0
  %334 = vmatpush1.msra.mxu0 0.0
  %335 = vmatprep.subr.mxu0 0.0
  %336 = vmatpush1.msra.mxu0 0.0
  %337 = vmatprep.subr.mxu0 0.0
  %338 = vmatpush1.msra.mxu0 0.0
  %339 = vmatprep.subr.mxu0 0.0
  %340 = vmatpush1.msra.mxu0 0.0
  %341 = vmatprep.subr.mxu0 0.0
  %342 = vmatpush1.msra.mxu0 0.0
  %343 = vmatprep.subr.mxu0 0.0
  %344 = vmatpush1.msra.mxu0 0.0
  %345 = vmatprep.mubr.f32.mxu0 0.0
  %v346 = vand.u32 %v41, 4294901760
  %v347 = vsub.f32 %v41, %v346
  %348 = vmatmul.mubr.f32.gmra.mrb[0].mxu0 %v347
  %v349 = vpop.f32.mrb[0].mxu0
  %v350 = vadd.f32 %v250, %v349
  %v351 = vpop.f32.mrb[0].mxu0
  %352 = vmatprep.mubr.f32.mxu0 0.0
  %v353 = vand.u32 %v44, 4294901760
  %v354 = vsub.f32 %v44, %v353
  %355 = vmatmul.mubr.f32.gmra.mrb[0].mxu0 %v354
  %v356 = vpop.f32.mrb[0].mxu0
  %v357 = vadd.f32 %v256, %v356
  %v358 = vpop.f32.mrb[0].mxu0
  %359 = vmatprep.mubr.f32.mxu0 0.0
  %v360 = vand.u32 %v47, 4294901760
  %v361 = vsub.f32 %v47, %v360
  %362 = vmatmul.mubr.f32.gmra.mrb[0].mxu0 %v361
  %v363 = vpop.f32.mrb[0].mxu0
  %v364 = vadd.f32 %v262, %v363
  %v365 = vpop.f32.mrb[0].mxu0
  %366 = vmatprep.mubr.f32.mxu0 0.0
  %v367 = vand.u32 %v50, 4294901760
  %v368 = vsub.f32 %v50, %v367
  %369 = vmatmul.mubr.f32.gmra.mrb[0].mxu0 %v368
  %v370 = vpop.f32.mrb[0].mxu0
  %v371 = vadd.f32 %v268, %v370
  %v372 = vpop.f32.mrb[0].mxu0
  %373 = vmatprep.mubr.f32.mxu0 0.0
  %v374 = vand.u32 %v53, 4294901760
  %v375 = vsub.f32 %v53, %v374
  %376 = vmatmul.mubr.f32.gmra.mrb[0].mxu0 %v375
  %v377 = vpop.f32.mrb[0].mxu0
  %v378 = vadd.f32 %v274, %v377
  %v379 = vpop.f32.mrb[0].mxu0
  %380 = vdwg.mxu0
  %381 = vmatprep.subr.mxu0 0.0
  %v382 = vand.u32 %v37, 4294901760
  %383 = vmatpush1.msra.mxu0 %v382
  %384 = vmatprep.subr.mxu0 0.0
  %v385 = vand.u32 %v38, 4294901760
  %386 = vmatpush1.msra.mxu0 %v385
  %387 = vmatprep.subr.mxu0 0.0
  %388 = vmatpush1.msra.mxu0 0.0
  %389 = vmatprep.subr.mxu0 0.0
  %390 = vmatpush1.msra.mxu0 0.0
  %391 = vmatprep.subr.mxu0 0.0
  %392 = vmatpush1.msra.mxu0 0.0
  %393 = vmatprep.subr.mxu0 0.0
  %394 = vmatpush1.msra.mxu0 0.0
  %395 = vmatprep.subr.mxu0 0.0
  %396 = vmatpush1.msra.mxu0 0.0
  %397 = vmatprep.subr.mxu0 0.0
  %398 = vmatpush1.msra.mxu0 0.0
  %399 = vmatprep.subr.mxu0 0.0
  %400 = vmatpush1.msra.mxu0 0.0
  %401 = vmatprep.subr.mxu0 0.0
  %402 = vmatpush1.msra.mxu0 0.0
  %403 = vmatprep.subr.mxu0 0.0
  %404 = vmatpush1.msra.mxu0 0.0
  %405 = vmatprep.subr.mxu0 0.0
  %406 = vmatpush1.msra.mxu0 0.0
  %407 = vmatprep.subr.mxu0 0.0
  %408 = vmatpush1.msra.mxu0 0.0
  %409 = vmatprep.subr.mxu0 0.0
  %410 = vmatpush1.msra.mxu0 0.0
  %411 = vmatprep.subr.mxu0 0.0
  %412 = vmatpush1.msra.mxu0 0.0
  %413 = vmatprep.subr.mxu0 0.0
  %414 = vmatpush1.msra.mxu0 0.0
  %415 = vmatprep.subr.mxu0 0.0
  %416 = vmatpush1.msra.mxu0 0.0
  %417 = vmatprep.subr.mxu0 0.0
  %418 = vmatpush1.msra.mxu0 0.0
  %419 = vmatprep.subr.mxu0 0.0
  %420 = vmatpush1.msra.mxu0 0.0
  %421 = vmatprep.subr.mxu0 0.0
  %422 = vmatpush1.msra.mxu0 0.0
  %423 = vmatprep.subr.mxu0 0.0
  %424 = vmatpush1.msra.mxu0 0.0
  %425 = vmatprep.subr.mxu0 0.0
  %426 = vmatpush1.msra.mxu0 0.0
  %427 = vmatprep.subr.mxu0 0.0
  %428 = vmatpush1.msra.mxu0 0.0
  %429 = vmatprep.subr.mxu0 0.0
  %430 = vmatpush1.msra.mxu0 0.0
  %431 = vmatprep.subr.mxu0 0.0
  %432 = vmatpush1.msra.mxu0 0.0
  %433 = vmatprep.subr.mxu0 0.0
  %434 = vmatpush1.msra.mxu0 0.0
  %435 = vmatprep.subr.mxu0 0.0
  %436 = vmatpush1.msra.mxu0 0.0
  %437 = vmatprep.subr.mxu0 0.0
  %438 = vmatpush1.msra.mxu0 0.0
  %439 = vmatprep.subr.mxu0 0.0
  %440 = vmatpush1.msra.mxu0 0.0
  %441 = vmatprep.subr.mxu0 0.0
  %442 = vmatpush1.msra.mxu0 0.0
  %443 = vmatprep.subr.mxu0 0.0
  %444 = vmatpush1.msra.mxu0 0.0
  %445 = vmatprep.subr.mxu0 0.0
  %446 = vmatpush1.msra.mxu0 0.0
  %447 = vmatprep.mubr.f32.mxu0 0.0
  %v448 = vand.u32 %v41, 4294901760
  %v449 = vsub.f32 %v41, %v448
  %v450 = vand.u32 %v449, 4294901760
  %451 = vmatmul.mubr.f32.gmra.mrb[0].mxu0 %v450
  %v452 = vpop.f32.mrb[0].mxu0
  %v453 = vadd.f32 %v350, %v452
  %v454 = vpop.f32.mrb[0].mxu0
  %455 = vmatprep.mubr.f32.mxu0 0.0
  %v456 = vand.u32 %v44, 4294901760
  %v457 = vsub.f32 %v44, %v456
  %v458 = vand.u32 %v457, 4294901760
  %459 = vmatmul.mubr.f32.gmra.mrb[0].mxu0 %v458
  %v460 = vpop.f32.mrb[0].mxu0
  %v461 = vadd.f32 %v357, %v460
  %v462 = vpop.f32.mrb[0].mxu0
  %463 = vmatprep.mubr.f32.mxu0 0.0
  %v464 = vand.u32 %v47, 4294901760
  %v465 = vsub.f32 %v47, %v464
  %v466 = vand.u32 %v465, 4294901760
  %467 = vmatmul.mubr.f32.gmra.mrb[0].mxu0 %v466
  %v468 = vpop.f32.mrb[0].mxu0
  %v469 = vadd.f32 %v364, %v468
  %v470 = vpop.f32.mrb[0].mxu0
  %471 = vmatprep.mubr.f32.mxu0 0.0
  %v472 = vand.u32 %v50, 4294901760
  %v473 = vsub.f32 %v50, %v472
  %v474 = vand.u32 %v473, 4294901760
  %475 = vmatmul.mubr.f32.gmra.mrb[0].mxu0 %v474
  %v476 = vpop.f32.mrb[0].mxu0
  %v477 = vadd.f32 %v371, %v476
  %v478 = vpop.f32.mrb[0].mxu0
  %479 = vmatprep.mubr.f32.mxu0 0.0
  %v480 = vand.u32 %v53, 4294901760
  %v481 = vsub.f32 %v53, %v480
  %v482 = vand.u32 %v481, 4294901760
  %483 = vmatmul.mubr.f32.gmra.mrb[0].mxu0 %v482
  %v484 = vpop.f32.mrb[0].mxu0
  %v485 = vadd.f32 %v378, %v484
  %v486 = vpop.f32.mrb[0].mxu0
  %487 = vdwg.mxu0
  %488 = vmatprep.subr.mxu0 0.0
  %v489 = vand.u32 %v37, 4294901760
  %v490 = vsub.f32 %v37, %v489
  %v491 = vand.u32 %v490, 4294901760
  %492 = vmatpush1.msra.mxu0 %v491
  %493 = vmatprep.subr.mxu0 0.0
  %v494 = vand.u32 %v38, 4294901760
  %v495 = vsub.f32 %v38, %v494
  %v496 = vand.u32 %v495, 4294901760
  %497 = vmatpush1.msra.mxu0 %v496
  %498 = vmatprep.subr.mxu0 0.0
  %499 = vmatpush1.msra.mxu0 0.0
  %500 = vmatprep.subr.mxu0 0.0
  %501 = vmatpush1.msra.mxu0 0.0
  %502 = vmatprep.subr.mxu0 0.0
  %503 = vmatpush1.msra.mxu0 0.0
  %504 = vmatprep.subr.mxu0 0.0
  %505 = vmatpush1.msra.mxu0 0.0
  %506 = vmatprep.subr.mxu0 0.0
  %507 = vmatpush1.msra.mxu0 0.0
  %508 = vmatprep.subr.mxu0 0.0
  %509 = vmatpush1.msra.mxu0 0.0
  %510 = vmatprep.subr.mxu0 0.0
  %511 = vmatpush1.msra.mxu0 0.0
  %512 = vmatprep.subr.mxu0 0.0
  %513 = vmatpush1.msra.mxu0 0.0
  %514 = vmatprep.subr.mxu0 0.0
  %515 = vmatpush1.msra.mxu0 0.0
  %516 = vmatprep.subr.mxu0 0.0
  %517 = vmatpush1.msra.mxu0 0.0
  %518 = vmatprep.subr.mxu0 0.0
  %519 = vmatpush1.msra.mxu0 0.0
  %520 = vmatprep.subr.mxu0 0.0
  %521 = vmatpush1.msra.mxu0 0.0
  %522 = vmatprep.subr.mxu0 0.0
  %523 = vmatpush1.msra.mxu0 0.0
  %524 = vmatprep.subr.mxu0 0.0
  %525 = vmatpush1.msra.mxu0 0.0
  %526 = vmatprep.subr.mxu0 0.0
  %527 = vmatpush1.msra.mxu0 0.0
  %528 = vmatprep.subr.mxu0 0.0
  %529 = vmatpush1.msra.mxu0 0.0
  %530 = vmatprep.subr.mxu0 0.0
  %531 = vmatpush1.msra.mxu0 0.0
  %532 = vmatprep.subr.mxu0 0.0
  %533 = vmatpush1.msra.mxu0 0.0
  %534 = vmatprep.subr.mxu0 0.0
  %535 = vmatpush1.msra.mxu0 0.0
  %536 = vmatprep.subr.mxu0 0.0
  %537 = vmatpush1.msra.mxu0 0.0
  %538 = vmatprep.subr.mxu0 0.0
  %539 = vmatpush1.msra.mxu0 0.0
  %540 = vmatprep.subr.mxu0 0.0
  %541 = vmatpush1.msra.mxu0 0.0
  %542 = vmatprep.subr.mxu0 0.0
  %543 = vmatpush1.msra.mxu0 0.0
  %544 = vmatprep.subr.mxu0 0.0
  %545 = vmatpush1.msra.mxu0 0.0
  %546 = vmatprep.subr.mxu0 0.0
  %547 = vmatpush1.msra.mxu0 0.0
  %548 = vmatprep.subr.mxu0 0.0
  %549 = vmatpush1.msra.mxu0 0.0
  %550 = vmatprep.subr.mxu0 0.0
  %551 = vmatpush1.msra.mxu0 0.0
  %552 = vmatprep.subr.mxu0 0.0
  %553 = vmatpush1.msra.mxu0 0.0
  %554 = vmatprep.subr.mxu0 0.0
  %555 = vmatpush1.msra.mxu0 0.0
  %556 = vmatprep.subr.mxu0 0.0
  %557 = vmatpush1.msra.mxu0 0.0
  %558 = vmatprep.mubr.f32.mxu0 0.0
  %v559 = vand.u32 %v41, 4294901760
  %560 = vmatmul.mubr.f32.gmra.mrb[0].mxu0 %v559
  %v561 = vpop.f32.mrb[0].mxu0
  %v562 = vadd.f32 %v453, %v561
  %v563 = vpop.f32.mrb[0].mxu0
  %564 = vmatprep.mubr.f32.mxu0 0.0
  %v565 = vand.u32 %v44, 4294901760
  %566 = vmatmul.mubr.f32.gmra.mrb[0].mxu0 %v565
  %v567 = vpop.f32.mrb[0].mxu0
  %v568 = vadd.f32 %v461, %v567
  %v569 = vpop.f32.mrb[0].mxu0
  %570 = vmatprep.mubr.f32.mxu0 0.0
  %v571 = vand.u32 %v47, 4294901760
  %572 = vmatmul.mubr.f32.gmra.mrb[0].mxu0 %v571
  %v573 = vpop.f32.mrb[0].mxu0
  %v574 = vadd.f32 %v469, %v573
  %v575 = vpop.f32.mrb[0].mxu0
  %576 = vmatprep.mubr.f32.mxu0 0.0
  %v577 = vand.u32 %v50, 4294901760
  %578 = vmatmul.mubr.f32.gmra.mrb[0].mxu0 %v577
  %v579 = vpop.f32.mrb[0].mxu0
  %v580 = vadd.f32 %v477, %v579
  %v581 = vpop.f32.mrb[0].mxu0
  %582 = vmatprep.mubr.f32.mxu0 0.0
  %v583 = vand.u32 %v53, 4294901760
  %584 = vmatmul.mubr.f32.gmra.mrb[0].mxu0 %v583
  %v585 = vpop.f32.mrb[0].mxu0
  %v586 = vadd.f32 %v485, %v585
  %v587 = vpop.f32.mrb[0].mxu0
  %588 = vdwg.mxu0
  %589 = vmatprep.subr.mxu0 0.0
  %v590 = vand.u32 %v37, 4294901760
  %591 = vmatpush1.msra.mxu0 %v590
  %592 = vmatprep.subr.mxu0 0.0
  %v593 = vand.u32 %v38, 4294901760
  %594 = vmatpush1.msra.mxu0 %v593
  %595 = vmatprep.subr.mxu0 0.0
  %596 = vmatpush1.msra.mxu0 0.0
  %597 = vmatprep.subr.mxu0 0.0
  %598 = vmatpush1.msra.mxu0 0.0
  %599 = vmatprep.subr.mxu0 0.0
  %600 = vmatpush1.msra.mxu0 0.0
  %601 = vmatprep.subr.mxu0 0.0
  %602 = vmatpush1.msra.mxu0 0.0
  %603 = vmatprep.subr.mxu0 0.0
  %604 = vmatpush1.msra.mxu0 0.0
  %605 = vmatprep.subr.mxu0 0.0
  %606 = vmatpush1.msra.mxu0 0.0
  %607 = vmatprep.subr.mxu0 0.0
  %608 = vmatpush1.msra.mxu0 0.0
  %609 = vmatprep.subr.mxu0 0.0
  %610 = vmatpush1.msra.mxu0 0.0
  %611 = vmatprep.subr.mxu0 0.0
  %612 = vmatpush1.msra.mxu0 0.0
  %613 = vmatprep.subr.mxu0 0.0
  %614 = vmatpush1.msra.mxu0 0.0
  %615 = vmatprep.subr.mxu0 0.0
  %616 = vmatpush1.msra.mxu0 0.0
  %617 = vmatprep.subr.mxu0 0.0
  %618 = vmatpush1.msra.mxu0 0.0
  %619 = vmatprep.subr.mxu0 0.0
  %620 = vmatpush1.msra.mxu0 0.0
  %621 = vmatprep.subr.mxu0 0.0
  %622 = vmatpush1.msra.mxu0 0.0
  %623 = vmatprep.subr.mxu0 0.0
  %624 = vmatpush1.msra.mxu0 0.0
  %625 = vmatprep.subr.mxu0 0.0
  %626 = vmatpush1.msra.mxu0 0.0
  %627 = vmatprep.subr.mxu0 0.0
  %628 = vmatpush1.msra.mxu0 0.0
  %629 = vmatprep.subr.mxu0 0.0
  %630 = vmatpush1.msra.mxu0 0.0
  %631 = vmatprep.subr.mxu0 0.0
  %632 = vmatpush1.msra.mxu0 0.0
  %633 = vmatprep.subr.mxu0 0.0
  %634 = vmatpush1.msra.mxu0 0.0
  %635 = vmatprep.subr.mxu0 0.0
  %636 = vmatpush1.msra.mxu0 0.0
  %637 = vmatprep.subr.mxu0 0.0
  %638 = vmatpush1.msra.mxu0 0.0
  %639 = vmatprep.subr.mxu0 0.0
  %640 = vmatpush1.msra.mxu0 0.0
  %641 = vmatprep.subr.mxu0 0.0
  %642 = vmatpush1.msra.mxu0 0.0
  %643 = vmatprep.subr.mxu0 0.0
  %644 = vmatpush1.msra.mxu0 0.0
  %645 = vmatprep.subr.mxu0 0.0
  %646 = vmatpush1.msra.mxu0 0.0
  %647 = vmatprep.subr.mxu0 0.0
  %648 = vmatpush1.msra.mxu0 0.0
  %649 = vmatprep.subr.mxu0 0.0
  %650 = vmatpush1.msra.mxu0 0.0
  %651 = vmatprep.subr.mxu0 0.0
  %652 = vmatpush1.msra.mxu0 0.0
  %653 = vmatprep.subr.mxu0 0.0
  %654 = vmatpush1.msra.mxu0 0.0
  %655 = vmatprep.mubr.f32.mxu0 0.0
  %v656 = vand.u32 %v41, 4294901760
  %657 = vmatmul.mubr.f32.gmra.mrb[0].mxu0 %v656
  %v658 = vpop.f32.mrb[0].mxu0
  %v659 = vadd.f32 %v562, %v658
  %v660 = vpop.f32.mrb[0].mxu0
  %661 = vmatprep.mubr.f32.mxu0 0.0
  %v662 = vand.u32 %v44, 4294901760
  %663 = vmatmul.mubr.f32.gmra.mrb[0].mxu0 %v662
  %v664 = vpop.f32.mrb[0].mxu0
  %v665 = vadd.f32 %v568, %v664
  %v666 = vpop.f32.mrb[0].mxu0
  %667 = vmatprep.mubr.f32.mxu0 0.0
  %v668 = vand.u32 %v47, 4294901760
  %669 = vmatmul.mubr.f32.gmra.mrb[0].mxu0 %v668
  %v670 = vpop.f32.mrb[0].mxu0
  %v671 = vadd.f32 %v574, %v670
  %v672 = vpop.f32.mrb[0].mxu0
  %673 = vmatprep.mubr.f32.mxu0 0.0
  %v674 = vand.u32 %v50, 4294901760
  %675 = vmatmul.mubr.f32.gmra.mrb[0].mxu0 %v674
  %v676 = vpop.f32.mrb[0].mxu0
  %v677 = vadd.f32 %v580, %v676
  %v678 = vpop.f32.mrb[0].mxu0
  %679 = vmatprep.mubr.f32.mxu0 0.0
  %v680 = vand.u32 %v53, 4294901760
  %681 = vmatmul.mubr.f32.gmra.mrb[0].mxu0 %v680
  %v682 = vpop.f32.mrb[0].mxu0
  %v683 = vadd.f32 %v586, %v682
  %v684 = vpop.f32.mrb[0].mxu0
  %685 = vdwg.mxu0
  %vm686 = vcmask 64512
  %687 = vst.msk [vmem:[#allocation2] sm:$0xff] %vm686, %v659
  %688 = vst.msk [vmem:[#allocation2 + $0x8] sm:$0xff] %vm686, %v665
  %689 = vst.msk [vmem:[#allocation2 + $0x10] sm:$0xff] %vm686, %v671
  %690 = vst.msk [vmem:[#allocation2 + $0x18] sm:$0xff] %vm686, %v677
  %vm691 = vcmask 60416
  %692 = vst.msk [vmem:[#allocation2 + $0x20] sm:$0xf] %vm691, %v683
  %s693 = scalar_lea.vmem %s1, 16
  %v694 = vld [vmem:[%s693] sm:$0xff]
  %v695 = vld [vmem:[%s693 + $0x8] sm:$0xff]
  %696 = vmatprep.subr.mxu0 0.0
  %v697 = vand.u32 %v694, 4294901760
  %698 = vmatpush1.msra.mxu0 %v697
  %699 = vmatprep.subr.mxu0 0.0
  %v700 = vand.u32 %v695, 4294901760
  %701 = vmatpush1.msra.mxu0 %v700
  %702 = vmatprep.subr.mxu0 0.0
  %703 = vmatpush1.msra.mxu0 0.0
  %704 = vmatprep.subr.mxu0 0.0
  %705 = vmatpush1.msra.mxu0 0.0
  %706 = vmatprep.subr.mxu0 0.0
  %707 = vmatpush1.msra.mxu0 0.0
  %708 = vmatprep.subr.mxu0 0.0
  %709 = vmatpush1.msra.mxu0 0.0
  %710 = vmatprep.subr.mxu0 0.0
  %711 = vmatpush1.msra.mxu0 0.0
  %712 = vmatprep.subr.mxu0 0.0
  %713 = vmatpush1.msra.mxu0 0.0
  %714 = vmatprep.subr.mxu0 0.0
  %715 = vmatpush1.msra.mxu0 0.0
  %716 = vmatprep.subr.mxu0 0.0
  %717 = vmatpush1.msra.mxu0 0.0
  %718 = vmatprep.subr.mxu0 0.0
  %719 = vmatpush1.msra.mxu0 0.0
  %720 = vmatprep.subr.mxu0 0.0
  %721 = vmatpush1.msra.mxu0 0.0
  %722 = vmatprep.subr.mxu0 0.0
  %723 = vmatpush1.msra.mxu0 0.0
  %724 = vmatprep.subr.mxu0 0.0
  %725 = vmatpush1.msra.mxu0 0.0
  %726 = vmatprep.subr.mxu0 0.0
  %727 = vmatpush1.msra.mxu0 0.0
  %728 = vmatprep.subr.mxu0 0.0
  %729 = vmatpush1.msra.mxu0 0.0
  %730 = vmatprep.subr.mxu0 0.0
  %731 = vmatpush1.msra.mxu0 0.0
  %732 = vmatprep.subr.mxu0 0.0
  %733 = vmatpush1.msra.mxu0 0.0
  %734 = vmatprep.subr.mxu0 0.0
  %735 = vmatpush1.msra.mxu0 0.0
  %736 = vmatprep.subr.mxu0 0.0
  %737 = vmatpush1.msra.mxu0 0.0
  %738 = vmatprep.subr.mxu0 0.0
  %739 = vmatpush1.msra.mxu0 0.0
  %740 = vmatprep.subr.mxu0 0.0
  %741 = vmatpush1.msra.mxu0 0.0
  %742 = vmatprep.subr.mxu0 0.0
  %743 = vmatpush1.msra.mxu0 0.0
  %744 = vmatprep.subr.mxu0 0.0
  %745 = vmatpush1.msra.mxu0 0.0
  %746 = vmatprep.subr.mxu0 0.0
  %747 = vmatpush1.msra.mxu0 0.0
  %748 = vmatprep.subr.mxu0 0.0
  %749 = vmatpush1.msra.mxu0 0.0
  %750 = vmatprep.subr.mxu0 0.0
  %751 = vmatpush1.msra.mxu0 0.0
  %752 = vmatprep.subr.mxu0 0.0
  %753 = vmatpush1.msra.mxu0 0.0
  %754 = vmatprep.subr.mxu0 0.0
  %755 = vmatpush1.msra.mxu0 0.0
  %756 = vmatprep.subr.mxu0 0.0
  %757 = vmatpush1.msra.mxu0 0.0
  %758 = vmatprep.subr.mxu0 0.0
  %759 = vmatpush1.msra.mxu0 0.0
  %760 = vmatprep.subr.mxu0 0.0
  %761 = vmatpush1.msra.mxu0 0.0
  %762 = vmatprep.mubr.f32.mxu0 0.0
  %v763 = vand.u32 %v41, 4294901760
  %v764 = vsub.f32 %v41, %v763
  %v765 = vand.u32 %v764, 4294901760
  %v766 = vsub.f32 %v764, %v765
  %v767 = vand.u32 %v766, 4294901760
  %768 = vmatmul.mubr.f32.gmra.mrb[0].mxu0 %v767
  %v769 = vpop.f32.mrb[0].mxu0
  %v770 = vadd.f32 0.0, %v769
  %v771 = vpop.f32.mrb[0].mxu0
  %772 = vmatprep.mubr.f32.mxu0 0.0
  %v773 = vand.u32 %v44, 4294901760
  %v774 = vsub.f32 %v44, %v773
  %v775 = vand.u32 %v774, 4294901760
  %v776 = vsub.f32 %v774, %v775
  %v777 = vand.u32 %v776, 4294901760
  %778 = vmatmul.mubr.f32.gmra.mrb[0].mxu0 %v777
  %v779 = vpop.f32.mrb[0].mxu0
  %v780 = vadd.f32 0.0, %v779
  %v781 = vpop.f32.mrb[0].mxu0
  %782 = vmatprep.mubr.f32.mxu0 0.0
  %v783 = vand.u32 %v47, 4294901760
  %v784 = vsub.f32 %v47, %v783
  %v785 = vand.u32 %v784, 4294901760
  %v786 = vsub.f32 %v784, %v785
  %v787 = vand.u32 %v786, 4294901760
  %788 = vmatmul.mubr.f32.gmra.mrb[0].mxu0 %v787
  %v789 = vpop.f32.mrb[0].mxu0
  %v790 = vadd.f32 0.0, %v789
  %v791 = vpop.f32.mrb[0].mxu0
  %792 = vmatprep.mubr.f32.mxu0 0.0
  %v793 = vand.u32 %v50, 4294901760
  %v794 = vsub.f32 %v50, %v793
  %v795 = vand.u32 %v794, 4294901760
  %v796 = vsub.f32 %v794, %v795
  %v797 = vand.u32 %v796, 4294901760
  %798 = vmatmul.mubr.f32.gmra.mrb[0].mxu0 %v797
  %v799 = vpop.f32.mrb[0].mxu0
  %v800 = vadd.f32 0.0, %v799
  %v801 = vpop.f32.mrb[0].mxu0
  %802 = vmatprep.mubr.f32.mxu0 0.0
  %v803 = vand.u32 %v53, 4294901760
  %v804 = vsub.f32 %v53, %v803
  %v805 = vand.u32 %v804, 4294901760
  %v806 = vsub.f32 %v804, %v805
  %v807 = vand.u32 %v806, 4294901760
  %808 = vmatmul.mubr.f32.gmra.mrb[0].mxu0 %v807
  %v809 = vpop.f32.mrb[0].mxu0
  %v810 = vadd.f32 0.0, %v809
  %v811 = vpop.f32.mrb[0].mxu0
  %812 = vdwg.mxu0
  %813 = vmatprep.subr.mxu0 0.0
  %v814 = vand.u32 %v694, 4294901760
  %v815 = vsub.f32 %v694, %v814
  %v816 = vand.u32 %v815, 4294901760
  %v817 = vsub.f32 %v815, %v816
  %v818 = vand.u32 %v817, 4294901760
  %819 = vmatpush1.msra.mxu0 %v818
  %820 = vmatprep.subr.mxu0 0.0
  %v821 = vand.u32 %v695, 4294901760
  %v822 = vsub.f32 %v695, %v821
  %v823 = vand.u32 %v822, 4294901760
  %v824 = vsub.f32 %v822, %v823
  %v825 = vand.u32 %v824, 4294901760
  %826 = vmatpush1.msra.mxu0 %v825
  %827 = vmatprep.subr.mxu0 0.0
  %828 = vmatpush1.msra.mxu0 0.0
  %829 = vmatprep.subr.mxu0 0.0
  %830 = vmatpush1.msra.mxu0 0.0
  %831 = vmatprep.subr.mxu0 0.0
  %832 = vmatpush1.msra.mxu0 0.0
  %833 = vmatprep.subr.mxu0 0.0
  %834 = vmatpush1.msra.mxu0 0.0
  %835 = vmatprep.subr.mxu0 0.0
  %836 = vmatpush1.msra.mxu0 0.0
  %837 = vmatprep.subr.mxu0 0.0
  %838 = vmatpush1.msra.mxu0 0.0
  %839 = vmatprep.subr.mxu0 0.0
  %840 = vmatpush1.msra.mxu0 0.0
  %841 = vmatprep.subr.mxu0 0.0
  %842 = vmatpush1.msra.mxu0 0.0
  %843 = vmatprep.subr.mxu0 0.0
  %844 = vmatpush1.msra.mxu0 0.0
  %845 = vmatprep.subr.mxu0 0.0
  %846 = vmatpush1.msra.mxu0 0.0
  %847 = vmatprep.subr.mxu0 0.0
  %848 = vmatpush1.msra.mxu0 0.0
  %849 = vmatprep.subr.mxu0 0.0
  %850 = vmatpush1.msra.mxu0 0.0
  %851 = vmatprep.subr.mxu0 0.0
  %852 = vmatpush1.msra.mxu0 0.0
  %853 = vmatprep.subr.mxu0 0.0
  %854 = vmatpush1.msra.mxu0 0.0
  %855 = vmatprep.subr.mxu0 0.0
  %856 = vmatpush1.msra.mxu0 0.0
  %857 = vmatprep.subr.mxu0 0.0
  %858 = vmatpush1.msra.mxu0 0.0
  %859 = vmatprep.subr.mxu0 0.0
  %860 = vmatpush1.msra.mxu0 0.0
  %861 = vmatprep.subr.mxu0 0.0
  %862 = vmatpush1.msra.mxu0 0.0
  %863 = vmatprep.subr.mxu0 0.0
  %864 = vmatpush1.msra.mxu0 0.0
  %865 = vmatprep.subr.mxu0 0.0
  %866 = vmatpush1.msra.mxu0 0.0
  %867 = vmatprep.subr.mxu0 0.0
  %868 = vmatpush1.msra.mxu0 0.0
  %869 = vmatprep.subr.mxu0 0.0
  %870 = vmatpush1.msra.mxu0 0.0
  %871 = vmatprep.subr.mxu0 0.0
  %872 = vmatpush1.msra.mxu0 0.0
  %873 = vmatprep.subr.mxu0 0.0
  %874 = vmatpush1.msra.mxu0 0.0
  %875 = vmatprep.subr.mxu0 0.0
  %876 = vmatpush1.msra.mxu0 0.0
  %877 = vmatprep.subr.mxu0 0.0
  %878 = vmatpush1.msra.mxu0 0.0
  %879 = vmatprep.subr.mxu0 0.0
  %880 = vmatpush1.msra.mxu0 0.0
  %881 = vmatprep.subr.mxu0 0.0
  %882 = vmatpush1.msra.mxu0 0.0
  %883 = vmatprep.subr.mxu0 0.0
  %884 = vmatpush1.msra.mxu0 0.0
  %885 = vmatprep.subr.mxu0 0.0
  %886 = vmatpush1.msra.mxu0 0.0
  %887 = vmatprep.mubr.f32.mxu0 0.0
  %v888 = vand.u32 %v41, 4294901760
  %889 = vmatmul.mubr.f32.gmra.mrb[0].mxu0 %v888
  %v890 = vpop.f32.mrb[0].mxu0
  %v891 = vadd.f32 %v770, %v890
  %v892 = vpop.f32.mrb[0].mxu0
  %893 = vmatprep.mubr.f32.mxu0 0.0
  %v894 = vand.u32 %v44, 4294901760
  %895 = vmatmul.mubr.f32.gmra.mrb[0].mxu0 %v894
  %v896 = vpop.f32.mrb[0].mxu0
  %v897 = vadd.f32 %v780, %v896
  %v898 = vpop.f32.mrb[0].mxu0
  %899 = vmatprep.mubr.f32.mxu0 0.0
  %v900 = vand.u32 %v47, 4294901760
  %901 = vmatmul.mubr.f32.gmra.mrb[0].mxu0 %v900
  %v902 = vpop.f32.mrb[0].mxu0
  %v903 = vadd.f32 %v790, %v902
  %v904 = vpop.f32.mrb[0].mxu0
  %905 = vmatprep.mubr.f32.mxu0 0.0
  %v906 = vand.u32 %v50, 4294901760
  %907 = vmatmul.mubr.f32.gmra.mrb[0].mxu0 %v906
  %v908 = vpop.f32.mrb[0].mxu0
  %v909 = vadd.f32 %v800, %v908
  %v910 = vpop.f32.mrb[0].mxu0
  %911 = vmatprep.mubr.f32.mxu0 0.0
  %v912 = vand.u32 %v53, 4294901760
  %913 = vmatmul.mubr.f32.gmra.mrb[0].mxu0 %v912
  %v914 = vpop.f32.mrb[0].mxu0
  %v915 = vadd.f32 %v810, %v914
  %v916 = vpop.f32.mrb[0].mxu0
  %917 = vdwg.mxu0
  %918 = vmatprep.subr.mxu0 0.0
  %v919 = vand.u32 %v694, 4294901760
  %v920 = vsub.f32 %v694, %v919
  %921 = vmatpush1.msra.mxu0 %v920
  %922 = vmatprep.subr.mxu0 0.0
  %v923 = vand.u32 %v695, 4294901760
  %v924 = vsub.f32 %v695, %v923
  %925 = vmatpush1.msra.mxu0 %v924
  %926 = vmatprep.subr.mxu0 0.0
  %927 = vmatpush1.msra.mxu0 0.0
  %928 = vmatprep.subr.mxu0 0.0
  %929 = vmatpush1.msra.mxu0 0.0
  %930 = vmatprep.subr.mxu0 0.0
  %931 = vmatpush1.msra.mxu0 0.0
  %932 = vmatprep.subr.mxu0 0.0
  %933 = vmatpush1.msra.mxu0 0.0
  %934 = vmatprep.subr.mxu0 0.0
  %935 = vmatpush1.msra.mxu0 0.0
  %936 = vmatprep.subr.mxu0 0.0
  %937 = vmatpush1.msra.mxu0 0.0
  %938 = vmatprep.subr.mxu0 0.0
  %939 = vmatpush1.msra.mxu0 0.0
  %940 = vmatprep.subr.mxu0 0.0
  %941 = vmatpush1.msra.mxu0 0.0
  %942 = vmatprep.subr.mxu0 0.0
  %943 = vmatpush1.msra.mxu0 0.0
  %944 = vmatprep.subr.mxu0 0.0
  %945 = vmatpush1.msra.mxu0 0.0
  %946 = vmatprep.subr.mxu0 0.0
  %947 = vmatpush1.msra.mxu0 0.0
  %948 = vmatprep.subr.mxu0 0.0
  %949 = vmatpush1.msra.mxu0 0.0
  %950 = vmatprep.subr.mxu0 0.0
  %951 = vmatpush1.msra.mxu0 0.0
  %952 = vmatprep.subr.mxu0 0.0
  %953 = vmatpush1.msra.mxu0 0.0
  %954 = vmatprep.subr.mxu0 0.0
  %955 = vmatpush1.msra.mxu0 0.0
  %956 = vmatprep.subr.mxu0 0.0
  %957 = vmatpush1.msra.mxu0 0.0
  %958 = vmatprep.subr.mxu0 0.0
  %959 = vmatpush1.msra.mxu0 0.0
  %960 = vmatprep.subr.mxu0 0.0
  %961 = vmatpush1.msra.mxu0 0.0
  %962 = vmatprep.subr.mxu0 0.0
  %963 = vmatpush1.msra.mxu0 0.0
  %964 = vmatprep.subr.mxu0 0.0
  %965 = vmatpush1.msra.mxu0 0.0
  %966 = vmatprep.subr.mxu0 0.0
  %967 = vmatpush1.msra.mxu0 0.0
  %968 = vmatprep.subr.mxu0 0.0
  %969 = vmatpush1.msra.mxu0 0.0
  %970 = vmatprep.subr.mxu0 0.0
  %971 = vmatpush1.msra.mxu0 0.0
  %972 = vmatprep.subr.mxu0 0.0
  %973 = vmatpush1.msra.mxu0 0.0
  %974 = vmatprep.subr.mxu0 0.0
  %975 = vmatpush1.msra.mxu0 0.0
  %976 = vmatprep.subr.mxu0 0.0
  %977 = vmatpush1.msra.mxu0 0.0
  %978 = vmatprep.subr.mxu0 0.0
  %979 = vmatpush1.msra.mxu0 0.0
  %980 = vmatprep.subr.mxu0 0.0
  %981 = vmatpush1.msra.mxu0 0.0
  %982 = vmatprep.subr.mxu0 0.0
  %983 = vmatpush1.msra.mxu0 0.0
  %984 = vmatprep.subr.mxu0 0.0
  %985 = vmatpush1.msra.mxu0 0.0
  %986 = vmatprep.mubr.f32.mxu0 0.0
  %v987 = vand.u32 %v41, 4294901760
  %v988 = vsub.f32 %v41, %v987
  %989 = vmatmul.mubr.f32.gmra.mrb[0].mxu0 %v988
  %v990 = vpop.f32.mrb[0].mxu0
  %v991 = vadd.f32 %v891, %v990
  %v992 = vpop.f32.mrb[0].mxu0
  %993 = vmatprep.mubr.f32.mxu0 0.0
  %v994 = vand.u32 %v44, 4294901760
  %v995 = vsub.f32 %v44, %v994
  %996 = vmatmul.mubr.f32.gmra.mrb[0].mxu0 %v995
  %v997 = vpop.f32.mrb[0].mxu0
  %v998 = vadd.f32 %v897, %v997
  %v999 = vpop.f32.mrb[0].mxu0
  %1000 = vmatprep.mubr.f32.mxu0 0.0
  %v1001 = vand.u32 %v47, 4294901760
  %v1002 = vsub.f32 %v47, %v1001
  %1003 = vmatmul.mubr.f32.gmra.mrb[0].mxu0 %v1002
  %v1004 = vpop.f32.mrb[0].mxu0
  %v1005 = vadd.f32 %v903, %v1004
  %v1006 = vpop.f32.mrb[0].mxu0
  %1007 = vmatprep.mubr.f32.mxu0 0.0
  %v1008 = vand.u32 %v50, 4294901760
  %v1009 = vsub.f32 %v50, %v1008
  %1010 = vmatmul.mubr.f32.gmra.mrb[0].mxu0 %v1009
  %v1011 = vpop.f32.mrb[0].mxu0
  %v1012 = vadd.f32 %v909, %v1011
  %v1013 = vpop.f32.mrb[0].mxu0
  %1014 = vmatprep.mubr.f32.mxu0 0.0
  %v1015 = vand.u32 %v53, 4294901760
  %v1016 = vsub.f32 %v53, %v1015
  %1017 = vmatmul.mubr.f32.gmra.mrb[0].mxu0 %v1016
  %v1018 = vpop.f32.mrb[0].mxu0
  %v1019 = vadd.f32 %v915, %v1018
  %v1020 = vpop.f32.mrb[0].mxu0
  %1021 = vdwg.mxu0
  %1022 = vmatprep.subr.mxu0 0.0
  %v1023 = vand.u32 %v694, 4294901760
  %1024 = vmatpush1.msra.mxu0 %v1023
  %1025 = vmatprep.subr.mxu0 0.0
  %v1026 = vand.u32 %v695, 4294901760
  %1027 = vmatpush1.msra.mxu0 %v1026
  %1028 = vmatprep.subr.mxu0 0.0
  %1029 = vmatpush1.msra.mxu0 0.0
  %1030 = vmatprep.subr.mxu0 0.0
  %1031 = vmatpush1.msra.mxu0 0.0
  %1032 = vmatprep.subr.mxu0 0.0
  %1033 = vmatpush1.msra.mxu0 0.0
  %1034 = vmatprep.subr.mxu0 0.0
  %1035 = vmatpush1.msra.mxu0 0.0
  %1036 = vmatprep.subr.mxu0 0.0
  %1037 = vmatpush1.msra.mxu0 0.0
  %1038 = vmatprep.subr.mxu0 0.0
  %1039 = vmatpush1.msra.mxu0 0.0
  %1040 = vmatprep.subr.mxu0 0.0
  %1041 = vmatpush1.msra.mxu0 0.0
  %1042 = vmatprep.subr.mxu0 0.0
  %1043 = vmatpush1.msra.mxu0 0.0
  %1044 = vmatprep.subr.mxu0 0.0
  %1045 = vmatpush1.msra.mxu0 0.0
  %1046 = vmatprep.subr.mxu0 0.0
  %1047 = vmatpush1.msra.mxu0 0.0
  %1048 = vmatprep.subr.mxu0 0.0
  %1049 = vmatpush1.msra.mxu0 0.0
  %1050 = vmatprep.subr.mxu0 0.0
  %1051 = vmatpush1.msra.mxu0 0.0
  %1052 = vmatprep.subr.mxu0 0.0
  %1053 = vmatpush1.msra.mxu0 0.0
  %1054 = vmatprep.subr.mxu0 0.0
  %1055 = vmatpush1.msra.mxu0 0.0
  %1056 = vmatprep.subr.mxu0 0.0
  %1057 = vmatpush1.msra.mxu0 0.0
  %1058 = vmatprep.subr.mxu0 0.0
  %1059 = vmatpush1.msra.mxu0 0.0
  %1060 = vmatprep.subr.mxu0 0.0
  %1061 = vmatpush1.msra.mxu0 0.0
  %1062 = vmatprep.subr.mxu0 0.0
  %1063 = vmatpush1.msra.mxu0 0.0
  %1064 = vmatprep.subr.mxu0 0.0
  %1065 = vmatpush1.msra.mxu0 0.0
  %1066 = vmatprep.subr.mxu0 0.0
  %1067 = vmatpush1.msra.mxu0 0.0
  %1068 = vmatprep.subr.mxu0 0.0
  %1069 = vmatpush1.msra.mxu0 0.0
  %1070 = vmatprep.subr.mxu0 0.0
  %1071 = vmatpush1.msra.mxu0 0.0
  %1072 = vmatprep.subr.mxu0 0.0
  %1073 = vmatpush1.msra.mxu0 0.0
  %1074 = vmatprep.subr.mxu0 0.0
  %1075 = vmatpush1.msra.mxu0 0.0
  %1076 = vmatprep.subr.mxu0 0.0
  %1077 = vmatpush1.msra.mxu0 0.0
  %1078 = vmatprep.subr.mxu0 0.0
  %1079 = vmatpush1.msra.mxu0 0.0
  %1080 = vmatprep.subr.mxu0 0.0
  %1081 = vmatpush1.msra.mxu0 0.0
  %1082 = vmatprep.subr.mxu0 0.0
  %1083 = vmatpush1.msra.mxu0 0.0
  %1084 = vmatprep.subr.mxu0 0.0
  %1085 = vmatpush1.msra.mxu0 0.0
  %1086 = vmatprep.subr.mxu0 0.0
  %1087 = vmatpush1.msra.mxu0 0.0
  %1088 = vmatprep.mubr.f32.mxu0 0.0
  %v1089 = vand.u32 %v41, 4294901760
  %v1090 = vsub.f32 %v41, %v1089
  %v1091 = vand.u32 %v1090, 4294901760
  %1092 = vmatmul.mubr.f32.gmra.mrb[0].mxu0 %v1091
  %v1093 = vpop.f32.mrb[0].mxu0
  %v1094 = vadd.f32 %v991, %v1093
  %v1095 = vpop.f32.mrb[0].mxu0
  %1096 = vmatprep.mubr.f32.mxu0 0.0
  %v1097 = vand.u32 %v44, 4294901760
  %v1098 = vsub.f32 %v44, %v1097
  %v1099 = vand.u32 %v1098, 4294901760
  %1100 = vmatmul.mubr.f32.gmra.mrb[0].mxu0 %v1099
  %v1101 = vpop.f32.mrb[0].mxu0
  %v1102 = vadd.f32 %v998, %v1101
  %v1103 = vpop.f32.mrb[0].mxu0
  %1104 = vmatprep.mubr.f32.mxu0 0.0
  %v1105 = vand.u32 %v47, 4294901760
  %v1106 = vsub.f32 %v47, %v1105
  %v1107 = vand.u32 %v1106, 4294901760
  %1108 = vmatmul.mubr.f32.gmra.mrb[0].mxu0 %v1107
  %v1109 = vpop.f32.mrb[0].mxu0
  %v1110 = vadd.f32 %v1005, %v1109
  %v1111 = vpop.f32.mrb[0].mxu0
  %1112 = vmatprep.mubr.f32.mxu0 0.0
  %v1113 = vand.u32 %v50, 4294901760
  %v1114 = vsub.f32 %v50, %v1113
  %v1115 = vand.u32 %v1114, 4294901760
  %1116 = vmatmul.mubr.f32.gmra.mrb[0].mxu0 %v1115
  %v1117 = vpop.f32.mrb[0].mxu0
  %v1118 = vadd.f32 %v1012, %v1117
  %v1119 = vpop.f32.mrb[0].mxu0
  %1120 = vmatprep.mubr.f32.mxu0 0.0
  %v1121 = vand.u32 %v53, 4294901760
  %v1122 = vsub.f32 %v53, %v1121
  %v1123 = vand.u32 %v1122, 4294901760
  %1124 = vmatmul.mubr.f32.gmra.mrb[0].mxu0 %v1123
  %v1125 = vpop.f32.mrb[0].mxu0
  %v1126 = vadd.f32 %v1019, %v1125
  %v1127 = vpop.f32.mrb[0].mxu0
  %1128 = vdwg.mxu0
  %1129 = vmatprep.subr.mxu0 0.0
  %v1130 = vand.u32 %v694, 4294901760
  %v1131 = vsub.f32 %v694, %v1130
  %v1132 = vand.u32 %v1131, 4294901760
  %1133 = vmatpush1.msra.mxu0 %v1132
  %1134 = vmatprep.subr.mxu0 0.0
  %v1135 = vand.u32 %v695, 4294901760
  %v1136 = vsub.f32 %v695, %v1135
  %v1137 = vand.u32 %v1136, 4294901760
  %1138 = vmatpush1.msra.mxu0 %v1137
  %1139 = vmatprep.subr.mxu0 0.0
  %1140 = vmatpush1.msra.mxu0 0.0
  %1141 = vmatprep.subr.mxu0 0.0
  %1142 = vmatpush1.msra.mxu0 0.0
  %1143 = vmatprep.subr.mxu0 0.0
  %1144 = vmatpush1.msra.mxu0 0.0
  %1145 = vmatprep.subr.mxu0 0.0
  %1146 = vmatpush1.msra.mxu0 0.0
  %1147 = vmatprep.subr.mxu0 0.0
  %1148 = vmatpush1.msra.mxu0 0.0
  %1149 = vmatprep.subr.mxu0 0.0
  %1150 = vmatpush1.msra.mxu0 0.0
  %1151 = vmatprep.subr.mxu0 0.0
  %1152 = vmatpush1.msra.mxu0 0.0
  %1153 = vmatprep.subr.mxu0 0.0
  %1154 = vmatpush1.msra.mxu0 0.0
  %1155 = vmatprep.subr.mxu0 0.0
  %1156 = vmatpush1.msra.mxu0 0.0
  %1157 = vmatprep.subr.mxu0 0.0
  %1158 = vmatpush1.msra.mxu0 0.0
  %1159 = vmatprep.subr.mxu0 0.0
  %1160 = vmatpush1.msra.mxu0 0.0
  %1161 = vmatprep.subr.mxu0 0.0
  %1162 = vmatpush1.msra.mxu0 0.0
  %1163 = vmatprep.subr.mxu0 0.0
  %1164 = vmatpush1.msra.mxu0 0.0
  %1165 = vmatprep.subr.mxu0 0.0
  %1166 = vmatpush1.msra.mxu0 0.0
  %1167 = vmatprep.subr.mxu0 0.0
  %1168 = vmatpush1.msra.mxu0 0.0
  %1169 = vmatprep.subr.mxu0 0.0
  %1170 = vmatpush1.msra.mxu0 0.0
  %1171 = vmatprep.subr.mxu0 0.0
  %1172 = vmatpush1.msra.mxu0 0.0
  %1173 = vmatprep.subr.mxu0 0.0
  %1174 = vmatpush1.msra.mxu0 0.0
  %1175 = vmatprep.subr.mxu0 0.0
  %1176 = vmatpush1.msra.mxu0 0.0
  %1177 = vmatprep.subr.mxu0 0.0
  %1178 = vmatpush1.msra.mxu0 0.0
  %1179 = vmatprep.subr.mxu0 0.0
  %1180 = vmatpush1.msra.mxu0 0.0
  %1181 = vmatprep.subr.mxu0 0.0
  %1182 = vmatpush1.msra.mxu0 0.0
  %1183 = vmatprep.subr.mxu0 0.0
  %1184 = vmatpush1.msra.mxu0 0.0
  %1185 = vmatprep.subr.mxu0 0.0
  %1186 = vmatpush1.msra.mxu0 0.0
  %1187 = vmatprep.subr.mxu0 0.0
  %1188 = vmatpush1.msra.mxu0 0.0
  %1189 = vmatprep.subr.mxu0 0.0
  %1190 = vmatpush1.msra.mxu0 0.0
  %1191 = vmatprep.subr.mxu0 0.0
  %1192 = vmatpush1.msra.mxu0 0.0
  %1193 = vmatprep.subr.mxu0 0.0
  %1194 = vmatpush1.msra.mxu0 0.0
  %1195 = vmatprep.subr.mxu0 0.0
  %1196 = vmatpush1.msra.mxu0 0.0
  %1197 = vmatprep.subr.mxu0 0.0
  %1198 = vmatpush1.msra.mxu0 0.0
  %1199 = vmatprep.mubr.f32.mxu0 0.0
  %v1200 = vand.u32 %v41, 4294901760
  %1201 = vmatmul.mubr.f32.gmra.mrb[0].mxu0 %v1200
  %v1202 = vpop.f32.mrb[0].mxu0
  %v1203 = vadd.f32 %v1094, %v1202
  %v1204 = vpop.f32.mrb[0].mxu0
  %1205 = vmatprep.mubr.f32.mxu0 0.0
  %v1206 = vand.u32 %v44, 4294901760
  %1207 = vmatmul.mubr.f32.gmra.mrb[0].mxu0 %v1206
  %v1208 = vpop.f32.mrb[0].mxu0
  %v1209 = vadd.f32 %v1102, %v1208
  %v1210 = vpop.f32.mrb[0].mxu0
  %1211 = vmatprep.mubr.f32.mxu0 0.0
  %v1212 = vand.u32 %v47, 4294901760
  %1213 = vmatmul.mubr.f32.gmra.mrb[0].mxu0 %v1212
  %v1214 = vpop.f32.mrb[0].mxu0
  %v1215 = vadd.f32 %v1110, %v1214
  %v1216 = vpop.f32.mrb[0].mxu0
  %1217 = vmatprep.mubr.f32.mxu0 0.0
  %v1218 = vand.u32 %v50, 4294901760
  %1219 = vmatmul.mubr.f32.gmra.mrb[0].mxu0 %v1218
  %v1220 = vpop.f32.mrb[0].mxu0
  %v1221 = vadd.f32 %v1118, %v1220
  %v1222 = vpop.f32.mrb[0].mxu0
  %1223 = vmatprep.mubr.f32.mxu0 0.0
  %v1224 = vand.u32 %v53, 4294901760
  %1225 = vmatmul.mubr.f32.gmra.mrb[0].mxu0 %v1224
  %v1226 = vpop.f32.mrb[0].mxu0
  %v1227 = vadd.f32 %v1126, %v1226
  %v1228 = vpop.f32.mrb[0].mxu0
  %1229 = vdwg.mxu0
  %1230 = vmatprep.subr.mxu0 0.0
  %v1231 = vand.u32 %v694, 4294901760
  %1232 = vmatpush1.msra.mxu0 %v1231
  %1233 = vmatprep.subr.mxu0 0.0
  %v1234 = vand.u32 %v695, 4294901760
  %1235 = vmatpush1.msra.mxu0 %v1234
  %1236 = vmatprep.subr.mxu0 0.0
  %1237 = vmatpush1.msra.mxu0 0.0
  %1238 = vmatprep.subr.mxu0 0.0
  %1239 = vmatpush1.msra.mxu0 0.0
  %1240 = vmatprep.subr.mxu0 0.0
  %1241 = vmatpush1.msra.mxu0 0.0
  %1242 = vmatprep.subr.mxu0 0.0
  %1243 = vmatpush1.msra.mxu0 0.0
  %1244 = vmatprep.subr.mxu0 0.0
  %1245 = vmatpush1.msra.mxu0 0.0
  %1246 = vmatprep.subr.mxu0 0.0
  %1247 = vmatpush1.msra.mxu0 0.0
  %1248 = vmatprep.subr.mxu0 0.0
  %1249 = vmatpush1.msra.mxu0 0.0
  %1250 = vmatprep.subr.mxu0 0.0
  %1251 = vmatpush1.msra.mxu0 0.0
  %1252 = vmatprep.subr.mxu0 0.0
  %1253 = vmatpush1.msra.mxu0 0.0
  %1254 = vmatprep.subr.mxu0 0.0
  %1255 = vmatpush1.msra.mxu0 0.0
  %1256 = vmatprep.subr.mxu0 0.0
  %1257 = vmatpush1.msra.mxu0 0.0
  %1258 = vmatprep.subr.mxu0 0.0
  %1259 = vmatpush1.msra.mxu0 0.0
  %1260 = vmatprep.subr.mxu0 0.0
  %1261 = vmatpush1.msra.mxu0 0.0
  %1262 = vmatprep.subr.mxu0 0.0
  %1263 = vmatpush1.msra.mxu0 0.0
  %1264 = vmatprep.subr.mxu0 0.0
  %1265 = vmatpush1.msra.mxu0 0.0
  %1266 = vmatprep.subr.mxu0 0.0
  %1267 = vmatpush1.msra.mxu0 0.0
  %1268 = vmatprep.subr.mxu0 0.0
  %1269 = vmatpush1.msra.mxu0 0.0
  %1270 = vmatprep.subr.mxu0 0.0
  %1271 = vmatpush1.msra.mxu0 0.0
  %1272 = vmatprep.subr.mxu0 0.0
  %1273 = vmatpush1.msra.mxu0 0.0
  %1274 = vmatprep.subr.mxu0 0.0
  %1275 = vmatpush1.msra.mxu0 0.0
  %1276 = vmatprep.subr.mxu0 0.0
  %1277 = vmatpush1.msra.mxu0 0.0
  %1278 = vmatprep.subr.mxu0 0.0
  %1279 = vmatpush1.msra.mxu0 0.0
  %1280 = vmatprep.subr.mxu0 0.0
  %1281 = vmatpush1.msra.mxu0 0.0
  %1282 = vmatprep.subr.mxu0 0.0
  %1283 = vmatpush1.msra.mxu0 0.0
  %1284 = vmatprep.subr.mxu0 0.0
  %1285 = vmatpush1.msra.mxu0 0.0
  %1286 = vmatprep.subr.mxu0 0.0
  %1287 = vmatpush1.msra.mxu0 0.0
  %1288 = vmatprep.subr.mxu0 0.0
  %1289 = vmatpush1.msra.mxu0 0.0
  %1290 = vmatprep.subr.mxu0 0.0
  %1291 = vmatpush1.msra.mxu0 0.0
  %1292 = vmatprep.subr.mxu0 0.0
  %1293 = vmatpush1.msra.mxu0 0.0
  %1294 = vmatprep.subr.mxu0 0.0
  %1295 = vmatpush1.msra.mxu0 0.0
  %1296 = vmatprep.mubr.f32.mxu0 0.0
  %v1297 = vand.u32 %v41, 4294901760
  %1298 = vmatmul.mubr.f32.gmra.mrb[0].mxu0 %v1297
  %v1299 = vpop.f32.mrb[0].mxu0
  %v1300 = vadd.f32 %v1203, %v1299
  %v1301 = vpop.f32.mrb[0].mxu0
  %1302 = vmatprep.mubr.f32.mxu0 0.0
  %v1303 = vand.u32 %v44, 4294901760
  %1304 = vmatmul.mubr.f32.gmra.mrb[0].mxu0 %v1303
  %v1305 = vpop.f32.mrb[0].mxu0
  %v1306 = vadd.f32 %v1209, %v1305
  %v1307 = vpop.f32.mrb[0].mxu0
  %1308 = vmatprep.mubr.f32.mxu0 0.0
  %v1309 = vand.u32 %v47, 4294901760
  %1310 = vmatmul.mubr.f32.gmra.mrb[0].mxu0 %v1309
  %v1311 = vpop.f32.mrb[0].mxu0
  %v1312 = vadd.f32 %v1215, %v1311
  %v1313 = vpop.f32.mrb[0].mxu0
  %1314 = vmatprep.mubr.f32.mxu0 0.0
  %v1315 = vand.u32 %v50, 4294901760
  %1316 = vmatmul.mubr.f32.gmra.mrb[0].mxu0 %v1315
  %v1317 = vpop.f32.mrb[0].mxu0
  %v1318 = vadd.f32 %v1221, %v1317
  %v1319 = vpop.f32.mrb[0].mxu0
  %1320 = vmatprep.mubr.f32.mxu0 0.0
  %v1321 = vand.u32 %v53, 4294901760
  %1322 = vmatmul.mubr.f32.gmra.mrb[0].mxu0 %v1321
  %v1323 = vpop.f32.mrb[0].mxu0
  %v1324 = vadd.f32 %v1227, %v1323
  %v1325 = vpop.f32.mrb[0].mxu0
  %1326 = vdwg.mxu0
  %s1327 = scalar_lea.vmem [#allocation2], 80
  %1328 = vst.msk [vmem:[%s1327] sm:$0xff] %vm686, %v1300
  %1329 = vst.msk [vmem:[%s1327 + $0x8] sm:$0xff] %vm686, %v1306
  %1330 = vst.msk [vmem:[%s1327 + $0x10] sm:$0xff] %vm686, %v1312
  %1331 = vst.msk [vmem:[%s1327 + $0x18] sm:$0xff] %vm686, %v1318
  %1332 = vst.msk [vmem:[%s1327 + $0x20] sm:$0xf] %vm691, %v1324
  %s1333 = scalar_lea.vmem %s1, 32
  %v1334 = vld [vmem:[%s1333] sm:$0xff]
  %v1335 = vld [vmem:[%s1333 + $0x8] sm:$0xff]
  %1336 = vmatprep.subr.mxu0 0.0
  %v1337 = vand.u32 %v1334, 4294901760
  %1338 = vmatpush1.msra.mxu0 %v1337
  %1339 = vmatprep.subr.mxu0 0.0
  %v1340 = vand.u32 %v1335, 4294901760
  %1341 = vmatpush1.msra.mxu0 %v1340
  %1342 = vmatprep.subr.mxu0 0.0
  %1343 = vmatpush1.msra.mxu0 0.0
  %1344 = vmatprep.subr.mxu0 0.0
  %1345 = vmatpush1.msra.mxu0 0.0
  %1346 = vmatprep.subr.mxu0 0.0
  %1347 = vmatpush1.msra.mxu0 0.0
  %1348 = vmatprep.subr.mxu0 0.0
  %1349 = vmatpush1.msra.mxu0 0.0
  %1350 = vmatprep.subr.mxu0 0.0
  %1351 = vmatpush1.msra.mxu0 0.0
  %1352 = vmatprep.subr.mxu0 0.0
  %1353 = vmatpush1.msra.mxu0 0.0
  %1354 = vmatprep.subr.mxu0 0.0
  %1355 = vmatpush1.msra.mxu0 0.0
  %1356 = vmatprep.subr.mxu0 0.0
  %1357 = vmatpush1.msra.mxu0 0.0
  %1358 = vmatprep.subr.mxu0 0.0
  %1359 = vmatpush1.msra.mxu0 0.0
  %1360 = vmatprep.subr.mxu0 0.0
  %1361 = vmatpush1.msra.mxu0 0.0
  %1362 = vmatprep.subr.mxu0 0.0
  %1363 = vmatpush1.msra.mxu0 0.0
  %1364 = vmatprep.subr.mxu0 0.0
  %1365 = vmatpush1.msra.mxu0 0.0
  %1366 = vmatprep.subr.mxu0 0.0
  %1367 = vmatpush1.msra.mxu0 0.0
  %1368 = vmatprep.subr.mxu0 0.0
  %1369 = vmatpush1.msra.mxu0 0.0
  %1370 = vmatprep.subr.mxu0 0.0
  %1371 = vmatpush1.msra.mxu0 0.0
  %1372 = vmatprep.subr.mxu0 0.0
  %1373 = vmatpush1.msra.mxu0 0.0
  %1374 = vmatprep.subr.mxu0 0.0
  %1375 = vmatpush1.msra.mxu0 0.0
  %1376 = vmatprep.subr.mxu0 0.0
  %1377 = vmatpush1.msra.mxu0 0.0
  %1378 = vmatprep.subr.mxu0 0.0
  %1379 = vmatpush1.msra.mxu0 0.0
  %1380 = vmatprep.subr.mxu0 0.0
  %1381 = vmatpush1.msra.mxu0 0.0
  %1382 = vmatprep.subr.mxu0 0.0
  %1383 = vmatpush1.msra.mxu0 0.0
  %1384 = vmatprep.subr.mxu0 0.0
  %1385 = vmatpush1.msra.mxu0 0.0
  %1386 = vmatprep.subr.mxu0 0.0
  %1387 = vmatpush1.msra.mxu0 0.0
  %1388 = vmatprep.subr.mxu0 0.0
  %1389 = vmatpush1.msra.mxu0 0.0
  %1390 = vmatprep.subr.mxu0 0.0
  %1391 = vmatpush1.msra.mxu0 0.0
  %1392 = vmatprep.subr.mxu0 0.0
  %1393 = vmatpush1.msra.mxu0 0.0
  %1394 = vmatprep.subr.mxu0 0.0
  %1395 = vmatpush1.msra.mxu0 0.0
  %1396 = vmatprep.subr.mxu0 0.0
  %1397 = vmatpush1.msra.mxu0 0.0
  %1398 = vmatprep.subr.mxu0 0.0
  %1399 = vmatpush1.msra.mxu0 0.0
  %1400 = vmatprep.subr.mxu0 0.0
  %1401 = vmatpush1.msra.mxu0 0.0
  %1402 = vmatprep.mubr.f32.mxu0 0.0
  %v1403 = vand.u32 %v41, 4294901760
  %v1404 = vsub.f32 %v41, %v1403
  %v1405 = vand.u32 %v1404, 4294901760
  %v1406 = vsub.f32 %v1404, %v1405
  %v1407 = vand.u32 %v1406, 4294901760
  %1408 = vmatmul.mubr.f32.gmra.mrb[0].mxu0 %v1407
  %v1409 = vpop.f32.mrb[0].mxu0
  %v1410 = vadd.f32 0.0, %v1409
  %v1411 = vpop.f32.mrb[0].mxu0
  %1412 = vmatprep.mubr.f32.mxu0 0.0
  %v1413 = vand.u32 %v44, 4294901760
  %v1414 = vsub.f32 %v44, %v1413
  %v1415 = vand.u32 %v1414, 4294901760
  %v1416 = vsub.f32 %v1414, %v1415
  %v1417 = vand.u32 %v1416, 4294901760
  %1418 = vmatmul.mubr.f32.gmra.mrb[0].mxu0 %v1417
  %v1419 = vpop.f32.mrb[0].mxu0
  %v1420 = vadd.f32 0.0, %v1419
  %v1421 = vpop.f32.mrb[0].mxu0
  %1422 = vmatprep.mubr.f32.mxu0 0.0
  %v1423 = vand.u32 %v47, 4294901760
  %v1424 = vsub.f32 %v47, %v1423
  %v1425 = vand.u32 %v1424, 4294901760
  %v1426 = vsub.f32 %v1424, %v1425
  %v1427 = vand.u32 %v1426, 4294901760
  %1428 = vmatmul.mubr.f32.gmra.mrb[0].mxu0 %v1427
  %v1429 = vpop.f32.mrb[0].mxu0
  %v1430 = vadd.f32 0.0, %v1429
  %v1431 = vpop.f32.mrb[0].mxu0
  %1432 = vmatprep.mubr.f32.mxu0 0.0
  %v1433 = vand.u32 %v50, 4294901760
  %v1434 = vsub.f32 %v50, %v1433
  %v1435 = vand.u32 %v1434, 4294901760
  %v1436 = vsub.f32 %v1434, %v1435
  %v1437 = vand.u32 %v1436, 4294901760
  %1438 = vmatmul.mubr.f32.gmra.mrb[0].mxu0 %v1437
  %v1439 = vpop.f32.mrb[0].mxu0
  %v1440 = vadd.f32 0.0, %v1439
  %v1441 = vpop.f32.mrb[0].mxu0
  %1442 = vmatprep.mubr.f32.mxu0 0.0
  %v1443 = vand.u32 %v53, 4294901760
  %v1444 = vsub.f32 %v53, %v1443
  %v1445 = vand.u32 %v1444, 4294901760
  %v1446 = vsub.f32 %v1444, %v1445
  %v1447 = vand.u32 %v1446, 4294901760
  %1448 = vmatmul.mubr.f32.gmra.mrb[0].mxu0 %v1447
  %v1449 = vpop.f32.mrb[0].mxu0
  %v1450 = vadd.f32 0.0, %v1449
  %v1451 = vpop.f32.mrb[0].mxu0
  %1452 = vdwg.mxu0
  %1453 = vmatprep.subr.mxu0 0.0
  %v1454 = vand.u32 %v1334, 4294901760
  %v1455 = vsub.f32 %v1334, %v1454
  %v1456 = vand.u32 %v1455, 4294901760
  %v1457 = vsub.f32 %v1455, %v1456
  %v1458 = vand.u32 %v1457, 4294901760
  %1459 = vmatpush1.msra.mxu0 %v1458
  %1460 = vmatprep.subr.mxu0 0.0
  %v1461 = vand.u32 %v1335, 4294901760
  %v1462 = vsub.f32 %v1335, %v1461
  %v1463 = vand.u32 %v1462, 4294901760
  %v1464 = vsub.f32 %v1462, %v1463
  %v1465 = vand.u32 %v1464, 4294901760
  %1466 = vmatpush1.msra.mxu0 %v1465
  %1467 = vmatprep.subr.mxu0 0.0
  %1468 = vmatpush1.msra.mxu0 0.0
  %1469 = vmatprep.subr.mxu0 0.0
  %1470 = vmatpush1.msra.mxu0 0.0
  %1471 = vmatprep.subr.mxu0 0.0
  %1472 = vmatpush1.msra.mxu0 0.0
  %1473 = vmatprep.subr.mxu0 0.0
  %1474 = vmatpush1.msra.mxu0 0.0
  %1475 = vmatprep.subr.mxu0 0.0
  %1476 = vmatpush1.msra.mxu0 0.0
  %1477 = vmatprep.subr.mxu0 0.0
  %1478 = vmatpush1.msra.mxu0 0.0
  %1479 = vmatprep.subr.mxu0 0.0
  %1480 = vmatpush1.msra.mxu0 0.0
  %1481 = vmatprep.subr.mxu0 0.0
  %1482 = vmatpush1.msra.mxu0 0.0
  %1483 = vmatprep.subr.mxu0 0.0
  %1484 = vmatpush1.msra.mxu0 0.0
  %1485 = vmatprep.subr.mxu0 0.0
  %1486 = vmatpush1.msra.mxu0 0.0
  %1487 = vmatprep.subr.mxu0 0.0
  %1488 = vmatpush1.msra.mxu0 0.0
  %1489 = vmatprep.subr.mxu0 0.0
  %1490 = vmatpush1.msra.mxu0 0.0
  %1491 = vmatprep.subr.mxu0 0.0
  %1492 = vmatpush1.msra.mxu0 0.0
  %1493 = vmatprep.subr.mxu0 0.0
  %1494 = vmatpush1.msra.mxu0 0.0
  %1495 = vmatprep.subr.mxu0 0.0
  %1496 = vmatpush1.msra.mxu0 0.0
  %1497 = vmatprep.subr.mxu0 0.0
  %1498 = vmatpush1.msra.mxu0 0.0
  %1499 = vmatprep.subr.mxu0 0.0
  %1500 = vmatpush1.msra.mxu0 0.0
  %1501 = vmatprep.subr.mxu0 0.0
  %1502 = vmatpush1.msra.mxu0 0.0
  %1503 = vmatprep.subr.mxu0 0.0
  %1504 = vmatpush1.msra.mxu0 0.0
  %1505 = vmatprep.subr.mxu0 0.0
  %1506 = vmatpush1.msra.mxu0 0.0
  %1507 = vmatprep.subr.mxu0 0.0
  %1508 = vmatpush1.msra.mxu0 0.0
  %1509 = vmatprep.subr.mxu0 0.0
  %1510 = vmatpush1.msra.mxu0 0.0
  %1511 = vmatprep.subr.mxu0 0.0
  %1512 = vmatpush1.msra.mxu0 0.0
  %1513 = vmatprep.subr.mxu0 0.0
  %1514 = vmatpush1.msra.mxu0 0.0
  %1515 = vmatprep.subr.mxu0 0.0
  %1516 = vmatpush1.msra.mxu0 0.0
  %1517 = vmatprep.subr.mxu0 0.0
  %1518 = vmatpush1.msra.mxu0 0.0
  %1519 = vmatprep.subr.mxu0 0.0
  %1520 = vmatpush1.msra.mxu0 0.0
  %1521 = vmatprep.subr.mxu0 0.0
  %1522 = vmatpush1.msra.mxu0 0.0
  %1523 = vmatprep.subr.mxu0 0.0
  %1524 = vmatpush1.msra.mxu0 0.0
  %1525 = vmatprep.subr.mxu0 0.0
  %1526 = vmatpush1.msra.mxu0 0.0
  %1527 = vmatprep.mubr.f32.mxu0 0.0
  %v1528 = vand.u32 %v41, 4294901760
  %1529 = vmatmul.mubr.f32.gmra.mrb[0].mxu0 %v1528
  %v1530 = vpop.f32.mrb[0].mxu0
  %v1531 = vadd.f32 %v1410, %v1530
  %v1532 = vpop.f32.mrb[0].mxu0
  %1533 = vmatprep.mubr.f32.mxu0 0.0
  %v1534 = vand.u32 %v44, 4294901760
  %1535 = vmatmul.mubr.f32.gmra.mrb[0].mxu0 %v1534
  %v1536 = vpop.f32.mrb[0].mxu0
  %v1537 = vadd.f32 %v1420, %v1536
  %v1538 = vpop.f32.mrb[0].mxu0
  %1539 = vmatprep.mubr.f32.mxu0 0.0
  %v1540 = vand.u32 %v47, 4294901760
  %1541 = vmatmul.mubr.f32.gmra.mrb[0].mxu0 %v1540
  %v1542 = vpop.f32.mrb[0].mxu0
  %v1543 = vadd.f32 %v1430, %v1542
  %v1544 = vpop.f32.mrb[0].mxu0
  %1545 = vmatprep.mubr.f32.mxu0 0.0
  %v1546 = vand.u32 %v50, 4294901760
  %1547 = vmatmul.mubr.f32.gmra.mrb[0].mxu0 %v1546
  %v1548 = vpop.f32.mrb[0].mxu0
  %v1549 = vadd.f32 %v1440, %v1548
  %v1550 = vpop.f32.mrb[0].mxu0
  %1551 = vmatprep.mubr.f32.mxu0 0.0
  %v1552 = vand.u32 %v53, 4294901760
  %1553 = vmatmul.mubr.f32.gmra.mrb[0].mxu0 %v1552
  %v1554 = vpop.f32.mrb[0].mxu0
  %v1555 = vadd.f32 %v1450, %v1554
  %v1556 = vpop.f32.mrb[0].mxu0
  %1557 = vdwg.mxu0
  %1558 = vmatprep.subr.mxu0 0.0
  %v1559 = vand.u32 %v1334, 4294901760
  %v1560 = vsub.f32 %v1334, %v1559
  %1561 = vmatpush1.msra.mxu0 %v1560
  %1562 = vmatprep.subr.mxu0 0.0
  %v1563 = vand.u32 %v1335, 4294901760
  %v1564 = vsub.f32 %v1335, %v1563
  %1565 = vmatpush1.msra.mxu0 %v1564
  %1566 = vmatprep.subr.mxu0 0.0
  %1567 = vmatpush1.msra.mxu0 0.0
  %1568 = vmatprep.subr.mxu0 0.0
  %1569 = vmatpush1.msra.mxu0 0.0
  %1570 = vmatprep.subr.mxu0 0.0
  %1571 = vmatpush1.msra.mxu0 0.0
  %1572 = vmatprep.subr.mxu0 0.0
  %1573 = vmatpush1.msra.mxu0 0.0
  %1574 = vmatprep.subr.mxu0 0.0
  %1575 = vmatpush1.msra.mxu0 0.0
  %1576 = vmatprep.subr.mxu0 0.0
  %1577 = vmatpush1.msra.mxu0 0.0
  %1578 = vmatprep.subr.mxu0 0.0
  %1579 = vmatpush1.msra.mxu0 0.0
  %1580 = vmatprep.subr.mxu0 0.0
  %1581 = vmatpush1.msra.mxu0 0.0
  %1582 = vmatprep.subr.mxu0 0.0
  %1583 = vmatpush1.msra.mxu0 0.0
  %1584 = vmatprep.subr.mxu0 0.0
  %1585 = vmatpush1.msra.mxu0 0.0
  %1586 = vmatprep.subr.mxu0 0.0
  %1587 = vmatpush1.msra.mxu0 0.0
  %1588 = vmatprep.subr.mxu0 0.0
  %1589 = vmatpush1.msra.mxu0 0.0
  %1590 = vmatprep.subr.mxu0 0.0
  %1591 = vmatpush1.msra.mxu0 0.0
  %1592 = vmatprep.subr.mxu0 0.0
  %1593 = vmatpush1.msra.mxu0 0.0
  %1594 = vmatprep.subr.mxu0 0.0
  %1595 = vmatpush1.msra.mxu0 0.0
  %1596 = vmatprep.subr.mxu0 0.0
  %1597 = vmatpush1.msra.mxu0 0.0
  %1598 = vmatprep.subr.mxu0 0.0
  %1599 = vmatpush1.msra.mxu0 0.0
  %1600 = vmatprep.subr.mxu0 0.0
  %1601 = vmatpush1.msra.mxu0 0.0
  %1602 = vmatprep.subr.mxu0 0.0
  %1603 = vmatpush1.msra.mxu0 0.0
  %1604 = vmatprep.subr.mxu0 0.0
  %1605 = vmatpush1.msra.mxu0 0.0
  %1606 = vmatprep.subr.mxu0 0.0
  %1607 = vmatpush1.msra.mxu0 0.0
  %1608 = vmatprep.subr.mxu0 0.0
  %1609 = vmatpush1.msra.mxu0 0.0
  %1610 = vmatprep.subr.mxu0 0.0
  %1611 = vmatpush1.msra.mxu0 0.0
  %1612 = vmatprep.subr.mxu0 0.0
  %1613 = vmatpush1.msra.mxu0 0.0
  %1614 = vmatprep.subr.mxu0 0.0
  %1615 = vmatpush1.msra.mxu0 0.0
  %1616 = vmatprep.subr.mxu0 0.0
  %1617 = vmatpush1.msra.mxu0 0.0
  %1618 = vmatprep.subr.mxu0 0.0
  %1619 = vmatpush1.msra.mxu0 0.0
  %1620 = vmatprep.subr.mxu0 0.0
  %1621 = vmatpush1.msra.mxu0 0.0
  %1622 = vmatprep.subr.mxu0 0.0
  %1623 = vmatpush1.msra.mxu0 0.0
  %1624 = vmatprep.subr.mxu0 0.0
  %1625 = vmatpush1.msra.mxu0 0.0
  %1626 = vmatprep.mubr.f32.mxu0 0.0
  %v1627 = vand.u32 %v41, 4294901760
  %v1628 = vsub.f32 %v41, %v1627
  %1629 = vmatmul.mubr.f32.gmra.mrb[0].mxu0 %v1628
  %v1630 = vpop.f32.mrb[0].mxu0
  %v1631 = vadd.f32 %v1531, %v1630
  %v1632 = vpop.f32.mrb[0].mxu0
  %1633 = vmatprep.mubr.f32.mxu0 0.0
  %v1634 = vand.u32 %v44, 4294901760
  %v1635 = vsub.f32 %v44, %v1634
  %1636 = vmatmul.mubr.f32.gmra.mrb[0].mxu0 %v1635
  %v1637 = vpop.f32.mrb[0].mxu0
  %v1638 = vadd.f32 %v1537, %v1637
  %v1639 = vpop.f32.mrb[0].mxu0
  %1640 = vmatprep.mubr.f32.mxu0 0.0
  %v1641 = vand.u32 %v47, 4294901760
  %v1642 = vsub.f32 %v47, %v1641
  %1643 = vmatmul.mubr.f32.gmra.mrb[0].mxu0 %v1642
  %v1644 = vpop.f32.mrb[0].mxu0
  %v1645 = vadd.f32 %v1543, %v1644
  %v1646 = vpop.f32.mrb[0].mxu0
  %1647 = vmatprep.mubr.f32.mxu0 0.0
  %v1648 = vand.u32 %v50, 4294901760
  %v1649 = vsub.f32 %v50, %v1648
  %1650 = vmatmul.mubr.f32.gmra.mrb[0].mxu0 %v1649
  %v1651 = vpop.f32.mrb[0].mxu0
  %v1652 = vadd.f32 %v1549, %v1651
  %v1653 = vpop.f32.mrb[0].mxu0
  %1654 = vmatprep.mubr.f32.mxu0 0.0
  %v1655 = vand.u32 %v53, 4294901760
  %v1656 = vsub.f32 %v53, %v1655
  %1657 = vmatmul.mubr.f32.gmra.mrb[0].mxu0 %v1656
  %v1658 = vpop.f32.mrb[0].mxu0
  %v1659 = vadd.f32 %v1555, %v1658
  %v1660 = vpop.f32.mrb[0].mxu0
  %1661 = vdwg.mxu0
  %1662 = vmatprep.subr.mxu0 0.0
  %v1663 = vand.u32 %v1334, 4294901760
  %1664 = vmatpush1.msra.mxu0 %v1663
  %1665 = vmatprep.subr.mxu0 0.0
  %v1666 = vand.u32 %v1335, 4294901760
  %1667 = vmatpush1.msra.mxu0 %v1666
  %1668 = vmatprep.subr.mxu0 0.0
  %1669 = vmatpush1.msra.mxu0 0.0
  %1670 = vmatprep.subr.mxu0 0.0
  %1671 = vmatpush1.msra.mxu0 0.0
  %1672 = vmatprep.subr.mxu0 0.0
  %1673 = vmatpush1.msra.mxu0 0.0
  %1674 = vmatprep.subr.mxu0 0.0
  %1675 = vmatpush1.msra.mxu0 0.0
  %1676 = vmatprep.subr.mxu0 0.0
  %1677 = vmatpush1.msra.mxu0 0.0
  %1678 = vmatprep.subr.mxu0 0.0
  %1679 = vmatpush1.msra.mxu0 0.0
  %1680 = vmatprep.subr.mxu0 0.0
  %1681 = vmatpush1.msra.mxu0 0.0
  %1682 = vmatprep.subr.mxu0 0.0
  %1683 = vmatpush1.msra.mxu0 0.0
  %1684 = vmatprep.subr.mxu0 0.0
  %1685 = vmatpush1.msra.mxu0 0.0
  %1686 = vmatprep.subr.mxu0 0.0
  %1687 = vmatpush1.msra.mxu0 0.0
  %1688 = vmatprep.subr.mxu0 0.0
  %1689 = vmatpush1.msra.mxu0 0.0
  %1690 = vmatprep.subr.mxu0 0.0
  %1691 = vmatpush1.msra.mxu0 0.0
  %1692 = vmatprep.subr.mxu0 0.0
  %1693 = vmatpush1.msra.mxu0 0.0
  %1694 = vmatprep.subr.mxu0 0.0
  %1695 = vmatpush1.msra.mxu0 0.0
  %1696 = vmatprep.subr.mxu0 0.0
  %1697 = vmatpush1.msra.mxu0 0.0
  %1698 = vmatprep.subr.mxu0 0.0
  %1699 = vmatpush1.msra.mxu0 0.0
  %1700 = vmatprep.subr.mxu0 0.0
  %1701 = vmatpush1.msra.mxu0 0.0
  %1702 = vmatprep.subr.mxu0 0.0
  %1703 = vmatpush1.msra.mxu0 0.0
  %1704 = vmatprep.subr.mxu0 0.0
  %1705 = vmatpush1.msra.mxu0 0.0
  %1706 = vmatprep.subr.mxu0 0.0
  %1707 = vmatpush1.msra.mxu0 0.0
  %1708 = vmatprep.subr.mxu0 0.0
  %1709 = vmatpush1.msra.mxu0 0.0
  %1710 = vmatprep.subr.mxu0 0.0
  %1711 = vmatpush1.msra.mxu0 0.0
  %1712 = vmatprep.subr.mxu0 0.0
  %1713 = vmatpush1.msra.mxu0 0.0
  %1714 = vmatprep.subr.mxu0 0.0
  %1715 = vmatpush1.msra.mxu0 0.0
  %1716 = vmatprep.subr.mxu0 0.0
  %1717 = vmatpush1.msra.mxu0 0.0
  %1718 = vmatprep.subr.mxu0 0.0
  %1719 = vmatpush1.msra.mxu0 0.0
  %1720 = vmatprep.subr.mxu0 0.0
  %1721 = vmatpush1.msra.mxu0 0.0
  %1722 = vmatprep.subr.mxu0 0.0
  %1723 = vmatpush1.msra.mxu0 0.0
  %1724 = vmatprep.subr.mxu0 0.0
  %1725 = vmatpush1.msra.mxu0 0.0
  %1726 = vmatprep.subr.mxu0 0.0
  %1727 = vmatpush1.msra.mxu0 0.0
  %1728 = vmatprep.mubr.f32.mxu0 0.0
  %v1729 = vand.u32 %v41, 4294901760
  %v1730 = vsub.f32 %v41, %v1729
  %v1731 = vand.u32 %v1730, 4294901760
  %1732 = vmatmul.mubr.f32.gmra.mrb[0].mxu0 %v1731
  %v1733 = vpop.f32.mrb[0].mxu0
  %v1734 = vadd.f32 %v1631, %v1733
  %v1735 = vpop.f32.mrb[0].mxu0
  %1736 = vmatprep.mubr.f32.mxu0 0.0
  %v1737 = vand.u32 %v44, 4294901760
  %v1738 = vsub.f32 %v44, %v1737
  %v1739 = vand.u32 %v1738, 4294901760
  %1740 = vmatmul.mubr.f32.gmra.mrb[0].mxu0 %v1739
  %v1741 = vpop.f32.mrb[0].mxu0
  %v1742 = vadd.f32 %v1638, %v1741
  %v1743 = vpop.f32.mrb[0].mxu0
  %1744 = vmatprep.mubr.f32.mxu0 0.0
  %v1745 = vand.u32 %v47, 4294901760
  %v1746 = vsub.f32 %v47, %v1745
  %v1747 = vand.u32 %v1746, 4294901760
  %1748 = vmatmul.mubr.f32.gmra.mrb[0].mxu0 %v1747
  %v1749 = vpop.f32.mrb[0].mxu0
  %v1750 = vadd.f32 %v1645, %v1749
  %v1751 = vpop.f32.mrb[0].mxu0
  %1752 = vmatprep.mubr.f32.mxu0 0.0
  %v1753 = vand.u32 %v50, 4294901760
  %v1754 = vsub.f32 %v50, %v1753
  %v1755 = vand.u32 %v1754, 4294901760
  %1756 = vmatmul.mubr.f32.gmra.mrb[0].mxu0 %v1755
  %v1757 = vpop.f32.mrb[0].mxu0
  %v1758 = vadd.f32 %v1652, %v1757
  %v1759 = vpop.f32.mrb[0].mxu0
  %1760 = vmatprep.mubr.f32.mxu0 0.0
  %v1761 = vand.u32 %v53, 4294901760
  %v1762 = vsub.f32 %v53, %v1761
  %v1763 = vand.u32 %v1762, 4294901760
  %1764 = vmatmul.mubr.f32.gmra.mrb[0].mxu0 %v1763
  %v1765 = vpop.f32.mrb[0].mxu0
  %v1766 = vadd.f32 %v1659, %v1765
  %v1767 = vpop.f32.mrb[0].mxu0
  %1768 = vdwg.mxu0
  %1769 = vmatprep.subr.mxu0 0.0
  %v1770 = vand.u32 %v1334, 4294901760
  %v1771 = vsub.f32 %v1334, %v1770
  %v1772 = vand.u32 %v1771, 4294901760
  %1773 = vmatpush1.msra.mxu0 %v1772
  %1774 = vmatprep.subr.mxu0 0.0
  %v1775 = vand.u32 %v1335, 4294901760
  %v1776 = vsub.f32 %v1335, %v1775
  %v1777 = vand.u32 %v1776, 4294901760
  %1778 = vmatpush1.msra.mxu0 %v1777
  %1779 = vmatprep.subr.mxu0 0.0
  %1780 = vmatpush1.msra.mxu0 0.0
  %1781 = vmatprep.subr.mxu0 0.0
  %1782 = vmatpush1.msra.mxu0 0.0
  %1783 = vmatprep.subr.mxu0 0.0
  %1784 = vmatpush1.msra.mxu0 0.0
  %1785 = vmatprep.subr.mxu0 0.0
  %1786 = vmatpush1.msra.mxu0 0.0
  %1787 = vmatprep.subr.mxu0 0.0
  %1788 = vmatpush1.msra.mxu0 0.0
  %1789 = vmatprep.subr.mxu0 0.0
  %1790 = vmatpush1.msra.mxu0 0.0
  %1791 = vmatprep.subr.mxu0 0.0
  %1792 = vmatpush1.msra.mxu0 0.0
  %1793 = vmatprep.subr.mxu0 0.0
  %1794 = vmatpush1.msra.mxu0 0.0
  %1795 = vmatprep.subr.mxu0 0.0
  %1796 = vmatpush1.msra.mxu0 0.0
  %1797 = vmatprep.subr.mxu0 0.0
  %1798 = vmatpush1.msra.mxu0 0.0
  %1799 = vmatprep.subr.mxu0 0.0
  %1800 = vmatpush1.msra.mxu0 0.0
  %1801 = vmatprep.subr.mxu0 0.0
  %1802 = vmatpush1.msra.mxu0 0.0
  %1803 = vmatprep.subr.mxu0 0.0
  %1804 = vmatpush1.msra.mxu0 0.0
  %1805 = vmatprep.subr.mxu0 0.0
  %1806 = vmatpush1.msra.mxu0 0.0
  %1807 = vmatprep.subr.mxu0 0.0
  %1808 = vmatpush1.msra.mxu0 0.0
  %1809 = vmatprep.subr.mxu0 0.0
  %1810 = vmatpush1.msra.mxu0 0.0
  %1811 = vmatprep.subr.mxu0 0.0
  %1812 = vmatpush1.msra.mxu0 0.0
  %1813 = vmatprep.subr.mxu0 0.0
  %1814 = vmatpush1.msra.mxu0 0.0
  %1815 = vmatprep.subr.mxu0 0.0
  %1816 = vmatpush1.msra.mxu0 0.0
  %1817 = vmatprep.subr.mxu0 0.0
  %1818 = vmatpush1.msra.mxu0 0.0
  %1819 = vmatprep.subr.mxu0 0.0
  %1820 = vmatpush1.msra.mxu0 0.0
  %1821 = vmatprep.subr.mxu0 0.0
  %1822 = vmatpush1.msra.mxu0 0.0
  %1823 = vmatprep.subr.mxu0 0.0
  %1824 = vmatpush1.msra.mxu0 0.0
  %1825 = vmatprep.subr.mxu0 0.0
  %1826 = vmatpush1.msra.mxu0 0.0
  %1827 = vmatprep.subr.mxu0 0.0
  %1828 = vmatpush1.msra.mxu0 0.0
  %1829 = vmatprep.subr.mxu0 0.0
  %1830 = vmatpush1.msra.mxu0 0.0
  %1831 = vmatprep.subr.mxu0 0.0
  %1832 = vmatpush1.msra.mxu0 0.0
  %1833 = vmatprep.subr.mxu0 0.0
  %1834 = vmatpush1.msra.mxu0 0.0
  %1835 = vmatprep.subr.mxu0 0.0
  %1836 = vmatpush1.msra.mxu0 0.0
  %1837 = vmatprep.subr.mxu0 0.0
  %1838 = vmatpush1.msra.mxu0 0.0
  %1839 = vmatprep.mubr.f32.mxu0 0.0
  %v1840 = vand.u32 %v41, 4294901760
  %1841 = vmatmul.mubr.f32.gmra.mrb[0].mxu0 %v1840
  %v1842 = vpop.f32.mrb[0].mxu0
  %v1843 = vadd.f32 %v1734, %v1842
  %v1844 = vpop.f32.mrb[0].mxu0
  %1845 = vmatprep.mubr.f32.mxu0 0.0
  %v1846 = vand.u32 %v44, 4294901760
  %1847 = vmatmul.mubr.f32.gmra.mrb[0].mxu0 %v1846
  %v1848 = vpop.f32.mrb[0].mxu0
  %v1849 = vadd.f32 %v1742, %v1848
  %v1850 = vpop.f32.mrb[0].mxu0
  %1851 = vmatprep.mubr.f32.mxu0 0.0
  %v1852 = vand.u32 %v47, 4294901760
  %1853 = vmatmul.mubr.f32.gmra.mrb[0].mxu0 %v1852
  %v1854 = vpop.f32.mrb[0].mxu0
  %v1855 = vadd.f32 %v1750, %v1854
  %v1856 = vpop.f32.mrb[0].mxu0
  %1857 = vmatprep.mubr.f32.mxu0 0.0
  %v1858 = vand.u32 %v50, 4294901760
  %1859 = vmatmul.mubr.f32.gmra.mrb[0].mxu0 %v1858
  %v1860 = vpop.f32.mrb[0].mxu0
  %v1861 = vadd.f32 %v1758, %v1860
  %v1862 = vpop.f32.mrb[0].mxu0
  %1863 = vmatprep.mubr.f32.mxu0 0.0
  %v1864 = vand.u32 %v53, 4294901760
  %1865 = vmatmul.mubr.f32.gmra.mrb[0].mxu0 %v1864
  %v1866 = vpop.f32.mrb[0].mxu0
  %v1867 = vadd.f32 %v1766, %v1866
  %v1868 = vpop.f32.mrb[0].mxu0
  %1869 = vdwg.mxu0
  %1870 = vmatprep.subr.mxu0 0.0
  %v1871 = vand.u32 %v1334, 4294901760
  %1872 = vmatpush1.msra.mxu0 %v1871
  %1873 = vmatprep.subr.mxu0 0.0
  %v1874 = vand.u32 %v1335, 4294901760
  %1875 = vmatpush1.msra.mxu0 %v1874
  %1876 = vmatprep.subr.mxu0 0.0
  %1877 = vmatpush1.msra.mxu0 0.0
  %1878 = vmatprep.subr.mxu0 0.0
  %1879 = vmatpush1.msra.mxu0 0.0
  %1880 = vmatprep.subr.mxu0 0.0
  %1881 = vmatpush1.msra.mxu0 0.0
  %1882 = vmatprep.subr.mxu0 0.0
  %1883 = vmatpush1.msra.mxu0 0.0
  %1884 = vmatprep.subr.mxu0 0.0
  %1885 = vmatpush1.msra.mxu0 0.0
  %1886 = vmatprep.subr.mxu0 0.0
  %1887 = vmatpush1.msra.mxu0 0.0
  %1888 = vmatprep.subr.mxu0 0.0
  %1889 = vmatpush1.msra.mxu0 0.0
  %1890 = vmatprep.subr.mxu0 0.0
  %1891 = vmatpush1.msra.mxu0 0.0
  %1892 = vmatprep.subr.mxu0 0.0
  %1893 = vmatpush1.msra.mxu0 0.0
  %1894 = vmatprep.subr.mxu0 0.0
  %1895 = vmatpush1.msra.mxu0 0.0
  %1896 = vmatprep.subr.mxu0 0.0
  %1897 = vmatpush1.msra.mxu0 0.0
  %1898 = vmatprep.subr.mxu0 0.0
  %1899 = vmatpush1.msra.mxu0 0.0
  %1900 = vmatprep.subr.mxu0 0.0
  %1901 = vmatpush1.msra.mxu0 0.0
  %1902 = vmatprep.subr.mxu0 0.0
  %1903 = vmatpush1.msra.mxu0 0.0
  %1904 = vmatprep.subr.mxu0 0.0
  %1905 = vmatpush1.msra.mxu0 0.0
  %1906 = vmatprep.subr.mxu0 0.0
  %1907 = vmatpush1.msra.mxu0 0.0
  %1908 = vmatprep.subr.mxu0 0.0
  %1909 = vmatpush1.msra.mxu0 0.0
  %1910 = vmatprep.subr.mxu0 0.0
  %1911 = vmatpush1.msra.mxu0 0.0
  %1912 = vmatprep.subr.mxu0 0.0
  %1913 = vmatpush1.msra.mxu0 0.0
  %1914 = vmatprep.subr.mxu0 0.0
  %1915 = vmatpush1.msra.mxu0 0.0
  %1916 = vmatprep.subr.mxu0 0.0
  %1917 = vmatpush1.msra.mxu0 0.0
  %1918 = vmatprep.subr.mxu0 0.0
  %1919 = vmatpush1.msra.mxu0 0.0
  %1920 = vmatprep.subr.mxu0 0.0
  %1921 = vmatpush1.msra.mxu0 0.0
  %1922 = vmatprep.subr.mxu0 0.0
  %1923 = vmatpush1.msra.mxu0 0.0
  %1924 = vmatprep.subr.mxu0 0.0
  %1925 = vmatpush1.msra.mxu0 0.0
  %1926 = vmatprep.subr.mxu0 0.0
  %1927 = vmatpush1.msra.mxu0 0.0
  %1928 = vmatprep.subr.mxu0 0.0
  %1929 = vmatpush1.msra.mxu0 0.0
  %1930 = vmatprep.subr.mxu0 0.0
  %1931 = vmatpush1.msra.mxu0 0.0
  %1932 = vmatprep.subr.mxu0 0.0
  %1933 = vmatpush1.msra.mxu0 0.0
  %1934 = vmatprep.subr.mxu0 0.0
  %1935 = vmatpush1.msra.mxu0 0.0
  %1936 = vmatprep.mubr.f32.mxu0 0.0
  %v1937 = vand.u32 %v41, 4294901760
  %1938 = vmatmul.mubr.f32.gmra.mrb[0].mxu0 %v1937
  %v1939 = vpop.f32.mrb[0].mxu0
  %v1940 = vadd.f32 %v1843, %v1939
  %v1941 = vpop.f32.mrb[0].mxu0
  %1942 = vmatprep.mubr.f32.mxu0 0.0
  %v1943 = vand.u32 %v44, 4294901760
  %1944 = vmatmul.mubr.f32.gmra.mrb[0].mxu0 %v1943
  %v1945 = vpop.f32.mrb[0].mxu0
  %v1946 = vadd.f32 %v1849, %v1945
  %v1947 = vpop.f32.mrb[0].mxu0
  %1948 = vmatprep.mubr.f32.mxu0 0.0
  %v1949 = vand.u32 %v47, 4294901760
  %1950 = vmatmul.mubr.f32.gmra.mrb[0].mxu0 %v1949
  %v1951 = vpop.f32.mrb[0].mxu0
  %v1952 = vadd.f32 %v1855, %v1951
  %v1953 = vpop.f32.mrb[0].mxu0
  %1954 = vmatprep.mubr.f32.mxu0 0.0
  %v1955 = vand.u32 %v50, 4294901760
  %1956 = vmatmul.mubr.f32.gmra.mrb[0].mxu0 %v1955
  %v1957 = vpop.f32.mrb[0].mxu0
  %v1958 = vadd.f32 %v1861, %v1957
  %v1959 = vpop.f32.mrb[0].mxu0
  %1960 = vmatprep.mubr.f32.mxu0 0.0
  %v1961 = vand.u32 %v53, 4294901760
  %1962 = vmatmul.mubr.f32.gmra.mrb[0].mxu0 %v1961
  %v1963 = vpop.f32.mrb[0].mxu0
  %v1964 = vadd.f32 %v1867, %v1963
  %v1965 = vpop.f32.mrb[0].mxu0
  %1966 = vdwg.mxu0
  %s1967 = scalar_lea.vmem [#allocation2], 160
  %1968 = vst.msk [vmem:[%s1967] sm:$0xff] %vm686, %v1940
  %1969 = vst.msk [vmem:[%s1967 + $0x8] sm:$0xff] %vm686, %v1946
  %1970 = vst.msk [vmem:[%s1967 + $0x10] sm:$0xff] %vm686, %v1952
  %1971 = vst.msk [vmem:[%s1967 + $0x18] sm:$0xff] %vm686, %v1958
  %1972 = vst.msk [vmem:[%s1967 + $0x20] sm:$0xf] %vm691, %v1964
  %v1973 = vld [vmem:[%s2] sm:$0xf]
  %v1974 = vld [vmem:[#allocation2] sm:$0x7]
  %vm1975 = vcmask 59392
  %1976 = vst.msk [vmem:[#allocation3] sm:$0x7] %vm1975, %v1974
  %v1977 = vld [vmem:[#allocation2 + $0x12] sm:$0x7]
  %1979 = vrot.lane.b32.xlu0 %v1977, 8
  %v1980 = vpop.permute.xlu0 %1979
  %vm1982 = vcmask 124992
  %1983 = vst.msk [vmem:[#allocation3] sm:$0x7] %vm1982, %v1980
  %v1984 = vld [vmem:[#allocation2 + $0x2] sm:$0x7]
  %1986 = vrot.lane.b32.xlu0 %v1984, 16
  %v1987 = vpop.permute.xlu0 %1986
  %vm1989 = vcmask 190592
  %1990 = vst.msk [vmem:[#allocation3] sm:$0x7] %vm1989, %v1987
  %v1991 = vld [vmem:[#allocation2 + $0x14] sm:$0x7]
  %1993 = vrot.lane.b32.xlu0 %v1991, 24
  %v1994 = vpop.permute.xlu0 %1993
  %vm1996 = vcmask 256192
  %1997 = vst.msk [vmem:[#allocation3] sm:$0x7] %vm1996, %v1994
  %v1998 = vld [vmem:[#allocation2 + $0x4] sm:$0x7]
  %2000 = vrot.lane.b32.xlu0 %v1998, 32
  %v2001 = vpop.permute.xlu0 %2000
  %vm2003 = vcmask 321792
  %2004 = vst.msk [vmem:[#allocation3] sm:$0x7] %vm2003, %v2001
  %v2005 = vld [vmem:[#allocation2 + $0x16] sm:$0x7]
  %2007 = vrot.lane.b32.xlu0 %v2005, 40
  %v2008 = vpop.permute.xlu0 %2007
  %vm2010 = vcmask 387392
  %2011 = vst.msk [vmem:[#allocation3] sm:$0x7] %vm2010, %v2008
  %v2012 = vld [vmem:[#allocation2 + $0x6] sm:$0x7]
  %2014 = vrot.lane.b32.xlu0 %v2012, 48
  %v2015 = vpop.permute.xlu0 %2014
  %vm2017 = vcmask 452992
  %2018 = vst.msk [vmem:[#allocation3] sm:$0x7] %vm2017, %v2015
  %v2019 = vld [vmem:[#allocation2 + $0x18] sm:$0x7]
  %2021 = vrot.lane.b32.xlu0 %v2019, 56
  %v2022 = vpop.permute.xlu0 %2021
  %vm2024 = vcmask 518592
  %2025 = vst.msk [vmem:[#allocation3] sm:$0x7] %vm2024, %v2022
  %v2026 = vld [vmem:[#allocation2 + $0x8] sm:$0x7]
  %2028 = vrot.lane.b32.xlu0 %v2026, 64
  %v2029 = vpop.permute.xlu0 %2028
  %vm2031 = vcmask 584192
  %2032 = vst.msk [vmem:[#allocation3] sm:$0x7] %vm2031, %v2029
  %v2033 = vld [vmem:[#allocation2 + $0x1a] sm:$0x7]
  %2035 = vrot.lane.b32.xlu0 %v2033, 72
  %v2036 = vpop.permute.xlu0 %2035
  %vm2038 = vcmask 649792
  %2039 = vst.msk [vmem:[#allocation3] sm:$0x7] %vm2038, %v2036
  %v2040 = vld [vmem:[#allocation2 + $0xa] sm:$0x7]
  %2042 = vrot.lane.b32.xlu0 %v2040, 80
  %v2043 = vpop.permute.xlu0 %2042
  %vm2045 = vcmask 715392
  %2046 = vst.msk [vmem:[#allocation3] sm:$0x7] %vm2045, %v2043
  %v2047 = vld [vmem:[#allocation2 + $0x1c] sm:$0x7]
  %2049 = vrot.lane.b32.xlu0 %v2047, 88
  %v2050 = vpop.permute.xlu0 %2049
  %vm2052 = vcmask 780992
  %2053 = vst.msk [vmem:[#allocation3] sm:$0x7] %vm2052, %v2050
  %v2054 = vld [vmem:[#allocation2 + $0xc] sm:$0x7]
  %2056 = vrot.lane.b32.xlu0 %v2054, 96
  %v2057 = vpop.permute.xlu0 %2056
  %vm2059 = vcmask 846592
  %2060 = vst.msk [vmem:[#allocation3] sm:$0x7] %vm2059, %v2057
  %v2061 = vld [vmem:[#allocation2 + $0x1e] sm:$0x7]
  %2063 = vrot.lane.b32.xlu0 %v2061, 104
  %v2064 = vpop.permute.xlu0 %2063
  %vm2066 = vcmask 912192
  %2067 = vst.msk [vmem:[#allocation3] sm:$0x7] %vm2066, %v2064
  %v2068 = vld [vmem:[#allocation2 + $0xe] sm:$0x7]
  %2070 = vrot.lane.b32.xlu0 %v2068, 112
  %v2071 = vpop.permute.xlu0 %2070
  %vm2073 = vcmask 977792
  %2074 = vst.msk [vmem:[#allocation3] sm:$0x7] %vm2073, %v2071
  %v2075 = vld [vmem:[#allocation2 + $0x20] sm:$0x7]
  %2077 = vrot.lane.b32.xlu0 %v2075, 120
  %v2078 = vpop.permute.xlu0 %2077
  %vm2080 = vcmask 1043392
  %2081 = vst.msk [vmem:[#allocation3] sm:$0x7] %vm2080, %v2078
  %v2082 = vld [vmem:[%s1327] sm:$0x7]
  %2083 = vst.msk [vmem:[#allocation3 + $0x3] sm:$0x7] %vm1975, %v2082
  %v2084 = vld [vmem:[%s1327 + $0x12] sm:$0x7]
  %2086 = vrot.lane.b32.xlu0 %v2084, 8
  %v2087 = vpop.permute.xlu0 %2086
  %2089 = vst.msk [vmem:[#allocation3 + $0x3] sm:$0x7] %vm1982, %v2087
  %v2090 = vld [vmem:[%s1327 + $0x2] sm:$0x7]
  %2092 = vrot.lane.b32.xlu0 %v2090, 16
  %v2093 = vpop.permute.xlu0 %2092
  %2095 = vst.msk [vmem:[#allocation3 + $0x3] sm:$0x7] %vm1989, %v2093
  %v2096 = vld [vmem:[%s1327 + $0x14] sm:$0x7]
  %2098 = vrot.lane.b32.xlu0 %v2096, 24
  %v2099 = vpop.permute.xlu0 %2098
  %2101 = vst.msk [vmem:[#allocation3 + $0x3] sm:$0x7] %vm1996, %v2099
  %v2102 = vld [vmem:[%s1327 + $0x4] sm:$0x7]
  %2104 = vrot.lane.b32.xlu0 %v2102, 32
  %v2105 = vpop.permute.xlu0 %2104
  %2107 = vst.msk [vmem:[#allocation3 + $0x3] sm:$0x7] %vm2003, %v2105
  %v2108 = vld [vmem:[%s1327 + $0x16] sm:$0x7]
  %2110 = vrot.lane.b32.xlu0 %v2108, 40
  %v2111 = vpop.permute.xlu0 %2110
  %2113 = vst.msk [vmem:[#allocation3 + $0x3] sm:$0x7] %vm2010, %v2111
  %v2114 = vld [vmem:[%s1327 + $0x6] sm:$0x7]
  %2116 = vrot.lane.b32.xlu0 %v2114, 48
  %v2117 = vpop.permute.xlu0 %2116
  %2119 = vst.msk [vmem:[#allocation3 + $0x3] sm:$0x7] %vm2017, %v2117
  %v2120 = vld [vmem:[%s1327 + $0x18] sm:$0x7]
  %2122 = vrot.lane.b32.xlu0 %v2120, 56
  %v2123 = vpop.permute.xlu0 %2122
  %2125 = vst.msk [vmem:[#allocation3 + $0x3] sm:$0x7] %vm2024, %v2123
  %v2126 = vld [vmem:[%s1327 + $0x8] sm:$0x7]
  %2128 = vrot.lane.b32.xlu0 %v2126, 64
  %v2129 = vpop.permute.xlu0 %2128
  %2131 = vst.msk [vmem:[#allocation3 + $0x3] sm:$0x7] %vm2031, %v2129
  %v2132 = vld [vmem:[%s1327 + $0x1a] sm:$0x7]
  %2134 = vrot.lane.b32.xlu0 %v2132, 72
  %v2135 = vpop.permute.xlu0 %2134
  %2137 = vst.msk [vmem:[#allocation3 + $0x3] sm:$0x7] %vm2038, %v2135
  %v2138 = vld [vmem:[%s1327 + $0xa] sm:$0x7]
  %2140 = vrot.lane.b32.xlu0 %v2138, 80
  %v2141 = vpop.permute.xlu0 %2140
  %2143 = vst.msk [vmem:[#allocation3 + $0x3] sm:$0x7] %vm2045, %v2141
  %v2144 = vld [vmem:[%s1327 + $0x1c] sm:$0x7]
  %2146 = vrot.lane.b32.xlu0 %v2144, 88
  %v2147 = vpop.permute.xlu0 %2146
  %2149 = vst.msk [vmem:[#allocation3 + $0x3] sm:$0x7] %vm2052, %v2147
  %v2150 = vld [vmem:[%s1327 + $0xc] sm:$0x7]
  %2152 = vrot.lane.b32.xlu0 %v2150, 96
  %v2153 = vpop.permute.xlu0 %2152
  %2155 = vst.msk [vmem:[#allocation3 + $0x3] sm:$0x7] %vm2059, %v2153
  %v2156 = vld [vmem:[%s1327 + $0x1e] sm:$0x7]
  %2158 = vrot.lane.b32.xlu0 %v2156, 104
  %v2159 = vpop.permute.xlu0 %2158
  %2161 = vst.msk [vmem:[#allocation3 + $0x3] sm:$0x7] %vm2066, %v2159
  %v2162 = vld [vmem:[%s1327 + $0xe] sm:$0x7]
  %2164 = vrot.lane.b32.xlu0 %v2162, 112
  %v2165 = vpop.permute.xlu0 %2164
  %2167 = vst.msk [vmem:[#allocation3 + $0x3] sm:$0x7] %vm2073, %v2165
  %v2168 = vld [vmem:[%s1327 + $0x20] sm:$0x7]
  %2170 = vrot.lane.b32.xlu0 %v2168, 120
  %v2171 = vpop.permute.xlu0 %2170
  %2173 = vst.msk [vmem:[#allocation3 + $0x3] sm:$0x7] %vm2080, %v2171
  %v2174 = vld [vmem:[%s1967] sm:$0x7]
  %2175 = vst.msk [vmem:[#allocation3 + $0x6] sm:$0x7] %vm1975, %v2174
  %v2176 = vld [vmem:[%s1967 + $0x12] sm:$0x7]
  %2178 = vrot.lane.b32.xlu0 %v2176, 8
  %v2179 = vpop.permute.xlu0 %2178
  %2181 = vst.msk [vmem:[#allocation3 + $0x6] sm:$0x7] %vm1982, %v2179
  %v2182 = vld [vmem:[%s1967 + $0x2] sm:$0x7]
  %2184 = vrot.lane.b32.xlu0 %v2182, 16
  %v2185 = vpop.permute.xlu0 %2184
  %2187 = vst.msk [vmem:[#allocation3 + $0x6] sm:$0x7] %vm1989, %v2185
  %v2188 = vld [vmem:[%s1967 + $0x14] sm:$0x7]
  %2190 = vrot.lane.b32.xlu0 %v2188, 24
  %v2191 = vpop.permute.xlu0 %2190
  %2193 = vst.msk [vmem:[#allocation3 + $0x6] sm:$0x7] %vm1996, %v2191
  %v2194 = vld [vmem:[%s1967 + $0x4] sm:$0x7]
  %2196 = vrot.lane.b32.xlu0 %v2194, 32
  %v2197 = vpop.permute.xlu0 %2196
  %2199 = vst.msk [vmem:[#allocation3 + $0x6] sm:$0x7] %vm2003, %v2197
  %v2200 = vld [vmem:[%s1967 + $0x16] sm:$0x7]
  %2202 = vrot.lane.b32.xlu0 %v2200, 40
  %v2203 = vpop.permute.xlu0 %2202
  %2205 = vst.msk [vmem:[#allocation3 + $0x6] sm:$0x7] %vm2010, %v2203
  %v2206 = vld [vmem:[%s1967 + $0x6] sm:$0x7]
  %2208 = vrot.lane.b32.xlu0 %v2206, 48
  %v2209 = vpop.permute.xlu0 %2208
  %2211 = vst.msk [vmem:[#allocation3 + $0x6] sm:$0x7] %vm2017, %v2209
  %v2212 = vld [vmem:[%s1967 + $0x18] sm:$0x7]
  %2214 = vrot.lane.b32.xlu0 %v2212, 56
  %v2215 = vpop.permute.xlu0 %2214
  %2217 = vst.msk [vmem:[#allocation3 + $0x6] sm:$0x7] %vm2024, %v2215
  %v2218 = vld [vmem:[%s1967 + $0x8] sm:$0x7]
  %2220 = vrot.lane.b32.xlu0 %v2218, 64
  %v2221 = vpop.permute.xlu0 %2220
  %2223 = vst.msk [vmem:[#allocation3 + $0x6] sm:$0x7] %vm2031, %v2221
  %v2224 = vld [vmem:[%s1967 + $0x1a] sm:$0x7]
  %2226 = vrot.lane.b32.xlu0 %v2224, 72
  %v2227 = vpop.permute.xlu0 %2226
  %2229 = vst.msk [vmem:[#allocation3 + $0x6] sm:$0x7] %vm2038, %v2227
  %v2230 = vld [vmem:[%s1967 + $0xa] sm:$0x7]
  %2232 = vrot.lane.b32.xlu0 %v2230, 80
  %v2233 = vpop.permute.xlu0 %2232
  %2235 = vst.msk [vmem:[#allocation3 + $0x6] sm:$0x7] %vm2045, %v2233
  %v2236 = vld [vmem:[%s1967 + $0x1c] sm:$0x7]
  %2238 = vrot.lane.b32.xlu0 %v2236, 88
  %v2239 = vpop.permute.xlu0 %2238
  %2241 = vst.msk [vmem:[#allocation3 + $0x6] sm:$0x7] %vm2052, %v2239
  %v2242 = vld [vmem:[%s1967 + $0xc] sm:$0x7]
  %2244 = vrot.lane.b32.xlu0 %v2242, 96
  %v2245 = vpop.permute.xlu0 %2244
  %2247 = vst.msk [vmem:[#allocation3 + $0x6] sm:$0x7] %vm2059, %v2245
  %v2248 = vld [vmem:[%s1967 + $0x1e] sm:$0x7]
  %2250 = vrot.lane.b32.xlu0 %v2248, 104
  %v2251 = vpop.permute.xlu0 %2250
  %2253 = vst.msk [vmem:[#allocation3 + $0x6] sm:$0x7] %vm2066, %v2251
  %v2254 = vld [vmem:[%s1967 + $0xe] sm:$0x7]
  %2256 = vrot.lane.b32.xlu0 %v2254, 112
  %v2257 = vpop.permute.xlu0 %2256
  %2259 = vst.msk [vmem:[#allocation3 + $0x6] sm:$0x7] %vm2073, %v2257
  %v2260 = vld [vmem:[%s1967 + $0x20] sm:$0x7]
  %2262 = vrot.lane.b32.xlu0 %v2260, 120
  %v2263 = vpop.permute.xlu0 %2262
  %2265 = vst.msk [vmem:[#allocation3 + $0x6] sm:$0x7] %vm2080, %v2263
  %v2266 = vld [vmem:[#allocation3] sm:$0xff]
  %v2267 = vld [vmem:[#allocation3 + $0x8] sm:$0x1]
  %vm2268 = vcmask 72704
  %v2270 = vsel %vm2268, %v1973, 0
  %vm2272 = vcmask 1040384
  %v2274 = vsel %vm2272, %v2267, 0
  %2276 = vmatprep.subr.mxu0 0.0
  %2277 = vmatpush1.msra.mxu0 %v2266
  %2278 = vmatprep.subr.mxu0 0.0
  %2279 = vmatpush1.msra.mxu0 %v2274
  %2280 = vmatprep.subr.mxu0 0.0
  %2281 = vmatpush1.msra.mxu0 0.0
  %2282 = vmatprep.subr.mxu0 0.0
  %2283 = vmatpush1.msra.mxu0 0.0
  %2284 = vmatprep.subr.mxu0 0.0
  %2285 = vmatpush1.msra.mxu0 0.0
  %2286 = vmatprep.subr.mxu0 0.0
  %2287 = vmatpush1.msra.mxu0 0.0
  %2288 = vmatprep.subr.mxu0 0.0
  %2289 = vmatpush1.msra.mxu0 0.0
  %2290 = vmatprep.subr.mxu0 0.0
  %2291 = vmatpush1.msra.mxu0 0.0
  %2292 = vmatprep.subr.mxu0 0.0
  %2293 = vmatpush1.msra.mxu0 0.0
  %2294 = vmatprep.subr.mxu0 0.0
  %2295 = vmatpush1.msra.mxu0 0.0
  %2296 = vmatprep.subr.mxu0 0.0
  %2297 = vmatpush1.msra.mxu0 0.0
  %2298 = vmatprep.subr.mxu0 0.0
  %2299 = vmatpush1.msra.mxu0 0.0
  %2300 = vmatprep.subr.mxu0 0.0
  %2301 = vmatpush1.msra.mxu0 0.0
  %2302 = vmatprep.subr.mxu0 0.0
  %2303 = vmatpush1.msra.mxu0 0.0
  %2304 = vmatprep.subr.mxu0 0.0
  %2305 = vmatpush1.msra.mxu0 0.0
  %2306 = vmatprep.subr.mxu0 0.0
  %2307 = vmatpush1.msra.mxu0 0.0
  %2308 = vmatprep.subr.mxu0 0.0
  %2309 = vmatpush1.msra.mxu0 0.0
  %2310 = vmatprep.subr.mxu0 0.0
  %2311 = vmatpush1.msra.mxu0 0.0
  %2312 = vmatprep.subr.mxu0 0.0
  %2313 = vmatpush1.msra.mxu0 0.0
  %2314 = vmatprep.subr.mxu0 0.0
  %2315 = vmatpush1.msra.mxu0 0.0
  %2316 = vmatprep.subr.mxu0 0.0
  %2317 = vmatpush1.msra.mxu0 0.0
  %2318 = vmatprep.subr.mxu0 0.0
  %2319 = vmatpush1.msra.mxu0 0.0
  %2320 = vmatprep.subr.mxu0 0.0
  %2321 = vmatpush1.msra.mxu0 0.0
  %2322 = vmatprep.subr.mxu0 0.0
  %2323 = vmatpush1.msra.mxu0 0.0
  %2324 = vmatprep.subr.mxu0 0.0
  %2325 = vmatpush1.msra.mxu0 0.0
  %2326 = vmatprep.subr.mxu0 0.0
  %2327 = vmatpush1.msra.mxu0 0.0
  %2328 = vmatprep.subr.mxu0 0.0
  %2329 = vmatpush1.msra.mxu0 0.0
  %2330 = vmatprep.subr.mxu0 0.0
  %2331 = vmatpush1.msra.mxu0 0.0
  %2332 = vmatprep.subr.mxu0 0.0
  %2333 = vmatpush1.msra.mxu0 0.0
  %2334 = vmatprep.subr.mxu0 0.0
  %2335 = vmatpush1.msra.mxu0 0.0
  %2336 = vmatprep.subr.mxu0 0.0
  %2337 = vmatpush1.msra.mxu0 0.0
  %2338 = vmatprep.subr.mxu0 0.0
  %2339 = vmatpush1.msra.mxu0 0.0
  %2340 = vmatprep.mubr.f32.mxu0 0.0
  %2341 = vmatmul.mubr.f32.gmra.mrb[0].mxu0 %v2270
  %v2342 = vpop.f32.mrb[0].mxu0
  %v2343 = vadd.f32 0.0, %v2342
  %v2344 = vpop.f32.mrb[0].mxu0
  %2345 = vdwg.mxu0
  %2346 = vst [vmem:[#allocation4] sm:$0xf] %v2343
  %v2347 = vld [vmem:[#allocation4] sm:$0xf]
  %vm2348 = vcmask 1043456
  %v2349 = vsel %vm2348, %v2347, 0.0
  %2350 = vadd.xlane.f32.xlu0 %v2349
  %v2351 = vpop.xlane.xlu0 %2350
  %v2352 = vmul.f32 %v2351, 0.0078125
  %v2353 = vsub.f32 %v2347, %v2352
  %v2354 = vmul.f32 %v2353, %v2353
  %v2355 = vsel %vm2348, %v2354, 0.0
  %2356 = vadd.xlane.f32.xlu0 %v2355
  %v2357 = vpop.xlane.xlu0 %2356
  %v2358 = vmul.f32 %v2357, 0.0078125
  %v2359 = vld [vmem:[%s3] sm:$0xf]
  %v2360 = vadd.f32 %v2358, 1e-05
  %v2361 = vrsqrt.pop %v2360
  %v2362 = vmul.f32 %v2359, %v2361
  %2364 = vset.pattern.permute.xlu0 0
  %2365 = vperm.xlu0 %2364, %v2362
  %v2366 = vpop.permute.xlu0 %2365
  %v2368 = vmul.f32 %v2353, %v2366
  %v2369 = vld [vmem:[%s4] sm:$0xf]
  %2371 = vset.pattern.permute.xlu0 0
  %2372 = vperm.xlu0 %2371, %v2369
  %v2373 = vpop.permute.xlu0 %2372
  %v2375 = vadd.f32 %v2368, %v2373
  %vm2376 = vcmp.gt.f32.partialorder %v2375, 0.0
  %v2377 = vmul.f32 %v2375, 0.01
  %v2378 = vsel %vm2376, %v2375, %v2377
  %2379 = vst.msk [vmem:[#allocation5] sm:$0xf] %vm691, 0.0
  %2380 = vst.msk [vmem:[#allocation5 + $0x24] sm:$0xf] %vm691, 0.0
  %2381 = vst.msk [vmem:[#allocation5 + $0x28] sm:$0xf] %vm691, 0.0
  %2382 = vst.msk [vmem:[#allocation5 + $0x4c] sm:$0xf] %vm691, 0.0
  %2383 = vst.msk [vmem:[#allocation5 + $0x4] sm:$0xf] %vm691, %v2378
  %2385 = vrot.lane.b32.xlu0 %v2378, 120
  %v2386 = vpop.permute.xlu0 %2385
  %2388 = vst.msk [vmem:[#allocation5 + $0x2c] sm:$0xf] %vm691, %v2386
  %2389 = vrot.lane.b32.xlu0 %v2378, 112
  %v2390 = vpop.permute.xlu0 %2389
  %2392 = vst.msk [vmem:[#allocation5 + $0x8] sm:$0xf] %vm691, %v2390
  %2393 = vrot.lane.b32.xlu0 %v2378, 104
  %v2394 = vpop.permute.xlu0 %2393
  %2396 = vst.msk [vmem:[#allocation5 + $0x30] sm:$0xf] %vm691, %v2394
  %2397 = vrot.lane.b32.xlu0 %v2378, 96
  %v2398 = vpop.permute.xlu0 %2397
  %2400 = vst.msk [vmem:[#allocation5 + $0xc] sm:$0xf] %vm691, %v2398
  %2401 = vrot.lane.b32.xlu0 %v2378, 88
  %v2402 = vpop.permute.xlu0 %2401
  %2404 = vst.msk [vmem:[#allocation5 + $0x34] sm:$0xf] %vm691, %v2402
  %2405 = vrot.lane.b32.xlu0 %v2378, 80
  %v2406 = vpop.permute.xlu0 %2405
  %2408 = vst.msk [vmem:[#allocation5 + $0x10] sm:$0xf] %vm691, %v2406
  %2409 = vrot.lane.b32.xlu0 %v2378, 72
  %v2410 = vpop.permute.xlu0 %2409
  %2412 = vst.msk [vmem:[#allocation5 + $0x38] sm:$0xf] %vm691, %v2410
  %2413 = vrot.lane.b32.xlu0 %v2378, 64
  %v2414 = vpop.permute.xlu0 %2413
  %2416 = vst.msk [vmem:[#allocation5 + $0x14] sm:$0xf] %vm691, %v2414
  %2417 = vrot.lane.b32.xlu0 %v2378, 56
  %v2418 = vpop.permute.xlu0 %2417
  %2420 = vst.msk [vmem:[#allocation5 + $0x3c] sm:$0xf] %vm691, %v2418
  %2421 = vrot.lane.b32.xlu0 %v2378, 48
  %v2422 = vpop.permute.xlu0 %2421
  %2424 = vst.msk [vmem:[#allocation5 + $0x18] sm:$0xf] %vm691, %v2422
  %2425 = vrot.lane.b32.xlu0 %v2378, 40
  %v2426 = vpop.permute.xlu0 %2425
  %2428 = vst.msk [vmem:[#allocation5 + $0x40] sm:$0xf] %vm691, %v2426
  %2429 = vrot.lane.b32.xlu0 %v2378, 32
  %v2430 = vpop.permute.xlu0 %2429
  %2432 = vst.msk [vmem:[#allocation5 + $0x1c] sm:$0xf] %vm691, %v2430
  %2433 = vrot.lane.b32.xlu0 %v2378, 24
  %v2434 = vpop.permute.xlu0 %2433
  %2436 = vst.msk [vmem:[#allocation5 + $0x44] sm:$0xf] %vm691, %v2434
  %2437 = vrot.lane.b32.xlu0 %v2378, 16
  %v2438 = vpop.permute.xlu0 %2437
  %2440 = vst.msk [vmem:[#allocation5 + $0x20] sm:$0xf] %vm691, %v2438
  %2441 = vrot.lane.b32.xlu0 %v2378, 8
  %v2442 = vpop.permute.xlu0 %2441
  %2444 = vst.msk [vmem:[#allocation5 + $0x48] sm:$0xf] %vm691, %v2442
  %v2445 = vld [vmem:[#allocation5] sm:$0xff]
  %v2446 = vld [vmem:[#allocation5 + $0x8] sm:$0xff]
  %v2447 = vld [vmem:[#allocation5 + $0x10] sm:$0xff]
  %v2448 = vld [vmem:[#allocation5 + $0x18] sm:$0xff]
  %v2449 = vld [vmem:[#allocation5 + $0x20] sm:$0xff]
  %v2450 = vld [vmem:[#allocation5 + $0x28] sm:$0xff]
  %v2451 = vld [vmem:[#allocation5 + $0x30] sm:$0xff]
  %v2452 = vld [vmem:[#allocation5 + $0x38] sm:$0xff]
  %v2453 = vld [vmem:[#allocation5 + $0x40] sm:$0xff]
  %v2454 = vld [vmem:[#allocation5 + $0x48] sm:$0xff]
  %v2455 = vld [vmem:[%s5] sm:$0xff]
  %v2457 = vsel %vm686, %v2445, 0
  %v2460 = vsel %vm686, %v2446, 0
  %v2463 = vsel %vm686, %v2447, 0
  %v2466 = vsel %vm686, %v2448, 0
  %v2469 = vsel %vm686, %v2449, 0
  %v2472 = vsel %vm686, %v2450, 0
  %v2475 = vsel %vm686, %v2451, 0
  %v2478 = vsel %vm686, %v2452, 0
  %v2481 = vsel %vm686, %v2453, 0
  %v2484 = vsel %vm686, %v2454, 0
  %2486 = vmatprep.subr.mxu0 0.0
  %v2487 = vand.u32 %v2455, 4294901760
  %2488 = vmatpush1.msra.mxu0 %v2487
  %2489 = vmatprep.subr.mxu0 0.0
  %2490 = vmatpush1.msra.mxu0 0.0
  %2491 = vmatprep.subr.mxu0 0.0
  %2492 = vmatpush1.msra.mxu0 0.0
  %2493 = vmatprep.subr.mxu0 0.0
  %2494 = vmatpush1.msra.mxu0 0.0
  %2495 = vmatprep.subr.mxu0 0.0
  %2496 = vmatpush1.msra.mxu0 0.0
  %2497 = vmatprep.subr.mxu0 0.0
  %2498 = vmatpush1.msra.mxu0 0.0
  %2499 = vmatprep.subr.mxu0 0.0
  %2500 = vmatpush1.msra.mxu0 0.0
  %2501 = vmatprep.subr.mxu0 0.0
  %2502 = vmatpush1.msra.mxu0 0.0
  %2503 = vmatprep.subr.mxu0 0.0
  %2504 = vmatpush1.msra.mxu0 0.0
  %2505 = vmatprep.subr.mxu0 0.0
  %2506 = vmatpush1.msra.mxu0 0.0
  %2507 = vmatprep.subr.mxu0 0.0
  %2508 = vmatpush1.msra.mxu0 0.0
  %2509 = vmatprep.subr.mxu0 0.0
  %2510 = vmatpush1.msra.mxu0 0.0
  %2511 = vmatprep.subr.mxu0 0.0
  %2512 = vmatpush1.msra.mxu0 0.0
  %2513 = vmatprep.subr.mxu0 0.0
  %2514 = vmatpush1.msra.mxu0 0.0
  %2515 = vmatprep.subr.mxu0 0.0
  %2516 = vmatpush1.msra.mxu0 0.0
  %2517 = vmatprep.subr.mxu0 0.0
  %2518 = vmatpush1.msra.mxu0 0.0
  %2519 = vmatprep.subr.mxu0 0.0
  %2520 = vmatpush1.msra.mxu0 0.0
  %2521 = vmatprep.subr.mxu0 0.0
  %2522 = vmatpush1.msra.mxu0 0.0
  %2523 = vmatprep.subr.mxu0 0.0
  %2524 = vmatpush1.msra.mxu0 0.0
  %2525 = vmatprep.subr.mxu0 0.0
  %2526 = vmatpush1.msra.mxu0 0.0
  %2527 = vmatprep.subr.mxu0 0.0
  %2528 = vmatpush1.msra.mxu0 0.0
  %2529 = vmatprep.subr.mxu0 0.0
  %2530 = vmatpush1.msra.mxu0 0.0
  %2531 = vmatprep.subr.mxu0 0.0
  %2532 = vmatpush1.msra.mxu0 0.0
  %2533 = vmatprep.subr.mxu0 0.0
  %2534 = vmatpush1.msra.mxu0 0.0
  %2535 = vmatprep.subr.mxu0 0.0
  %2536 = vmatpush1.msra.mxu0 0.0
  %2537 = vmatprep.subr.mxu0 0.0
  %2538 = vmatpush1.msra.mxu0 0.0
  %2539 = vmatprep.subr.mxu0 0.0
  %2540 = vmatpush1.msra.mxu0 0.0
  %2541 = vmatprep.subr.mxu0 0.0
  %2542 = vmatpush1.msra.mxu0 0.0
  %2543 = vmatprep.subr.mxu0 0.0
  %2544 = vmatpush1.msra.mxu0 0.0
  %2545 = vmatprep.subr.mxu0 0.0
  %2546 = vmatpush1.msra.mxu0 0.0
  %2547 = vmatprep.subr.mxu0 0.0
  %2548 = vmatpush1.msra.mxu0 0.0
  %2549 = vmatprep.subr.mxu0 0.0
  %2550 = vmatpush1.msra.mxu0 0.0
  %2551 = vmatprep.mubr.f32.mxu0 0.0
  %v2552 = vand.u32 %v2457, 4294901760
  %v2553 = vsub.f32 %v2457, %v2552
  %v2554 = vand.u32 %v2553, 4294901760
  %v2555 = vsub.f32 %v2553, %v2554
  %v2556 = vand.u32 %v2555, 4294901760
  %2557 = vmatmul.mubr.f32.gmra.mrb[0].mxu0 %v2556
  %v2558 = vpop.f32.mrb[0].mxu0
  %v2559 = vadd.f32 0.0, %v2558
  %v2560 = vpop.f32.mrb[0].mxu0
  %2561 = vmatprep.mubr.f32.mxu0 0.0
  %v2562 = vand.u32 %v2460, 4294901760
  %v2563 = vsub.f32 %v2460, %v2562
  %v2564 = vand.u32 %v2563, 4294901760
  %v2565 = vsub.f32 %v2563, %v2564
  %v2566 = vand.u32 %v2565, 4294901760
  %2567 = vmatmul.mubr.f32.gmra.mrb[0].mxu0 %v2566
  %v2568 = vpop.f32.mrb[0].mxu0
  %v2569 = vadd.f32 0.0, %v2568
  %v2570 = vpop.f32.mrb[0].mxu0
  %2571 = vmatprep.mubr.f32.mxu0 0.0
  %v2572 = vand.u32 %v2463, 4294901760
  %v2573 = vsub.f32 %v2463, %v2572
  %v2574 = vand.u32 %v2573, 4294901760
  %v2575 = vsub.f32 %v2573, %v2574
  %v2576 = vand.u32 %v2575, 4294901760
  %2577 = vmatmul.mubr.f32.gmra.mrb[0].mxu0 %v2576
  %v2578 = vpop.f32.mrb[0].mxu0
  %v2579 = vadd.f32 0.0, %v2578
  %v2580 = vpop.f32.mrb[0].mxu0
  %2581 = vmatprep.mubr.f32.mxu0 0.0
  %v2582 = vand.u32 %v2466, 4294901760
  %v2583 = vsub.f32 %v2466, %v2582
  %v2584 = vand.u32 %v2583, 4294901760
  %v2585 = vsub.f32 %v2583, %v2584
  %v2586 = vand.u32 %v2585, 4294901760
  %2587 = vmatmul.mubr.f32.gmra.mrb[0].mxu0 %v2586
  %v2588 = vpop.f32.mrb[0].mxu0
  %v2589 = vadd.f32 0.0, %v2588
  %v2590 = vpop.f32.mrb[0].mxu0
  %2591 = vmatprep.mubr.f32.mxu0 0.0
  %v2592 = vand.u32 %v2469, 4294901760
  %v2593 = vsub.f32 %v2469, %v2592
  %v2594 = vand.u32 %v2593, 4294901760
  %v2595 = vsub.f32 %v2593, %v2594
  %v2596 = vand.u32 %v2595, 4294901760
  %2597 = vmatmul.mubr.f32.gmra.mrb[0].mxu0 %v2596
  %v2598 = vpop.f32.mrb[0].mxu0
  %v2599 = vadd.f32 0.0, %v2598
  %v2600 = vpop.f32.mrb[0].mxu0
  %2601 = vmatprep.mubr.f32.mxu0 0.0
  %v2602 = vand.u32 %v2472, 4294901760
  %v2603 = vsub.f32 %v2472, %v2602
  %v2604 = vand.u32 %v2603, 4294901760
  %v2605 = vsub.f32 %v2603, %v2604
  %v2606 = vand.u32 %v2605, 4294901760
  %2607 = vmatmul.mubr.f32.gmra.mrb[0].mxu0 %v2606
  %v2608 = vpop.f32.mrb[0].mxu0
  %v2609 = vadd.f32 0.0, %v2608
  %v2610 = vpop.f32.mrb[0].mxu0
  %2611 = vmatprep.mubr.f32.mxu0 0.0
  %v2612 = vand.u32 %v2475, 4294901760
  %v2613 = vsub.f32 %v2475, %v2612
  %v2614 = vand.u32 %v2613, 4294901760
  %v2615 = vsub.f32 %v2613, %v2614
  %v2616 = vand.u32 %v2615, 4294901760
  %2617 = vmatmul.mubr.f32.gmra.mrb[0].mxu0 %v2616
  %v2618 = vpop.f32.mrb[0].mxu0
  %v2619 = vadd.f32 0.0, %v2618
  %v2620 = vpop.f32.mrb[0].mxu0
  %2621 = vmatprep.mubr.f32.mxu0 0.0
  %v2622 = vand.u32 %v2478, 4294901760
  %v2623 = vsub.f32 %v2478, %v2622
  %v2624 = vand.u32 %v2623, 4294901760
  %v2625 = vsub.f32 %v2623, %v2624
  %v2626 = vand.u32 %v2625, 4294901760
  %2627 = vmatmul.mubr.f32.gmra.mrb[0].mxu0 %v2626
  %v2628 = vpop.f32.mrb[0].mxu0
  %v2629 = vadd.f32 0.0, %v2628
  %v2630 = vpop.f32.mrb[0].mxu0
  %2631 = vmatprep.mubr.f32.mxu0 0.0
  %v2632 = vand.u32 %v2481, 4294901760
  %v2633 = vsub.f32 %v2481, %v2632
  %v2634 = vand.u32 %v2633, 4294901760
  %v2635 = vsub.f32 %v2633, %v2634
  %v2636 = vand.u32 %v2635, 4294901760
  %2637 = vmatmul.mubr.f32.gmra.mrb[0].mxu0 %v2636
  %v2638 = vpop.f32.mrb[0].mxu0
  %v2639 = vadd.f32 0.0, %v2638
  %v2640 = vpop.f32.mrb[0].mxu0
  %2641 = vmatprep.mubr.f32.mxu0 0.0
  %v2642 = vand.u32 %v2484, 4294901760
  %v2643 = vsub.f32 %v2484, %v2642
  %v2644 = vand.u32 %v2643, 4294901760
  %v2645 = vsub.f32 %v2643, %v2644
  %v2646 = vand.u32 %v2645, 4294901760
  %2647 = vmatmul.mubr.f32.gmra.mrb[0].mxu0 %v2646
  %v2648 = vpop.f32.mrb[0].mxu0
  %v2649 = vadd.f32 0.0, %v2648
  %v2650 = vpop.f32.mrb[0].mxu0
  %2651 = vdwg.mxu0
  %2652 = vmatprep.subr.mxu0 0.0
  %v2653 = vand.u32 %v2455, 4294901760
  %v2654 = vsub.f32 %v2455, %v2653
  %v2655 = vand.u32 %v2654, 4294901760
  %v2656 = vsub.f32 %v2654, %v2655
  %v2657 = vand.u32 %v2656, 4294901760
  %2658 = vmatpush1.msra.mxu0 %v2657
  %2659 = vmatprep.subr.mxu0 0.0
  %2660 = vmatpush1.msra.mxu0 0.0
  %2661 = vmatprep.subr.mxu0 0.0
  %2662 = vmatpush1.msra.mxu0 0.0
  %2663 = vmatprep.subr.mxu0 0.0
  %2664 = vmatpush1.msra.mxu0 0.0
  %2665 = vmatprep.subr.mxu0 0.0
  %2666 = vmatpush1.msra.mxu0 0.0
  %2667 = vmatprep.subr.mxu0 0.0
  %2668 = vmatpush1.msra.mxu0 0.0
  %2669 = vmatprep.subr.mxu0 0.0
  %2670 = vmatpush1.msra.mxu0 0.0
  %2671 = vmatprep.subr.mxu0 0.0
  %2672 = vmatpush1.msra.mxu0 0.0
  %2673 = vmatprep.subr.mxu0 0.0
  %2674 = vmatpush1.msra.mxu0 0.0
  %2675 = vmatprep.subr.mxu0 0.0
  %2676 = vmatpush1.msra.mxu0 0.0
  %2677 = vmatprep.subr.mxu0 0.0
  %2678 = vmatpush1.msra.mxu0 0.0
  %2679 = vmatprep.subr.mxu0 0.0
  %2680 = vmatpush1.msra.mxu0 0.0
  %2681 = vmatprep.subr.mxu0 0.0
  %2682 = vmatpush1.msra.mxu0 0.0
  %2683 = vmatprep.subr.mxu0 0.0
  %2684 = vmatpush1.msra.mxu0 0.0
  %2685 = vmatprep.subr.mxu0 0.0
  %2686 = vmatpush1.msra.mxu0 0.0
  %2687 = vmatprep.subr.mxu0 0.0
  %2688 = vmatpush1.msra.mxu0 0.0
  %2689 = vmatprep.subr.mxu0 0.0
  %2690 = vmatpush1.msra.mxu0 0.0
  %2691 = vmatprep.subr.mxu0 0.0
  %2692 = vmatpush1.msra.mxu0 0.0
  %2693 = vmatprep.subr.mxu0 0.0
  %2694 = vmatpush1.msra.mxu0 0.0
  %2695 = vmatprep.subr.mxu0 0.0
  %2696 = vmatpush1.msra.mxu0 0.0
  %2697 = vmatprep.subr.mxu0 0.0
  %2698 = vmatpush1.msra.mxu0 0.0
  %2699 = vmatprep.subr.mxu0 0.0
  %2700 = vmatpush1.msra.mxu0 0.0
  %2701 = vmatprep.subr.mxu0 0.0
  %2702 = vmatpush1.msra.mxu0 0.0
  %2703 = vmatprep.subr.mxu0 0.0
  %2704 = vmatpush1.msra.mxu0 0.0
  %2705 = vmatprep.subr.mxu0 0.0
  %2706 = vmatpush1.msra.mxu0 0.0
  %2707 = vmatprep.subr.mxu0 0.0
  %2708 = vmatpush1.msra.mxu0 0.0
  %2709 = vmatprep.subr.mxu0 0.0
  %2710 = vmatpush1.msra.mxu0 0.0
  %2711 = vmatprep.subr.mxu0 0.0
  %2712 = vmatpush1.msra.mxu0 0.0
  %2713 = vmatprep.subr.mxu0 0.0
  %2714 = vmatpush1.msra.mxu0 0.0
  %2715 = vmatprep.subr.mxu0 0.0
  %2716 = vmatpush1.msra.mxu0 0.0
  %2717 = vmatprep.subr.mxu0 0.0
  %2718 = vmatpush1.msra.mxu0 0.0
  %2719 = vmatprep.subr.mxu0 0.0
  %2720 = vmatpush1.msra.mxu0 0.0
  %2721 = vmatprep.mubr.f32.mxu0 0.0
  %v2722 = vand.u32 %v2457, 4294901760
  %2723 = vmatmul.mubr.f32.gmra.mrb[0].mxu0 %v2722
  %v2724 = vpop.f32.mrb[0].mxu0
  %v2725 = vadd.f32 %v2559, %v2724
  %v2726 = vpop.f32.mrb[0].mxu0
  %2727 = vmatprep.mubr.f32.mxu0 0.0
  %v2728 = vand.u32 %v2460, 4294901760
  %2729 = vmatmul.mubr.f32.gmra.mrb[0].mxu0 %v2728
  %v2730 = vpop.f32.mrb[0].mxu0
  %v2731 = vadd.f32 %v2569, %v2730
  %v2732 = vpop.f32.mrb[0].mxu0
  %2733 = vmatprep.mubr.f32.mxu0 0.0
  %v2734 = vand.u32 %v2463, 4294901760
  %2735 = vmatmul.mubr.f32.gmra.mrb[0].mxu0 %v2734
  %v2736 = vpop.f32.mrb[0].mxu0
  %v2737 = vadd.f32 %v2579, %v2736
  %v2738 = vpop.f32.mrb[0].mxu0
  %2739 = vmatprep.mubr.f32.mxu0 0.0
  %v2740 = vand.u32 %v2466, 4294901760
  %2741 = vmatmul.mubr.f32.gmra.mrb[0].mxu0 %v2740
  %v2742 = vpop.f32.mrb[0].mxu0
  %v2743 = vadd.f32 %v2589, %v2742
  %v2744 = vpop.f32.mrb[0].mxu0
  %2745 = vmatprep.mubr.f32.mxu0 0.0
  %v2746 = vand.u32 %v2469, 4294901760
  %2747 = vmatmul.mubr.f32.gmra.mrb[0].mxu0 %v2746
  %v2748 = vpop.f32.mrb[0].mxu0
  %v2749 = vadd.f32 %v2599, %v2748
  %v2750 = vpop.f32.mrb[0].mxu0
  %2751 = vmatprep.mubr.f32.mxu0 0.0
  %v2752 = vand.u32 %v2472, 4294901760
  %2753 = vmatmul.mubr.f32.gmra.mrb[0].mxu0 %v2752
  %v2754 = vpop.f32.mrb[0].mxu0
  %v2755 = vadd.f32 %v2609, %v2754
  %v2756 = vpop.f32.mrb[0].mxu0
  %2757 = vmatprep.mubr.f32.mxu0 0.0
  %v2758 = vand.u32 %v2475, 4294901760
  %2759 = vmatmul.mubr.f32.gmra.mrb[0].mxu0 %v2758
  %v2760 = vpop.f32.mrb[0].mxu0
  %v2761 = vadd.f32 %v2619, %v2760
  %v2762 = vpop.f32.mrb[0].mxu0
  %2763 = vmatprep.mubr.f32.mxu0 0.0
  %v2764 = vand.u32 %v2478, 4294901760
  %2765 = vmatmul.mubr.f32.gmra.mrb[0].mxu0 %v2764
  %v2766 = vpop.f32.mrb[0].mxu0
  %v2767 = vadd.f32 %v2629, %v2766
  %v2768 = vpop.f32.mrb[0].mxu0
  %2769 = vmatprep.mubr.f32.mxu0 0.0
  %v2770 = vand.u32 %v2481, 4294901760
  %2771 = vmatmul.mubr.f32.gmra.mrb[0].mxu0 %v2770
  %v2772 = vpop.f32.mrb[0].mxu0
  %v2773 = vadd.f32 %v2639, %v2772
  %v2774 = vpop.f32.mrb[0].mxu0
  %2775 = vmatprep.mubr.f32.mxu0 0.0
  %v2776 = vand.u32 %v2484, 4294901760
  %2777 = vmatmul.mubr.f32.gmra.mrb[0].mxu0 %v2776
  %v2778 = vpop.f32.mrb[0].mxu0
  %v2779 = vadd.f32 %v2649, %v2778
  %v2780 = vpop.f32.mrb[0].mxu0
  %2781 = vdwg.mxu0
  %2782 = vmatprep.subr.mxu0 0.0
  %v2783 = vand.u32 %v2455, 4294901760
  %v2784 = vsub.f32 %v2455, %v2783
  %2785 = vmatpush1.msra.mxu0 %v2784
  %2786 = vmatprep.subr.mxu0 0.0
  %2787 = vmatpush1.msra.mxu0 0.0
  %2788 = vmatprep.subr.mxu0 0.0
  %2789 = vmatpush1.msra.mxu0 0.0
  %2790 = vmatprep.subr.mxu0 0.0
  %2791 = vmatpush1.msra.mxu0 0.0
  %2792 = vmatprep.subr.mxu0 0.0
  %2793 = vmatpush1.msra.mxu0 0.0
  %2794 = vmatprep.subr.mxu0 0.0
  %2795 = vmatpush1.msra.mxu0 0.0
  %2796 = vmatprep.subr.mxu0 0.0
  %2797 = vmatpush1.msra.mxu0 0.0
  %2798 = vmatprep.subr.mxu0 0.0
  %2799 = vmatpush1.msra.mxu0 0.0
  %2800 = vmatprep.subr.mxu0 0.0
  %2801 = vmatpush1.msra.mxu0 0.0
  %2802 = vmatprep.subr.mxu0 0.0
  %2803 = vmatpush1.msra.mxu0 0.0
  %2804 = vmatprep.subr.mxu0 0.0
  %2805 = vmatpush1.msra.mxu0 0.0
  %2806 = vmatprep.subr.mxu0 0.0
  %2807 = vmatpush1.msra.mxu0 0.0
  %2808 = vmatprep.subr.mxu0 0.0
  %2809 = vmatpush1.msra.mxu0 0.0
  %2810 = vmatprep.subr.mxu0 0.0
  %2811 = vmatpush1.msra.mxu0 0.0
  %2812 = vmatprep.subr.mxu0 0.0
  %2813 = vmatpush1.msra.mxu0 0.0
  %2814 = vmatprep.subr.mxu0 0.0
  %2815 = vmatpush1.msra.mxu0 0.0
  %2816 = vmatprep.subr.mxu0 0.0
  %2817 = vmatpush1.msra.mxu0 0.0
  %2818 = vmatprep.subr.mxu0 0.0
  %2819 = vmatpush1.msra.mxu0 0.0
  %2820 = vmatprep.subr.mxu0 0.0
  %2821 = vmatpush1.msra.mxu0 0.0
  %2822 = vmatprep.subr.mxu0 0.0
  %2823 = vmatpush1.msra.mxu0 0.0
  %2824 = vmatprep.subr.mxu0 0.0
  %2825 = vmatpush1.msra.mxu0 0.0
  %2826 = vmatprep.subr.mxu0 0.0
  %2827 = vmatpush1.msra.mxu0 0.0
  %2828 = vmatprep.subr.mxu0 0.0
  %2829 = vmatpush1.msra.mxu0 0.0
  %2830 = vmatprep.subr.mxu0 0.0
  %2831 = vmatpush1.msra.mxu0 0.0
  %2832 = vmatprep.subr.mxu0 0.0
  %2833 = vmatpush1.msra.mxu0 0.0
  %2834 = vmatprep.subr.mxu0 0.0
  %2835 = vmatpush1.msra.mxu0 0.0
  %2836 = vmatprep.subr.mxu0 0.0
  %2837 = vmatpush1.msra.mxu0 0.0
  %2838 = vmatprep.subr.mxu0 0.0
  %2839 = vmatpush1.msra.mxu0 0.0
  %2840 = vmatprep.subr.mxu0 0.0
  %2841 = vmatpush1.msra.mxu0 0.0
  %2842 = vmatprep.subr.mxu0 0.0
  %2843 = vmatpush1.msra.mxu0 0.0
  %2844 = vmatprep.subr.mxu0 0.0
  %2845 = vmatpush1.msra.mxu0 0.0
  %2846 = vmatprep.subr.mxu0 0.0
  %2847 = vmatpush1.msra.mxu0 0.0
  %2848 = vmatprep.mubr.f32.mxu0 0.0
  %v2849 = vand.u32 %v2457, 4294901760
  %v2850 = vsub.f32 %v2457, %v2849
  %2851 = vmatmul.mubr.f32.gmra.mrb[0].mxu0 %v2850
  %v2852 = vpop.f32.mrb[0].mxu0
  %v2853 = vadd.f32 %v2725, %v2852
  %v2854 = vpop.f32.mrb[0].mxu0
  %2855 = vmatprep.mubr.f32.mxu0 0.0
  %v2856 = vand.u32 %v2460, 4294901760
  %v2857 = vsub.f32 %v2460, %v2856
  %2858 = vmatmul.mubr.f32.gmra.mrb[0].mxu0 %v2857
  %v2859 = vpop.f32.mrb[0].mxu0
  %v2860 = vadd.f32 %v2731, %v2859
  %v2861 = vpop.f32.mrb[0].mxu0
  %2862 = vmatprep.mubr.f32.mxu0 0.0
  %v2863 = vand.u32 %v2463, 4294901760
  %v2864 = vsub.f32 %v2463, %v2863
  %2865 = vmatmul.mubr.f32.gmra.mrb[0].mxu0 %v2864
  %v2866 = vpop.f32.mrb[0].mxu0
  %v2867 = vadd.f32 %v2737, %v2866
  %v2868 = vpop.f32.mrb[0].mxu0
  %2869 = vmatprep.mubr.f32.mxu0 0.0
  %v2870 = vand.u32 %v2466, 4294901760
  %v2871 = vsub.f32 %v2466, %v2870
  %2872 = vmatmul.mubr.f32.gmra.mrb[0].mxu0 %v2871
  %v2873 = vpop.f32.mrb[0].mxu0
  %v2874 = vadd.f32 %v2743, %v2873
  %v2875 = vpop.f32.mrb[0].mxu0
  %2876 = vmatprep.mubr.f32.mxu0 0.0
  %v2877 = vand.u32 %v2469, 4294901760
  %v2878 = vsub.f32 %v2469, %v2877
  %2879 = vmatmul.mubr.f32.gmra.mrb[0].mxu0 %v2878
  %v2880 = vpop.f32.mrb[0].mxu0
  %v2881 = vadd.f32 %v2749, %v2880
  %v2882 = vpop.f32.mrb[0].mxu0
  %2883 = vmatprep.mubr.f32.mxu0 0.0
  %v2884 = vand.u32 %v2472, 4294901760
  %v2885 = vsub.f32 %v2472, %v2884
  %2886 = vmatmul.mubr.f32.gmra.mrb[0].mxu0 %v2885
  %v2887 = vpop.f32.mrb[0].mxu0
  %v2888 = vadd.f32 %v2755, %v2887
  %v2889 = vpop.f32.mrb[0].mxu0
  %2890 = vmatprep.mubr.f32.mxu0 0.0
  %v2891 = vand.u32 %v2475, 4294901760
  %v2892 = vsub.f32 %v2475, %v2891
  %2893 = vmatmul.mubr.f32.gmra.mrb[0].mxu0 %v2892
  %v2894 = vpop.f32.mrb[0].mxu0
  %v2895 = vadd.f32 %v2761, %v2894
  %v2896 = vpop.f32.mrb[0].mxu0
  %2897 = vmatprep.mubr.f32.mxu0 0.0
  %v2898 = vand.u32 %v2478, 4294901760
  %v2899 = vsub.f32 %v2478, %v2898
  %2900 = vmatmul.mubr.f32.gmra.mrb[0].mxu0 %v2899
  %v2901 = vpop.f32.mrb[0].mxu0
  %v2902 = vadd.f32 %v2767, %v2901
  %v2903 = vpop.f32.mrb[0].mxu0
  %2904 = vmatprep.mubr.f32.mxu0 0.0
  %v2905 = vand.u32 %v2481, 4294901760
  %v2906 = vsub.f32 %v2481, %v2905
  %2907 = vmatmul.mubr.f32.gmra.mrb[0].mxu0 %v2906
  %v2908 = vpop.f32.mrb[0].mxu0
  %v2909 = vadd.f32 %v2773, %v2908
  %v2910 = vpop.f32.mrb[0].mxu0
  %2911 = vmatprep.mubr.f32.mxu0 0.0
  %v2912 = vand.u32 %v2484, 4294901760
  %v2913 = vsub.f32 %v2484, %v2912
  %2914 = vmatmul.mubr.f32.gmra.mrb[0].mxu0 %v2913
  %v2915 = vpop.f32.mrb[0].mxu0
  %v2916 = vadd.f32 %v2779, %v2915
  %v2917 = vpop.f32.mrb[0].mxu0
  %2918 = vdwg.mxu0
  %2919 = vmatprep.subr.mxu0 0.0
  %v2920 = vand.u32 %v2455, 4294901760
  %2921 = vmatpush1.msra.mxu0 %v2920
  %2922 = vmatprep.subr.mxu0 0.0
  %2923 = vmatpush1.msra.mxu0 0.0
  %2924 = vmatprep.subr.mxu0 0.0
  %2925 = vmatpush1.msra.mxu0 0.0
  %2926 = vmatprep.subr.mxu0 0.0
  %2927 = vmatpush1.msra.mxu0 0.0
  %2928 = vmatprep.subr.mxu0 0.0
  %2929 = vmatpush1.msra.mxu0 0.0
  %2930 = vmatprep.subr.mxu0 0.0
  %2931 = vmatpush1.msra.mxu0 0.0
  %2932 = vmatprep.subr.mxu0 0.0
  %2933 = vmatpush1.msra.mxu0 0.0
  %2934 = vmatprep.subr.mxu0 0.0
  %2935 = vmatpush1.msra.mxu0 0.0
  %2936 = vmatprep.subr.mxu0 0.0
  %2937 = vmatpush1.msra.mxu0 0.0
  %2938 = vmatprep.subr.mxu0 0.0
  %2939 = vmatpush1.msra.mxu0 0.0
  %2940 = vmatprep.subr.mxu0 0.0
  %2941 = vmatpush1.msra.mxu0 0.0
  %2942 = vmatprep.subr.mxu0 0.0
  %2943 = vmatpush1.msra.mxu0 0.0
  %2944 = vmatprep.subr.mxu0 0.0
  %2945 = vmatpush1.msra.mxu0 0.0
  %2946 = vmatprep.subr.mxu0 0.0
  %2947 = vmatpush1.msra.mxu0 0.0
  %2948 = vmatprep.subr.mxu0 0.0
  %2949 = vmatpush1.msra.mxu0 0.0
  %2950 = vmatprep.subr.mxu0 0.0
  %2951 = vmatpush1.msra.mxu0 0.0
  %2952 = vmatprep.subr.mxu0 0.0
  %2953 = vmatpush1.msra.mxu0 0.0
  %2954 = vmatprep.subr.mxu0 0.0
  %2955 = vmatpush1.msra.mxu0 0.0
  %2956 = vmatprep.subr.mxu0 0.0
  %2957 = vmatpush1.msra.mxu0 0.0
  %2958 = vmatprep.subr.mxu0 0.0
  %2959 = vmatpush1.msra.mxu0 0.0
  %2960 = vmatprep.subr.mxu0 0.0
  %2961 = vmatpush1.msra.mxu0 0.0
  %2962 = vmatprep.subr.mxu0 0.0
  %2963 = vmatpush1.msra.mxu0 0.0
  %2964 = vmatprep.subr.mxu0 0.0
  %2965 = vmatpush1.msra.mxu0 0.0
  %2966 = vmatprep.subr.mxu0 0.0
  %2967 = vmatpush1.msra.mxu0 0.0
  %2968 = vmatprep.subr.mxu0 0.0
  %2969 = vmatpush1.msra.mxu0 0.0
  %2970 = vmatprep.subr.mxu0 0.0
  %2971 = vmatpush1.msra.mxu0 0.0
  %2972 = vmatprep.subr.mxu0 0.0
  %2973 = vmatpush1.msra.mxu0 0.0
  %2974 = vmatprep.subr.mxu0 0.0
  %2975 = vmatpush1.msra.mxu0 0.0
  %2976 = vmatprep.subr.mxu0 0.0
  %2977 = vmatpush1.msra.mxu0 0.0
  %2978 = vmatprep.subr.mxu0 0.0
  %2979 = vmatpush1.msra.mxu0 0.0
  %2980 = vmatprep.subr.mxu0 0.0
  %2981 = vmatpush1.msra.mxu0 0.0
  %2982 = vmatprep.subr.mxu0 0.0
  %2983 = vmatpush1.msra.mxu0 0.0
  %2984 = vmatprep.mubr.f32.mxu0 0.0
  %v2985 = vand.u32 %v2457, 4294901760
  %v2986 = vsub.f32 %v2457, %v2985
  %v2987 = vand.u32 %v2986, 4294901760
  %2988 = vmatmul.mubr.f32.gmra.mrb[0].mxu0 %v2987
  %v2989 = vpop.f32.mrb[0].mxu0
  %v2990 = vadd.f32 %v2853, %v2989
  %v2991 = vpop.f32.mrb[0].mxu0
  %2992 = vmatprep.mubr.f32.mxu0 0.0
  %v2993 = vand.u32 %v2460, 4294901760
  %v2994 = vsub.f32 %v2460, %v2993
  %v2995 = vand.u32 %v2994, 4294901760
  %2996 = vmatmul.mubr.f32.gmra.mrb[0].mxu0 %v2995
  %v2997 = vpop.f32.mrb[0].mxu0
  %v2998 = vadd.f32 %v2860, %v2997
  %v2999 = vpop.f32.mrb[0].mxu0
  %3000 = vmatprep.mubr.f32.mxu0 0.0
  %v3001 = vand.u32 %v2463, 4294901760
  %v3002 = vsub.f32 %v2463, %v3001
  %v3003 = vand.u32 %v3002, 4294901760
  %3004 = vmatmul.mubr.f32.gmra.mrb[0].mxu0 %v3003
  %v3005 = vpop.f32.mrb[0].mxu0
  %v3006 = vadd.f32 %v2867, %v3005
  %v3007 = vpop.f32.mrb[0].mxu0
  %3008 = vmatprep.mubr.f32.mxu0 0.0
  %v3009 = vand.u32 %v2466, 4294901760
  %v3010 = vsub.f32 %v2466, %v3009
  %v3011 = vand.u32 %v3010, 4294901760
  %3012 = vmatmul.mubr.f32.gmra.mrb[0].mxu0 %v3011
  %v3013 = vpop.f32.mrb[0].mxu0
  %v3014 = vadd.f32 %v2874, %v3013
  %v3015 = vpop.f32.mrb[0].mxu0
  %3016 = vmatprep.mubr.f32.mxu0 0.0
  %v3017 = vand.u32 %v2469, 4294901760
  %v3018 = vsub.f32 %v2469, %v3017
  %v3019 = vand.u32 %v3018, 4294901760
  %3020 = vmatmul.mubr.f32.gmra.mrb[0].mxu0 %v3019
  %v3021 = vpop.f32.mrb[0].mxu0
  %v3022 = vadd.f32 %v2881, %v3021
  %v3023 = vpop.f32.mrb[0].mxu0
  %3024 = vmatprep.mubr.f32.mxu0 0.0
  %v3025 = vand.u32 %v2472, 4294901760
  %v3026 = vsub.f32 %v2472, %v3025
  %v3027 = vand.u32 %v3026, 4294901760
  %3028 = vmatmul.mubr.f32.gmra.mrb[0].mxu0 %v3027
  %v3029 = vpop.f32.mrb[0].mxu0
  %v3030 = vadd.f32 %v2888, %v3029
  %v3031 = vpop.f32.mrb[0].mxu0
  %3032 = vmatprep.mubr.f32.mxu0 0.0
  %v3033 = vand.u32 %v2475, 4294901760
  %v3034 = vsub.f32 %v2475, %v3033
  %v3035 = vand.u32 %v3034, 4294901760
  %3036 = vmatmul.mubr.f32.gmra.mrb[0].mxu0 %v3035
  %v3037 = vpop.f32.mrb[0].mxu0
  %v3038 = vadd.f32 %v2895, %v3037
  %v3039 = vpop.f32.mrb[0].mxu0
  %3040 = vmatprep.mubr.f32.mxu0 0.0
  %v3041 = vand.u32 %v2478, 4294901760
  %v3042 = vsub.f32 %v2478, %v3041
  %v3043 = vand.u32 %v3042, 4294901760
  %3044 = vmatmul.mubr.f32.gmra.mrb[0].mxu0 %v3043
  %v3045 = vpop.f32.mrb[0].mxu0
  %v3046 = vadd.f32 %v2902, %v3045
  %v3047 = vpop.f32.mrb[0].mxu0
  %3048 = vmatprep.mubr.f32.mxu0 0.0
  %v3049 = vand.u32 %v2481, 4294901760
  %v3050 = vsub.f32 %v2481, %v3049
  %v3051 = vand.u32 %v3050, 4294901760
  %3052 = vmatmul.mubr.f32.gmra.mrb[0].mxu0 %v3051
  %v3053 = vpop.f32.mrb[0].mxu0
  %v3054 = vadd.f32 %v2909, %v3053
  %v3055 = vpop.f32.mrb[0].mxu0
  %3056 = vmatprep.mubr.f32.mxu0 0.0
  %v3057 = vand.u32 %v2484, 4294901760
  %v3058 = vsub.f32 %v2484, %v3057
  %v3059 = vand.u32 %v3058, 4294901760
  %3060 = vmatmul.mubr.f32.gmra.mrb[0].mxu0 %v3059
  %v3061 = vpop.f32.mrb[0].mxu0
  %v3062 = vadd.f32 %v2916, %v3061
  %v3063 = vpop.f32.mrb[0].mxu0
  %3064 = vdwg.mxu0
  %3065 = vmatprep.subr.mxu0 0.0
  %v3066 = vand.u32 %v2455, 4294901760
  %v3067 = vsub.f32 %v2455, %v3066
  %v3068 = vand.u32 %v3067, 4294901760
  %3069 = vmatpush1.msra.mxu0 %v3068
  %3070 = vmatprep.subr.mxu0 0.0
  %3071 = vmatpush1.msra.mxu0 0.0
  %3072 = vmatprep.subr.mxu0 0.0
  %3073 = vmatpush1.msra.mxu0 0.0
  %3074 = vmatprep.subr.mxu0 0.0
  %3075 = vmatpush1.msra.mxu0 0.0
  %3076 = vmatprep.subr.mxu0 0.0
  %3077 = vmatpush1.msra.mxu0 0.0
  %3078 = vmatprep.subr.mxu0 0.0
  %3079 = vmatpush1.msra.mxu0 0.0
  %3080 = vmatprep.subr.mxu0 0.0
  %3081 = vmatpush1.msra.mxu0 0.0
  %3082 = vmatprep.subr.mxu0 0.0
  %3083 = vmatpush1.msra.mxu0 0.0
  %3084 = vmatprep.subr.mxu0 0.0
  %3085 = vmatpush1.msra.mxu0 0.0
  %3086 = vmatprep.subr.mxu0 0.0
  %3087 = vmatpush1.msra.mxu0 0.0
  %3088 = vmatprep.subr.mxu0 0.0
  %3089 = vmatpush1.msra.mxu0 0.0
  %3090 = vmatprep.subr.mxu0 0.0
  %3091 = vmatpush1.msra.mxu0 0.0
  %3092 = vmatprep.subr.mxu0 0.0
  %3093 = vmatpush1.msra.mxu0 0.0
  %3094 = vmatprep.subr.mxu0 0.0
  %3095 = vmatpush1.msra.mxu0 0.0
  %3096 = vmatprep.subr.mxu0 0.0
  %3097 = vmatpush1.msra.mxu0 0.0
  %3098 = vmatprep.subr.mxu0 0.0
  %3099 = vmatpush1.msra.mxu0 0.0
  %3100 = vmatprep.subr.mxu0 0.0
  %3101 = vmatpush1.msra.mxu0 0.0
  %3102 = vmatprep.subr.mxu0 0.0
  %3103 = vmatpush1.msra.mxu0 0.0
  %3104 = vmatprep.subr.mxu0 0.0
  %3105 = vmatpush1.msra.mxu0 0.0
  %3106 = vmatprep.subr.mxu0 0.0
  %3107 = vmatpush1.msra.mxu0 0.0
  %3108 = vmatprep.subr.mxu0 0.0
  %3109 = vmatpush1.msra.mxu0 0.0
  %3110 = vmatprep.subr.mxu0 0.0
  %3111 = vmatpush1.msra.mxu0 0.0
  %3112 = vmatprep.subr.mxu0 0.0
  %3113 = vmatpush1.msra.mxu0 0.0
  %3114 = vmatprep.subr.mxu0 0.0
  %3115 = vmatpush1.msra.mxu0 0.0
  %3116 = vmatprep.subr.mxu0 0.0
  %3117 = vmatpush1.msra.mxu0 0.0
  %3118 = vmatprep.subr.mxu0 0.0
  %3119 = vmatpush1.msra.mxu0 0.0
  %3120 = vmatprep.subr.mxu0 0.0
  %3121 = vmatpush1.msra.mxu0 0.0
  %3122 = vmatprep.subr.mxu0 0.0
  %3123 = vmatpush1.msra.mxu0 0.0
  %3124 = vmatprep.subr.mxu0 0.0
  %3125 = vmatpush1.msra.mxu0 0.0
  %3126 = vmatprep.subr.mxu0 0.0
  %3127 = vmatpush1.msra.mxu0 0.0
  %3128 = vmatprep.subr.mxu0 0.0
  %3129 = vmatpush1.msra.mxu0 0.0
  %3130 = vmatprep.subr.mxu0 0.0
  %3131 = vmatpush1.msra.mxu0 0.0
  %3132 = vmatprep.mubr.f32.mxu0 0.0
  %v3133 = vand.u32 %v2457, 4294901760
  %3134 = vmatmul.mubr.f32.gmra.mrb[0].mxu0 %v3133
  %v3135 = vpop.f32.mrb[0].mxu0
  %v3136 = vadd.f32 %v2990, %v3135
  %v3137 = vpop.f32.mrb[0].mxu0
  %3138 = vmatprep.mubr.f32.mxu0 0.0
  %v3139 = vand.u32 %v2460, 4294901760
  %3140 = vmatmul.mubr.f32.gmra.mrb[0].mxu0 %v3139
  %v3141 = vpop.f32.mrb[0].mxu0
  %v3142 = vadd.f32 %v2998, %v3141
  %v3143 = vpop.f32.mrb[0].mxu0
  %3144 = vmatprep.mubr.f32.mxu0 0.0
  %v3145 = vand.u32 %v2463, 4294901760
  %3146 = vmatmul.mubr.f32.gmra.mrb[0].mxu0 %v3145
  %v3147 = vpop.f32.mrb[0].mxu0
  %v3148 = vadd.f32 %v3006, %v3147
  %v3149 = vpop.f32.mrb[0].mxu0
  %3150 = vmatprep.mubr.f32.mxu0 0.0
  %v3151 = vand.u32 %v2466, 4294901760
  %3152 = vmatmul.mubr.f32.gmra.mrb[0].mxu0 %v3151
  %v3153 = vpop.f32.mrb[0].mxu0
  %v3154 = vadd.f32 %v3014, %v3153
  %v3155 = vpop.f32.mrb[0].mxu0
  %3156 = vmatprep.mubr.f32.mxu0 0.0
  %v3157 = vand.u32 %v2469, 4294901760
  %3158 = vmatmul.mubr.f32.gmra.mrb[0].mxu0 %v3157
  %v3159 = vpop.f32.mrb[0].mxu0
  %v3160 = vadd.f32 %v3022, %v3159
  %v3161 = vpop.f32.mrb[0].mxu0
  %3162 = vmatprep.mubr.f32.mxu0 0.0
  %v3163 = vand.u32 %v2472, 4294901760
  %3164 = vmatmul.mubr.f32.gmra.mrb[0].mxu0 %v3163
  %v3165 = vpop.f32.mrb[0].mxu0
  %v3166 = vadd.f32 %v3030, %v3165
  %v3167 = vpop.f32.mrb[0].mxu0
  %3168 = vmatprep.mubr.f32.mxu0 0.0
  %v3169 = vand.u32 %v2475, 4294901760
  %3170 = vmatmul.mubr.f32.gmra.mrb[0].mxu0 %v3169
  %v3171 = vpop.f32.mrb[0].mxu0
  %v3172 = vadd.f32 %v3038, %v3171
  %v3173 = vpop.f32.mrb[0].mxu0
  %3174 = vmatprep.mubr.f32.mxu0 0.0
  %v3175 = vand.u32 %v2478, 4294901760
  %3176 = vmatmul.mubr.f32.gmra.mrb[0].mxu0 %v3175
  %v3177 = vpop.f32.mrb[0].mxu0
  %v3178 = vadd.f32 %v3046, %v3177
  %v3179 = vpop.f32.mrb[0].mxu0
  %3180 = vmatprep.mubr.f32.mxu0 0.0
  %v3181 = vand.u32 %v2481, 4294901760
  %3182 = vmatmul.mubr.f32.gmra.mrb[0].mxu0 %v3181
  %v3183 = vpop.f32.mrb[0].mxu0
  %v3184 = vadd.f32 %v3054, %v3183
  %v3185 = vpop.f32.mrb[0].mxu0
  %3186 = vmatprep.mubr.f32.mxu0 0.0
  %v3187 = vand.u32 %v2484, 4294901760
  %3188 = vmatmul.mubr.f32.gmra.mrb[0].mxu0 %v3187
  %v3189 = vpop.f32.mrb[0].mxu0
  %v3190 = vadd.f32 %v3062, %v3189
  %v3191 = vpop.f32.mrb[0].mxu0
  %3192 = vdwg.mxu0
  %3193 = vmatprep.subr.mxu0 0.0
  %v3194 = vand.u32 %v2455, 4294901760
  %3195 = vmatpush1.msra.mxu0 %v3194
  %3196 = vmatprep.subr.mxu0 0.0
  %3197 = vmatpush1.msra.mxu0 0.0
  %3198 = vmatprep.subr.mxu0 0.0
  %3199 = vmatpush1.msra.mxu0 0.0
  %3200 = vmatprep.subr.mxu0 0.0
  %3201 = vmatpush1.msra.mxu0 0.0
  %3202 = vmatprep.subr.mxu0 0.0
  %3203 = vmatpush1.msra.mxu0 0.0
  %3204 = vmatprep.subr.mxu0 0.0
  %3205 = vmatpush1.msra.mxu0 0.0
  %3206 = vmatprep.subr.mxu0 0.0
  %3207 = vmatpush1.msra.mxu0 0.0
  %3208 = vmatprep.subr.mxu0 0.0
  %3209 = vmatpush1.msra.mxu0 0.0
  %3210 = vmatprep.subr.mxu0 0.0
  %3211 = vmatpush1.msra.mxu0 0.0
  %3212 = vmatprep.subr.mxu0 0.0
  %3213 = vmatpush1.msra.mxu0 0.0
  %3214 = vmatprep.subr.mxu0 0.0
  %3215 = vmatpush1.msra.mxu0 0.0
  %3216 = vmatprep.subr.mxu0 0.0
  %3217 = vmatpush1.msra.mxu0 0.0
  %3218 = vmatprep.subr.mxu0 0.0
  %3219 = vmatpush1.msra.mxu0 0.0
  %3220 = vmatprep.subr.mxu0 0.0
  %3221 = vmatpush1.msra.mxu0 0.0
  %3222 = vmatprep.subr.mxu0 0.0
  %3223 = vmatpush1.msra.mxu0 0.0
  %3224 = vmatprep.subr.mxu0 0.0
  %3225 = vmatpush1.msra.mxu0 0.0
  %3226 = vmatprep.subr.mxu0 0.0
  %3227 = vmatpush1.msra.mxu0 0.0
  %3228 = vmatprep.subr.mxu0 0.0
  %3229 = vmatpush1.msra.mxu0 0.0
  %3230 = vmatprep.subr.mxu0 0.0
  %3231 = vmatpush1.msra.mxu0 0.0
  %3232 = vmatprep.subr.mxu0 0.0
  %3233 = vmatpush1.msra.mxu0 0.0
  %3234 = vmatprep.subr.mxu0 0.0
  %3235 = vmatpush1.msra.mxu0 0.0
  %3236 = vmatprep.subr.mxu0 0.0
  %3237 = vmatpush1.msra.mxu0 0.0
  %3238 = vmatprep.subr.mxu0 0.0
  %3239 = vmatpush1.msra.mxu0 0.0
  %3240 = vmatprep.subr.mxu0 0.0
  %3241 = vmatpush1.msra.mxu0 0.0
  %3242 = vmatprep.subr.mxu0 0.0
  %3243 = vmatpush1.msra.mxu0 0.0
  %3244 = vmatprep.subr.mxu0 0.0
  %3245 = vmatpush1.msra.mxu0 0.0
  %3246 = vmatprep.subr.mxu0 0.0
  %3247 = vmatpush1.msra.mxu0 0.0
  %3248 = vmatprep.subr.mxu0 0.0
  %3249 = vmatpush1.msra.mxu0 0.0
  %3250 = vmatprep.subr.mxu0 0.0
  %3251 = vmatpush1.msra.mxu0 0.0
  %3252 = vmatprep.subr.mxu0 0.0
  %3253 = vmatpush1.msra.mxu0 0.0
  %3254 = vmatprep.subr.mxu0 0.0
  %3255 = vmatpush1.msra.mxu0 0.0
  %3256 = vmatprep.subr.mxu0 0.0
  %3257 = vmatpush1.msra.mxu0 0.0
  %3258 = vmatprep.mubr.f32.mxu0 0.0
  %v3259 = vand.u32 %v2457, 4294901760
  %3260 = vmatmul.mubr.f32.gmra.mrb[0].mxu0 %v3259
  %v3261 = vpop.f32.mrb[0].mxu0
  %v3262 = vadd.f32 %v3136, %v3261
  %v3263 = vpop.f32.mrb[0].mxu0
  %3264 = vmatprep.mubr.f32.mxu0 0.0
  %v3265 = vand.u32 %v2460, 4294901760
  %3266 = vmatmul.mubr.f32.gmra.mrb[0].mxu0 %v3265
  %v3267 = vpop.f32.mrb[0].mxu0
  %v3268 = vadd.f32 %v3142, %v3267
  %v3269 = vpop.f32.mrb[0].mxu0
  %3270 = vmatprep.mubr.f32.mxu0 0.0
  %v3271 = vand.u32 %v2463, 4294901760
  %3272 = vmatmul.mubr.f32.gmra.mrb[0].mxu0 %v3271
  %v3273 = vpop.f32.mrb[0].mxu0
  %v3274 = vadd.f32 %v3148, %v3273
  %v3275 = vpop.f32.mrb[0].mxu0
  %3276 = vmatprep.mubr.f32.mxu0 0.0
  %v3277 = vand.u32 %v2466, 4294901760
  %3278 = vmatmul.mubr.f32.gmra.mrb[0].mxu0 %v3277
  %v3279 = vpop.f32.mrb[0].mxu0
  %v3280 = vadd.f32 %v3154, %v3279
  %v3281 = vpop.f32.mrb[0].mxu0
  %3282 = vmatprep.mubr.f32.mxu0 0.0
  %v3283 = vand.u32 %v2469, 4294901760
  %3284 = vmatmul.mubr.f32.gmra.mrb[0].mxu0 %v3283
  %v3285 = vpop.f32.mrb[0].mxu0
  %v3286 = vadd.f32 %v3160, %v3285
  %v3287 = vpop.f32.mrb[0].mxu0
  %3288 = vmatprep.mubr.f32.mxu0 0.0
  %v3289 = vand.u32 %v2472, 4294901760
  %3290 = vmatmul.mubr.f32.gmra.mrb[0].mxu0 %v3289
  %v3291 = vpop.f32.mrb[0].mxu0
  %v3292 = vadd.f32 %v3166, %v3291
  %v3293 = vpop.f32.mrb[0].mxu0
  %3294 = vmatprep.mubr.f32.mxu0 0.0
  %v3295 = vand.u32 %v2475, 4294901760
  %3296 = vmatmul.mubr.f32.gmra.mrb[0].mxu0 %v3295
  %v3297 = vpop.f32.mrb[0].mxu0
  %v3298 = vadd.f32 %v3172, %v3297
  %v3299 = vpop.f32.mrb[0].mxu0
  %3300 = vmatprep.mubr.f32.mxu0 0.0
  %v3301 = vand.u32 %v2478, 4294901760
  %3302 = vmatmul.mubr.f32.gmra.mrb[0].mxu0 %v3301
  %v3303 = vpop.f32.mrb[0].mxu0
  %v3304 = vadd.f32 %v3178, %v3303
  %v3305 = vpop.f32.mrb[0].mxu0
  %3306 = vmatprep.mubr.f32.mxu0 0.0
  %v3307 = vand.u32 %v2481, 4294901760
  %3308 = vmatmul.mubr.f32.gmra.mrb[0].mxu0 %v3307
  %v3309 = vpop.f32.mrb[0].mxu0
  %v3310 = vadd.f32 %v3184, %v3309
  %v3311 = vpop.f32.mrb[0].mxu0
  %3312 = vmatprep.mubr.f32.mxu0 0.0
  %v3313 = vand.u32 %v2484, 4294901760
  %3314 = vmatmul.mubr.f32.gmra.mrb[0].mxu0 %v3313
  %v3315 = vpop.f32.mrb[0].mxu0
  %v3316 = vadd.f32 %v3190, %v3315
  %v3317 = vpop.f32.mrb[0].mxu0
  %3318 = vdwg.mxu0
  %vm3319 = vcmask 31744
  %3320 = vst.msk [vmem:[#allocation2] sm:$0xff] %vm3319, %v3262
  %3321 = vst.msk [vmem:[#allocation2 + $0x8] sm:$0xff] %vm3319, %v3268
  %3322 = vst.msk [vmem:[#allocation2 + $0x10] sm:$0xff] %vm3319, %v3274
  %3323 = vst.msk [vmem:[#allocation2 + $0x18] sm:$0xff] %vm3319, %v3280
  %3324 = vst.msk [vmem:[#allocation2 + $0x20] sm:$0xff] %vm3319, %v3286
  %3325 = vst.msk [vmem:[#allocation2 + $0x28] sm:$0xff] %vm3319, %v3292
  %3326 = vst.msk [vmem:[#allocation2 + $0x30] sm:$0xff] %vm3319, %v3298
  %3327 = vst.msk [vmem:[#allocation2 + $0x38] sm:$0xff] %vm3319, %v3304
  %3328 = vst.msk [vmem:[#allocation2 + $0x40] sm:$0xff] %vm3319, %v3310
  %3329 = vst.msk [vmem:[#allocation2 + $0x48] sm:$0xff] %vm3319, %v3316
  %s3330 = scalar_lea.vmem %s5, 8
  %v3331 = vld [vmem:[%s3330] sm:$0xff]
  %3332 = vmatprep.subr.mxu0 0.0
  %v3333 = vand.u32 %v3331, 4294901760
  %3334 = vmatpush1.msra.mxu0 %v3333
  %3335 = vmatprep.subr.mxu0 0.0
  %3336 = vmatpush1.msra.mxu0 0.0
  %3337 = vmatprep.subr.mxu0 0.0
  %3338 = vmatpush1.msra.mxu0 0.0
  %3339 = vmatprep.subr.mxu0 0.0
  %3340 = vmatpush1.msra.mxu0 0.0
  %3341 = vmatprep.subr.mxu0 0.0
  %3342 = vmatpush1.msra.mxu0 0.0
  %3343 = vmatprep.subr.mxu0 0.0
  %3344 = vmatpush1.msra.mxu0 0.0
  %3345 = vmatprep.subr.mxu0 0.0
  %3346 = vmatpush1.msra.mxu0 0.0
  %3347 = vmatprep.subr.mxu0 0.0
  %3348 = vmatpush1.msra.mxu0 0.0
  %3349 = vmatprep.subr.mxu0 0.0
  %3350 = vmatpush1.msra.mxu0 0.0
  %3351 = vmatprep.subr.mxu0 0.0
  %3352 = vmatpush1.msra.mxu0 0.0
  %3353 = vmatprep.subr.mxu0 0.0
  %3354 = vmatpush1.msra.mxu0 0.0
  %3355 = vmatprep.subr.mxu0 0.0
  %3356 = vmatpush1.msra.mxu0 0.0
  %3357 = vmatprep.subr.mxu0 0.0
  %3358 = vmatpush1.msra.mxu0 0.0
  %3359 = vmatprep.subr.mxu0 0.0
  %3360 = vmatpush1.msra.mxu0 0.0
  %3361 = vmatprep.subr.mxu0 0.0
  %3362 = vmatpush1.msra.mxu0 0.0
  %3363 = vmatprep.subr.mxu0 0.0
  %3364 = vmatpush1.msra.mxu0 0.0
  %3365 = vmatprep.subr.mxu0 0.0
  %3366 = vmatpush1.msra.mxu0 0.0
  %3367 = vmatprep.subr.mxu0 0.0
  %3368 = vmatpush1.msra.mxu0 0.0
  %3369 = vmatprep.subr.mxu0 0.0
  %3370 = vmatpush1.msra.mxu0 0.0
  %3371 = vmatprep.subr.mxu0 0.0
  %3372 = vmatpush1.msra.mxu0 0.0
  %3373 = vmatprep.subr.mxu0 0.0
  %3374 = vmatpush1.msra.mxu0 0.0
  %3375 = vmatprep.subr.mxu0 0.0
  %3376 = vmatpush1.msra.mxu0 0.0
  %3377 = vmatprep.subr.mxu0 0.0
  %3378 = vmatpush1.msra.mxu0 0.0
  %3379 = vmatprep.subr.mxu0 0.0
  %3380 = vmatpush1.msra.mxu0 0.0
  %3381 = vmatprep.subr.mxu0 0.0
  %3382 = vmatpush1.msra.mxu0 0.0
  %3383 = vmatprep.subr.mxu0 0.0
  %3384 = vmatpush1.msra.mxu0 0.0
  %3385 = vmatprep.subr.mxu0 0.0
  %3386 = vmatpush1.msra.mxu0 0.0
  %3387 = vmatprep.subr.mxu0 0.0
  %3388 = vmatpush1.msra.mxu0 0.0
  %3389 = vmatprep.subr.mxu0 0.0
  %3390 = vmatpush1.msra.mxu0 0.0
  %3391 = vmatprep.subr.mxu0 0.0
  %3392 = vmatpush1.msra.mxu0 0.0
  %3393 = vmatprep.subr.mxu0 0.0
  %3394 = vmatpush1.msra.mxu0 0.0
  %3395 = vmatprep.subr.mxu0 0.0
  %3396 = vmatpush1.msra.mxu0 0.0
  %3397 = vmatprep.mubr.f32.mxu0 0.0
  %v3398 = vand.u32 %v2457, 4294901760
  %v3399 = vsub.f32 %v2457, %v3398
  %v3400 = vand.u32 %v3399, 4294901760
  %v3401 = vsub.f32 %v3399, %v3400
  %v3402 = vand.u32 %v3401, 4294901760
  %3403 = vmatmul.mubr.f32.gmra.mrb[0].mxu0 %v3402
  %v3404 = vpop.f32.mrb[0].mxu0
  %v3405 = vadd.f32 0.0, %v3404
  %v3406 = vpop.f32.mrb[0].mxu0
  %3407 = vmatprep.mubr.f32.mxu0 0.0
  %v3408 = vand.u32 %v2460, 4294901760
  %v3409 = vsub.f32 %v2460, %v3408
  %v3410 = vand.u32 %v3409, 4294901760
  %v3411 = vsub.f32 %v3409, %v3410
  %v3412 = vand.u32 %v3411, 4294901760
  %3413 = vmatmul.mubr.f32.gmra.mrb[0].mxu0 %v3412
  %v3414 = vpop.f32.mrb[0].mxu0
  %v3415 = vadd.f32 0.0, %v3414
  %v3416 = vpop.f32.mrb[0].mxu0
  %3417 = vmatprep.mubr.f32.mxu0 0.0
  %v3418 = vand.u32 %v2463, 4294901760
  %v3419 = vsub.f32 %v2463, %v3418
  %v3420 = vand.u32 %v3419, 4294901760
  %v3421 = vsub.f32 %v3419, %v3420
  %v3422 = vand.u32 %v3421, 4294901760
  %3423 = vmatmul.mubr.f32.gmra.mrb[0].mxu0 %v3422
  %v3424 = vpop.f32.mrb[0].mxu0
  %v3425 = vadd.f32 0.0, %v3424
  %v3426 = vpop.f32.mrb[0].mxu0
  %3427 = vmatprep.mubr.f32.mxu0 0.0
  %v3428 = vand.u32 %v2466, 4294901760
  %v3429 = vsub.f32 %v2466, %v3428
  %v3430 = vand.u32 %v3429, 4294901760
  %v3431 = vsub.f32 %v3429, %v3430
  %v3432 = vand.u32 %v3431, 4294901760
  %3433 = vmatmul.mubr.f32.gmra.mrb[0].mxu0 %v3432
  %v3434 = vpop.f32.mrb[0].mxu0
  %v3435 = vadd.f32 0.0, %v3434
  %v3436 = vpop.f32.mrb[0].mxu0
  %3437 = vmatprep.mubr.f32.mxu0 0.0
  %v3438 = vand.u32 %v2469, 4294901760
  %v3439 = vsub.f32 %v2469, %v3438
  %v3440 = vand.u32 %v3439, 4294901760
  %v3441 = vsub.f32 %v3439, %v3440
  %v3442 = vand.u32 %v3441, 4294901760
  %3443 = vmatmul.mubr.f32.gmra.mrb[0].mxu0 %v3442
  %v3444 = vpop.f32.mrb[0].mxu0
  %v3445 = vadd.f32 0.0, %v3444
  %v3446 = vpop.f32.mrb[0].mxu0
  %3447 = vmatprep.mubr.f32.mxu0 0.0
  %v3448 = vand.u32 %v2472, 4294901760
  %v3449 = vsub.f32 %v2472, %v3448
  %v3450 = vand.u32 %v3449, 4294901760
  %v3451 = vsub.f32 %v3449, %v3450
  %v3452 = vand.u32 %v3451, 4294901760
  %3453 = vmatmul.mubr.f32.gmra.mrb[0].mxu0 %v3452
  %v3454 = vpop.f32.mrb[0].mxu0
  %v3455 = vadd.f32 0.0, %v3454
  %v3456 = vpop.f32.mrb[0].mxu0
  %3457 = vmatprep.mubr.f32.mxu0 0.0
  %v3458 = vand.u32 %v2475, 4294901760
  %v3459 = vsub.f32 %v2475, %v3458
  %v3460 = vand.u32 %v3459, 4294901760
  %v3461 = vsub.f32 %v3459, %v3460
  %v3462 = vand.u32 %v3461, 4294901760
  %3463 = vmatmul.mubr.f32.gmra.mrb[0].mxu0 %v3462
  %v3464 = vpop.f32.mrb[0].mxu0
  %v3465 = vadd.f32 0.0, %v3464
  %v3466 = vpop.f32.mrb[0].mxu0
  %3467 = vmatprep.mubr.f32.mxu0 0.0
  %v3468 = vand.u32 %v2478, 4294901760
  %v3469 = vsub.f32 %v2478, %v3468
  %v3470 = vand.u32 %v3469, 4294901760
  %v3471 = vsub.f32 %v3469, %v3470
  %v3472 = vand.u32 %v3471, 4294901760
  %3473 = vmatmul.mubr.f32.gmra.mrb[0].mxu0 %v3472
  %v3474 = vpop.f32.mrb[0].mxu0
  %v3475 = vadd.f32 0.0, %v3474
  %v3476 = vpop.f32.mrb[0].mxu0
  %3477 = vmatprep.mubr.f32.mxu0 0.0
  %v3478 = vand.u32 %v2481, 4294901760
  %v3479 = vsub.f32 %v2481, %v3478
  %v3480 = vand.u32 %v3479, 4294901760
  %v3481 = vsub.f32 %v3479, %v3480
  %v3482 = vand.u32 %v3481, 4294901760
  %3483 = vmatmul.mubr.f32.gmra.mrb[0].mxu0 %v3482
  %v3484 = vpop.f32.mrb[0].mxu0
  %v3485 = vadd.f32 0.0, %v3484
  %v3486 = vpop.f32.mrb[0].mxu0
  %3487 = vmatprep.mubr.f32.mxu0 0.0
  %v3488 = vand.u32 %v2484, 4294901760
  %v3489 = vsub.f32 %v2484, %v3488
  %v3490 = vand.u32 %v3489, 4294901760
  %v3491 = vsub.f32 %v3489, %v3490
  %v3492 = vand.u32 %v3491, 4294901760
  %3493 = vmatmul.mubr.f32.gmra.mrb[0].mxu0 %v3492
  %v3494 = vpop.f32.mrb[0].mxu0
  %v3495 = vadd.f32 0.0, %v3494
  %v3496 = vpop.f32.mrb[0].mxu0
  %3497 = vdwg.mxu0
  %3498 = vmatprep.subr.mxu0 0.0
  %v3499 = vand.u32 %v3331, 4294901760
  %v3500 = vsub.f32 %v3331, %v3499
  %v3501 = vand.u32 %v3500, 4294901760
  %v3502 = vsub.f32 %v3500, %v3501
  %v3503 = vand.u32 %v3502, 4294901760
  %3504 = vmatpush1.msra.mxu0 %v3503
  %3505 = vmatprep.subr.mxu0 0.0
  %3506 = vmatpush1.msra.mxu0 0.0
  %3507 = vmatprep.subr.mxu0 0.0
  %3508 = vmatpush1.msra.mxu0 0.0
  %3509 = vmatprep.subr.mxu0 0.0
  %3510 = vmatpush1.msra.mxu0 0.0
  %3511 = vmatprep.subr.mxu0 0.0
  %3512 = vmatpush1.msra.mxu0 0.0
  %3513 = vmatprep.subr.mxu0 0.0
  %3514 = vmatpush1.msra.mxu0 0.0
  %3515 = vmatprep.subr.mxu0 0.0
  %3516 = vmatpush1.msra.mxu0 0.0
  %3517 = vmatprep.subr.mxu0 0.0
  %3518 = vmatpush1.msra.mxu0 0.0
  %3519 = vmatprep.subr.mxu0 0.0
  %3520 = vmatpush1.msra.mxu0 0.0
  %3521 = vmatprep.subr.mxu0 0.0
  %3522 = vmatpush1.msra.mxu0 0.0
  %3523 = vmatprep.subr.mxu0 0.0
  %3524 = vmatpush1.msra.mxu0 0.0
  %3525 = vmatprep.subr.mxu0 0.0
  %3526 = vmatpush1.msra.mxu0 0.0
  %3527 = vmatprep.subr.mxu0 0.0
  %3528 = vmatpush1.msra.mxu0 0.0
  %3529 = vmatprep.subr.mxu0 0.0
  %3530 = vmatpush1.msra.mxu0 0.0
  %3531 = vmatprep.subr.mxu0 0.0
  %3532 = vmatpush1.msra.mxu0 0.0
  %3533 = vmatprep.subr.mxu0 0.0
  %3534 = vmatpush1.msra.mxu0 0.0
  %3535 = vmatprep.subr.mxu0 0.0
  %3536 = vmatpush1.msra.mxu0 0.0
  %3537 = vmatprep.subr.mxu0 0.0
  %3538 = vmatpush1.msra.mxu0 0.0
  %3539 = vmatprep.subr.mxu0 0.0
  %3540 = vmatpush1.msra.mxu0 0.0
  %3541 = vmatprep.subr.mxu0 0.0
  %3542 = vmatpush1.msra.mxu0 0.0
  %3543 = vmatprep.subr.mxu0 0.0
  %3544 = vmatpush1.msra.mxu0 0.0
  %3545 = vmatprep.subr.mxu0 0.0
  %3546 = vmatpush1.msra.mxu0 0.0
  %3547 = vmatprep.subr.mxu0 0.0
  %3548 = vmatpush1.msra.mxu0 0.0
  %3549 = vmatprep.subr.mxu0 0.0
  %3550 = vmatpush1.msra.mxu0 0.0
  %3551 = vmatprep.subr.mxu0 0.0
  %3552 = vmatpush1.msra.mxu0 0.0
  %3553 = vmatprep.subr.mxu0 0.0
  %3554 = vmatpush1.msra.mxu0 0.0
  %3555 = vmatprep.subr.mxu0 0.0
  %3556 = vmatpush1.msra.mxu0 0.0
  %3557 = vmatprep.subr.mxu0 0.0
  %3558 = vmatpush1.msra.mxu0 0.0
  %3559 = vmatprep.subr.mxu0 0.0
  %3560 = vmatpush1.msra.mxu0 0.0
  %3561 = vmatprep.subr.mxu0 0.0
  %3562 = vmatpush1.msra.mxu0 0.0
  %3563 = vmatprep.subr.mxu0 0.0
  %3564 = vmatpush1.msra.mxu0 0.0
  %3565 = vmatprep.subr.mxu0 0.0
  %3566 = vmatpush1.msra.mxu0 0.0
  %3567 = vmatprep.mubr.f32.mxu0 0.0
  %v3568 = vand.u32 %v2457, 4294901760
  %3569 = vmatmul.mubr.f32.gmra.mrb[0].mxu0 %v3568
  %v3570 = vpop.f32.mrb[0].mxu0
  %v3571 = vadd.f32 %v3405, %v3570
  %v3572 = vpop.f32.mrb[0].mxu0
  %3573 = vmatprep.mubr.f32.mxu0 0.0
  %v3574 = vand.u32 %v2460, 4294901760
  %3575 = vmatmul.mubr.f32.gmra.mrb[0].mxu0 %v3574
  %v3576 = vpop.f32.mrb[0].mxu0
  %v3577 = vadd.f32 %v3415, %v3576
  %v3578 = vpop.f32.mrb[0].mxu0
  %3579 = vmatprep.mubr.f32.mxu0 0.0
  %v3580 = vand.u32 %v2463, 4294901760
  %3581 = vmatmul.mubr.f32.gmra.mrb[0].mxu0 %v3580
  %v3582 = vpop.f32.mrb[0].mxu0
  %v3583 = vadd.f32 %v3425, %v3582
  %v3584 = vpop.f32.mrb[0].mxu0
  %3585 = vmatprep.mubr.f32.mxu0 0.0
  %v3586 = vand.u32 %v2466, 4294901760
  %3587 = vmatmul.mubr.f32.gmra.mrb[0].mxu0 %v3586
  %v3588 = vpop.f32.mrb[0].mxu0
  %v3589 = vadd.f32 %v3435, %v3588
  %v3590 = vpop.f32.mrb[0].mxu0
  %3591 = vmatprep.mubr.f32.mxu0 0.0
  %v3592 = vand.u32 %v2469, 4294901760
  %3593 = vmatmul.mubr.f32.gmra.mrb[0].mxu0 %v3592
  %v3594 = vpop.f32.mrb[0].mxu0
  %v3595 = vadd.f32 %v3445, %v3594
  %v3596 = vpop.f32.mrb[0].mxu0
  %3597 = vmatprep.mubr.f32.mxu0 0.0
  %v3598 = vand.u32 %v2472, 4294901760
  %3599 = vmatmul.mubr.f32.gmra.mrb[0].mxu0 %v3598
  %v3600 = vpop.f32.mrb[0].mxu0
  %v3601 = vadd.f32 %v3455, %v3600
  %v3602 = vpop.f32.mrb[0].mxu0
  %3603 = vmatprep.mubr.f32.mxu0 0.0
  %v3604 = vand.u32 %v2475, 4294901760
  %3605 = vmatmul.mubr.f32.gmra.mrb[0].mxu0 %v3604
  %v3606 = vpop.f32.mrb[0].mxu0
  %v3607 = vadd.f32 %v3465, %v3606
  %v3608 = vpop.f32.mrb[0].mxu0
  %3609 = vmatprep.mubr.f32.mxu0 0.0
  %v3610 = vand.u32 %v2478, 4294901760
  %3611 = vmatmul.mubr.f32.gmra.mrb[0].mxu0 %v3610
  %v3612 = vpop.f32.mrb[0].mxu0
  %v3613 = vadd.f32 %v3475, %v3612
  %v3614 = vpop.f32.mrb[0].mxu0
  %3615 = vmatprep.mubr.f32.mxu0 0.0
  %v3616 = vand.u32 %v2481, 4294901760
  %3617 = vmatmul.mubr.f32.gmra.mrb[0].mxu0 %v3616
  %v3618 = vpop.f32.mrb[0].mxu0
  %v3619 = vadd.f32 %v3485, %v3618
  %v3620 = vpop.f32.mrb[0].mxu0
  %3621 = vmatprep.mubr.f32.mxu0 0.0
  %v3622 = vand.u32 %v2484, 4294901760
  %3623 = vmatmul.mubr.f32.gmra.mrb[0].mxu0 %v3622
  %v3624 = vpop.f32.mrb[0].mxu0
  %v3625 = vadd.f32 %v3495, %v3624
  %v3626 = vpop.f32.mrb[0].mxu0
  %3627 = vdwg.mxu0
  %3628 = vmatprep.subr.mxu0 0.0
  %v3629 = vand.u32 %v3331, 4294901760
  %v3630 = vsub.f32 %v3331, %v3629
  %3631 = vmatpush1.msra.mxu0 %v3630
  %3632 = vmatprep.subr.mxu0 0.0
  %3633 = vmatpush1.msra.mxu0 0.0
  %3634 = vmatprep.subr.mxu0 0.0
  %3635 = vmatpush1.msra.mxu0 0.0
  %3636 = vmatprep.subr.mxu0 0.0
  %3637 = vmatpush1.msra.mxu0 0.0
  %3638 = vmatprep.subr.mxu0 0.0
  %3639 = vmatpush1.msra.mxu0 0.0
  %3640 = vmatprep.subr.mxu0 0.0
  %3641 = vmatpush1.msra.mxu0 0.0
  %3642 = vmatprep.subr.mxu0 0.0
  %3643 = vmatpush1.msra.mxu0 0.0
  %3644 = vmatprep.subr.mxu0 0.0
  %3645 = vmatpush1.msra.mxu0 0.0
  %3646 = vmatprep.subr.mxu0 0.0
  %3647 = vmatpush1.msra.mxu0 0.0
  %3648 = vmatprep.subr.mxu0 0.0
  %3649 = vmatpush1.msra.mxu0 0.0
  %3650 = vmatprep.subr.mxu0 0.0
  %3651 = vmatpush1.msra.mxu0 0.0
  %3652 = vmatprep.subr.mxu0 0.0
  %3653 = vmatpush1.msra.mxu0 0.0
  %3654 = vmatprep.subr.mxu0 0.0
  %3655 = vmatpush1.msra.mxu0 0.0
  %3656 = vmatprep.subr.mxu0 0.0
  %3657 = vmatpush1.msra.mxu0 0.0
  %3658 = vmatprep.subr.mxu0 0.0
  %3659 = vmatpush1.msra.mxu0 0.0
  %3660 = vmatprep.subr.mxu0 0.0
  %3661 = vmatpush1.msra.mxu0 0.0
  %3662 = vmatprep.subr.mxu0 0.0
  %3663 = vmatpush1.msra.mxu0 0.0
  %3664 = vmatprep.subr.mxu0 0.0
  %3665 = vmatpush1.msra.mxu0 0.0
  %3666 = vmatprep.subr.mxu0 0.0
  %3667 = vmatpush1.msra.mxu0 0.0
  %3668 = vmatprep.subr.mxu0 0.0
  %3669 = vmatpush1.msra.mxu0 0.0
  %3670 = vmatprep.subr.mxu0 0.0
  %3671 = vmatpush1.msra.mxu0 0.0
  %3672 = vmatprep.subr.mxu0 0.0
  %3673 = vmatpush1.msra.mxu0 0.0
  %3674 = vmatprep.subr.mxu0 0.0
  %3675 = vmatpush1.msra.mxu0 0.0
  %3676 = vmatprep.subr.mxu0 0.0
  %3677 = vmatpush1.msra.mxu0 0.0
  %3678 = vmatprep.subr.mxu0 0.0
  %3679 = vmatpush1.msra.mxu0 0.0
  %3680 = vmatprep.subr.mxu0 0.0
  %3681 = vmatpush1.msra.mxu0 0.0
  %3682 = vmatprep.subr.mxu0 0.0
  %3683 = vmatpush1.msra.mxu0 0.0
  %3684 = vmatprep.subr.mxu0 0.0
  %3685 = vmatpush1.msra.mxu0 0.0
  %3686 = vmatprep.subr.mxu0 0.0
  %3687 = vmatpush1.msra.mxu0 0.0
  %3688 = vmatprep.subr.mxu0 0.0
  %3689 = vmatpush1.msra.mxu0 0.0
  %3690 = vmatprep.subr.mxu0 0.0
  %3691 = vmatpush1.msra.mxu0 0.0
  %3692 = vmatprep.subr.mxu0 0.0
  %3693 = vmatpush1.msra.mxu0 0.0
  %3694 = vmatprep.mubr.f32.mxu0 0.0
  %v3695 = vand.u32 %v2457, 4294901760
  %v3696 = vsub.f32 %v2457, %v3695
  %3697 = vmatmul.mubr.f32.gmra.mrb[0].mxu0 %v3696
  %v3698 = vpop.f32.mrb[0].mxu0
  %v3699 = vadd.f32 %v3571, %v3698
  %v3700 = vpop.f32.mrb[0].mxu0
  %3701 = vmatprep.mubr.f32.mxu0 0.0
  %v3702 = vand.u32 %v2460, 4294901760
  %v3703 = vsub.f32 %v2460, %v3702
  %3704 = vmatmul.mubr.f32.gmra.mrb[0].mxu0 %v3703
  %v3705 = vpop.f32.mrb[0].mxu0
  %v3706 = vadd.f32 %v3577, %v3705
  %v3707 = vpop.f32.mrb[0].mxu0
  %3708 = vmatprep.mubr.f32.mxu0 0.0
  %v3709 = vand.u32 %v2463, 4294901760
  %v3710 = vsub.f32 %v2463, %v3709
  %3711 = vmatmul.mubr.f32.gmra.mrb[0].mxu0 %v3710
  %v3712 = vpop.f32.mrb[0].mxu0
  %v3713 = vadd.f32 %v3583, %v3712
  %v3714 = vpop.f32.mrb[0].mxu0
  %3715 = vmatprep.mubr.f32.mxu0 0.0
  %v3716 = vand.u32 %v2466, 4294901760
  %v3717 = vsub.f32 %v2466, %v3716
  %3718 = vmatmul.mubr.f32.gmra.mrb[0].mxu0 %v3717
  %v3719 = vpop.f32.mrb[0].mxu0
  %v3720 = vadd.f32 %v3589, %v3719
  %v3721 = vpop.f32.mrb[0].mxu0
  %3722 = vmatprep.mubr.f32.mxu0 0.0
  %v3723 = vand.u32 %v2469, 4294901760
  %v3724 = vsub.f32 %v2469, %v3723
  %3725 = vmatmul.mubr.f32.gmra.mrb[0].mxu0 %v3724
  %v3726 = vpop.f32.mrb[0].mxu0
  %v3727 = vadd.f32 %v3595, %v3726
  %v3728 = vpop.f32.mrb[0].mxu0
  %3729 = vmatprep.mubr.f32.mxu0 0.0
  %v3730 = vand.u32 %v2472, 4294901760
  %v3731 = vsub.f32 %v2472, %v3730
  %3732 = vmatmul.mubr.f32.gmra.mrb[0].mxu0 %v3731
  %v3733 = vpop.f32.mrb[0].mxu0
  %v3734 = vadd.f32 %v3601, %v3733
  %v3735 = vpop.f32.mrb[0].mxu0
  %3736 = vmatprep.mubr.f32.mxu0 0.0
  %v3737 = vand.u32 %v2475, 4294901760
  %v3738 = vsub.f32 %v2475, %v3737
  %3739 = vmatmul.mubr.f32.gmra.mrb[0].mxu0 %v3738
  %v3740 = vpop.f32.mrb[0].mxu0
  %v3741 = vadd.f32 %v3607, %v3740
  %v3742 = vpop.f32.mrb[0].mxu0
  %3743 = vmatprep.mubr.f32.mxu0 0.0
  %v3744 = vand.u32 %v2478, 4294901760
  %v3745 = vsub.f32 %v2478, %v3744
  %3746 = vmatmul.mubr.f32.gmra.mrb[0].mxu0 %v3745
  %v3747 = vpop.f32.mrb[0].mxu0
  %v3748 = vadd.f32 %v3613, %v3747
  %v3749 = vpop.f32.mrb[0].mxu0
  %3750 = vmatprep.mubr.f32.mxu0 0.0
  %v3751 = vand.u32 %v2481, 4294901760
  %v3752 = vsub.f32 %v2481, %v3751
  %3753 = vmatmul.mubr.f32.gmra.mrb[0].mxu0 %v3752
  %v3754 = vpop.f32.mrb[0].mxu0
  %v3755 = vadd.f32 %v3619, %v3754
  %v3756 = vpop.f32.mrb[0].mxu0
  %3757 = vmatprep.mubr.f32.mxu0 0.0
  %v3758 = vand.u32 %v2484, 4294901760
  %v3759 = vsub.f32 %v2484, %v3758
  %3760 = vmatmul.mubr.f32.gmra.mrb[0].mxu0 %v3759
  %v3761 = vpop.f32.mrb[0].mxu0
  %v3762 = vadd.f32 %v3625, %v3761
  %v3763 = vpop.f32.mrb[0].mxu0
  %3764 = vdwg.mxu0
  %3765 = vmatprep.subr.mxu0 0.0
  %v3766 = vand.u32 %v3331, 4294901760
  %3767 = vmatpush1.msra.mxu0 %v3766
  %3768 = vmatprep.subr.mxu0 0.0
  %3769 = vmatpush1.msra.mxu0 0.0
  %3770 = vmatprep.subr.mxu0 0.0
  %3771 = vmatpush1.msra.mxu0 0.0
  %3772 = vmatprep.subr.mxu0 0.0
  %3773 = vmatpush1.msra.mxu0 0.0
  %3774 = vmatprep.subr.mxu0 0.0
  %3775 = vmatpush1.msra.mxu0 0.0
  %3776 = vmatprep.subr.mxu0 0.0
  %3777 = vmatpush1.msra.mxu0 0.0
  %3778 = vmatprep.subr.mxu0 0.0
  %3779 = vmatpush1.msra.mxu0 0.0
  %3780 = vmatprep.subr.mxu0 0.0
  %3781 = vmatpush1.msra.mxu0 0.0
  %3782 = vmatprep.subr.mxu0 0.0
  %3783 = vmatpush1.msra.mxu0 0.0
  %3784 = vmatprep.subr.mxu0 0.0
  %3785 = vmatpush1.msra.mxu0 0.0
  %3786 = vmatprep.subr.mxu0 0.0
  %3787 = vmatpush1.msra.mxu0 0.0
  %3788 = vmatprep.subr.mxu0 0.0
  %3789 = vmatpush1.msra.mxu0 0.0
  %3790 = vmatprep.subr.mxu0 0.0
  %3791 = vmatpush1.msra.mxu0 0.0
  %3792 = vmatprep.subr.mxu0 0.0
  %3793 = vmatpush1.msra.mxu0 0.0
  %3794 = vmatprep.subr.mxu0 0.0
  %3795 = vmatpush1.msra.mxu0 0.0
  %3796 = vmatprep.subr.mxu0 0.0
  %3797 = vmatpush1.msra.mxu0 0.0
  %3798 = vmatprep.subr.mxu0 0.0
  %3799 = vmatpush1.msra.mxu0 0.0
  %3800 = vmatprep.subr.mxu0 0.0
  %3801 = vmatpush1.msra.mxu0 0.0
  %3802 = vmatprep.subr.mxu0 0.0
  %3803 = vmatpush1.msra.mxu0 0.0
  %3804 = vmatprep.subr.mxu0 0.0
  %3805 = vmatpush1.msra.mxu0 0.0
  %3806 = vmatprep.subr.mxu0 0.0
  %3807 = vmatpush1.msra.mxu0 0.0
  %3808 = vmatprep.subr.mxu0 0.0
  %3809 = vmatpush1.msra.mxu0 0.0
  %3810 = vmatprep.subr.mxu0 0.0
  %3811 = vmatpush1.msra.mxu0 0.0
  %3812 = vmatprep.subr.mxu0 0.0
  %3813 = vmatpush1.msra.mxu0 0.0
  %3814 = vmatprep.subr.mxu0 0.0
  %3815 = vmatpush1.msra.mxu0 0.0
  %3816 = vmatprep.subr.mxu0 0.0
  %3817 = vmatpush1.msra.mxu0 0.0
  %3818 = vmatprep.subr.mxu0 0.0
  %3819 = vmatpush1.msra.mxu0 0.0
  %3820 = vmatprep.subr.mxu0 0.0
  %3821 = vmatpush1.msra.mxu0 0.0
  %3822 = vmatprep.subr.mxu0 0.0
  %3823 = vmatpush1.msra.mxu0 0.0
  %3824 = vmatprep.subr.mxu0 0.0
  %3825 = vmatpush1.msra.mxu0 0.0
  %3826 = vmatprep.subr.mxu0 0.0
  %3827 = vmatpush1.msra.mxu0 0.0
  %3828 = vmatprep.subr.mxu0 0.0
  %3829 = vmatpush1.msra.mxu0 0.0
  %3830 = vmatprep.mubr.f32.mxu0 0.0
  %v3831 = vand.u32 %v2457, 4294901760
  %v3832 = vsub.f32 %v2457, %v3831
  %v3833 = vand.u32 %v3832, 4294901760
  %3834 = vmatmul.mubr.f32.gmra.mrb[0].mxu0 %v3833
  %v3835 = vpop.f32.mrb[0].mxu0
  %v3836 = vadd.f32 %v3699, %v3835
  %v3837 = vpop.f32.mrb[0].mxu0
  %3838 = vmatprep.mubr.f32.mxu0 0.0
  %v3839 = vand.u32 %v2460, 4294901760
  %v3840 = vsub.f32 %v2460, %v3839
  %v3841 = vand.u32 %v3840, 4294901760
  %3842 = vmatmul.mubr.f32.gmra.mrb[0].mxu0 %v3841
  %v3843 = vpop.f32.mrb[0].mxu0
  %v3844 = vadd.f32 %v3706, %v3843
  %v3845 = vpop.f32.mrb[0].mxu0
  %3846 = vmatprep.mubr.f32.mxu0 0.0
  %v3847 = vand.u32 %v2463, 4294901760
  %v3848 = vsub.f32 %v2463, %v3847
  %v3849 = vand.u32 %v3848, 4294901760
  %3850 = vmatmul.mubr.f32.gmra.mrb[0].mxu0 %v3849
  %v3851 = vpop.f32.mrb[0].mxu0
  %v3852 = vadd.f32 %v3713, %v3851
  %v3853 = vpop.f32.mrb[0].mxu0
  %3854 = vmatprep.mubr.f32.mxu0 0.0
  %v3855 = vand.u32 %v2466, 4294901760
  %v3856 = vsub.f32 %v2466, %v3855
  %v3857 = vand.u32 %v3856, 4294901760
  %3858 = vmatmul.mubr.f32.gmra.mrb[0].mxu0 %v3857
  %v3859 = vpop.f32.mrb[0].mxu0
  %v3860 = vadd.f32 %v3720, %v3859
  %v3861 = vpop.f32.mrb[0].mxu0
  %3862 = vmatprep.mubr.f32.mxu0 0.0
  %v3863 = vand.u32 %v2469, 4294901760
  %v3864 = vsub.f32 %v2469, %v3863
  %v3865 = vand.u32 %v3864, 4294901760
  %3866 = vmatmul.mubr.f32.gmra.mrb[0].mxu0 %v3865
  %v3867 = vpop.f32.mrb[0].mxu0
  %v3868 = vadd.f32 %v3727, %v3867
  %v3869 = vpop.f32.mrb[0].mxu0
  %3870 = vmatprep.mubr.f32.mxu0 0.0
  %v3871 = vand.u32 %v2472, 4294901760
  %v3872 = vsub.f32 %v2472, %v3871
  %v3873 = vand.u32 %v3872, 4294901760
  %3874 = vmatmul.mubr.f32.gmra.mrb[0].mxu0 %v3873
  %v3875 = vpop.f32.mrb[0].mxu0
  %v3876 = vadd.f32 %v3734, %v3875
  %v3877 = vpop.f32.mrb[0].mxu0
  %3878 = vmatprep.mubr.f32.mxu0 0.0
  %v3879 = vand.u32 %v2475, 4294901760
  %v3880 = vsub.f32 %v2475, %v3879
  %v3881 = vand.u32 %v3880, 4294901760
  %3882 = vmatmul.mubr.f32.gmra.mrb[0].mxu0 %v3881
  %v3883 = vpop.f32.mrb[0].mxu0
  %v3884 = vadd.f32 %v3741, %v3883
  %v3885 = vpop.f32.mrb[0].mxu0
  %3886 = vmatprep.mubr.f32.mxu0 0.0
  %v3887 = vand.u32 %v2478, 4294901760
  %v3888 = vsub.f32 %v2478, %v3887
  %v3889 = vand.u32 %v3888, 4294901760
  %3890 = vmatmul.mubr.f32.gmra.mrb[0].mxu0 %v3889
  %v3891 = vpop.f32.mrb[0].mxu0
  %v3892 = vadd.f32 %v3748, %v3891
  %v3893 = vpop.f32.mrb[0].mxu0
  %3894 = vmatprep.mubr.f32.mxu0 0.0
  %v3895 = vand.u32 %v2481, 4294901760
  %v3896 = vsub.f32 %v2481, %v3895
  %v3897 = vand.u32 %v3896, 4294901760
  %3898 = vmatmul.mubr.f32.gmra.mrb[0].mxu0 %v3897
  %v3899 = vpop.f32.mrb[0].mxu0
  %v3900 = vadd.f32 %v3755, %v3899
  %v3901 = vpop.f32.mrb[0].mxu0
  %3902 = vmatprep.mubr.f32.mxu0 0.0
  %v3903 = vand.u32 %v2484, 4294901760
  %v3904 = vsub.f32 %v2484, %v3903
  %v3905 = vand.u32 %v3904, 4294901760
  %3906 = vmatmul.mubr.f32.gmra.mrb[0].mxu0 %v3905
  %v3907 = vpop.f32.mrb[0].mxu0
  %v3908 = vadd.f32 %v3762, %v3907
  %v3909 = vpop.f32.mrb[0].mxu0
  %3910 = vdwg.mxu0
  %3911 = vmatprep.subr.mxu0 0.0
  %v3912 = vand.u32 %v3331, 4294901760
  %v3913 = vsub.f32 %v3331, %v3912
  %v3914 = vand.u32 %v3913, 4294901760
  %3915 = vmatpush1.msra.mxu0 %v3914
  %3916 = vmatprep.subr.mxu0 0.0
  %3917 = vmatpush1.msra.mxu0 0.0
  %3918 = vmatprep.subr.mxu0 0.0
  %3919 = vmatpush1.msra.mxu0 0.0
  %3920 = vmatprep.subr.mxu0 0.0
  %3921 = vmatpush1.msra.mxu0 0.0
  %3922 = vmatprep.subr.mxu0 0.0
  %3923 = vmatpush1.msra.mxu0 0.0
  %3924 = vmatprep.subr.mxu0 0.0
  %3925 = vmatpush1.msra.mxu0 0.0
  %3926 = vmatprep.subr.mxu0 0.0
  %3927 = vmatpush1.msra.mxu0 0.0
  %3928 = vmatprep.subr.mxu0 0.0
  %3929 = vmatpush1.msra.mxu0 0.0
  %3930 = vmatprep.subr.mxu0 0.0
  %3931 = vmatpush1.msra.mxu0 0.0
  %3932 = vmatprep.subr.mxu0 0.0
  %3933 = vmatpush1.msra.mxu0 0.0
  %3934 = vmatprep.subr.mxu0 0.0
  %3935 = vmatpush1.msra.mxu0 0.0
  %3936 = vmatprep.subr.mxu0 0.0
  %3937 = vmatpush1.msra.mxu0 0.0
  %3938 = vmatprep.subr.mxu0 0.0
  %3939 = vmatpush1.msra.mxu0 0.0
  %3940 = vmatprep.subr.mxu0 0.0
  %3941 = vmatpush1.msra.mxu0 0.0
  %3942 = vmatprep.subr.mxu0 0.0
  %3943 = vmatpush1.msra.mxu0 0.0
  %3944 = vmatprep.subr.mxu0 0.0
  %3945 = vmatpush1.msra.mxu0 0.0
  %3946 = vmatprep.subr.mxu0 0.0
  %3947 = vmatpush1.msra.mxu0 0.0
  %3948 = vmatprep.subr.mxu0 0.0
  %3949 = vmatpush1.msra.mxu0 0.0
  %3950 = vmatprep.subr.mxu0 0.0
  %3951 = vmatpush1.msra.mxu0 0.0
  %3952 = vmatprep.subr.mxu0 0.0
  %3953 = vmatpush1.msra.mxu0 0.0
  %3954 = vmatprep.subr.mxu0 0.0
  %3955 = vmatpush1.msra.mxu0 0.0
  %3956 = vmatprep.subr.mxu0 0.0
  %3957 = vmatpush1.msra.mxu0 0.0
  %3958 = vmatprep.subr.mxu0 0.0
  %3959 = vmatpush1.msra.mxu0 0.0
  %3960 = vmatprep.subr.mxu0 0.0
  %3961 = vmatpush1.msra.mxu0 0.0
  %3962 = vmatprep.subr.mxu0 0.0
  %3963 = vmatpush1.msra.mxu0 0.0
  %3964 = vmatprep.subr.mxu0 0.0
  %3965 = vmatpush1.msra.mxu0 0.0
  %3966 = vmatprep.subr.mxu0 0.0
  %3967 = vmatpush1.msra.mxu0 0.0
  %3968 = vmatprep.subr.mxu0 0.0
  %3969 = vmatpush1.msra.mxu0 0.0
  %3970 = vmatprep.subr.mxu0 0.0
  %3971 = vmatpush1.msra.mxu0 0.0
  %3972 = vmatprep.subr.mxu0 0.0
  %3973 = vmatpush1.msra.mxu0 0.0
  %3974 = vmatprep.subr.mxu0 0.0
  %3975 = vmatpush1.msra.mxu0 0.0
  %3976 = vmatprep.subr.mxu0 0.0
  %3977 = vmatpush1.msra.mxu0 0.0
  %3978 = vmatprep.mubr.f32.mxu0 0.0
  %v3979 = vand.u32 %v2457, 4294901760
  %3980 = vmatmul.mubr.f32.gmra.mrb[0].mxu0 %v3979
  %v3981 = vpop.f32.mrb[0].mxu0
  %v3982 = vadd.f32 %v3836, %v3981
  %v3983 = vpop.f32.mrb[0].mxu0
  %3984 = vmatprep.mubr.f32.mxu0 0.0
  %v3985 = vand.u32 %v2460, 4294901760
  %3986 = vmatmul.mubr.f32.gmra.mrb[0].mxu0 %v3985
  %v3987 = vpop.f32.mrb[0].mxu0
  %v3988 = vadd.f32 %v3844, %v3987
  %v3989 = vpop.f32.mrb[0].mxu0
  %3990 = vmatprep.mubr.f32.mxu0 0.0
  %v3991 = vand.u32 %v2463, 4294901760
  %3992 = vmatmul.mubr.f32.gmra.mrb[0].mxu0 %v3991
  %v3993 = vpop.f32.mrb[0].mxu0
  %v3994 = vadd.f32 %v3852, %v3993
  %v3995 = vpop.f32.mrb[0].mxu0
  %3996 = vmatprep.mubr.f32.mxu0 0.0
  %v3997 = vand.u32 %v2466, 4294901760
  %3998 = vmatmul.mubr.f32.gmra.mrb[0].mxu0 %v3997
  %v3999 = vpop.f32.mrb[0].mxu0
  %v4000 = vadd.f32 %v3860, %v3999
  %v4001 = vpop.f32.mrb[0].mxu0
  %4002 = vmatprep.mubr.f32.mxu0 0.0
  %v4003 = vand.u32 %v2469, 4294901760
  %4004 = vmatmul.mubr.f32.gmra.mrb[0].mxu0 %v4003
  %v4005 = vpop.f32.mrb[0].mxu0
  %v4006 = vadd.f32 %v3868, %v4005
  %v4007 = vpop.f32.mrb[0].mxu0
  %4008 = vmatprep.mubr.f32.mxu0 0.0
  %v4009 = vand.u32 %v2472, 4294901760
  %4010 = vmatmul.mubr.f32.gmra.mrb[0].mxu0 %v4009
  %v4011 = vpop.f32.mrb[0].mxu0
  %v4012 = vadd.f32 %v3876, %v4011
  %v4013 = vpop.f32.mrb[0].mxu0
  %4014 = vmatprep.mubr.f32.mxu0 0.0
  %v4015 = vand.u32 %v2475, 4294901760
  %4016 = vmatmul.mubr.f32.gmra.mrb[0].mxu0 %v4015
  %v4017 = vpop.f32.mrb[0].mxu0
  %v4018 = vadd.f32 %v3884, %v4017
  %v4019 = vpop.f32.mrb[0].mxu0
  %4020 = vmatprep.mubr.f32.mxu0 0.0
  %v4021 = vand.u32 %v2478, 4294901760
  %4022 = vmatmul.mubr.f32.gmra.mrb[0].mxu0 %v4021
  %v4023 = vpop.f32.mrb[0].mxu0
  %v4024 = vadd.f32 %v3892, %v4023
  %v4025 = vpop.f32.mrb[0].mxu0
  %4026 = vmatprep.mubr.f32.mxu0 0.0
  %v4027 = vand.u32 %v2481, 4294901760
  %4028 = vmatmul.mubr.f32.gmra.mrb[0].mxu0 %v4027
  %v4029 = vpop.f32.mrb[0].mxu0
  %v4030 = vadd.f32 %v3900, %v4029
  %v4031 = vpop.f32.mrb[0].mxu0
  %4032 = vmatprep.mubr.f32.mxu0 0.0
  %v4033 = vand.u32 %v2484, 4294901760
  %4034 = vmatmul.mubr.f32.gmra.mrb[0].mxu0 %v4033
  %v4035 = vpop.f32.mrb[0].mxu0
  %v4036 = vadd.f32 %v3908, %v4035
  %v4037 = vpop.f32.mrb[0].mxu0
  %4038 = vdwg.mxu0
  %4039 = vmatprep.subr.mxu0 0.0
  %v4040 = vand.u32 %v3331, 4294901760
  %4041 = vmatpush1.msra.mxu0 %v4040
  %4042 = vmatprep.subr.mxu0 0.0
  %4043 = vmatpush1.msra.mxu0 0.0
  %4044 = vmatprep.subr.mxu0 0.0
  %4045 = vmatpush1.msra.mxu0 0.0
  %4046 = vmatprep.subr.mxu0 0.0
  %4047 = vmatpush1.msra.mxu0 0.0
  %4048 = vmatprep.subr.mxu0 0.0
  %4049 = vmatpush1.msra.mxu0 0.0
  %4050 = vmatprep.subr.mxu0 0.0
  %4051 = vmatpush1.msra.mxu0 0.0
  %4052 = vmatprep.subr.mxu0 0.0
  %4053 = vmatpush1.msra.mxu0 0.0
  %4054 = vmatprep.subr.mxu0 0.0
  %4055 = vmatpush1.msra.mxu0 0.0
  %4056 = vmatprep.subr.mxu0 0.0
  %4057 = vmatpush1.msra.mxu0 0.0
  %4058 = vmatprep.subr.mxu0 0.0
  %4059 = vmatpush1.msra.mxu0 0.0
  %4060 = vmatprep.subr.mxu0 0.0
  %4061 = vmatpush1.msra.mxu0 0.0
  %4062 = vmatprep.subr.mxu0 0.0
  %4063 = vmatpush1.msra.mxu0 0.0
  %4064 = vmatprep.subr.mxu0 0.0
  %4065 = vmatpush1.msra.mxu0 0.0
  %4066 = vmatprep.subr.mxu0 0.0
  %4067 = vmatpush1.msra.mxu0 0.0
  %4068 = vmatprep.subr.mxu0 0.0
  %4069 = vmatpush1.msra.mxu0 0.0
  %4070 = vmatprep.subr.mxu0 0.0
  %4071 = vmatpush1.msra.mxu0 0.0
  %4072 = vmatprep.subr.mxu0 0.0
  %4073 = vmatpush1.msra.mxu0 0.0
  %4074 = vmatprep.subr.mxu0 0.0
  %4075 = vmatpush1.msra.mxu0 0.0
  %4076 = vmatprep.subr.mxu0 0.0
  %4077 = vmatpush1.msra.mxu0 0.0
  %4078 = vmatprep.subr.mxu0 0.0
  %4079 = vmatpush1.msra.mxu0 0.0
  %4080 = vmatprep.subr.mxu0 0.0
  %4081 = vmatpush1.msra.mxu0 0.0
  %4082 = vmatprep.subr.mxu0 0.0
  %4083 = vmatpush1.msra.mxu0 0.0
  %4084 = vmatprep.subr.mxu0 0.0
  %4085 = vmatpush1.msra.mxu0 0.0
  %4086 = vmatprep.subr.mxu0 0.0
  %4087 = vmatpush1.msra.mxu0 0.0
  %4088 = vmatprep.subr.mxu0 0.0
  %4089 = vmatpush1.msra.mxu0 0.0
  %4090 = vmatprep.subr.mxu0 0.0
  %4091 = vmatpush1.msra.mxu0 0.0
  %4092 = vmatprep.subr.mxu0 0.0
  %4093 = vmatpush1.msra.mxu0 0.0
  %4094 = vmatprep.subr.mxu0 0.0
  %4095 = vmatpush1.msra.mxu0 0.0
  %4096 = vmatprep.subr.mxu0 0.0
  %4097 = vmatpush1.msra.mxu0 0.0
  %4098 = vmatprep.subr.mxu0 0.0
  %4099 = vmatpush1.msra.mxu0 0.0
  %4100 = vmatprep.subr.mxu0 0.0
  %4101 = vmatpush1.msra.mxu0 0.0
  %4102 = vmatprep.subr.mxu0 0.0
  %4103 = vmatpush1.msra.mxu0 0.0
  %4104 = vmatprep.mubr.f32.mxu0 0.0
  %v4105 = vand.u32 %v2457, 4294901760
  %4106 = vmatmul.mubr.f32.gmra.mrb[0].mxu0 %v4105
  %v4107 = vpop.f32.mrb[0].mxu0
  %v4108 = vadd.f32 %v3982, %v4107
  %v4109 = vpop.f32.mrb[0].mxu0
  %4110 = vmatprep.mubr.f32.mxu0 0.0
  %v4111 = vand.u32 %v2460, 4294901760
  %4112 = vmatmul.mubr.f32.gmra.mrb[0].mxu0 %v4111
  %v4113 = vpop.f32.mrb[0].mxu0
  %v4114 = vadd.f32 %v3988, %v4113
  %v4115 = vpop.f32.mrb[0].mxu0
  %4116 = vmatprep.mubr.f32.mxu0 0.0
  %v4117 = vand.u32 %v2463, 4294901760
  %4118 = vmatmul.mubr.f32.gmra.mrb[0].mxu0 %v4117
  %v4119 = vpop.f32.mrb[0].mxu0
  %v4120 = vadd.f32 %v3994, %v4119
  %v4121 = vpop.f32.mrb[0].mxu0
  %4122 = vmatprep.mubr.f32.mxu0 0.0
  %v4123 = vand.u32 %v2466, 4294901760
  %4124 = vmatmul.mubr.f32.gmra.mrb[0].mxu0 %v4123
  %v4125 = vpop.f32.mrb[0].mxu0
  %v4126 = vadd.f32 %v4000, %v4125
  %v4127 = vpop.f32.mrb[0].mxu0
  %4128 = vmatprep.mubr.f32.mxu0 0.0
  %v4129 = vand.u32 %v2469, 4294901760
  %4130 = vmatmul.mubr.f32.gmra.mrb[0].mxu0 %v4129
  %v4131 = vpop.f32.mrb[0].mxu0
  %v4132 = vadd.f32 %v4006, %v4131
  %v4133 = vpop.f32.mrb[0].mxu0
  %4134 = vmatprep.mubr.f32.mxu0 0.0
  %v4135 = vand.u32 %v2472, 4294901760
  %4136 = vmatmul.mubr.f32.gmra.mrb[0].mxu0 %v4135
  %v4137 = vpop.f32.mrb[0].mxu0
  %v4138 = vadd.f32 %v4012, %v4137
  %v4139 = vpop.f32.mrb[0].mxu0
  %4140 = vmatprep.mubr.f32.mxu0 0.0
  %v4141 = vand.u32 %v2475, 4294901760
  %4142 = vmatmul.mubr.f32.gmra.mrb[0].mxu0 %v4141
  %v4143 = vpop.f32.mrb[0].mxu0
  %v4144 = vadd.f32 %v4018, %v4143
  %v4145 = vpop.f32.mrb[0].mxu0
  %4146 = vmatprep.mubr.f32.mxu0 0.0
  %v4147 = vand.u32 %v2478, 4294901760
  %4148 = vmatmul.mubr.f32.gmra.mrb[0].mxu0 %v4147
  %v4149 = vpop.f32.mrb[0].mxu0
  %v4150 = vadd.f32 %v4024, %v4149
  %v4151 = vpop.f32.mrb[0].mxu0
  %4152 = vmatprep.mubr.f32.mxu0 0.0
  %v4153 = vand.u32 %v2481, 4294901760
  %4154 = vmatmul.mubr.f32.gmra.mrb[0].mxu0 %v4153
  %v4155 = vpop.f32.mrb[0].mxu0
  %v4156 = vadd.f32 %v4030, %v4155
  %v4157 = vpop.f32.mrb[0].mxu0
  %4158 = vmatprep.mubr.f32.mxu0 0.0
  %v4159 = vand.u32 %v2484, 4294901760
  %4160 = vmatmul.mubr.f32.gmra.mrb[0].mxu0 %v4159
  %v4161 = vpop.f32.mrb[0].mxu0
  %v4162 = vadd.f32 %v4036, %v4161
  %v4163 = vpop.f32.mrb[0].mxu0
  %4164 = vdwg.mxu0
  %4165 = vst.msk [vmem:[%s1327] sm:$0xff] %vm3319, %v4108
  %4166 = vst.msk [vmem:[%s1327 + $0x8] sm:$0xff] %vm3319, %v4114
  %4167 = vst.msk [vmem:[%s1327 + $0x10] sm:$0xff] %vm3319, %v4120
  %4168 = vst.msk [vmem:[%s1327 + $0x18] sm:$0xff] %vm3319, %v4126
  %4169 = vst.msk [vmem:[%s1327 + $0x20] sm:$0xff] %vm3319, %v4132
  %4170 = vst.msk [vmem:[%s1327 + $0x28] sm:$0xff] %vm3319, %v4138
  %4171 = vst.msk [vmem:[%s1327 + $0x30] sm:$0xff] %vm3319, %v4144
  %4172 = vst.msk [vmem:[%s1327 + $0x38] sm:$0xff] %vm3319, %v4150
  %4173 = vst.msk [vmem:[%s1327 + $0x40] sm:$0xff] %vm3319, %v4156
  %4174 = vst.msk [vmem:[%s1327 + $0x48] sm:$0xff] %vm3319, %v4162
  %s4175 = scalar_lea.vmem %s5, 16
  %v4176 = vld [vmem:[%s4175] sm:$0xff]
  %4177 = vmatprep.subr.mxu0 0.0
  %v4178 = vand.u32 %v4176, 4294901760
  %4179 = vmatpush1.msra.mxu0 %v4178
  %4180 = vmatprep.subr.mxu0 0.0
  %4181 = vmatpush1.msra.mxu0 0.0
  %4182 = vmatprep.subr.mxu0 0.0
  %4183 = vmatpush1.msra.mxu0 0.0
  %4184 = vmatprep.subr.mxu0 0.0
  %4185 = vmatpush1.msra.mxu0 0.0
  %4186 = vmatprep.subr.mxu0 0.0
  %4187 = vmatpush1.msra.mxu0 0.0
  %4188 = vmatprep.subr.mxu0 0.0
  %4189 = vmatpush1.msra.mxu0 0.0
  %4190 = vmatprep.subr.mxu0 0.0
  %4191 = vmatpush1.msra.mxu0 0.0
  %4192 = vmatprep.subr.mxu0 0.0
  %4193 = vmatpush1.msra.mxu0 0.0
  %4194 = vmatprep.subr.mxu0 0.0
  %4195 = vmatpush1.msra.mxu0 0.0
  %4196 = vmatprep.subr.mxu0 0.0
  %4197 = vmatpush1.msra.mxu0 0.0
  %4198 = vmatprep.subr.mxu0 0.0
  %4199 = vmatpush1.msra.mxu0 0.0
  %4200 = vmatprep.subr.mxu0 0.0
  %4201 = vmatpush1.msra.mxu0 0.0
  %4202 = vmatprep.subr.mxu0 0.0
  %4203 = vmatpush1.msra.mxu0 0.0
  %4204 = vmatprep.subr.mxu0 0.0
  %4205 = vmatpush1.msra.mxu0 0.0
  %4206 = vmatprep.subr.mxu0 0.0
  %4207 = vmatpush1.msra.mxu0 0.0
  %4208 = vmatprep.subr.mxu0 0.0
  %4209 = vmatpush1.msra.mxu0 0.0
  %4210 = vmatprep.subr.mxu0 0.0
  %4211 = vmatpush1.msra.mxu0 0.0
  %4212 = vmatprep.subr.mxu0 0.0
  %4213 = vmatpush1.msra.mxu0 0.0
  %4214 = vmatprep.subr.mxu0 0.0
  %4215 = vmatpush1.msra.mxu0 0.0
  %4216 = vmatprep.subr.mxu0 0.0
  %4217 = vmatpush1.msra.mxu0 0.0
  %4218 = vmatprep.subr.mxu0 0.0
  %4219 = vmatpush1.msra.mxu0 0.0
  %4220 = vmatprep.subr.mxu0 0.0
  %4221 = vmatpush1.msra.mxu0 0.0
  %4222 = vmatprep.subr.mxu0 0.0
  %4223 = vmatpush1.msra.mxu0 0.0
  %4224 = vmatprep.subr.mxu0 0.0
  %4225 = vmatpush1.msra.mxu0 0.0
  %4226 = vmatprep.subr.mxu0 0.0
  %4227 = vmatpush1.msra.mxu0 0.0
  %4228 = vmatprep.subr.mxu0 0.0
  %4229 = vmatpush1.msra.mxu0 0.0
  %4230 = vmatprep.subr.mxu0 0.0
  %4231 = vmatpush1.msra.mxu0 0.0
  %4232 = vmatprep.subr.mxu0 0.0
  %4233 = vmatpush1.msra.mxu0 0.0
  %4234 = vmatprep.subr.mxu0 0.0
  %4235 = vmatpush1.msra.mxu0 0.0
  %4236 = vmatprep.subr.mxu0 0.0
  %4237 = vmatpush1.msra.mxu0 0.0
  %4238 = vmatprep.subr.mxu0 0.0
  %4239 = vmatpush1.msra.mxu0 0.0
  %4240 = vmatprep.subr.mxu0 0.0
  %4241 = vmatpush1.msra.mxu0 0.0
  %4242 = vmatprep.mubr.f32.mxu0 0.0
  %v4243 = vand.u32 %v2457, 4294901760
  %v4244 = vsub.f32 %v2457, %v4243
  %v4245 = vand.u32 %v4244, 4294901760
  %v4246 = vsub.f32 %v4244, %v4245
  %v4247 = vand.u32 %v4246, 4294901760
  %4248 = vmatmul.mubr.f32.gmra.mrb[0].mxu0 %v4247
  %v4249 = vpop.f32.mrb[0].mxu0
  %v4250 = vadd.f32 0.0, %v4249
  %v4251 = vpop.f32.mrb[0].mxu0
  %4252 = vmatprep.mubr.f32.mxu0 0.0
  %v4253 = vand.u32 %v2460, 4294901760
  %v4254 = vsub.f32 %v2460, %v4253
  %v4255 = vand.u32 %v4254, 4294901760
  %v4256 = vsub.f32 %v4254, %v4255
  %v4257 = vand.u32 %v4256, 4294901760
  %4258 = vmatmul.mubr.f32.gmra.mrb[0].mxu0 %v4257
  %v4259 = vpop.f32.mrb[0].mxu0
  %v4260 = vadd.f32 0.0, %v4259
  %v4261 = vpop.f32.mrb[0].mxu0
  %4262 = vmatprep.mubr.f32.mxu0 0.0
  %v4263 = vand.u32 %v2463, 4294901760
  %v4264 = vsub.f32 %v2463, %v4263
  %v4265 = vand.u32 %v4264, 4294901760
  %v4266 = vsub.f32 %v4264, %v4265
  %v4267 = vand.u32 %v4266, 4294901760
  %4268 = vmatmul.mubr.f32.gmra.mrb[0].mxu0 %v4267
  %v4269 = vpop.f32.mrb[0].mxu0
  %v4270 = vadd.f32 0.0, %v4269
  %v4271 = vpop.f32.mrb[0].mxu0
  %4272 = vmatprep.mubr.f32.mxu0 0.0
  %v4273 = vand.u32 %v2466, 4294901760
  %v4274 = vsub.f32 %v2466, %v4273
  %v4275 = vand.u32 %v4274, 4294901760
  %v4276 = vsub.f32 %v4274, %v4275
  %v4277 = vand.u32 %v4276, 4294901760
  %4278 = vmatmul.mubr.f32.gmra.mrb[0].mxu0 %v4277
  %v4279 = vpop.f32.mrb[0].mxu0
  %v4280 = vadd.f32 0.0, %v4279
  %v4281 = vpop.f32.mrb[0].mxu0
  %4282 = vmatprep.mubr.f32.mxu0 0.0
  %v4283 = vand.u32 %v2469, 4294901760
  %v4284 = vsub.f32 %v2469, %v4283
  %v4285 = vand.u32 %v4284, 4294901760
  %v4286 = vsub.f32 %v4284, %v4285
  %v4287 = vand.u32 %v4286, 4294901760
  %4288 = vmatmul.mubr.f32.gmra.mrb[0].mxu0 %v4287
  %v4289 = vpop.f32.mrb[0].mxu0
  %v4290 = vadd.f32 0.0, %v4289
  %v4291 = vpop.f32.mrb[0].mxu0
  %4292 = vmatprep.mubr.f32.mxu0 0.0
  %v4293 = vand.u32 %v2472, 4294901760
  %v4294 = vsub.f32 %v2472, %v4293
  %v4295 = vand.u32 %v4294, 4294901760
  %v4296 = vsub.f32 %v4294, %v4295
  %v4297 = vand.u32 %v4296, 4294901760
  %4298 = vmatmul.mubr.f32.gmra.mrb[0].mxu0 %v4297
  %v4299 = vpop.f32.mrb[0].mxu0
  %v4300 = vadd.f32 0.0, %v4299
  %v4301 = vpop.f32.mrb[0].mxu0
  %4302 = vmatprep.mubr.f32.mxu0 0.0
  %v4303 = vand.u32 %v2475, 4294901760
  %v4304 = vsub.f32 %v2475, %v4303
  %v4305 = vand.u32 %v4304, 4294901760
  %v4306 = vsub.f32 %v4304, %v4305
  %v4307 = vand.u32 %v4306, 4294901760
  %4308 = vmatmul.mubr.f32.gmra.mrb[0].mxu0 %v4307
  %v4309 = vpop.f32.mrb[0].mxu0
  %v4310 = vadd.f32 0.0, %v4309
  %v4311 = vpop.f32.mrb[0].mxu0
  %4312 = vmatprep.mubr.f32.mxu0 0.0
  %v4313 = vand.u32 %v2478, 4294901760
  %v4314 = vsub.f32 %v2478, %v4313
  %v4315 = vand.u32 %v4314, 4294901760
  %v4316 = vsub.f32 %v4314, %v4315
  %v4317 = vand.u32 %v4316, 4294901760
  %4318 = vmatmul.mubr.f32.gmra.mrb[0].mxu0 %v4317
  %v4319 = vpop.f32.mrb[0].mxu0
  %v4320 = vadd.f32 0.0, %v4319
  %v4321 = vpop.f32.mrb[0].mxu0
  %4322 = vmatprep.mubr.f32.mxu0 0.0
  %v4323 = vand.u32 %v2481, 4294901760
  %v4324 = vsub.f32 %v2481, %v4323
  %v4325 = vand.u32 %v4324, 4294901760
  %v4326 = vsub.f32 %v4324, %v4325
  %v4327 = vand.u32 %v4326, 4294901760
  %4328 = vmatmul.mubr.f32.gmra.mrb[0].mxu0 %v4327
  %v4329 = vpop.f32.mrb[0].mxu0
  %v4330 = vadd.f32 0.0, %v4329
  %v4331 = vpop.f32.mrb[0].mxu0
  %4332 = vmatprep.mubr.f32.mxu0 0.0
  %v4333 = vand.u32 %v2484, 4294901760
  %v4334 = vsub.f32 %v2484, %v4333
  %v4335 = vand.u32 %v4334, 4294901760
  %v4336 = vsub.f32 %v4334, %v4335
  %v4337 = vand.u32 %v4336, 4294901760
  %4338 = vmatmul.mubr.f32.gmra.mrb[0].mxu0 %v4337
  %v4339 = vpop.f32.mrb[0].mxu0
  %v4340 = vadd.f32 0.0, %v4339
  %v4341 = vpop.f32.mrb[0].mxu0
  %4342 = vdwg.mxu0
  %4343 = vmatprep.subr.mxu0 0.0
  %v4344 = vand.u32 %v4176, 4294901760
  %v4345 = vsub.f32 %v4176, %v4344
  %v4346 = vand.u32 %v4345, 4294901760
  %v4347 = vsub.f32 %v4345, %v4346
  %v4348 = vand.u32 %v4347, 4294901760
  %4349 = vmatpush1.msra.mxu0 %v4348
  %4350 = vmatprep.subr.mxu0 0.0
  %4351 = vmatpush1.msra.mxu0 0.0
  %4352 = vmatprep.subr.mxu0 0.0
  %4353 = vmatpush1.msra.mxu0 0.0
  %4354 = vmatprep.subr.mxu0 0.0
  %4355 = vmatpush1.msra.mxu0 0.0
  %4356 = vmatprep.subr.mxu0 0.0
  %4357 = vmatpush1.msra.mxu0 0.0
  %4358 = vmatprep.subr.mxu0 0.0
  %4359 = vmatpush1.msra.mxu0 0.0
  %4360 = vmatprep.subr.mxu0 0.0
  %4361 = vmatpush1.msra.mxu0 0.0
  %4362 = vmatprep.subr.mxu0 0.0
  %4363 = vmatpush1.msra.mxu0 0.0
  %4364 = vmatprep.subr.mxu0 0.0
  %4365 = vmatpush1.msra.mxu0 0.0
  %4366 = vmatprep.subr.mxu0 0.0
  %4367 = vmatpush1.msra.mxu0 0.0
  %4368 = vmatprep.subr.mxu0 0.0
  %4369 = vmatpush1.msra.mxu0 0.0
  %4370 = vmatprep.subr.mxu0 0.0
  %4371 = vmatpush1.msra.mxu0 0.0
  %4372 = vmatprep.subr.mxu0 0.0
  %4373 = vmatpush1.msra.mxu0 0.0
  %4374 = vmatprep.subr.mxu0 0.0
  %4375 = vmatpush1.msra.mxu0 0.0
  %4376 = vmatprep.subr.mxu0 0.0
  %4377 = vmatpush1.msra.mxu0 0.0
  %4378 = vmatprep.subr.mxu0 0.0
  %4379 = vmatpush1.msra.mxu0 0.0
  %4380 = vmatprep.subr.mxu0 0.0
  %4381 = vmatpush1.msra.mxu0 0.0
  %4382 = vmatprep.subr.mxu0 0.0
  %4383 = vmatpush1.msra.mxu0 0.0
  %4384 = vmatprep.subr.mxu0 0.0
  %4385 = vmatpush1.msra.mxu0 0.0
  %4386 = vmatprep.subr.mxu0 0.0
  %4387 = vmatpush1.msra.mxu0 0.0
  %4388 = vmatprep.subr.mxu0 0.0
  %4389 = vmatpush1.msra.mxu0 0.0
  %4390 = vmatprep.subr.mxu0 0.0
  %4391 = vmatpush1.msra.mxu0 0.0
  %4392 = vmatprep.subr.mxu0 0.0
  %4393 = vmatpush1.msra.mxu0 0.0
  %4394 = vmatprep.subr.mxu0 0.0
  %4395 = vmatpush1.msra.mxu0 0.0
  %4396 = vmatprep.subr.mxu0 0.0
  %4397 = vmatpush1.msra.mxu0 0.0
  %4398 = vmatprep.subr.mxu0 0.0
  %4399 = vmatpush1.msra.mxu0 0.0
  %4400 = vmatprep.subr.mxu0 0.0
  %4401 = vmatpush1.msra.mxu0 0.0
  %4402 = vmatprep.subr.mxu0 0.0
  %4403 = vmatpush1.msra.mxu0 0.0
  %4404 = vmatprep.subr.mxu0 0.0
  %4405 = vmatpush1.msra.mxu0 0.0
  %4406 = vmatprep.subr.mxu0 0.0
  %4407 = vmatpush1.msra.mxu0 0.0
  %4408 = vmatprep.subr.mxu0 0.0
  %4409 = vmatpush1.msra.mxu0 0.0
  %4410 = vmatprep.subr.mxu0 0.0
  %4411 = vmatpush1.msra.mxu0 0.0
  %4412 = vmatprep.mubr.f32.mxu0 0.0
  %v4413 = vand.u32 %v2457, 4294901760
  %4414 = vmatmul.mubr.f32.gmra.mrb[0].mxu0 %v4413
  %v4415 = vpop.f32.mrb[0].mxu0
  %v4416 = vadd.f32 %v4250, %v4415
  %v4417 = vpop.f32.mrb[0].mxu0
  %4418 = vmatprep.mubr.f32.mxu0 0.0
  %v4419 = vand.u32 %v2460, 4294901760
  %4420 = vmatmul.mubr.f32.gmra.mrb[0].mxu0 %v4419
  %v4421 = vpop.f32.mrb[0].mxu0
  %v4422 = vadd.f32 %v4260, %v4421
  %v4423 = vpop.f32.mrb[0].mxu0
  %4424 = vmatprep.mubr.f32.mxu0 0.0
  %v4425 = vand.u32 %v2463, 4294901760
  %4426 = vmatmul.mubr.f32.gmra.mrb[0].mxu0 %v4425
  %v4427 = vpop.f32.mrb[0].mxu0
  %v4428 = vadd.f32 %v4270, %v4427
  %v4429 = vpop.f32.mrb[0].mxu0
  %4430 = vmatprep.mubr.f32.mxu0 0.0
  %v4431 = vand.u32 %v2466, 4294901760
  %4432 = vmatmul.mubr.f32.gmra.mrb[0].mxu0 %v4431
  %v4433 = vpop.f32.mrb[0].mxu0
  %v4434 = vadd.f32 %v4280, %v4433
  %v4435 = vpop.f32.mrb[0].mxu0
  %4436 = vmatprep.mubr.f32.mxu0 0.0
  %v4437 = vand.u32 %v2469, 4294901760
  %4438 = vmatmul.mubr.f32.gmra.mrb[0].mxu0 %v4437
  %v4439 = vpop.f32.mrb[0].mxu0
  %v4440 = vadd.f32 %v4290, %v4439
  %v4441 = vpop.f32.mrb[0].mxu0
  %4442 = vmatprep.mubr.f32.mxu0 0.0
  %v4443 = vand.u32 %v2472, 4294901760
  %4444 = vmatmul.mubr.f32.gmra.mrb[0].mxu0 %v4443
  %v4445 = vpop.f32.mrb[0].mxu0
  %v4446 = vadd.f32 %v4300, %v4445
  %v4447 = vpop.f32.mrb[0].mxu0
  %4448 = vmatprep.mubr.f32.mxu0 0.0
  %v4449 = vand.u32 %v2475, 4294901760
  %4450 = vmatmul.mubr.f32.gmra.mrb[0].mxu0 %v4449
  %v4451 = vpop.f32.mrb[0].mxu0
  %v4452 = vadd.f32 %v4310, %v4451
  %v4453 = vpop.f32.mrb[0].mxu0
  %4454 = vmatprep.mubr.f32.mxu0 0.0
  %v4455 = vand.u32 %v2478, 4294901760
  %4456 = vmatmul.mubr.f32.gmra.mrb[0].mxu0 %v4455
  %v4457 = vpop.f32.mrb[0].mxu0
  %v4458 = vadd.f32 %v4320, %v4457
  %v4459 = vpop.f32.mrb[0].mxu0
  %4460 = vmatprep.mubr.f32.mxu0 0.0
  %v4461 = vand.u32 %v2481, 4294901760
  %4462 = vmatmul.mubr.f32.gmra.mrb[0].mxu0 %v4461
  %v4463 = vpop.f32.mrb[0].mxu0
  %v4464 = vadd.f32 %v4330, %v4463
  %v4465 = vpop.f32.mrb[0].mxu0
  %4466 = vmatprep.mubr.f32.mxu0 0.0
  %v4467 = vand.u32 %v2484, 4294901760
  %4468 = vmatmul.mubr.f32.gmra.mrb[0].mxu0 %v4467
  %v4469 = vpop.f32.mrb[0].mxu0
  %v4470 = vadd.f32 %v4340, %v4469
  %v4471 = vpop.f32.mrb[0].mxu0
  %4472 = vdwg.mxu0
  %4473 = vmatprep.subr.mxu0 0.0
  %v4474 = vand.u32 %v4176, 4294901760
  %v4475 = vsub.f32 %v4176, %v4474
  %4476 = vmatpush1.msra.mxu0 %v4475
  %4477 = vmatprep.subr.mxu0 0.0
  %4478 = vmatpush1.msra.mxu0 0.0
  %4479 = vmatprep.subr.mxu0 0.0
  %4480 = vmatpush1.msra.mxu0 0.0
  %4481 = vmatprep.subr.mxu0 0.0
  %4482 = vmatpush1.msra.mxu0 0.0
  %4483 = vmatprep.subr.mxu0 0.0
  %4484 = vmatpush1.msra.mxu0 0.0
  %4485 = vmatprep.subr.mxu0 0.0
  %4486 = vmatpush1.msra.mxu0 0.0
  %4487 = vmatprep.subr.mxu0 0.0
  %4488 = vmatpush1.msra.mxu0 0.0
  %4489 = vmatprep.subr.mxu0 0.0
  %4490 = vmatpush1.msra.mxu0 0.0
  %4491 = vmatprep.subr.mxu0 0.0
  %4492 = vmatpush1.msra.mxu0 0.0
  %4493 = vmatprep.subr.mxu0 0.0
  %4494 = vmatpush1.msra.mxu0 0.0
  %4495 = vmatprep.subr.mxu0 0.0
  %4496 = vmatpush1.msra.mxu0 0.0
  %4497 = vmatprep.subr.mxu0 0.0
  %4498 = vmatpush1.msra.mxu0 0.0
  %4499 = vmatprep.subr.mxu0 0.0
  %4500 = vmatpush1.msra.mxu0 0.0
  %4501 = vmatprep.subr.mxu0 0.0
  %4502 = vmatpush1.msra.mxu0 0.0
  %4503 = vmatprep.subr.mxu0 0.0
  %4504 = vmatpush1.msra.mxu0 0.0
  %4505 = vmatprep.subr.mxu0 0.0
  %4506 = vmatpush1.msra.mxu0 0.0
  %4507 = vmatprep.subr.mxu0 0.0
  %4508 = vmatpush1.msra.mxu0 0.0
  %4509 = vmatprep.subr.mxu0 0.0
  %4510 = vmatpush1.msra.mxu0 0.0
  %4511 = vmatprep.subr.mxu0 0.0
  %4512 = vmatpush1.msra.mxu0 0.0
  %4513 = vmatprep.subr.mxu0 0.0
  %4514 = vmatpush1.msra.mxu0 0.0
  %4515 = vmatprep.subr.mxu0 0.0
  %4516 = vmatpush1.msra.mxu0 0.0
  %4517 = vmatprep.subr.mxu0 0.0
  %4518 = vmatpush1.msra.mxu0 0.0
  %4519 = vmatprep.subr.mxu0 0.0
  %4520 = vmatpush1.msra.mxu0 0.0
  %4521 = vmatprep.subr.mxu0 0.0
  %4522 = vmatpush1.msra.mxu0 0.0
  %4523 = vmatprep.subr.mxu0 0.0
  %4524 = vmatpush1.msra.mxu0 0.0
  %4525 = vmatprep.subr.mxu0 0.0
  %4526 = vmatpush1.msra.mxu0 0.0
  %4527 = vmatprep.subr.mxu0 0.0
  %4528 = vmatpush1.msra.mxu0 0.0
  %4529 = vmatprep.subr.mxu0 0.0
  %4530 = vmatpush1.msra.mxu0 0.0
  %4531 = vmatprep.subr.mxu0 0.0
  %4532 = vmatpush1.msra.mxu0 0.0
  %4533 = vmatprep.subr.mxu0 0.0
  %4534 = vmatpush1.msra.mxu0 0.0
  %4535 = vmatprep.subr.mxu0 0.0
  %4536 = vmatpush1.msra.mxu0 0.0
  %4537 = vmatprep.subr.mxu0 0.0
  %4538 = vmatpush1.msra.mxu0 0.0
  %4539 = vmatprep.mubr.f32.mxu0 0.0
  %v4540 = vand.u32 %v2457, 4294901760
  %v4541 = vsub.f32 %v2457, %v4540
  %4542 = vmatmul.mubr.f32.gmra.mrb[0].mxu0 %v4541
  %v4543 = vpop.f32.mrb[0].mxu0
  %v4544 = vadd.f32 %v4416, %v4543
  %v4545 = vpop.f32.mrb[0].mxu0
  %4546 = vmatprep.mubr.f32.mxu0 0.0
  %v4547 = vand.u32 %v2460, 4294901760
  %v4548 = vsub.f32 %v2460, %v4547
  %4549 = vmatmul.mubr.f32.gmra.mrb[0].mxu0 %v4548
  %v4550 = vpop.f32.mrb[0].mxu0
  %v4551 = vadd.f32 %v4422, %v4550
  %v4552 = vpop.f32.mrb[0].mxu0
  %4553 = vmatprep.mubr.f32.mxu0 0.0
  %v4554 = vand.u32 %v2463, 4294901760
  %v4555 = vsub.f32 %v2463, %v4554
  %4556 = vmatmul.mubr.f32.gmra.mrb[0].mxu0 %v4555
  %v4557 = vpop.f32.mrb[0].mxu0
  %v4558 = vadd.f32 %v4428, %v4557
  %v4559 = vpop.f32.mrb[0].mxu0
  %4560 = vmatprep.mubr.f32.mxu0 0.0
  %v4561 = vand.u32 %v2466, 4294901760
  %v4562 = vsub.f32 %v2466, %v4561
  %4563 = vmatmul.mubr.f32.gmra.mrb[0].mxu0 %v4562
  %v4564 = vpop.f32.mrb[0].mxu0
  %v4565 = vadd.f32 %v4434, %v4564
  %v4566 = vpop.f32.mrb[0].mxu0
  %4567 = vmatprep.mubr.f32.mxu0 0.0
  %v4568 = vand.u32 %v2469, 4294901760
  %v4569 = vsub.f32 %v2469, %v4568
  %4570 = vmatmul.mubr.f32.gmra.mrb[0].mxu0 %v4569
  %v4571 = vpop.f32.mrb[0].mxu0
  %v4572 = vadd.f32 %v4440, %v4571
  %v4573 = vpop.f32.mrb[0].mxu0
  %4574 = vmatprep.mubr.f32.mxu0 0.0
  %v4575 = vand.u32 %v2472, 4294901760
  %v4576 = vsub.f32 %v2472, %v4575
  %4577 = vmatmul.mubr.f32.gmra.mrb[0].mxu0 %v4576
  %v4578 = vpop.f32.mrb[0].mxu0
  %v4579 = vadd.f32 %v4446, %v4578
  %v4580 = vpop.f32.mrb[0].mxu0
  %4581 = vmatprep.mubr.f32.mxu0 0.0
  %v4582 = vand.u32 %v2475, 4294901760
  %v4583 = vsub.f32 %v2475, %v4582
  %4584 = vmatmul.mubr.f32.gmra.mrb[0].mxu0 %v4583
  %v4585 = vpop.f32.mrb[0].mxu0
  %v4586 = vadd.f32 %v4452, %v4585
  %v4587 = vpop.f32.mrb[0].mxu0
  %4588 = vmatprep.mubr.f32.mxu0 0.0
  %v4589 = vand.u32 %v2478, 4294901760
  %v4590 = vsub.f32 %v2478, %v4589
  %4591 = vmatmul.mubr.f32.gmra.mrb[0].mxu0 %v4590
  %v4592 = vpop.f32.mrb[0].mxu0
  %v4593 = vadd.f32 %v4458, %v4592
  %v4594 = vpop.f32.mrb[0].mxu0
  %4595 = vmatprep.mubr.f32.mxu0 0.0
  %v4596 = vand.u32 %v2481, 4294901760
  %v4597 = vsub.f32 %v2481, %v4596
  %4598 = vmatmul.mubr.f32.gmra.mrb[0].mxu0 %v4597
  %v4599 = vpop.f32.mrb[0].mxu0
  %v4600 = vadd.f32 %v4464, %v4599
  %v4601 = vpop.f32.mrb[0].mxu0
  %4602 = vmatprep.mubr.f32.mxu0 0.0
  %v4603 = vand.u32 %v2484, 4294901760
  %v4604 = vsub.f32 %v2484, %v4603
  %4605 = vmatmul.mubr.f32.gmra.mrb[0].mxu0 %v4604
  %v4606 = vpop.f32.mrb[0].mxu0
  %v4607 = vadd.f32 %v4470, %v4606
  %v4608 = vpop.f32.mrb[0].mxu0
  %4609 = vdwg.mxu0
  %4610 = vmatprep.subr.mxu0 0.0
  %v4611 = vand.u32 %v4176, 4294901760
  %4612 = vmatpush1.msra.mxu0 %v4611
  %4613 = vmatprep.subr.mxu0 0.0
  %4614 = vmatpush1.msra.mxu0 0.0
  %4615 = vmatprep.subr.mxu0 0.0
  %4616 = vmatpush1.msra.mxu0 0.0
  %4617 = vmatprep.subr.mxu0 0.0
  %4618 = vmatpush1.msra.mxu0 0.0
  %4619 = vmatprep.subr.mxu0 0.0
  %4620 = vmatpush1.msra.mxu0 0.0
  %4621 = vmatprep.subr.mxu0 0.0
  %4622 = vmatpush1.msra.mxu0 0.0
  %4623 = vmatprep.subr.mxu0 0.0
  %4624 = vmatpush1.msra.mxu0 0.0
  %4625 = vmatprep.subr.mxu0 0.0
  %4626 = vmatpush1.msra.mxu0 0.0
  %4627 = vmatprep.subr.mxu0 0.0
  %4628 = vmatpush1.msra.mxu0 0.0
  %4629 = vmatprep.subr.mxu0 0.0
  %4630 = vmatpush1.msra.mxu0 0.0
  %4631 = vmatprep.subr.mxu0 0.0
  %4632 = vmatpush1.msra.mxu0 0.0
  %4633 = vmatprep.subr.mxu0 0.0
  %4634 = vmatpush1.msra.mxu0 0.0
  %4635 = vmatprep.subr.mxu0 0.0
  %4636 = vmatpush1.msra.mxu0 0.0
  %4637 = vmatprep.subr.mxu0 0.0
  %4638 = vmatpush1.msra.mxu0 0.0
  %4639 = vmatprep.subr.mxu0 0.0
  %4640 = vmatpush1.msra.mxu0 0.0
  %4641 = vmatprep.subr.mxu0 0.0
  %4642 = vmatpush1.msra.mxu0 0.0
  %4643 = vmatprep.subr.mxu0 0.0
  %4644 = vmatpush1.msra.mxu0 0.0
  %4645 = vmatprep.subr.mxu0 0.0
  %4646 = vmatpush1.msra.mxu0 0.0
  %4647 = vmatprep.subr.mxu0 0.0
  %4648 = vmatpush1.msra.mxu0 0.0
  %4649 = vmatprep.subr.mxu0 0.0
  %4650 = vmatpush1.msra.mxu0 0.0
  %4651 = vmatprep.subr.mxu0 0.0
  %4652 = vmatpush1.msra.mxu0 0.0
  %4653 = vmatprep.subr.mxu0 0.0
  %4654 = vmatpush1.msra.mxu0 0.0
  %4655 = vmatprep.subr.mxu0 0.0
  %4656 = vmatpush1.msra.mxu0 0.0
  %4657 = vmatprep.subr.mxu0 0.0
  %4658 = vmatpush1.msra.mxu0 0.0
  %4659 = vmatprep.subr.mxu0 0.0
  %4660 = vmatpush1.msra.mxu0 0.0
  %4661 = vmatprep.subr.mxu0 0.0
  %4662 = vmatpush1.msra.mxu0 0.0
  %4663 = vmatprep.subr.mxu0 0.0
  %4664 = vmatpush1.msra.mxu0 0.0
  %4665 = vmatprep.subr.mxu0 0.0
  %4666 = vmatpush1.msra.mxu0 0.0
  %4667 = vmatprep.subr.mxu0 0.0
  %4668 = vmatpush1.msra.mxu0 0.0
  %4669 = vmatprep.subr.mxu0 0.0
  %4670 = vmatpush1.msra.mxu0 0.0
  %4671 = vmatprep.subr.mxu0 0.0
  %4672 = vmatpush1.msra.mxu0 0.0
  %4673 = vmatprep.subr.mxu0 0.0
  %4674 = vmatpush1.msra.mxu0 0.0
  %4675 = vmatprep.mubr.f32.mxu0 0.0
  %v4676 = vand.u32 %v2457, 4294901760
  %v4677 = vsub.f32 %v2457, %v4676
  %v4678 = vand.u32 %v4677, 4294901760
  %4679 = vmatmul.mubr.f32.gmra.mrb[0].mxu0 %v4678
  %v4680 = vpop.f32.mrb[0].mxu0
  %v4681 = vadd.f32 %v4544, %v4680
  %v4682 = vpop.f32.mrb[0].mxu0
  %4683 = vmatprep.mubr.f32.mxu0 0.0
  %v4684 = vand.u32 %v2460, 4294901760
  %v4685 = vsub.f32 %v2460, %v4684
  %v4686 = vand.u32 %v4685, 4294901760
  %4687 = vmatmul.mubr.f32.gmra.mrb[0].mxu0 %v4686
  %v4688 = vpop.f32.mrb[0].mxu0
  %v4689 = vadd.f32 %v4551, %v4688
  %v4690 = vpop.f32.mrb[0].mxu0
  %4691 = vmatprep.mubr.f32.mxu0 0.0
  %v4692 = vand.u32 %v2463, 4294901760
  %v4693 = vsub.f32 %v2463, %v4692
  %v4694 = vand.u32 %v4693, 4294901760
  %4695 = vmatmul.mubr.f32.gmra.mrb[0].mxu0 %v4694
  %v4696 = vpop.f32.mrb[0].mxu0
  %v4697 = vadd.f32 %v4558, %v4696
  %v4698 = vpop.f32.mrb[0].mxu0
  %4699 = vmatprep.mubr.f32.mxu0 0.0
  %v4700 = vand.u32 %v2466, 4294901760
  %v4701 = vsub.f32 %v2466, %v4700
  %v4702 = vand.u32 %v4701, 4294901760
  %4703 = vmatmul.mubr.f32.gmra.mrb[0].mxu0 %v4702
  %v4704 = vpop.f32.mrb[0].mxu0
  %v4705 = vadd.f32 %v4565, %v4704
  %v4706 = vpop.f32.mrb[0].mxu0
  %4707 = vmatprep.mubr.f32.mxu0 0.0
  %v4708 = vand.u32 %v2469, 4294901760
  %v4709 = vsub.f32 %v2469, %v4708
  %v4710 = vand.u32 %v4709, 4294901760
  %4711 = vmatmul.mubr.f32.gmra.mrb[0].mxu0 %v4710
  %v4712 = vpop.f32.mrb[0].mxu0
  %v4713 = vadd.f32 %v4572, %v4712
  %v4714 = vpop.f32.mrb[0].mxu0
  %4715 = vmatprep.mubr.f32.mxu0 0.0
  %v4716 = vand.u32 %v2472, 4294901760
  %v4717 = vsub.f32 %v2472, %v4716
  %v4718 = vand.u32 %v4717, 4294901760
  %4719 = vmatmul.mubr.f32.gmra.mrb[0].mxu0 %v4718
  %v4720 = vpop.f32.mrb[0].mxu0
  %v4721 = vadd.f32 %v4579, %v4720
  %v4722 = vpop.f32.mrb[0].mxu0
  %4723 = vmatprep.mubr.f32.mxu0 0.0
  %v4724 = vand.u32 %v2475, 4294901760
  %v4725 = vsub.f32 %v2475, %v4724
  %v4726 = vand.u32 %v4725, 4294901760
  %4727 = vmatmul.mubr.f32.gmra.mrb[0].mxu0 %v4726
  %v4728 = vpop.f32.mrb[0].mxu0
  %v4729 = vadd.f32 %v4586, %v4728
  %v4730 = vpop.f32.mrb[0].mxu0
  %4731 = vmatprep.mubr.f32.mxu0 0.0
  %v4732 = vand.u32 %v2478, 4294901760
  %v4733 = vsub.f32 %v2478, %v4732
  %v4734 = vand.u32 %v4733, 4294901760
  %4735 = vmatmul.mubr.f32.gmra.mrb[0].mxu0 %v4734
  %v4736 = vpop.f32.mrb[0].mxu0
  %v4737 = vadd.f32 %v4593, %v4736
  %v4738 = vpop.f32.mrb[0].mxu0
  %4739 = vmatprep.mubr.f32.mxu0 0.0
  %v4740 = vand.u32 %v2481, 4294901760
  %v4741 = vsub.f32 %v2481, %v4740
  %v4742 = vand.u32 %v4741, 4294901760
  %4743 = vmatmul.mubr.f32.gmra.mrb[0].mxu0 %v4742
  %v4744 = vpop.f32.mrb[0].mxu0
  %v4745 = vadd.f32 %v4600, %v4744
  %v4746 = vpop.f32.mrb[0].mxu0
  %4747 = vmatprep.mubr.f32.mxu0 0.0
  %v4748 = vand.u32 %v2484, 4294901760
  %v4749 = vsub.f32 %v2484, %v4748
  %v4750 = vand.u32 %v4749, 4294901760
  %4751 = vmatmul.mubr.f32.gmra.mrb[0].mxu0 %v4750
  %v4752 = vpop.f32.mrb[0].mxu0
  %v4753 = vadd.f32 %v4607, %v4752
  %v4754 = vpop.f32.mrb[0].mxu0
  %4755 = vdwg.mxu0
  %4756 = vmatprep.subr.mxu0 0.0
  %v4757 = vand.u32 %v4176, 4294901760
  %v4758 = vsub.f32 %v4176, %v4757
  %v4759 = vand.u32 %v4758, 4294901760
  %4760 = vmatpush1.msra.mxu0 %v4759
  %4761 = vmatprep.subr.mxu0 0.0
  %4762 = vmatpush1.msra.mxu0 0.0
  %4763 = vmatprep.subr.mxu0 0.0
  %4764 = vmatpush1.msra.mxu0 0.0
  %4765 = vmatprep.subr.mxu0 0.0
  %4766 = vmatpush1.msra.mxu0 0.0
  %4767 = vmatprep.subr.mxu0 0.0
  %4768 = vmatpush1.msra.mxu0 0.0
  %4769 = vmatprep.subr.mxu0 0.0
  %4770 = vmatpush1.msra.mxu0 0.0
  %4771 = vmatprep.subr.mxu0 0.0
  %4772 = vmatpush1.msra.mxu0 0.0
  %4773 = vmatprep.subr.mxu0 0.0
  %4774 = vmatpush1.msra.mxu0 0.0
  %4775 = vmatprep.subr.mxu0 0.0
  %4776 = vmatpush1.msra.mxu0 0.0
  %4777 = vmatprep.subr.mxu0 0.0
  %4778 = vmatpush1.msra.mxu0 0.0
  %4779 = vmatprep.subr.mxu0 0.0
  %4780 = vmatpush1.msra.mxu0 0.0
  %4781 = vmatprep.subr.mxu0 0.0
  %4782 = vmatpush1.msra.mxu0 0.0
  %4783 = vmatprep.subr.mxu0 0.0
  %4784 = vmatpush1.msra.mxu0 0.0
  %4785 = vmatprep.subr.mxu0 0.0
  %4786 = vmatpush1.msra.mxu0 0.0
  %4787 = vmatprep.subr.mxu0 0.0
  %4788 = vmatpush1.msra.mxu0 0.0
  %4789 = vmatprep.subr.mxu0 0.0
  %4790 = vmatpush1.msra.mxu0 0.0
  %4791 = vmatprep.subr.mxu0 0.0
  %4792 = vmatpush1.msra.mxu0 0.0
  %4793 = vmatprep.subr.mxu0 0.0
  %4794 = vmatpush1.msra.mxu0 0.0
  %4795 = vmatprep.subr.mxu0 0.0
  %4796 = vmatpush1.msra.mxu0 0.0
  %4797 = vmatprep.subr.mxu0 0.0
  %4798 = vmatpush1.msra.mxu0 0.0
  %4799 = vmatprep.subr.mxu0 0.0
  %4800 = vmatpush1.msra.mxu0 0.0
  %4801 = vmatprep.subr.mxu0 0.0
  %4802 = vmatpush1.msra.mxu0 0.0
  %4803 = vmatprep.subr.mxu0 0.0
  %4804 = vmatpush1.msra.mxu0 0.0
  %4805 = vmatprep.subr.mxu0 0.0
  %4806 = vmatpush1.msra.mxu0 0.0
  %4807 = vmatprep.subr.mxu0 0.0
  %4808 = vmatpush1.msra.mxu0 0.0
  %4809 = vmatprep.subr.mxu0 0.0
  %4810 = vmatpush1.msra.mxu0 0.0
  %4811 = vmatprep.subr.mxu0 0.0
  %4812 = vmatpush1.msra.mxu0 0.0
  %4813 = vmatprep.subr.mxu0 0.0
  %4814 = vmatpush1.msra.mxu0 0.0
  %4815 = vmatprep.subr.mxu0 0.0
  %4816 = vmatpush1.msra.mxu0 0.0
  %4817 = vmatprep.subr.mxu0 0.0
  %4818 = vmatpush1.msra.mxu0 0.0
  %4819 = vmatprep.subr.mxu0 0.0
  %4820 = vmatpush1.msra.mxu0 0.0
  %4821 = vmatprep.subr.mxu0 0.0
  %4822 = vmatpush1.msra.mxu0 0.0
  %4823 = vmatprep.mubr.f32.mxu0 0.0
  %v4824 = vand.u32 %v2457, 4294901760
  %4825 = vmatmul.mubr.f32.gmra.mrb[0].mxu0 %v4824
  %v4826 = vpop.f32.mrb[0].mxu0
  %v4827 = vadd.f32 %v4681, %v4826
  %v4828 = vpop.f32.mrb[0].mxu0
  %4829 = vmatprep.mubr.f32.mxu0 0.0
  %v4830 = vand.u32 %v2460, 4294901760
  %4831 = vmatmul.mubr.f32.gmra.mrb[0].mxu0 %v4830
  %v4832 = vpop.f32.mrb[0].mxu0
  %v4833 = vadd.f32 %v4689, %v4832
  %v4834 = vpop.f32.mrb[0].mxu0
  %4835 = vmatprep.mubr.f32.mxu0 0.0
  %v4836 = vand.u32 %v2463, 4294901760
  %4837 = vmatmul.mubr.f32.gmra.mrb[0].mxu0 %v4836
  %v4838 = vpop.f32.mrb[0].mxu0
  %v4839 = vadd.f32 %v4697, %v4838
  %v4840 = vpop.f32.mrb[0].mxu0
  %4841 = vmatprep.mubr.f32.mxu0 0.0
  %v4842 = vand.u32 %v2466, 4294901760
  %4843 = vmatmul.mubr.f32.gmra.mrb[0].mxu0 %v4842
  %v4844 = vpop.f32.mrb[0].mxu0
  %v4845 = vadd.f32 %v4705, %v4844
  %v4846 = vpop.f32.mrb[0].mxu0
  %4847 = vmatprep.mubr.f32.mxu0 0.0
  %v4848 = vand.u32 %v2469, 4294901760
  %4849 = vmatmul.mubr.f32.gmra.mrb[0].mxu0 %v4848
  %v4850 = vpop.f32.mrb[0].mxu0
  %v4851 = vadd.f32 %v4713, %v4850
  %v4852 = vpop.f32.mrb[0].mxu0
  %4853 = vmatprep.mubr.f32.mxu0 0.0
  %v4854 = vand.u32 %v2472, 4294901760
  %4855 = vmatmul.mubr.f32.gmra.mrb[0].mxu0 %v4854
  %v4856 = vpop.f32.mrb[0].mxu0
  %v4857 = vadd.f32 %v4721, %v4856
  %v4858 = vpop.f32.mrb[0].mxu0
  %4859 = vmatprep.mubr.f32.mxu0 0.0
  %v4860 = vand.u32 %v2475, 4294901760
  %4861 = vmatmul.mubr.f32.gmra.mrb[0].mxu0 %v4860
  %v4862 = vpop.f32.mrb[0].mxu0
  %v4863 = vadd.f32 %v4729, %v4862
  %v4864 = vpop.f32.mrb[0].mxu0
  %4865 = vmatprep.mubr.f32.mxu0 0.0
  %v4866 = vand.u32 %v2478, 4294901760
  %4867 = vmatmul.mubr.f32.gmra.mrb[0].mxu0 %v4866
  %v4868 = vpop.f32.mrb[0].mxu0
  %v4869 = vadd.f32 %v4737, %v4868
  %v4870 = vpop.f32.mrb[0].mxu0
  %4871 = vmatprep.mubr.f32.mxu0 0.0
  %v4872 = vand.u32 %v2481, 4294901760
  %4873 = vmatmul.mubr.f32.gmra.mrb[0].mxu0 %v4872
  %v4874 = vpop.f32.mrb[0].mxu0
  %v4875 = vadd.f32 %v4745, %v4874
  %v4876 = vpop.f32.mrb[0].mxu0
  %4877 = vmatprep.mubr.f32.mxu0 0.0
  %v4878 = vand.u32 %v2484, 4294901760
  %4879 = vmatmul.mubr.f32.gmra.mrb[0].mxu0 %v4878
  %v4880 = vpop.f32.mrb[0].mxu0
  %v4881 = vadd.f32 %v4753, %v4880
  %v4882 = vpop.f32.mrb[0].mxu0
  %4883 = vdwg.mxu0
  %4884 = vmatprep.subr.mxu0 0.0
  %v4885 = vand.u32 %v4176, 4294901760
  %4886 = vmatpush1.msra.mxu0 %v4885
  %4887 = vmatprep.subr.mxu0 0.0
  %4888 = vmatpush1.msra.mxu0 0.0
  %4889 = vmatprep.subr.mxu0 0.0
  %4890 = vmatpush1.msra.mxu0 0.0
  %4891 = vmatprep.subr.mxu0 0.0
  %4892 = vmatpush1.msra.mxu0 0.0
  %4893 = vmatprep.subr.mxu0 0.0
  %4894 = vmatpush1.msra.mxu0 0.0
  %4895 = vmatprep.subr.mxu0 0.0
  %4896 = vmatpush1.msra.mxu0 0.0
  %4897 = vmatprep.subr.mxu0 0.0
  %4898 = vmatpush1.msra.mxu0 0.0
  %4899 = vmatprep.subr.mxu0 0.0
  %4900 = vmatpush1.msra.mxu0 0.0
  %4901 = vmatprep.subr.mxu0 0.0
  %4902 = vmatpush1.msra.mxu0 0.0
  %4903 = vmatprep.subr.mxu0 0.0
  %4904 = vmatpush1.msra.mxu0 0.0
  %4905 = vmatprep.subr.mxu0 0.0
  %4906 = vmatpush1.msra.mxu0 0.0
  %4907 = vmatprep.subr.mxu0 0.0
  %4908 = vmatpush1.msra.mxu0 0.0
  %4909 = vmatprep.subr.mxu0 0.0
  %4910 = vmatpush1.msra.mxu0 0.0
  %4911 = vmatprep.subr.mxu0 0.0
  %4912 = vmatpush1.msra.mxu0 0.0
  %4913 = vmatprep.subr.mxu0 0.0
  %4914 = vmatpush1.msra.mxu0 0.0
  %4915 = vmatprep.subr.mxu0 0.0
  %4916 = vmatpush1.msra.mxu0 0.0
  %4917 = vmatprep.subr.mxu0 0.0
  %4918 = vmatpush1.msra.mxu0 0.0
  %4919 = vmatprep.subr.mxu0 0.0
  %4920 = vmatpush1.msra.mxu0 0.0
  %4921 = vmatprep.subr.mxu0 0.0
  %4922 = vmatpush1.msra.mxu0 0.0
  %4923 = vmatprep.subr.mxu0 0.0
  %4924 = vmatpush1.msra.mxu0 0.0
  %4925 = vmatprep.subr.mxu0 0.0
  %4926 = vmatpush1.msra.mxu0 0.0
  %4927 = vmatprep.subr.mxu0 0.0
  %4928 = vmatpush1.msra.mxu0 0.0
  %4929 = vmatprep.subr.mxu0 0.0
  %4930 = vmatpush1.msra.mxu0 0.0
  %4931 = vmatprep.subr.mxu0 0.0
  %4932 = vmatpush1.msra.mxu0 0.0
  %4933 = vmatprep.subr.mxu0 0.0
  %4934 = vmatpush1.msra.mxu0 0.0
  %4935 = vmatprep.subr.mxu0 0.0
  %4936 = vmatpush1.msra.mxu0 0.0
  %4937 = vmatprep.subr.mxu0 0.0
  %4938 = vmatpush1.msra.mxu0 0.0
  %4939 = vmatprep.subr.mxu0 0.0
  %4940 = vmatpush1.msra.mxu0 0.0
  %4941 = vmatprep.subr.mxu0 0.0
  %4942 = vmatpush1.msra.mxu0 0.0
  %4943 = vmatprep.subr.mxu0 0.0
  %4944 = vmatpush1.msra.mxu0 0.0
  %4945 = vmatprep.subr.mxu0 0.0
  %4946 = vmatpush1.msra.mxu0 0.0
  %4947 = vmatprep.subr.mxu0 0.0
  %4948 = vmatpush1.msra.mxu0 0.0
  %4949 = vmatprep.mubr.f32.mxu0 0.0
  %v4950 = vand.u32 %v2457, 4294901760
  %4951 = vmatmul.mubr.f32.gmra.mrb[0].mxu0 %v4950
  %v4952 = vpop.f32.mrb[0].mxu0
  %v4953 = vadd.f32 %v4827, %v4952
  %v4954 = vpop.f32.mrb[0].mxu0
  %4955 = vmatprep.mubr.f32.mxu0 0.0
  %v4956 = vand.u32 %v2460, 4294901760
  %4957 = vmatmul.mubr.f32.gmra.mrb[0].mxu0 %v4956
  %v4958 = vpop.f32.mrb[0].mxu0
  %v4959 = vadd.f32 %v4833, %v4958
  %v4960 = vpop.f32.mrb[0].mxu0
  %4961 = vmatprep.mubr.f32.mxu0 0.0
  %v4962 = vand.u32 %v2463, 4294901760
  %4963 = vmatmul.mubr.f32.gmra.mrb[0].mxu0 %v4962
  %v4964 = vpop.f32.mrb[0].mxu0
  %v4965 = vadd.f32 %v4839, %v4964
  %v4966 = vpop.f32.mrb[0].mxu0
  %4967 = vmatprep.mubr.f32.mxu0 0.0
  %v4968 = vand.u32 %v2466, 4294901760
  %4969 = vmatmul.mubr.f32.gmra.mrb[0].mxu0 %v4968
  %v4970 = vpop.f32.mrb[0].mxu0
  %v4971 = vadd.f32 %v4845, %v4970
  %v4972 = vpop.f32.mrb[0].mxu0
  %4973 = vmatprep.mubr.f32.mxu0 0.0
  %v4974 = vand.u32 %v2469, 4294901760
  %4975 = vmatmul.mubr.f32.gmra.mrb[0].mxu0 %v4974
  %v4976 = vpop.f32.mrb[0].mxu0
  %v4977 = vadd.f32 %v4851, %v4976
  %v4978 = vpop.f32.mrb[0].mxu0
  %4979 = vmatprep.mubr.f32.mxu0 0.0
  %v4980 = vand.u32 %v2472, 4294901760
  %4981 = vmatmul.mubr.f32.gmra.mrb[0].mxu0 %v4980
  %v4982 = vpop.f32.mrb[0].mxu0
  %v4983 = vadd.f32 %v4857, %v4982
  %v4984 = vpop.f32.mrb[0].mxu0
  %4985 = vmatprep.mubr.f32.mxu0 0.0
  %v4986 = vand.u32 %v2475, 4294901760
  %4987 = vmatmul.mubr.f32.gmra.mrb[0].mxu0 %v4986
  %v4988 = vpop.f32.mrb[0].mxu0
  %v4989 = vadd.f32 %v4863, %v4988
  %v4990 = vpop.f32.mrb[0].mxu0
  %4991 = vmatprep.mubr.f32.mxu0 0.0
  %v4992 = vand.u32 %v2478, 4294901760
  %4993 = vmatmul.mubr.f32.gmra.mrb[0].mxu0 %v4992
  %v4994 = vpop.f32.mrb[0].mxu0
  %v4995 = vadd.f32 %v4869, %v4994
  %v4996 = vpop.f32.mrb[0].mxu0
  %4997 = vmatprep.mubr.f32.mxu0 0.0
  %v4998 = vand.u32 %v2481, 4294901760
  %4999 = vmatmul.mubr.f32.gmra.mrb[0].mxu0 %v4998
  %v5000 = vpop.f32.mrb[0].mxu0
  %v5001 = vadd.f32 %v4875, %v5000
  %v5002 = vpop.f32.mrb[0].mxu0
  %5003 = vmatprep.mubr.f32.mxu0 0.0
  %v5004 = vand.u32 %v2484, 4294901760
  %5005 = vmatmul.mubr.f32.gmra.mrb[0].mxu0 %v5004
  %v5006 = vpop.f32.mrb[0].mxu0
  %v5007 = vadd.f32 %v4881, %v5006
  %v5008 = vpop.f32.mrb[0].mxu0
  %5009 = vdwg.mxu0
  %5010 = vst.msk [vmem:[%s1967] sm:$0xff] %vm3319, %v4953
  %5011 = vst.msk [vmem:[%s1967 + $0x8] sm:$0xff] %vm3319, %v4959
  %5012 = vst.msk [vmem:[%s1967 + $0x10] sm:$0xff] %vm3319, %v4965
  %5013 = vst.msk [vmem:[%s1967 + $0x18] sm:$0xff] %vm3319, %v4971
  %5014 = vst.msk [vmem:[%s1967 + $0x20] sm:$0xff] %vm3319, %v4977
  %5015 = vst.msk [vmem:[%s1967 + $0x28] sm:$0xff] %vm3319, %v4983
  %5016 = vst.msk [vmem:[%s1967 + $0x30] sm:$0xff] %vm3319, %v4989
  %5017 = vst.msk [vmem:[%s1967 + $0x38] sm:$0xff] %vm3319, %v4995
  %5018 = vst.msk [vmem:[%s1967 + $0x40] sm:$0xff] %vm3319, %v5001
  %5019 = vst.msk [vmem:[%s1967 + $0x48] sm:$0xff] %vm3319, %v5007
  %v5020 = vld [vmem:[%s6] sm:$0xff]
  %v5021 = vld [vmem:[#allocation2] sm:$0xff]
  %v5022 = vld [vmem:[#allocation2 + $0x8] sm:$0xf]
  %5023 = vst.msk [vmem:[#allocation3] sm:$0xff] %vm3319, %v5021
  %vm5024 = vcmask 27648
  %5025 = vst.msk [vmem:[#allocation3 + $0x8] sm:$0xf] %vm5024, %v5022
  %v5026 = vld [vmem:[#allocation2 + $0x28] sm:$0xff]
  %v5027 = vld [vmem:[#allocation2 + $0x30] sm:$0xf]
  %5030 = vrot.lane.b32.xlu0 %v5026, 4
  %v5031 = vpop.permute.xlu0 %5030
  %5032 = vrot.lane.b32.xlu0 %v5027, 4
  %v5033 = vpop.permute.xlu0 %5032
  %vm5036 = vcmask 64544
  %5037 = vst.msk [vmem:[#allocation3] sm:$0xff] %vm5036, %v5031
  %vm5038 = vcmask 60448
  %5039 = vst.msk [vmem:[#allocation3 + $0x8] sm:$0xf] %vm5038, %v5033
  %v5040 = vld [vmem:[#allocation2 + $0x8] sm:$0xff]
  %v5041 = vld [vmem:[#allocation2 + $0x10] sm:$0xf]
  %5044 = vrot.lane.b32.xlu0 %v5040, 8
  %v5045 = vpop.permute.xlu0 %5044
  %5046 = vrot.lane.b32.xlu0 %v5041, 8
  %v5047 = vpop.permute.xlu0 %5046
  %vm5050 = vcmask 97344
  %5051 = vst.msk [vmem:[#allocation3] sm:$0xff] %vm5050, %v5045
  %vm5052 = vcmask 93248
  %5053 = vst.msk [vmem:[#allocation3 + $0x8] sm:$0xf] %vm5052, %v5047
  %v5054 = vld [vmem:[#allocation2 + $0x30] sm:$0xff]
  %v5055 = vld [vmem:[#allocation2 + $0x38] sm:$0xf]
  %5058 = vrot.lane.b32.xlu0 %v5054, 12
  %v5059 = vpop.permute.xlu0 %5058
  %5060 = vrot.lane.b32.xlu0 %v5055, 12
  %v5061 = vpop.permute.xlu0 %5060
  %vm5064 = vcmask 130144
  %5065 = vst.msk [vmem:[#allocation3] sm:$0xff] %vm5064, %v5059
  %vm5066 = vcmask 126048
  %5067 = vst.msk [vmem:[#allocation3 + $0x8] sm:$0xf] %vm5066, %v5061
  %v5068 = vld [vmem:[#allocation2 + $0x10] sm:$0xff]
  %v5069 = vld [vmem:[#allocation2 + $0x18] sm:$0xf]
  %5072 = vrot.lane.b32.xlu0 %v5068, 16
  %v5073 = vpop.permute.xlu0 %5072
  %5074 = vrot.lane.b32.xlu0 %v5069, 16
  %v5075 = vpop.permute.xlu0 %5074
  %vm5078 = vcmask 162944
  %5079 = vst.msk [vmem:[#allocation3] sm:$0xff] %vm5078, %v5073
  %vm5080 = vcmask 158848
  %5081 = vst.msk [vmem:[#allocation3 + $0x8] sm:$0xf] %vm5080, %v5075
  %v5082 = vld [vmem:[#allocation2 + $0x38] sm:$0xff]
  %v5083 = vld [vmem:[#allocation2 + $0x40] sm:$0xf]
  %5086 = vrot.lane.b32.xlu0 %v5082, 20
  %v5087 = vpop.permute.xlu0 %5086
  %5088 = vrot.lane.b32.xlu0 %v5083, 20
  %v5089 = vpop.permute.xlu0 %5088
  %vm5092 = vcmask 195744
  %5093 = vst.msk [vmem:[#allocation3] sm:$0xff] %vm5092, %v5087
  %vm5094 = vcmask 191648
  %5095 = vst.msk [vmem:[#allocation3 + $0x8] sm:$0xf] %vm5094, %v5089
  %v5096 = vld [vmem:[#allocation2 + $0x18] sm:$0xff]
  %v5097 = vld [vmem:[#allocation2 + $0x20] sm:$0xf]
  %5100 = vrot.lane.b32.xlu0 %v5096, 24
  %v5101 = vpop.permute.xlu0 %5100
  %5102 = vrot.lane.b32.xlu0 %v5097, 24
  %v5103 = vpop.permute.xlu0 %5102
  %vm5106 = vcmask 228544
  %5107 = vst.msk [vmem:[#allocation3] sm:$0xff] %vm5106, %v5101
  %vm5108 = vcmask 224448
  %5109 = vst.msk [vmem:[#allocation3 + $0x8] sm:$0xf] %vm5108, %v5103
  %v5110 = vld [vmem:[#allocation2 + $0x40] sm:$0xff]
  %v5111 = vld [vmem:[#allocation2 + $0x48] sm:$0xf]
  %5114 = vrot.lane.b32.xlu0 %v5110, 28
  %v5115 = vpop.permute.xlu0 %5114
  %5116 = vrot.lane.b32.xlu0 %v5111, 28
  %v5117 = vpop.permute.xlu0 %5116
  %vm5120 = vcmask 261344
  %5121 = vst.msk [vmem:[#allocation3] sm:$0xff] %vm5120, %v5115
  %vm5122 = vcmask 257248
  %5123 = vst.msk [vmem:[#allocation3 + $0x8] sm:$0xf] %vm5122, %v5117
  %v5124 = vld [vmem:[%s1327] sm:$0xff]
  %v5125 = vld [vmem:[%s1327 + $0x8] sm:$0xf]
  %5126 = vst.msk [vmem:[#allocation3 + $0xc] sm:$0xff] %vm3319, %v5124
  %5127 = vst.msk [vmem:[#allocation3 + $0x14] sm:$0xf] %vm5024, %v5125
  %v5128 = vld [vmem:[%s1327 + $0x28] sm:$0xff]
  %v5129 = vld [vmem:[%s1327 + $0x30] sm:$0xf]
  %5132 = vrot.lane.b32.xlu0 %v5128, 4
  %v5133 = vpop.permute.xlu0 %5132
  %5134 = vrot.lane.b32.xlu0 %v5129, 4
  %v5135 = vpop.permute.xlu0 %5134
  %5138 = vst.msk [vmem:[#allocation3 + $0xc] sm:$0xff] %vm5036, %v5133
  %5139 = vst.msk [vmem:[#allocation3 + $0x14] sm:$0xf] %vm5038, %v5135
  %v5140 = vld [vmem:[%s1327 + $0x8] sm:$0xff]
  %v5141 = vld [vmem:[%s1327 + $0x10] sm:$0xf]
  %5144 = vrot.lane.b32.xlu0 %v5140, 8
  %v5145 = vpop.permute.xlu0 %5144
  %5146 = vrot.lane.b32.xlu0 %v5141, 8
  %v5147 = vpop.permute.xlu0 %5146
  %5150 = vst.msk [vmem:[#allocation3 + $0xc] sm:$0xff] %vm5050, %v5145
  %5151 = vst.msk [vmem:[#allocation3 + $0x14] sm:$0xf] %vm5052, %v5147
  %v5152 = vld [vmem:[%s1327 + $0x30] sm:$0xff]
  %v5153 = vld [vmem:[%s1327 + $0x38] sm:$0xf]
  %5156 = vrot.lane.b32.xlu0 %v5152, 12
  %v5157 = vpop.permute.xlu0 %5156
  %5158 = vrot.lane.b32.xlu0 %v5153, 12
  %v5159 = vpop.permute.xlu0 %5158
  %5162 = vst.msk [vmem:[#allocation3 + $0xc] sm:$0xff] %vm5064, %v5157
  %5163 = vst.msk [vmem:[#allocation3 + $0x14] sm:$0xf] %vm5066, %v5159
  %v5164 = vld [vmem:[%s1327 + $0x10] sm:$0xff]
  %v5165 = vld [vmem:[%s1327 + $0x18] sm:$0xf]
  %5168 = vrot.lane.b32.xlu0 %v5164, 16
  %v5169 = vpop.permute.xlu0 %5168
  %5170 = vrot.lane.b32.xlu0 %v5165, 16
  %v5171 = vpop.permute.xlu0 %5170
  %5174 = vst.msk [vmem:[#allocation3 + $0xc] sm:$0xff] %vm5078, %v5169
  %5175 = vst.msk [vmem:[#allocation3 + $0x14] sm:$0xf] %vm5080, %v5171
  %v5176 = vld [vmem:[%s1327 + $0x38] sm:$0xff]
  %v5177 = vld [vmem:[%s1327 + $0x40] sm:$0xf]
  %5180 = vrot.lane.b32.xlu0 %v5176, 20
  %v5181 = vpop.permute.xlu0 %5180
  %5182 = vrot.lane.b32.xlu0 %v5177, 20
  %v5183 = vpop.permute.xlu0 %5182
  %5186 = vst.msk [vmem:[#allocation3 + $0xc] sm:$0xff] %vm5092, %v5181
  %5187 = vst.msk [vmem:[#allocation3 + $0x14] sm:$0xf] %vm5094, %v5183
  %v5188 = vld [vmem:[%s1327 + $0x18] sm:$0xff]
  %v5189 = vld [vmem:[%s1327 + $0x20] sm:$0xf]
  %5192 = vrot.lane.b32.xlu0 %v5188, 24
  %v5193 = vpop.permute.xlu0 %5192
  %5194 = vrot.lane.b32.xlu0 %v5189, 24
  %v5195 = vpop.permute.xlu0 %5194
  %5198 = vst.msk [vmem:[#allocation3 + $0xc] sm:$0xff] %vm5106, %v5193
  %5199 = vst.msk [vmem:[#allocation3 + $0x14] sm:$0xf] %vm5108, %v5195
  %v5200 = vld [vmem:[%s1327 + $0x40] sm:$0xff]
  %v5201 = vld [vmem:[%s1327 + $0x48] sm:$0xf]
  %5204 = vrot.lane.b32.xlu0 %v5200, 28
  %v5205 = vpop.permute.xlu0 %5204
  %5206 = vrot.lane.b32.xlu0 %v5201, 28
  %v5207 = vpop.permute.xlu0 %5206
  %5210 = vst.msk [vmem:[#allocation3 + $0xc] sm:$0xff] %vm5120, %v5205
  %5211 = vst.msk [vmem:[#allocation3 + $0x14] sm:$0xf] %vm5122, %v5207
  %v5212 = vld [vmem:[%s1967] sm:$0xff]
  %v5213 = vld [vmem:[%s1967 + $0x8] sm:$0xf]
  %5214 = vst.msk [vmem:[#allocation3 + $0x18] sm:$0xff] %vm3319, %v5212
  %5215 = vst.msk [vmem:[#allocation3 + $0x20] sm:$0xf] %vm5024, %v5213
  %v5216 = vld [vmem:[%s1967 + $0x28] sm:$0xff]
  %v5217 = vld [vmem:[%s1967 + $0x30] sm:$0xf]
  %5220 = vrot.lane.b32.xlu0 %v5216, 4
  %v5221 = vpop.permute.xlu0 %5220
  %5222 = vrot.lane.b32.xlu0 %v5217, 4
  %v5223 = vpop.permute.xlu0 %5222
  %5226 = vst.msk [vmem:[#allocation3 + $0x18] sm:$0xff] %vm5036, %v5221
  %5227 = vst.msk [vmem:[#allocation3 + $0x20] sm:$0xf] %vm5038, %v5223
  %v5228 = vld [vmem:[%s1967 + $0x8] sm:$0xff]
  %v5229 = vld [vmem:[%s1967 + $0x10] sm:$0xf]
  %5232 = vrot.lane.b32.xlu0 %v5228, 8
  %v5233 = vpop.permute.xlu0 %5232
  %5234 = vrot.lane.b32.xlu0 %v5229, 8
  %v5235 = vpop.permute.xlu0 %5234
  %5238 = vst.msk [vmem:[#allocation3 + $0x18] sm:$0xff] %vm5050, %v5233
  %5239 = vst.msk [vmem:[#allocation3 + $0x20] sm:$0xf] %vm5052, %v5235
  %v5240 = vld [vmem:[%s1967 + $0x30] sm:$0xff]
  %v5241 = vld [vmem:[%s1967 + $0x38] sm:$0xf]
  %5244 = vrot.lane.b32.xlu0 %v5240, 12
  %v5245 = vpop.permute.xlu0 %5244
  %5246 = vrot.lane.b32.xlu0 %v5241, 12
  %v5247 = vpop.permute.xlu0 %5246
  %5250 = vst.msk [vmem:[#allocation3 + $0x18] sm:$0xff] %vm5064, %v5245
  %5251 = vst.msk [vmem:[#allocation3 + $0x20] sm:$0xf] %vm5066, %v5247
  %v5252 = vld [vmem:[%s1967 + $0x10] sm:$0xff]
  %v5253 = vld [vmem:[%s1967 + $0x18] sm:$0xf]
  %5256 = vrot.lane.b32.xlu0 %v5252, 16
  %v5257 = vpop.permute.xlu0 %5256
  %5258 = vrot.lane.b32.xlu0 %v5253, 16
  %v5259 = vpop.permute.xlu0 %5258
  %5262 = vst.msk [vmem:[#allocation3 + $0x18] sm:$0xff] %vm5078, %v5257
  %5263 = vst.msk [vmem:[#allocation3 + $0x20] sm:$0xf] %vm5080, %v5259
  %v5264 = vld [vmem:[%s1967 + $0x38] sm:$0xff]
  %v5265 = vld [vmem:[%s1967 + $0x40] sm:$0xf]
  %5268 = vrot.lane.b32.xlu0 %v5264, 20
  %v5269 = vpop.permute.xlu0 %5268
  %5270 = vrot.lane.b32.xlu0 %v5265, 20
  %v5271 = vpop.permute.xlu0 %5270
  %5274 = vst.msk [vmem:[#allocation3 + $0x18] sm:$0xff] %vm5092, %v5269
  %5275 = vst.msk [vmem:[#allocation3 + $0x20] sm:$0xf] %vm5094, %v5271
  %v5276 = vld [vmem:[%s1967 + $0x18] sm:$0xff]
  %v5277 = vld [vmem:[%s1967 + $0x20] sm:$0xf]
  %5280 = vrot.lane.b32.xlu0 %v5276, 24
  %v5281 = vpop.permute.xlu0 %5280
  %5282 = vrot.lane.b32.xlu0 %v5277, 24
  %v5283 = vpop.permute.xlu0 %5282
  %5286 = vst.msk [vmem:[#allocation3 + $0x18] sm:$0xff] %vm5106, %v5281
  %5287 = vst.msk [vmem:[#allocation3 + $0x20] sm:$0xf] %vm5108, %v5283
  %v5288 = vld [vmem:[%s1967 + $0x40] sm:$0xff]
  %v5289 = vld [vmem:[%s1967 + $0x48] sm:$0xf]
  %5292 = vrot.lane.b32.xlu0 %v5288, 28
  %v5293 = vpop.permute.xlu0 %5292
  %5294 = vrot.lane.b32.xlu0 %v5289, 28
  %v5295 = vpop.permute.xlu0 %5294
  %5298 = vst.msk [vmem:[#allocation3 + $0x18] sm:$0xff] %vm5120, %v5293
  %5299 = vst.msk [vmem:[#allocation3 + $0x20] sm:$0xf] %vm5122, %v5295
  %v5300 = vld [vmem:[#allocation3] sm:$0xff]
  %v5301 = vld [vmem:[#allocation3 + $0x8] sm:$0xff]
  %v5302 = vld [vmem:[#allocation3 + $0x10] sm:$0xff]
  %v5303 = vld [vmem:[#allocation3 + $0x18] sm:$0xff]
  %v5304 = vld [vmem:[#allocation3 + $0x20] sm:$0xf]
  %vm5305 = vcmask 293888
  %v5307 = vsel %vm5305, %v5020, 0
  %v5310 = vsel %vm2348, %v5304, 0
  %5312 = vmatprep.subr.mxu0 0.0
  %5313 = vmatpush1.msra.mxu0 %v5300
  %5314 = vmatprep.subr.mxu0 0.0
  %5315 = vmatpush1.msra.mxu0 %v5301
  %5316 = vmatprep.subr.mxu0 0.0
  %5317 = vmatpush1.msra.mxu0 %v5302
  %5318 = vmatprep.subr.mxu0 0.0
  %5319 = vmatpush1.msra.mxu0 %v5303
  %5320 = vmatprep.subr.mxu0 0.0
  %5321 = vmatpush1.msra.mxu0 %v5310
  %5322 = vmatprep.subr.mxu0 0.0
  %5323 = vmatpush1.msra.mxu0 0.0
  %5324 = vmatprep.subr.mxu0 0.0
  %5325 = vmatpush1.msra.mxu0 0.0
  %5326 = vmatprep.subr.mxu0 0.0
  %5327 = vmatpush1.msra.mxu0 0.0
  %5328 = vmatprep.subr.mxu0 0.0
  %5329 = vmatpush1.msra.mxu0 0.0
  %5330 = vmatprep.subr.mxu0 0.0
  %5331 = vmatpush1.msra.mxu0 0.0
  %5332 = vmatprep.subr.mxu0 0.0
  %5333 = vmatpush1.msra.mxu0 0.0
  %5334 = vmatprep.subr.mxu0 0.0
  %5335 = vmatpush1.msra.mxu0 0.0
  %5336 = vmatprep.subr.mxu0 0.0
  %5337 = vmatpush1.msra.mxu0 0.0
  %5338 = vmatprep.subr.mxu0 0.0
  %5339 = vmatpush1.msra.mxu0 0.0
  %5340 = vmatprep.subr.mxu0 0.0
  %5341 = vmatpush1.msra.mxu0 0.0
  %5342 = vmatprep.subr.mxu0 0.0
  %5343 = vmatpush1.msra.mxu0 0.0
  %5344 = vmatprep.subr.mxu0 0.0
  %5345 = vmatpush1.msra.mxu0 0.0
  %5346 = vmatprep.subr.mxu0 0.0
  %5347 = vmatpush1.msra.mxu0 0.0
  %5348 = vmatprep.subr.mxu0 0.0
  %5349 = vmatpush1.msra.mxu0 0.0
  %5350 = vmatprep.subr.mxu0 0.0
  %5351 = vmatpush1.msra.mxu0 0.0
  %5352 = vmatprep.subr.mxu0 0.0
  %5353 = vmatpush1.msra.mxu0 0.0
  %5354 = vmatprep.subr.mxu0 0.0
  %5355 = vmatpush1.msra.mxu0 0.0
  %5356 = vmatprep.subr.mxu0 0.0
  %5357 = vmatpush1.msra.mxu0 0.0
  %5358 = vmatprep.subr.mxu0 0.0
  %5359 = vmatpush1.msra.mxu0 0.0
  %5360 = vmatprep.subr.mxu0 0.0
  %5361 = vmatpush1.msra.mxu0 0.0
  %5362 = vmatprep.subr.mxu0 0.0
  %5363 = vmatpush1.msra.mxu0 0.0
  %5364 = vmatprep.subr.mxu0 0.0
  %5365 = vmatpush1.msra.mxu0 0.0
  %5366 = vmatprep.subr.mxu0 0.0
  %5367 = vmatpush1.msra.mxu0 0.0
  %5368 = vmatprep.subr.mxu0 0.0
  %5369 = vmatpush1.msra.mxu0 0.0
  %5370 = vmatprep.subr.mxu0 0.0
  %5371 = vmatpush1.msra.mxu0 0.0
  %5372 = vmatprep.subr.mxu0 0.0
  %5373 = vmatpush1.msra.mxu0 0.0
  %5374 = vmatprep.subr.mxu0 0.0
  %5375 = vmatpush1.msra.mxu0 0.0
  %5376 = vmatprep.mubr.f32.mxu0 0.0
  %5377 = vmatmul.mubr.f32.gmra.mrb[0].mxu0 %v5307
  %v5378 = vpop.f32.mrb[0].mxu0
  %v5379 = vadd.f32 0.0, %v5378
  %v5380 = vpop.f32.mrb[0].mxu0
  %5381 = vdwg.mxu0
  %vm5382 = vcmask 261120
  %5383 = vst.msk [vmem:[%s9] sm:$0xff] %vm5382, %v5379
  %v5384 = vld [vmem:[%s9] sm:$0xff]
  %v5385 = vsel %vm5382, %v5384, 0.0
  %5386 = vadd.xlane.f32.xlu0 %v5385
  %v5387 = vpop.xlane.xlu0 %5386
  %v5388 = vmul.f32 %v5387, 0.03125
  %v5389 = vsub.f32 %v5384, %v5388
  %v5390 = vmul.f32 %v5389, %v5389
  %v5391 = vsel %vm5382, %v5390, 0.0
  %5392 = vadd.xlane.f32.xlu0 %v5391
  %v5393 = vpop.xlane.xlu0 %5392
  %v5394 = vmul.f32 %v5393, 0.03125
  %v5395 = vld [vmem:[%s7] sm:$0xff]
  %v5396 = vadd.f32 %v5394, 1e-05
  %v5397 = vrsqrt.pop %v5396
  %v5398 = vmul.f32 %v5395, %v5397
  %5400 = vset.pattern.permute.xlu0 0
  %5401 = vperm.xlu0 %5400, %v5398
  %v5402 = vpop.permute.xlu0 %5401
  %v5404 = vmul.f32 %v5389, %v5402
  %v5405 = vld [vmem:[%s8] sm:$0xff]
  %5407 = vset.pattern.permute.xlu0 0
  %5408 = vperm.xlu0 %5407, %v5405
  %v5409 = vpop.permute.xlu0 %5408
  %v5411 = vadd.f32 %v5404, %v5409
  %vm5412 = vcmp.gt.f32.partialorder %v5411, 0.0
  %v5413 = vmul.f32 %v5411, 0.01
  %v5414 = vsel %vm5412, %v5411, %v5413
  %5415 = vst.msk [vmem:[%s9] sm:$0xff] %vm5382, %v5414
  // Predicated region
  $region38: #{img2latent_encoder.1} parent=0 // pred_check
    _
  $region39: #{img2latent_encoder.1} parent=0 // pred_check_branch
    %5417 = sbr.rel (0) target = $region41
  $region40: #{img2latent_encoder.1} parent=0 // pred_region
    _
  $region41: #{img2latent_encoder.1} parent=0 // pred_fallthru
    _
  // Predicated region
  $region42: #{img2latent_encoder.1} parent=0 // pred_check
    _
  $region43: #{img2latent_encoder.1} parent=0 // pred_check_branch
    %5419 = sbr.rel (0) target = $region45
  $region44: #{img2latent_encoder.1} parent=0 // pred_region
    _
  $region45: #{img2latent_encoder.1} parent=0 // pred_fallthru
    _

</llo_original>
